<compile_context>
chip_gen: v6e
topology: v6e:2x2x1
jax: 0.10.0
libtpu: 0.0.40
codegen_flags: <defaults>
</compile_context>

<pallas_src>
import functools

import jax
import jax.numpy as jnp
from jax.experimental import pallas as pl
from jax.experimental.pallas import tpu as pltpu


_TILE_VMEM_BUDGET = 40 * 1024 * 1024   # live bytes per grid step (v7x-safe)


def _vmem_bytes(TH, W, Cin, Cout, pool, out_isz=2):
    """Rough per-step VMEM footprint (double-buffered tiles + in-kernel temps)."""
    bpe = 2                                    # bf16 activations / weights
    x_tile = TH * W * Cin * bpe
    halos = 2 * W * Cin * bpe
    temps = 3 * (TH + 2) * W * Cin * bpe       # xrows + two W-shifted copies
    if pool:
        out_tile = (TH // 2) * (W // 2) * Cout * out_isz
        pool_sc = (TH // 2) * W * Cout * 4     # f32 pool scratch
    else:
        out_tile = TH * W * Cout * out_isz
        pool_sc = 0
    w_bytes = 9 * Cin * Cout * bpe + Cout * 4
    return 2 * (x_tile + halos + out_tile + w_bytes) + temps + pool_sc + (2 << 20)


def _pick_tile_h(H, W, Cin, Cout, pool, max_th):
    """Largest row tile TH <= max_th dividing H (even when pooling) under budget."""
    best = 2 if pool else 1
    for th in range(best, min(H, max_th) + 1):
        if H % th or (pool and th % 2):
            continue
        if _vmem_bytes(th, W, Cin, Cout, pool) > _TILE_VMEM_BUDGET:
            continue
        best = th
    return best


def _pick_chunk_rows(TH, W, pool):
    """Rows per inner matmul chunk: M = rc*W ~ 256 so the (M, Cout) f32
    accumulator stays in vregs instead of spilling to VMEM."""
    target = max(2 if pool else 1, 256 // max(W, 1))
    best = 2 if pool else 1
    for rc in range(best, TH + 1):
        if TH % rc == 0 and rc <= target and not (pool and rc % 2):
            best = rc
    return best


# ----------------------------------------------------------------------------
# Fused 3x3 conv (pad=1, stride=1) + bias + ReLU (+ optional fused 2x2 maxpool)
# ----------------------------------------------------------------------------
def _conv3x3_kernel(x_ref, xup_ref, xdn_ref, w_ref, b_ref, o_ref, *scratch,
                    pool, rc):
    # x_ref:   (1, TH, W, Cin)   bf16 main row tile
    # xup_ref: (1, 1, W, Cin)    row above the tile (clamped; zeroed at h==0)
    # xdn_ref: (1, 1, W, Cin)    row below the tile (clamped; zeroed at last h)
    # w_ref:   (9, Cin, Cout)    bf16 per-tap weights, tap index = dy*3 + dx
    # b_ref:   (1, Cout)         f32 bias
    # o_ref:   (1, TH*W, Cout)   bf16 (no pool)  |  (1, TH//2, W//2, Cout) (pool)
    # scratch: ()                (no pool)       |  (pool_sc: (TH//2, W, Cout) f32)
    _, TH, W, Cin = x_ref.shape
    Cout = o_ref.shape[-1]
    h = pl.program_id(1)
    n_h = pl.num_programs(1)
    dt = x_ref.dtype

    # --- H halo: leading-axis concat (layout preserving, no sublane shift) ---
    zrow = jnp.zeros((1, W, Cin), dt)
    xu = jnp.where(h == 0, zrow, xup_ref[0])
    xd = jnp.where(h == n_h - 1, zrow, xdn_ref[0])
    xrows = jnp.concatenate([xu, x_ref[0], xd], axis=0)        # (TH+2, W, Cin)

    # --- W halo: two sublane-shifted copies (the only relayout per step) -----
    zcol = jnp.zeros((TH + 2, 1, Cin), dt)
    # xs[dx][k, w, :] == input[row h*TH + k - 1, col w + dx - 1, :]  (zero pad)
    xs = (jnp.concatenate([zcol, xrows[:, :W - 1, :]], axis=1),   # dx = 0
          xrows,                                                  # dx = 1
          jnp.concatenate([xrows[:, 1:, :], zcol], axis=1))       # dx = 2

    bias = b_ref[...]                                             # (1, Cout) f32

    n_chunks = TH // rc
    for c in range(n_chunks):                                     # static unroll
        r0 = c * rc
        acc = jnp.zeros((rc * W, Cout), jnp.float32)
        for dy in range(3):
            for dx in range(3):
                patch = xs[dx][r0 + dy:r0 + dy + rc]              # (rc, W, Cin)
                acc = acc + jnp.dot(patch.reshape(rc * W, Cin),
                                    w_ref[dy * 3 + dx],
                                    preferred_element_type=jnp.float32)
        y = jnp.maximum(acc + bias, 0.0)                          # (rc*W, Cout) f32

        if not pool:
            o_ref[0, r0 * W:(r0 + rc) * W, :] = y.astype(o_ref.dtype)
        else:
            # H-direction 2x max in vregs (leading-dim split is layout
            # preserving); chunk rows land in the f32 pool scratch.
            yh = jnp.max(y.reshape(rc // 2, 2, W, Cout), axis=1)  # (rc//2, W, C)
            scratch[0][r0 // 2:(r0 + rc) // 2] = yh

    if pool:
        # W-direction 2x max via documented strided pl.ds ref reads.
        Wh = W // 2
        pool_sc = scratch[0]
        o_ref[0] = jnp.maximum(
            pool_sc[:, pl.ds(0, Wh, stride=2), :],
            pool_sc[:, pl.ds(1, Wh, stride=2), :]).astype(o_ref.dtype)


def conv3x3_bias_relu(x, w_hwio, b, *, pool=False, max_tile_h=16):
    """3x3 conv (stride 1, pad 1) + bias + ReLU (+ optional fused 2x2 maxpool).

    x: (N, H, W, Cin) bf16;  w_hwio: (3, 3, Cin, Cout) f32;  b: (Cout,) f32.
    Returns (N, H, W, Cout) bf16, or (N, H//2, W//2, Cout) bf16 when pool."""
    N, H, W, Cin = x.shape
    Cout = w_hwio.shape[-1]
    if pool:
        assert H % 2 == 0 and W % 2 == 0, "fused 2x2 pool needs even H, W"
    TH = _pick_tile_h(H, W, Cin, Cout, pool, max_tile_h)
    rc = _pick_chunk_rows(TH, W, pool)
    n_h = H // TH

    w_taps = w_hwio.reshape(9, Cin, Cout).astype(jnp.bfloat16)
    b2 = b.reshape(1, Cout).astype(jnp.float32)

    if pool:
        out_shape = jax.ShapeDtypeStruct((N, H // 2, W // 2, Cout), jnp.bfloat16)
        out_spec = pl.BlockSpec((1, TH // 2, W // 2, Cout),
                                lambda n, h: (n, h, 0, 0))
        scratch = [pltpu.VMEM((TH // 2, W, Cout), jnp.float32)]
    else:
        # Flattened (H*W) output -> simple contiguous chunk stores; the outer
        # reshape back to NHWC is metadata-only in XLA.
        out_shape = jax.ShapeDtypeStruct((N, H * W, Cout), jnp.bfloat16)
        out_spec = pl.BlockSpec((1, TH * W, Cout), lambda n, h: (n, h, 0))
        scratch = []

    params = dict(dimension_semantics=("parallel", "parallel"))
    est = _vmem_bytes(TH, W, Cin, Cout, pool)
    if est > 12 * 1024 * 1024:
        # Raise the scoped VMEM limit only when large tiles actually need it
        # (v5e default is ~16 MiB); stay under v7x's 64 MiB physical VMEM.
        params["vmem_limit_bytes"] = min(int(est * 3 // 2), 60 * 1024 * 1024)

    out = pl.pallas_call(
        functools.partial(_conv3x3_kernel, pool=pool, rc=rc),
        out_shape=out_shape,
        grid=(N, n_h),
        in_specs=[
            # main TH-row tile
            pl.BlockSpec((1, TH, W, Cin), lambda n, h: (n, h, 0, 0)),
            # 1-row halo above (block size 1 => row index; clamped, masked in-kernel)
            pl.BlockSpec((1, 1, W, Cin),
                         lambda n, h: (n, jnp.maximum(h * TH - 1, 0), 0, 0)),
            # 1-row halo below (clamped; masked in-kernel on the last tile)
            pl.BlockSpec((1, 1, W, Cin),
                         lambda n, h: (n, jnp.minimum(h * TH + TH, H - 1), 0, 0)),
            # per-tap weights / bias: constant index -> fetched once
            pl.BlockSpec((9, Cin, Cout), lambda n, h: (0, 0, 0)),
            pl.BlockSpec((1, Cout), lambda n, h: (0, 0)),
        ],
        out_specs=out_spec,
        scratch_shapes=scratch,
        compiler_params=pltpu.CompilerParams(**params),
    )(x, x, x, w_taps, b2)

    if not pool:
        out = out.reshape(N, H, W, Cout)
    return out


# ----------------------------------------------------------------------------
# VGGNet.forward equivalent: returns [activation after vgg16.features layer '8']
# ----------------------------------------------------------------------------
@functools.partial(jax.jit, static_argnames=("max_tile_h",))
def vggnet_forward(x_nchw, params, *, max_tile_h=16):
    x = jnp.transpose(x_nchw, (0, 2, 3, 1)).astype(jnp.bfloat16)   # NCHW->NHWC
    x = conv3x3_bias_relu(x, params["w0"], params["b0"],
                          max_tile_h=max_tile_h)                    # layers 0,1
    x = conv3x3_bias_relu(x, params["w2"], params["b2"], pool=True,
                          max_tile_h=max_tile_h)                    # layers 2,3,4
    x = conv3x3_bias_relu(x, params["w5"], params["b5"],
                          max_tile_h=max_tile_h)                    # layers 5,6
    x = conv3x3_bias_relu(x, params["w7"], params["b7"],
                          max_tile_h=max_tile_h)                    # layers 7,8
    # Kernel emits bf16; transpose + f32 cast fuse into a single XLA op.
    feat = jnp.transpose(x, (0, 3, 1, 2)).astype(jnp.float32)       # back to NCHW
    # vgg16.features layers 9..30 run in the torch forward but their outputs
    # are discarded; they do not affect the returned feature.
    return [feat]


# Deterministic synthetic parameters (shapes of the first 4 VGG16 convs).
# TODO(synk): pretrained vgg16 weights (model_zoo.load_url) cannot be loaded
# in-script; replaced with deterministic He-init random parameters.
def init_params(key):
    shapes = {
        "w0": (3, 3, 3, 64),    "b0": (64,),
        "w2": (3, 3, 64, 64),   "b2": (64,),
        "w5": (3, 3, 64, 128),  "b5": (128,),
        "w7": (3, 3, 128, 128), "b7": (128,),
    }
    params = {}
    names = sorted(shapes)
    keys = jax.random.split(key, len(names))
    for k, name in zip(keys, names):
        shp = shapes[name]
        if name.startswith("w"):
            fan_in = shp[0] * shp[1] * shp[2]
            params[name] = jax.random.normal(k, shp, jnp.float32) * (2.0 / fan_in) ** 0.5
        else:
            params[name] = jax.random.normal(k, shp, jnp.float32) * 0.01
    return params


# Pure-JAX reference mirroring the kernel pipeline's bf16-input / f32-accum
# arithmetic (bf16 products are exact in f32, so only summation order differs).
def _ref_forward(x_nchw, params):
    x = jnp.transpose(x_nchw, (0, 2, 3, 1)).astype(jnp.bfloat16)

    def conv(x, w, b):
        y = jax.lax.conv_general_dilated(
            x, w.astype(jnp.bfloat16), (1, 1), "SAME",
            dimension_numbers=("NHWC", "HWIO", "NHWC"),
            preferred_element_type=jnp.float32)
        return jnp.maximum(y + b.astype(jnp.float32), 0.0)

    x = conv(x, params["w0"], params["b0"]).astype(jnp.bfloat16)
    x = conv(x, params["w2"], params["b2"])                      # f32
    x = jax.lax.reduce_window(x, -jnp.inf, jax.lax.max,
                              (1, 2, 2, 1), (1, 2, 2, 1),
                              "VALID").astype(jnp.bfloat16)
    x = conv(x, params["w5"], params["b5"]).astype(jnp.bfloat16)
    x = conv(x, params["w7"], params["b7"]).astype(jnp.bfloat16)  # kernel emits bf16
    return jnp.transpose(x, (0, 3, 1, 2)).astype(jnp.float32)


if __name__ == "__main__":
    key = jax.random.PRNGKey(0)
    pkey, xkey = jax.random.split(key)
    params = init_params(pkey)

    # Small input consistent with the module: NCHW, 3 input channels.
    x = jax.random.normal(xkey, (2, 3, 16, 16), jnp.float32)

    ref = jax.block_until_ready(_ref_forward(x, params))

    # Default tiling.
    feats = vggnet_forward(x, params)
    feats = [jax.block_until_ready(f) for f in feats]
    assert len(feats) == 1
    assert feats[0].shape == (2, 128, 8, 8), feats[0].shape
    assert feats[0].dtype == jnp.float32
    err = float(jnp.max(jnp.abs(feats[0] - ref)))
    assert jnp.allclose(feats[0], ref, rtol=1e-2, atol=1e-2), err

    # Forced small row tile: exercises multi-tile grids, cross-tile halo
    # fetches and the h==0 / h==last masking (review correctness concern).
    feats_small = vggnet_forward(x, params, max_tile_h=4)
    f_small = jax.block_until_ready(feats_small[0])
    err_small = float(jnp.max(jnp.abs(f_small - ref)))
    assert jnp.allclose(f_small, ref, rtol=1e-2, atol=1e-2), err_small

    print("KERNEL_OK")
</pallas_src>

<mosaic_0001>
module attributes {stable_mosaic.version = 11 : i64} {
  func.func @_conv3x3_kernel(%arg0: i32, %arg1: i32, %arg2: memref<1x16x16x3xbf16, #tpu.memory_space<vmem>>, %arg3: memref<1x1x16x3xbf16, #tpu.memory_space<vmem>>, %arg4: memref<1x1x16x3xbf16, #tpu.memory_space<vmem>>, %arg5: memref<9x3x64xbf16, #tpu.memory_space<vmem>>, %arg6: memref<1x64xf32, #tpu.memory_space<vmem>>, %arg7: memref<1x256x64xbf16, #tpu.memory_space<vmem>>) attributes {dimension_semantics = [#tpu.dimension_semantics<parallel>, #tpu.dimension_semantics<parallel>], iteration_bounds = array<i64: 2, 1>, scalar_prefetch = 0 : i64, scratch_operands = 0 : i64, tpu.core_type = #tpu.core_type<tc>, window_params = [{transform_indices = @transform_0, window_bounds = array<i64: 1, 16, 16, 3>}, {transform_indices = @transform_1, window_bounds = array<i64: 1, 1, 16, 3>}, {transform_indices = @transform_2, window_bounds = array<i64: 1, 1, 16, 3>}, {pipeline_mode = #tpu.pipeline_mode<synchronous>, transform_indices = @transform_3, window_bounds = array<i64: 9, 3, 64>}, {pipeline_mode = #tpu.pipeline_mode<synchronous>, transform_indices = @transform_4, window_bounds = array<i64: 1, 64>}, {transform_indices = @transform_5, window_bounds = array<i64: 1, 256, 64>}]} {
    %cst = arith.constant 0.000000e+00 : bf16
    %0 = vector.broadcast %cst : bf16 to vector<1x16x3xbf16>
    %c0_i32 = arith.constant 0 : i32
    %1 = arith.cmpi eq, %arg1, %c0_i32 : i32
    %c0 = arith.constant 0 : index
    %c0_0 = arith.constant 0 : index
    %c0_1 = arith.constant 0 : index
    %c0_2 = arith.constant 0 : index
    %2 = vector.load %arg3[%c0, %c0_0, %c0_1, %c0_2] : memref<1x1x16x3xbf16, #tpu.memory_space<vmem>>, vector<1x1x16x3xbf16>
    %3 = vector.shape_cast %2 : vector<1x1x16x3xbf16> to vector<1x16x3xbf16>
    %4 = arith.select %1, %0, %3 : vector<1x16x3xbf16>
    %c0_i32_3 = arith.constant 0 : i32
    %5 = arith.cmpi eq, %arg1, %c0_i32_3 : i32
    %c0_4 = arith.constant 0 : index
    %c0_5 = arith.constant 0 : index
    %c0_6 = arith.constant 0 : index
    %c0_7 = arith.constant 0 : index
    %6 = vector.load %arg4[%c0_4, %c0_5, %c0_6, %c0_7] : memref<1x1x16x3xbf16, #tpu.memory_space<vmem>>, vector<1x1x16x3xbf16>
    %7 = vector.shape_cast %6 : vector<1x1x16x3xbf16> to vector<1x16x3xbf16>
    %8 = arith.select %5, %0, %7 : vector<1x16x3xbf16>
    %c0_8 = arith.constant 0 : index
    %c0_9 = arith.constant 0 : index
    %c0_10 = arith.constant 0 : index
    %c0_11 = arith.constant 0 : index
    %9 = vector.load %arg2[%c0_8, %c0_9, %c0_10, %c0_11] : memref<1x16x16x3xbf16, #tpu.memory_space<vmem>>, vector<1x16x16x3xbf16>
    %10 = vector.shape_cast %9 : vector<1x16x16x3xbf16> to vector<16x16x3xbf16>
    %11 = tpu.concatenate %4, %10, %8 in 0 : vector<1x16x3xbf16>, vector<16x16x3xbf16>, vector<1x16x3xbf16> -> vector<18x16x3xbf16>
    %cst_12 = arith.constant 0.000000e+00 : bf16
    %12 = vector.broadcast %cst_12 : bf16 to vector<18x1x3xbf16>
    %13 = vector.extract_strided_slice %11 {offsets = [0, 0, 0], sizes = [18, 15, 3], strides = [1, 1, 1]} : vector<18x16x3xbf16> to vector<18x15x3xbf16>
    %14 = tpu.concatenate %12, %13 in 1 : vector<18x1x3xbf16>, vector<18x15x3xbf16> -> vector<18x16x3xbf16>
    %15 = vector.extract_strided_slice %11 {offsets = [0, 1, 0], sizes = [18, 15, 3], strides = [1, 1, 1]} : vector<18x16x3xbf16> to vector<18x15x3xbf16>
    %16 = tpu.concatenate %15, %12 in 1 : vector<18x15x3xbf16>, vector<18x1x3xbf16> -> vector<18x16x3xbf16>
    %c0_13 = arith.constant 0 : index
    %c0_14 = arith.constant 0 : index
    %17 = vector.load %arg6[%c0_13, %c0_14] : memref<1x64xf32, #tpu.memory_space<vmem>>, vector<1x64xf32>
    %cst_15 = arith.constant 0.000000e+00 : f32
    %18 = vector.broadcast %cst_15 : f32 to vector<256x64xf32>
    %19 = vector.extract_strided_slice %14 {offsets = [0, 0, 0], sizes = [16, 16, 3], strides = [1, 1, 1]} : vector<18x16x3xbf16> to vector<16x16x3xbf16>
    %20 = vector.shape_cast %19 : vector<16x16x3xbf16> to vector<256x3xbf16>
    %c0_16 = arith.constant 0 : index
    %c0_17 = arith.constant 0 : index
    %c0_18 = arith.constant 0 : index
    %21 = vector.load %arg5[%c0_16, %c0_17, %c0_18] : memref<9x3x64xbf16, #tpu.memory_space<vmem>>, vector<1x3x64xbf16>
    %22 = vector.shape_cast %21 : vector<1x3x64xbf16> to vector<3x64xbf16>
    %cst_19 = arith.constant dense<0.000000e+00> : vector<256x64xf32>
    %23 = tpu.matmul %20, %22, %cst_19 {dimension_numbers = #tpu.dot_dimension_numbers<[1], [0], [0], [1], [0, 0, 1, 1], [], []>} : vector<256x3xbf16>, vector<3x64xbf16>, vector<256x64xf32> -> vector<256x64xf32>
    %24 = arith.addf %18, %23 : vector<256x64xf32>
    %25 = vector.extract_strided_slice %11 {offsets = [0, 0, 0], sizes = [16, 16, 3], strides = [1, 1, 1]} : vector<18x16x3xbf16> to vector<16x16x3xbf16>
    %26 = vector.shape_cast %25 : vector<16x16x3xbf16> to vector<256x3xbf16>
    %c1 = arith.constant 1 : index
    %c0_20 = arith.constant 0 : index
    %c0_21 = arith.constant 0 : index
    %27 = vector.load %arg5[%c1, %c0_20, %c0_21] : memref<9x3x64xbf16, #tpu.memory_space<vmem>>, vector<1x3x64xbf16>
    %28 = vector.shape_cast %27 : vector<1x3x64xbf16> to vector<3x64xbf16>
    %cst_22 = arith.constant dense<0.000000e+00> : vector<256x64xf32>
    %29 = tpu.matmul %26, %28, %cst_22 {dimension_numbers = #tpu.dot_dimension_numbers<[1], [0], [0], [1], [0, 0, 1, 1], [], []>} : vector<256x3xbf16>, vector<3x64xbf16>, vector<256x64xf32> -> vector<256x64xf32>
    %30 = arith.addf %24, %29 : vector<256x64xf32>
    %31 = vector.extract_strided_slice %16 {offsets = [0, 0, 0], sizes = [16, 16, 3], strides = [1, 1, 1]} : vector<18x16x3xbf16> to vector<16x16x3xbf16>
    %32 = vector.shape_cast %31 : vector<16x16x3xbf16> to vector<256x3xbf16>
    %c2 = arith.constant 2 : index
    %c0_23 = arith.constant 0 : index
    %c0_24 = arith.constant 0 : index
    %33 = vector.load %arg5[%c2, %c0_23, %c0_24] : memref<9x3x64xbf16, #tpu.memory_space<vmem>>, vector<1x3x64xbf16>
    %34 = vector.shape_cast %33 : vector<1x3x64xbf16> to vector<3x64xbf16>
    %cst_25 = arith.constant dense<0.000000e+00> : vector<256x64xf32>
    %35 = tpu.matmul %32, %34, %cst_25 {dimension_numbers = #tpu.dot_dimension_numbers<[1], [0], [0], [1], [0, 0, 1, 1], [], []>} : vector<256x3xbf16>, vector<3x64xbf16>, vector<256x64xf32> -> vector<256x64xf32>
    %36 = arith.addf %30, %35 : vector<256x64xf32>
    %37 = vector.extract_strided_slice %14 {offsets = [1, 0, 0], sizes = [16, 16, 3], strides = [1, 1, 1]} : vector<18x16x3xbf16> to vector<16x16x3xbf16>
    %38 = vector.shape_cast %37 : vector<16x16x3xbf16> to vector<256x3xbf16>
    %c3 = arith.constant 3 : index
    %c0_26 = arith.constant 0 : index
    %c0_27 = arith.constant 0 : index
    %39 = vector.load %arg5[%c3, %c0_26, %c0_27] : memref<9x3x64xbf16, #tpu.memory_space<vmem>>, vector<1x3x64xbf16>
    %40 = vector.shape_cast %39 : vector<1x3x64xbf16> to vector<3x64xbf16>
    %cst_28 = arith.constant dense<0.000000e+00> : vector<256x64xf32>
    %41 = tpu.matmul %38, %40, %cst_28 {dimension_numbers = #tpu.dot_dimension_numbers<[1], [0], [0], [1], [0, 0, 1, 1], [], []>} : vector<256x3xbf16>, vector<3x64xbf16>, vector<256x64xf32> -> vector<256x64xf32>
    %42 = arith.addf %36, %41 : vector<256x64xf32>
    %43 = vector.extract_strided_slice %11 {offsets = [1, 0, 0], sizes = [16, 16, 3], strides = [1, 1, 1]} : vector<18x16x3xbf16> to vector<16x16x3xbf16>
    %44 = vector.shape_cast %43 : vector<16x16x3xbf16> to vector<256x3xbf16>
    %c4 = arith.constant 4 : index
    %c0_29 = arith.constant 0 : index
    %c0_30 = arith.constant 0 : index
    %45 = vector.load %arg5[%c4, %c0_29, %c0_30] : memref<9x3x64xbf16, #tpu.memory_space<vmem>>, vector<1x3x64xbf16>
    %46 = vector.shape_cast %45 : vector<1x3x64xbf16> to vector<3x64xbf16>
    %cst_31 = arith.constant dense<0.000000e+00> : vector<256x64xf32>
    %47 = tpu.matmul %44, %46, %cst_31 {dimension_numbers = #tpu.dot_dimension_numbers<[1], [0], [0], [1], [0, 0, 1, 1], [], []>} : vector<256x3xbf16>, vector<3x64xbf16>, vector<256x64xf32> -> vector<256x64xf32>
    %48 = arith.addf %42, %47 : vector<256x64xf32>
    %49 = vector.extract_strided_slice %16 {offsets = [1, 0, 0], sizes = [16, 16, 3], strides = [1, 1, 1]} : vector<18x16x3xbf16> to vector<16x16x3xbf16>
    %50 = vector.shape_cast %49 : vector<16x16x3xbf16> to vector<256x3xbf16>
    %c5 = arith.constant 5 : index
    %c0_32 = arith.constant 0 : index
    %c0_33 = arith.constant 0 : index
    %51 = vector.load %arg5[%c5, %c0_32, %c0_33] : memref<9x3x64xbf16, #tpu.memory_space<vmem>>, vector<1x3x64xbf16>
    %52 = vector.shape_cast %51 : vector<1x3x64xbf16> to vector<3x64xbf16>
    %cst_34 = arith.constant dense<0.000000e+00> : vector<256x64xf32>
    %53 = tpu.matmul %50, %52, %cst_34 {dimension_numbers = #tpu.dot_dimension_numbers<[1], [0], [0], [1], [0, 0, 1, 1], [], []>} : vector<256x3xbf16>, vector<3x64xbf16>, vector<256x64xf32> -> vector<256x64xf32>
    %54 = arith.addf %48, %53 : vector<256x64xf32>
    %55 = vector.extract_strided_slice %14 {offsets = [2, 0, 0], sizes = [16, 16, 3], strides = [1, 1, 1]} : vector<18x16x3xbf16> to vector<16x16x3xbf16>
    %56 = vector.shape_cast %55 : vector<16x16x3xbf16> to vector<256x3xbf16>
    %c6 = arith.constant 6 : index
    %c0_35 = arith.constant 0 : index
    %c0_36 = arith.constant 0 : index
    %57 = vector.load %arg5[%c6, %c0_35, %c0_36] : memref<9x3x64xbf16, #tpu.memory_space<vmem>>, vector<1x3x64xbf16>
    %58 = vector.shape_cast %57 : vector<1x3x64xbf16> to vector<3x64xbf16>
    %cst_37 = arith.constant dense<0.000000e+00> : vector<256x64xf32>
    %59 = tpu.matmul %56, %58, %cst_37 {dimension_numbers = #tpu.dot_dimension_numbers<[1], [0], [0], [1], [0, 0, 1, 1], [], []>} : vector<256x3xbf16>, vector<3x64xbf16>, vector<256x64xf32> -> vector<256x64xf32>
    %60 = arith.addf %54, %59 : vector<256x64xf32>
    %61 = vector.extract_strided_slice %11 {offsets = [2, 0, 0], sizes = [16, 16, 3], strides = [1, 1, 1]} : vector<18x16x3xbf16> to vector<16x16x3xbf16>
    %62 = vector.shape_cast %61 : vector<16x16x3xbf16> to vector<256x3xbf16>
    %c7 = arith.constant 7 : index
    %c0_38 = arith.constant 0 : index
    %c0_39 = arith.constant 0 : index
    %63 = vector.load %arg5[%c7, %c0_38, %c0_39] : memref<9x3x64xbf16, #tpu.memory_space<vmem>>, vector<1x3x64xbf16>
    %64 = vector.shape_cast %63 : vector<1x3x64xbf16> to vector<3x64xbf16>
    %cst_40 = arith.constant dense<0.000000e+00> : vector<256x64xf32>
    %65 = tpu.matmul %62, %64, %cst_40 {dimension_numbers = #tpu.dot_dimension_numbers<[1], [0], [0], [1], [0, 0, 1, 1], [], []>} : vector<256x3xbf16>, vector<3x64xbf16>, vector<256x64xf32> -> vector<256x64xf32>
    %66 = arith.addf %60, %65 : vector<256x64xf32>
    %67 = vector.extract_strided_slice %16 {offsets = [2, 0, 0], sizes = [16, 16, 3], strides = [1, 1, 1]} : vector<18x16x3xbf16> to vector<16x16x3xbf16>
    %68 = vector.shape_cast %67 : vector<16x16x3xbf16> to vector<256x3xbf16>
    %c8 = arith.constant 8 : index
    %c0_41 = arith.constant 0 : index
    %c0_42 = arith.constant 0 : index
    %69 = vector.load %arg5[%c8, %c0_41, %c0_42] : memref<9x3x64xbf16, #tpu.memory_space<vmem>>, vector<1x3x64xbf16>
    %70 = vector.shape_cast %69 : vector<1x3x64xbf16> to vector<3x64xbf16>
    %cst_43 = arith.constant dense<0.000000e+00> : vector<256x64xf32>
    %71 = tpu.matmul %68, %70, %cst_43 {dimension_numbers = #tpu.dot_dimension_numbers<[1], [0], [0], [1], [0, 0, 1, 1], [], []>} : vector<256x3xbf16>, vector<3x64xbf16>, vector<256x64xf32> -> vector<256x64xf32>
    %72 = arith.addf %66, %71 : vector<256x64xf32>
    %73 = vector.broadcast %17 : vector<1x64xf32> to vector<256x64xf32>
    %74 = arith.addf %72, %73 : vector<256x64xf32>
    %cst_44 = arith.constant 0.000000e+00 : f32
    %75 = vector.broadcast %cst_44 : f32 to vector<256x64xf32>
    %76 = arith.maximumf %74, %75 : vector<256x64xf32>
    %77 = arith.truncf %76 : vector<256x64xf32> to vector<256x64xbf16>
    %c0_45 = arith.constant 0 : index
    %c0_46 = arith.constant 0 : index
    %c0_47 = arith.constant 0 : index
    %78 = vector.load %arg7[%c0_45, %c0_46, %c0_47] : memref<1x256x64xbf16, #tpu.memory_space<vmem>>, vector<1x256x64xbf16>
    %79 = vector.shape_cast %78 : vector<1x256x64xbf16> to vector<256x64xbf16>
    %80 = vector.shape_cast %77 : vector<256x64xbf16> to vector<1x256x64xbf16>
    tpu.vector_store %arg7[%c0_45, %c0_46, %c0_47], %80 {strides = array<i32>} : memref<1x256x64xbf16, #tpu.memory_space<vmem>>, vector<1x256x64xbf16>,
    return
  }
  func.func @transform_0(%arg0: i32, %arg1: i32) -> (i32, i32, i32, i32) {
    %c0_i32 = arith.constant 0 : i32
    %c0_i32_0 = arith.constant 0 : i32
    %c0_i32_1 = arith.constant 0 : i32
    return %arg0, %arg1, %c0_i32, %c0_i32_0 : i32, i32, i32, i32
  }
  func.func @transform_1(%arg0: i32, %arg1: i32) -> (i32, i32, i32, i32) {
    %c16_i32 = arith.constant 16 : i32
    %0 = arith.muli %arg1, %c16_i32 : i32
    %c1_i32 = arith.constant 1 : i32
    %1 = arith.subi %0, %c1_i32 : i32
    %c0_i32 = arith.constant 0 : i32
    %2 = arith.maxsi %1, %c0_i32 : i32
    %c0_i32_0 = arith.constant 0 : i32
    %c0_i32_1 = arith.constant 0 : i32
    %c0_i32_2 = arith.constant 0 : i32
    return %arg0, %2, %c0_i32_0, %c0_i32_1 : i32, i32, i32, i32
  }
  func.func @transform_2(%arg0: i32, %arg1: i32) -> (i32, i32, i32, i32) {
    %c16_i32 = arith.constant 16 : i32
    %0 = arith.muli %arg1, %c16_i32 : i32
    %c16_i32_0 = arith.constant 16 : i32
    %1 = arith.addi %0, %c16_i32_0 : i32
    %c15_i32 = arith.constant 15 : i32
    %2 = arith.minsi %1, %c15_i32 : i32
    %c0_i32 = arith.constant 0 : i32
    %c0_i32_1 = arith.constant 0 : i32
    %c0_i32_2 = arith.constant 0 : i32
    return %arg0, %2, %c0_i32, %c0_i32_1 : i32, i32, i32, i32
  }
  func.func @transform_3(%arg0: i32, %arg1: i32) -> (i32, i32, i32) {
    %c0_i32 = arith.constant 0 : i32
    %c0_i32_0 = arith.constant 0 : i32
    %c0_i32_1 = arith.constant 0 : i32
    %c0_i32_2 = arith.constant 0 : i32
    return %c0_i32, %c0_i32_0, %c0_i32_1 : i32, i32, i32
  }
  func.func @transform_4(%arg0: i32, %arg1: i32) -> (i32, i32) {
    %c0_i32 = arith.constant 0 : i32
    %c0_i32_0 = arith.constant 0 : i32
    %c0_i32_1 = arith.constant 0 : i32
    return %c0_i32, %c0_i32_0 : i32, i32
  }
  func.func @transform_5(%arg0: i32, %arg1: i32) -> (i32, i32, i32) {
    %c0_i32 = arith.constant 0 : i32
    %c0_i32_0 = arith.constant 0 : i32
    return %arg0, %arg1, %c0_i32 : i32, i32, i32
  }
}

module attributes {stable_mosaic.version = 11 : i64} {
  func.func @_conv3x3_kernel(%arg0: i32, %arg1: i32, %arg2: memref<1x16x16x64xbf16, #tpu.memory_space<vmem>>, %arg3: memref<1x1x16x64xbf16, #tpu.memory_space<vmem>>, %arg4: memref<1x1x16x64xbf16, #tpu.memory_space<vmem>>, %arg5: memref<9x64x64xbf16, #tpu.memory_space<vmem>>, %arg6: memref<1x64xf32, #tpu.memory_space<vmem>>, %arg7: memref<1x8x8x64xbf16, #tpu.memory_space<vmem>>, %arg8: memref<8x16x64xf32, #tpu.memory_space<vmem>>) attributes {dimension_semantics = [#tpu.dimension_semantics<parallel>, #tpu.dimension_semantics<parallel>], iteration_bounds = array<i64: 2, 1>, scalar_prefetch = 0 : i64, scratch_operands = 1 : i64, tpu.core_type = #tpu.core_type<tc>, window_params = [{transform_indices = @transform_0, window_bounds = array<i64: 1, 16, 16, 64>}, {transform_indices = @transform_1, window_bounds = array<i64: 1, 1, 16, 64>}, {transform_indices = @transform_2, window_bounds = array<i64: 1, 1, 16, 64>}, {pipeline_mode = #tpu.pipeline_mode<synchronous>, transform_indices = @transform_3, window_bounds = array<i64: 9, 64, 64>}, {pipeline_mode = #tpu.pipeline_mode<synchronous>, transform_indices = @transform_4, window_bounds = array<i64: 1, 64>}, {transform_indices = @transform_5, window_bounds = array<i64: 1, 8, 8, 64>}]} {
    %cst = arith.constant 0.000000e+00 : bf16
    %0 = vector.broadcast %cst : bf16 to vector<1x16x64xbf16>
    %c0_i32 = arith.constant 0 : i32
    %1 = arith.cmpi eq, %arg1, %c0_i32 : i32
    %c0 = arith.constant 0 : index
    %c0_0 = arith.constant 0 : index
    %c0_1 = arith.constant 0 : index
    %c0_2 = arith.constant 0 : index
    %2 = vector.load %arg3[%c0, %c0_0, %c0_1, %c0_2] : memref<1x1x16x64xbf16, #tpu.memory_space<vmem>>, vector<1x1x16x64xbf16>
    %3 = vector.shape_cast %2 : vector<1x1x16x64xbf16> to vector<1x16x64xbf16>
    %4 = arith.select %1, %0, %3 : vector<1x16x64xbf16>
    %c0_i32_3 = arith.constant 0 : i32
    %5 = arith.cmpi eq, %arg1, %c0_i32_3 : i32
    %c0_4 = arith.constant 0 : index
    %c0_5 = arith.constant 0 : index
    %c0_6 = arith.constant 0 : index
    %c0_7 = arith.constant 0 : index
    %6 = vector.load %arg4[%c0_4, %c0_5, %c0_6, %c0_7] : memref<1x1x16x64xbf16, #tpu.memory_space<vmem>>, vector<1x1x16x64xbf16>
    %7 = vector.shape_cast %6 : vector<1x1x16x64xbf16> to vector<1x16x64xbf16>
    %8 = arith.select %5, %0, %7 : vector<1x16x64xbf16>
    %c0_8 = arith.constant 0 : index
    %c0_9 = arith.constant 0 : index
    %c0_10 = arith.constant 0 : index
    %c0_11 = arith.constant 0 : index
    %9 = vector.load %arg2[%c0_8, %c0_9, %c0_10, %c0_11] : memref<1x16x16x64xbf16, #tpu.memory_space<vmem>>, vector<1x16x16x64xbf16>
    %10 = vector.shape_cast %9 : vector<1x16x16x64xbf16> to vector<16x16x64xbf16>
    %11 = tpu.concatenate %4, %10, %8 in 0 : vector<1x16x64xbf16>, vector<16x16x64xbf16>, vector<1x16x64xbf16> -> vector<18x16x64xbf16>
    %cst_12 = arith.constant 0.000000e+00 : bf16
    %12 = vector.broadcast %cst_12 : bf16 to vector<18x1x64xbf16>
    %13 = vector.extract_strided_slice %11 {offsets = [0, 0, 0], sizes = [18, 15, 64], strides = [1, 1, 1]} : vector<18x16x64xbf16> to vector<18x15x64xbf16>
    %14 = tpu.concatenate %12, %13 in 1 : vector<18x1x64xbf16>, vector<18x15x64xbf16> -> vector<18x16x64xbf16>
    %15 = vector.extract_strided_slice %11 {offsets = [0, 1, 0], sizes = [18, 15, 64], strides = [1, 1, 1]} : vector<18x16x64xbf16> to vector<18x15x64xbf16>
    %16 = tpu.concatenate %15, %12 in 1 : vector<18x15x64xbf16>, vector<18x1x64xbf16> -> vector<18x16x64xbf16>
    %c0_13 = arith.constant 0 : index
    %c0_14 = arith.constant 0 : index
    %17 = vector.load %arg6[%c0_13, %c0_14] : memref<1x64xf32, #tpu.memory_space<vmem>>, vector<1x64xf32>
    %cst_15 = arith.constant 0.000000e+00 : f32
    %18 = vector.broadcast %cst_15 : f32 to vector<256x64xf32>
    %19 = vector.extract_strided_slice %14 {offsets = [0, 0, 0], sizes = [16, 16, 64], strides = [1, 1, 1]} : vector<18x16x64xbf16> to vector<16x16x64xbf16>
    %20 = vector.shape_cast %19 : vector<16x16x64xbf16> to vector<256x64xbf16>
    %c0_16 = arith.constant 0 : index
    %c0_17 = arith.constant 0 : index
    %c0_18 = arith.constant 0 : index
    %21 = vector.load %arg5[%c0_16, %c0_17, %c0_18] : memref<9x64x64xbf16, #tpu.memory_space<vmem>>, vector<1x64x64xbf16>
    %22 = vector.shape_cast %21 : vector<1x64x64xbf16> to vector<64x64xbf16>
    %cst_19 = arith.constant dense<0.000000e+00> : vector<256x64xf32>
    %23 = tpu.matmul %20, %22, %cst_19 {dimension_numbers = #tpu.dot_dimension_numbers<[1], [0], [0], [1], [0, 0, 1, 1], [], []>} : vector<256x64xbf16>, vector<64x64xbf16>, vector<256x64xf32> -> vector<256x64xf32>
    %24 = arith.addf %18, %23 : vector<256x64xf32>
    %25 = vector.extract_strided_slice %11 {offsets = [0, 0, 0], sizes = [16, 16, 64], strides = [1, 1, 1]} : vector<18x16x64xbf16> to vector<16x16x64xbf16>
    %26 = vector.shape_cast %25 : vector<16x16x64xbf16> to vector<256x64xbf16>
    %c1 = arith.constant 1 : index
    %c0_20 = arith.constant 0 : index
    %c0_21 = arith.constant 0 : index
    %27 = vector.load %arg5[%c1, %c0_20, %c0_21] : memref<9x64x64xbf16, #tpu.memory_space<vmem>>, vector<1x64x64xbf16>
    %28 = vector.shape_cast %27 : vector<1x64x64xbf16> to vector<64x64xbf16>
    %cst_22 = arith.constant dense<0.000000e+00> : vector<256x64xf32>
    %29 = tpu.matmul %26, %28, %cst_22 {dimension_numbers = #tpu.dot_dimension_numbers<[1], [0], [0], [1], [0, 0, 1, 1], [], []>} : vector<256x64xbf16>, vector<64x64xbf16>, vector<256x64xf32> -> vector<256x64xf32>
    %30 = arith.addf %24, %29 : vector<256x64xf32>
    %31 = vector.extract_strided_slice %16 {offsets = [0, 0, 0], sizes = [16, 16, 64], strides = [1, 1, 1]} : vector<18x16x64xbf16> to vector<16x16x64xbf16>
    %32 = vector.shape_cast %31 : vector<16x16x64xbf16> to vector<256x64xbf16>
    %c2 = arith.constant 2 : index
    %c0_23 = arith.constant 0 : index
    %c0_24 = arith.constant 0 : index
    %33 = vector.load %arg5[%c2, %c0_23, %c0_24] : memref<9x64x64xbf16, #tpu.memory_space<vmem>>, vector<1x64x64xbf16>
    %34 = vector.shape_cast %33 : vector<1x64x64xbf16> to vector<64x64xbf16>
    %cst_25 = arith.constant dense<0.000000e+00> : vector<256x64xf32>
    %35 = tpu.matmul %32, %34, %cst_25 {dimension_numbers = #tpu.dot_dimension_numbers<[1], [0], [0], [1], [0, 0, 1, 1], [], []>} : vector<256x64xbf16>, vector<64x64xbf16>, vector<256x64xf32> -> vector<256x64xf32>
    %36 = arith.addf %30, %35 : vector<256x64xf32>
    %37 = vector.extract_strided_slice %14 {offsets = [1, 0, 0], sizes = [16, 16, 64], strides = [1, 1, 1]} : vector<18x16x64xbf16> to vector<16x16x64xbf16>
    %38 = vector.shape_cast %37 : vector<16x16x64xbf16> to vector<256x64xbf16>
    %c3 = arith.constant 3 : index
    %c0_26 = arith.constant 0 : index
    %c0_27 = arith.constant 0 : index
    %39 = vector.load %arg5[%c3, %c0_26, %c0_27] : memref<9x64x64xbf16, #tpu.memory_space<vmem>>, vector<1x64x64xbf16>
    %40 = vector.shape_cast %39 : vector<1x64x64xbf16> to vector<64x64xbf16>
    %cst_28 = arith.constant dense<0.000000e+00> : vector<256x64xf32>
    %41 = tpu.matmul %38, %40, %cst_28 {dimension_numbers = #tpu.dot_dimension_numbers<[1], [0], [0], [1], [0, 0, 1, 1], [], []>} : vector<256x64xbf16>, vector<64x64xbf16>, vector<256x64xf32> -> vector<256x64xf32>
    %42 = arith.addf %36, %41 : vector<256x64xf32>
    %43 = vector.extract_strided_slice %11 {offsets = [1, 0, 0], sizes = [16, 16, 64], strides = [1, 1, 1]} : vector<18x16x64xbf16> to vector<16x16x64xbf16>
    %44 = vector.shape_cast %43 : vector<16x16x64xbf16> to vector<256x64xbf16>
    %c4 = arith.constant 4 : index
    %c0_29 = arith.constant 0 : index
    %c0_30 = arith.constant 0 : index
    %45 = vector.load %arg5[%c4, %c0_29, %c0_30] : memref<9x64x64xbf16, #tpu.memory_space<vmem>>, vector<1x64x64xbf16>
    %46 = vector.shape_cast %45 : vector<1x64x64xbf16> to vector<64x64xbf16>
    %cst_31 = arith.constant dense<0.000000e+00> : vector<256x64xf32>
    %47 = tpu.matmul %44, %46, %cst_31 {dimension_numbers = #tpu.dot_dimension_numbers<[1], [0], [0], [1], [0, 0, 1, 1], [], []>} : vector<256x64xbf16>, vector<64x64xbf16>, vector<256x64xf32> -> vector<256x64xf32>
    %48 = arith.addf %42, %47 : vector<256x64xf32>
    %49 = vector.extract_strided_slice %16 {offsets = [1, 0, 0], sizes = [16, 16, 64], strides = [1, 1, 1]} : vector<18x16x64xbf16> to vector<16x16x64xbf16>
    %50 = vector.shape_cast %49 : vector<16x16x64xbf16> to vector<256x64xbf16>
    %c5 = arith.constant 5 : index
    %c0_32 = arith.constant 0 : index
    %c0_33 = arith.constant 0 : index
    %51 = vector.load %arg5[%c5, %c0_32, %c0_33] : memref<9x64x64xbf16, #tpu.memory_space<vmem>>, vector<1x64x64xbf16>
    %52 = vector.shape_cast %51 : vector<1x64x64xbf16> to vector<64x64xbf16>
    %cst_34 = arith.constant dense<0.000000e+00> : vector<256x64xf32>
    %53 = tpu.matmul %50, %52, %cst_34 {dimension_numbers = #tpu.dot_dimension_numbers<[1], [0], [0], [1], [0, 0, 1, 1], [], []>} : vector<256x64xbf16>, vector<64x64xbf16>, vector<256x64xf32> -> vector<256x64xf32>
    %54 = arith.addf %48, %53 : vector<256x64xf32>
    %55 = vector.extract_strided_slice %14 {offsets = [2, 0, 0], sizes = [16, 16, 64], strides = [1, 1, 1]} : vector<18x16x64xbf16> to vector<16x16x64xbf16>
    %56 = vector.shape_cast %55 : vector<16x16x64xbf16> to vector<256x64xbf16>
    %c6 = arith.constant 6 : index
    %c0_35 = arith.constant 0 : index
    %c0_36 = arith.constant 0 : index
    %57 = vector.load %arg5[%c6, %c0_35, %c0_36] : memref<9x64x64xbf16, #tpu.memory_space<vmem>>, vector<1x64x64xbf16>
    %58 = vector.shape_cast %57 : vector<1x64x64xbf16> to vector<64x64xbf16>
    %cst_37 = arith.constant dense<0.000000e+00> : vector<256x64xf32>
    %59 = tpu.matmul %56, %58, %cst_37 {dimension_numbers = #tpu.dot_dimension_numbers<[1], [0], [0], [1], [0, 0, 1, 1], [], []>} : vector<256x64xbf16>, vector<64x64xbf16>, vector<256x64xf32> -> vector<256x64xf32>
    %60 = arith.addf %54, %59 : vector<256x64xf32>
    %61 = vector.extract_strided_slice %11 {offsets = [2, 0, 0], sizes = [16, 16, 64], strides = [1, 1, 1]} : vector<18x16x64xbf16> to vector<16x16x64xbf16>
    %62 = vector.shape_cast %61 : vector<16x16x64xbf16> to vector<256x64xbf16>
    %c7 = arith.constant 7 : index
    %c0_38 = arith.constant 0 : index
    %c0_39 = arith.constant 0 : index
    %63 = vector.load %arg5[%c7, %c0_38, %c0_39] : memref<9x64x64xbf16, #tpu.memory_space<vmem>>, vector<1x64x64xbf16>
    %64 = vector.shape_cast %63 : vector<1x64x64xbf16> to vector<64x64xbf16>
    %cst_40 = arith.constant dense<0.000000e+00> : vector<256x64xf32>
    %65 = tpu.matmul %62, %64, %cst_40 {dimension_numbers = #tpu.dot_dimension_numbers<[1], [0], [0], [1], [0, 0, 1, 1], [], []>} : vector<256x64xbf16>, vector<64x64xbf16>, vector<256x64xf32> -> vector<256x64xf32>
    %66 = arith.addf %60, %65 : vector<256x64xf32>
    %67 = vector.extract_strided_slice %16 {offsets = [2, 0, 0], sizes = [16, 16, 64], strides = [1, 1, 1]} : vector<18x16x64xbf16> to vector<16x16x64xbf16>
    %68 = vector.shape_cast %67 : vector<16x16x64xbf16> to vector<256x64xbf16>
    %c8 = arith.constant 8 : index
    %c0_41 = arith.constant 0 : index
    %c0_42 = arith.constant 0 : index
    %69 = vector.load %arg5[%c8, %c0_41, %c0_42] : memref<9x64x64xbf16, #tpu.memory_space<vmem>>, vector<1x64x64xbf16>
    %70 = vector.shape_cast %69 : vector<1x64x64xbf16> to vector<64x64xbf16>
    %cst_43 = arith.constant dense<0.000000e+00> : vector<256x64xf32>
    %71 = tpu.matmul %68, %70, %cst_43 {dimension_numbers = #tpu.dot_dimension_numbers<[1], [0], [0], [1], [0, 0, 1, 1], [], []>} : vector<256x64xbf16>, vector<64x64xbf16>, vector<256x64xf32> -> vector<256x64xf32>
    %72 = arith.addf %66, %71 : vector<256x64xf32>
    %73 = vector.broadcast %17 : vector<1x64xf32> to vector<256x64xf32>
    %74 = arith.addf %72, %73 : vector<256x64xf32>
    %cst_44 = arith.constant 0.000000e+00 : f32
    %75 = vector.broadcast %cst_44 : f32 to vector<256x64xf32>
    %76 = arith.maximumf %74, %75 : vector<256x64xf32>
    %77 = vector.shape_cast %76 : vector<256x64xf32> to vector<8x2x16x64xf32>
    %cst_45 = arith.constant dense<0xFF800000> : vector<8x16x64xf32>
    %78 = vector.multi_reduction <maximumf>, %77, %cst_45 [1] : vector<8x2x16x64xf32> to vector<8x16x64xf32>
    %c0_46 = arith.constant 0 : index
    %c0_47 = arith.constant 0 : index
    %c0_48 = arith.constant 0 : index
    %79 = vector.load %arg8[%c0_46, %c0_47, %c0_48] : memref<8x16x64xf32, #tpu.memory_space<vmem>>, vector<8x16x64xf32>
    tpu.vector_store %arg8[%c0_46, %c0_47, %c0_48], %78 {strides = array<i32>} : memref<8x16x64xf32, #tpu.memory_space<vmem>>, vector<8x16x64xf32>,
    %c0_49 = arith.constant 0 : index
    %c0_50 = arith.constant 0 : index
    %c0_51 = arith.constant 0 : index
    %80 = tpu.strided_load %arg8[%c0_49, %c0_50, %c0_51] {strides = array<i32: 1, 2, 1>} : memref<8x16x64xf32, #tpu.memory_space<vmem>>, vector<8x8x64xf32>
    %c0_52 = arith.constant 0 : index
    %c1_53 = arith.constant 1 : index
    %c0_54 = arith.constant 0 : index
    %81 = tpu.strided_load %arg8[%c0_52, %c1_53, %c0_54] {strides = array<i32: 1, 2, 1>} : memref<8x16x64xf32, #tpu.memory_space<vmem>>, vector<8x8x64xf32>
    %82 = arith.maximumf %80, %81 : vector<8x8x64xf32>
    %83 = arith.truncf %82 : vector<8x8x64xf32> to vector<8x8x64xbf16>
    %c0_55 = arith.constant 0 : index
    %c0_56 = arith.constant 0 : index
    %c0_57 = arith.constant 0 : index
    %c0_58 = arith.constant 0 : index
    %84 = vector.load %arg7[%c0_55, %c0_56, %c0_57, %c0_58] : memref<1x8x8x64xbf16, #tpu.memory_space<vmem>>, vector<1x8x8x64xbf16>
    %85 = vector.shape_cast %84 : vector<1x8x8x64xbf16> to vector<8x8x64xbf16>
    %86 = vector.shape_cast %83 : vector<8x8x64xbf16> to vector<1x8x8x64xbf16>
    tpu.vector_store %arg7[%c0_55, %c0_56, %c0_57, %c0_58], %86 {strides = array<i32>} : memref<1x8x8x64xbf16, #tpu.memory_space<vmem>>, vector<1x8x8x64xbf16>,
    return
  }
  func.func @transform_0(%arg0: i32, %arg1: i32) -> (i32, i32, i32, i32) {
    %c0_i32 = arith.constant 0 : i32
    %c0_i32_0 = arith.constant 0 : i32
    %c0_i32_1 = arith.constant 0 : i32
    return %arg0, %arg1, %c0_i32, %c0_i32_0 : i32, i32, i32, i32
  }
  func.func @transform_1(%arg0: i32, %arg1: i32) -> (i32, i32, i32, i32) {
    %c16_i32 = arith.constant 16 : i32
    %0 = arith.muli %arg1, %c16_i32 : i32
    %c1_i32 = arith.constant 1 : i32
    %1 = arith.subi %0, %c1_i32 : i32
    %c0_i32 = arith.constant 0 : i32
    %2 = arith.maxsi %1, %c0_i32 : i32
    %c0_i32_0 = arith.constant 0 : i32
    %c0_i32_1 = arith.constant 0 : i32
    %c0_i32_2 = arith.constant 0 : i32
    return %arg0, %2, %c0_i32_0, %c0_i32_1 : i32, i32, i32, i32
  }
  func.func @transform_2(%arg0: i32, %arg1: i32) -> (i32, i32, i32, i32) {
    %c16_i32 = arith.constant 16 : i32
    %0 = arith.muli %arg1, %c16_i32 : i32
    %c16_i32_0 = arith.constant 16 : i32
    %1 = arith.addi %0, %c16_i32_0 : i32
    %c15_i32 = arith.constant 15 : i32
    %2 = arith.minsi %1, %c15_i32 : i32
    %c0_i32 = arith.constant 0 : i32
    %c0_i32_1 = arith.constant 0 : i32
    %c0_i32_2 = arith.constant 0 : i32
    return %arg0, %2, %c0_i32, %c0_i32_1 : i32, i32, i32, i32
  }
  func.func @transform_3(%arg0: i32, %arg1: i32) -> (i32, i32, i32) {
    %c0_i32 = arith.constant 0 : i32
    %c0_i32_0 = arith.constant 0 : i32
    %c0_i32_1 = arith.constant 0 : i32
    %c0_i32_2 = arith.constant 0 : i32
    return %c0_i32, %c0_i32_0, %c0_i32_1 : i32, i32, i32
  }
  func.func @transform_4(%arg0: i32, %arg1: i32) -> (i32, i32) {
    %c0_i32 = arith.constant 0 : i32
    %c0_i32_0 = arith.constant 0 : i32
    %c0_i32_1 = arith.constant 0 : i32
    return %c0_i32, %c0_i32_0 : i32, i32
  }
  func.func @transform_5(%arg0: i32, %arg1: i32) -> (i32, i32, i32, i32) {
    %c0_i32 = arith.constant 0 : i32
    %c0_i32_0 = arith.constant 0 : i32
    %c0_i32_1 = arith.constant 0 : i32
    return %arg0, %arg1, %c0_i32, %c0_i32_0 : i32, i32, i32, i32
  }
}

module attributes {stable_mosaic.version = 11 : i64} {
  func.func @_conv3x3_kernel(%arg0: i32, %arg1: i32, %arg2: memref<1x8x8x64xbf16, #tpu.memory_space<vmem>>, %arg3: memref<1x1x8x64xbf16, #tpu.memory_space<vmem>>, %arg4: memref<1x1x8x64xbf16, #tpu.memory_space<vmem>>, %arg5: memref<9x64x128xbf16, #tpu.memory_space<vmem>>, %arg6: memref<1x128xf32, #tpu.memory_space<vmem>>, %arg7: memref<1x64x128xbf16, #tpu.memory_space<vmem>>) attributes {dimension_semantics = [#tpu.dimension_semantics<parallel>, #tpu.dimension_semantics<parallel>], iteration_bounds = array<i64: 2, 1>, scalar_prefetch = 0 : i64, scratch_operands = 0 : i64, tpu.core_type = #tpu.core_type<tc>, window_params = [{transform_indices = @transform_0, window_bounds = array<i64: 1, 8, 8, 64>}, {transform_indices = @transform_1, window_bounds = array<i64: 1, 1, 8, 64>}, {transform_indices = @transform_2, window_bounds = array<i64: 1, 1, 8, 64>}, {pipeline_mode = #tpu.pipeline_mode<synchronous>, transform_indices = @transform_3, window_bounds = array<i64: 9, 64, 128>}, {pipeline_mode = #tpu.pipeline_mode<synchronous>, transform_indices = @transform_4, window_bounds = array<i64: 1, 128>}, {transform_indices = @transform_5, window_bounds = array<i64: 1, 64, 128>}]} {
    %cst = arith.constant 0.000000e+00 : bf16
    %0 = vector.broadcast %cst : bf16 to vector<1x8x64xbf16>
    %c0_i32 = arith.constant 0 : i32
    %1 = arith.cmpi eq, %arg1, %c0_i32 : i32
    %c0 = arith.constant 0 : index
    %c0_0 = arith.constant 0 : index
    %c0_1 = arith.constant 0 : index
    %c0_2 = arith.constant 0 : index
    %2 = vector.load %arg3[%c0, %c0_0, %c0_1, %c0_2] : memref<1x1x8x64xbf16, #tpu.memory_space<vmem>>, vector<1x1x8x64xbf16>
    %3 = vector.shape_cast %2 : vector<1x1x8x64xbf16> to vector<1x8x64xbf16>
    %4 = arith.select %1, %0, %3 : vector<1x8x64xbf16>
    %c0_i32_3 = arith.constant 0 : i32
    %5 = arith.cmpi eq, %arg1, %c0_i32_3 : i32
    %c0_4 = arith.constant 0 : index
    %c0_5 = arith.constant 0 : index
    %c0_6 = arith.constant 0 : index
    %c0_7 = arith.constant 0 : index
    %6 = vector.load %arg4[%c0_4, %c0_5, %c0_6, %c0_7] : memref<1x1x8x64xbf16, #tpu.memory_space<vmem>>, vector<1x1x8x64xbf16>
    %7 = vector.shape_cast %6 : vector<1x1x8x64xbf16> to vector<1x8x64xbf16>
    %8 = arith.select %5, %0, %7 : vector<1x8x64xbf16>
    %c0_8 = arith.constant 0 : index
    %c0_9 = arith.constant 0 : index
    %c0_10 = arith.constant 0 : index
    %c0_11 = arith.constant 0 : index
    %9 = vector.load %arg2[%c0_8, %c0_9, %c0_10, %c0_11] : memref<1x8x8x64xbf16, #tpu.memory_space<vmem>>, vector<1x8x8x64xbf16>
    %10 = vector.shape_cast %9 : vector<1x8x8x64xbf16> to vector<8x8x64xbf16>
    %11 = tpu.concatenate %4, %10, %8 in 0 : vector<1x8x64xbf16>, vector<8x8x64xbf16>, vector<1x8x64xbf16> -> vector<10x8x64xbf16>
    %cst_12 = arith.constant 0.000000e+00 : bf16
    %12 = vector.broadcast %cst_12 : bf16 to vector<10x1x64xbf16>
    %13 = vector.extract_strided_slice %11 {offsets = [0, 0, 0], sizes = [10, 7, 64], strides = [1, 1, 1]} : vector<10x8x64xbf16> to vector<10x7x64xbf16>
    %14 = tpu.concatenate %12, %13 in 1 : vector<10x1x64xbf16>, vector<10x7x64xbf16> -> vector<10x8x64xbf16>
    %15 = vector.extract_strided_slice %11 {offsets = [0, 1, 0], sizes = [10, 7, 64], strides = [1, 1, 1]} : vector<10x8x64xbf16> to vector<10x7x64xbf16>
    %16 = tpu.concatenate %15, %12 in 1 : vector<10x7x64xbf16>, vector<10x1x64xbf16> -> vector<10x8x64xbf16>
    %c0_13 = arith.constant 0 : index
    %c0_14 = arith.constant 0 : index
    %17 = vector.load %arg6[%c0_13, %c0_14] : memref<1x128xf32, #tpu.memory_space<vmem>>, vector<1x128xf32>
    %cst_15 = arith.constant 0.000000e+00 : f32
    %18 = vector.broadcast %cst_15 : f32 to vector<64x128xf32>
    %19 = vector.extract_strided_slice %14 {offsets = [0, 0, 0], sizes = [8, 8, 64], strides = [1, 1, 1]} : vector<10x8x64xbf16> to vector<8x8x64xbf16>
    %20 = vector.shape_cast %19 : vector<8x8x64xbf16> to vector<64x64xbf16>
    %c0_16 = arith.constant 0 : index
    %c0_17 = arith.constant 0 : index
    %c0_18 = arith.constant 0 : index
    %21 = vector.load %arg5[%c0_16, %c0_17, %c0_18] : memref<9x64x128xbf16, #tpu.memory_space<vmem>>, vector<1x64x128xbf16>
    %22 = vector.shape_cast %21 : vector<1x64x128xbf16> to vector<64x128xbf16>
    %cst_19 = arith.constant dense<0.000000e+00> : vector<64x128xf32>
    %23 = tpu.matmul %20, %22, %cst_19 {dimension_numbers = #tpu.dot_dimension_numbers<[1], [0], [0], [1], [0, 0, 1, 1], [], []>} : vector<64x64xbf16>, vector<64x128xbf16>, vector<64x128xf32> -> vector<64x128xf32>
    %24 = arith.addf %18, %23 : vector<64x128xf32>
    %25 = vector.extract_strided_slice %11 {offsets = [0, 0, 0], sizes = [8, 8, 64], strides = [1, 1, 1]} : vector<10x8x64xbf16> to vector<8x8x64xbf16>
    %26 = vector.shape_cast %25 : vector<8x8x64xbf16> to vector<64x64xbf16>
    %c1 = arith.constant 1 : index
    %c0_20 = arith.constant 0 : index
    %c0_21 = arith.constant 0 : index
    %27 = vector.load %arg5[%c1, %c0_20, %c0_21] : memref<9x64x128xbf16, #tpu.memory_space<vmem>>, vector<1x64x128xbf16>
    %28 = vector.shape_cast %27 : vector<1x64x128xbf16> to vector<64x128xbf16>
    %cst_22 = arith.constant dense<0.000000e+00> : vector<64x128xf32>
    %29 = tpu.matmul %26, %28, %cst_22 {dimension_numbers = #tpu.dot_dimension_numbers<[1], [0], [0], [1], [0, 0, 1, 1], [], []>} : vector<64x64xbf16>, vector<64x128xbf16>, vector<64x128xf32> -> vector<64x128xf32>
    %30 = arith.addf %24, %29 : vector<64x128xf32>
    %31 = vector.extract_strided_slice %16 {offsets = [0, 0, 0], sizes = [8, 8, 64], strides = [1, 1, 1]} : vector<10x8x64xbf16> to vector<8x8x64xbf16>
    %32 = vector.shape_cast %31 : vector<8x8x64xbf16> to vector<64x64xbf16>
    %c2 = arith.constant 2 : index
    %c0_23 = arith.constant 0 : index
    %c0_24 = arith.constant 0 : index
    %33 = vector.load %arg5[%c2, %c0_23, %c0_24] : memref<9x64x128xbf16, #tpu.memory_space<vmem>>, vector<1x64x128xbf16>
    %34 = vector.shape_cast %33 : vector<1x64x128xbf16> to vector<64x128xbf16>
    %cst_25 = arith.constant dense<0.000000e+00> : vector<64x128xf32>
    %35 = tpu.matmul %32, %34, %cst_25 {dimension_numbers = #tpu.dot_dimension_numbers<[1], [0], [0], [1], [0, 0, 1, 1], [], []>} : vector<64x64xbf16>, vector<64x128xbf16>, vector<64x128xf32> -> vector<64x128xf32>
    %36 = arith.addf %30, %35 : vector<64x128xf32>
    %37 = vector.extract_strided_slice %14 {offsets = [1, 0, 0], sizes = [8, 8, 64], strides = [1, 1, 1]} : vector<10x8x64xbf16> to vector<8x8x64xbf16>
    %38 = vector.shape_cast %37 : vector<8x8x64xbf16> to vector<64x64xbf16>
    %c3 = arith.constant 3 : index
    %c0_26 = arith.constant 0 : index
    %c0_27 = arith.constant 0 : index
    %39 = vector.load %arg5[%c3, %c0_26, %c0_27] : memref<9x64x128xbf16, #tpu.memory_space<vmem>>, vector<1x64x128xbf16>
    %40 = vector.shape_cast %39 : vector<1x64x128xbf16> to vector<64x128xbf16>
    %cst_28 = arith.constant dense<0.000000e+00> : vector<64x128xf32>
    %41 = tpu.matmul %38, %40, %cst_28 {dimension_numbers = #tpu.dot_dimension_numbers<[1], [0], [0], [1], [0, 0, 1, 1], [], []>} : vector<64x64xbf16>, vector<64x128xbf16>, vector<64x128xf32> -> vector<64x128xf32>
    %42 = arith.addf %36, %41 : vector<64x128xf32>
    %43 = vector.extract_strided_slice %11 {offsets = [1, 0, 0], sizes = [8, 8, 64], strides = [1, 1, 1]} : vector<10x8x64xbf16> to vector<8x8x64xbf16>
    %44 = vector.shape_cast %43 : vector<8x8x64xbf16> to vector<64x64xbf16>
    %c4 = arith.constant 4 : index
    %c0_29 = arith.constant 0 : index
    %c0_30 = arith.constant 0 : index
    %45 = vector.load %arg5[%c4, %c0_29, %c0_30] : memref<9x64x128xbf16, #tpu.memory_space<vmem>>, vector<1x64x128xbf16>
    %46 = vector.shape_cast %45 : vector<1x64x128xbf16> to vector<64x128xbf16>
    %cst_31 = arith.constant dense<0.000000e+00> : vector<64x128xf32>
    %47 = tpu.matmul %44, %46, %cst_31 {dimension_numbers = #tpu.dot_dimension_numbers<[1], [0], [0], [1], [0, 0, 1, 1], [], []>} : vector<64x64xbf16>, vector<64x128xbf16>, vector<64x128xf32> -> vector<64x128xf32>
    %48 = arith.addf %42, %47 : vector<64x128xf32>
    %49 = vector.extract_strided_slice %16 {offsets = [1, 0, 0], sizes = [8, 8, 64], strides = [1, 1, 1]} : vector<10x8x64xbf16> to vector<8x8x64xbf16>
    %50 = vector.shape_cast %49 : vector<8x8x64xbf16> to vector<64x64xbf16>
    %c5 = arith.constant 5 : index
    %c0_32 = arith.constant 0 : index
    %c0_33 = arith.constant 0 : index
    %51 = vector.load %arg5[%c5, %c0_32, %c0_33] : memref<9x64x128xbf16, #tpu.memory_space<vmem>>, vector<1x64x128xbf16>
    %52 = vector.shape_cast %51 : vector<1x64x128xbf16> to vector<64x128xbf16>
    %cst_34 = arith.constant dense<0.000000e+00> : vector<64x128xf32>
    %53 = tpu.matmul %50, %52, %cst_34 {dimension_numbers = #tpu.dot_dimension_numbers<[1], [0], [0], [1], [0, 0, 1, 1], [], []>} : vector<64x64xbf16>, vector<64x128xbf16>, vector<64x128xf32> -> vector<64x128xf32>
    %54 = arith.addf %48, %53 : vector<64x128xf32>
    %55 = vector.extract_strided_slice %14 {offsets = [2, 0, 0], sizes = [8, 8, 64], strides = [1, 1, 1]} : vector<10x8x64xbf16> to vector<8x8x64xbf16>
    %56 = vector.shape_cast %55 : vector<8x8x64xbf16> to vector<64x64xbf16>
    %c6 = arith.constant 6 : index
    %c0_35 = arith.constant 0 : index
    %c0_36 = arith.constant 0 : index
    %57 = vector.load %arg5[%c6, %c0_35, %c0_36] : memref<9x64x128xbf16, #tpu.memory_space<vmem>>, vector<1x64x128xbf16>
    %58 = vector.shape_cast %57 : vector<1x64x128xbf16> to vector<64x128xbf16>
    %cst_37 = arith.constant dense<0.000000e+00> : vector<64x128xf32>
    %59 = tpu.matmul %56, %58, %cst_37 {dimension_numbers = #tpu.dot_dimension_numbers<[1], [0], [0], [1], [0, 0, 1, 1], [], []>} : vector<64x64xbf16>, vector<64x128xbf16>, vector<64x128xf32> -> vector<64x128xf32>
    %60 = arith.addf %54, %59 : vector<64x128xf32>
    %61 = vector.extract_strided_slice %11 {offsets = [2, 0, 0], sizes = [8, 8, 64], strides = [1, 1, 1]} : vector<10x8x64xbf16> to vector<8x8x64xbf16>
    %62 = vector.shape_cast %61 : vector<8x8x64xbf16> to vector<64x64xbf16>
    %c7 = arith.constant 7 : index
    %c0_38 = arith.constant 0 : index
    %c0_39 = arith.constant 0 : index
    %63 = vector.load %arg5[%c7, %c0_38, %c0_39] : memref<9x64x128xbf16, #tpu.memory_space<vmem>>, vector<1x64x128xbf16>
    %64 = vector.shape_cast %63 : vector<1x64x128xbf16> to vector<64x128xbf16>
    %cst_40 = arith.constant dense<0.000000e+00> : vector<64x128xf32>
    %65 = tpu.matmul %62, %64, %cst_40 {dimension_numbers = #tpu.dot_dimension_numbers<[1], [0], [0], [1], [0, 0, 1, 1], [], []>} : vector<64x64xbf16>, vector<64x128xbf16>, vector<64x128xf32> -> vector<64x128xf32>
    %66 = arith.addf %60, %65 : vector<64x128xf32>
    %67 = vector.extract_strided_slice %16 {offsets = [2, 0, 0], sizes = [8, 8, 64], strides = [1, 1, 1]} : vector<10x8x64xbf16> to vector<8x8x64xbf16>
    %68 = vector.shape_cast %67 : vector<8x8x64xbf16> to vector<64x64xbf16>
    %c8 = arith.constant 8 : index
    %c0_41 = arith.constant 0 : index
    %c0_42 = arith.constant 0 : index
    %69 = vector.load %arg5[%c8, %c0_41, %c0_42] : memref<9x64x128xbf16, #tpu.memory_space<vmem>>, vector<1x64x128xbf16>
    %70 = vector.shape_cast %69 : vector<1x64x128xbf16> to vector<64x128xbf16>
    %cst_43 = arith.constant dense<0.000000e+00> : vector<64x128xf32>
    %71 = tpu.matmul %68, %70, %cst_43 {dimension_numbers = #tpu.dot_dimension_numbers<[1], [0], [0], [1], [0, 0, 1, 1], [], []>} : vector<64x64xbf16>, vector<64x128xbf16>, vector<64x128xf32> -> vector<64x128xf32>
    %72 = arith.addf %66, %71 : vector<64x128xf32>
    %73 = vector.broadcast %17 : vector<1x128xf32> to vector<64x128xf32>
    %74 = arith.addf %72, %73 : vector<64x128xf32>
    %cst_44 = arith.constant 0.000000e+00 : f32
    %75 = vector.broadcast %cst_44 : f32 to vector<64x128xf32>
    %76 = arith.maximumf %74, %75 : vector<64x128xf32>
    %77 = arith.truncf %76 : vector<64x128xf32> to vector<64x128xbf16>
    %c0_45 = arith.constant 0 : index
    %c0_46 = arith.constant 0 : index
    %c0_47 = arith.constant 0 : index
    %78 = vector.load %arg7[%c0_45, %c0_46, %c0_47] : memref<1x64x128xbf16, #tpu.memory_space<vmem>>, vector<1x64x128xbf16>
    %79 = vector.shape_cast %78 : vector<1x64x128xbf16> to vector<64x128xbf16>
    %80 = vector.shape_cast %77 : vector<64x128xbf16> to vector<1x64x128xbf16>
    tpu.vector_store %arg7[%c0_45, %c0_46, %c0_47], %80 {strides = array<i32>} : memref<1x64x128xbf16, #tpu.memory_space<vmem>>, vector<1x64x128xbf16>,
    return
  }
  func.func @transform_0(%arg0: i32, %arg1: i32) -> (i32, i32, i32, i32) {
    %c0_i32 = arith.constant 0 : i32
    %c0_i32_0 = arith.constant 0 : i32
    %c0_i32_1 = arith.constant 0 : i32
    return %arg0, %arg1, %c0_i32, %c0_i32_0 : i32, i32, i32, i32
  }
  func.func @transform_1(%arg0: i32, %arg1: i32) -> (i32, i32, i32, i32) {
    %c8_i32 = arith.constant 8 : i32
    %0 = arith.muli %arg1, %c8_i32 : i32
    %c1_i32 = arith.constant 1 : i32
    %1 = arith.subi %0, %c1_i32 : i32
    %c0_i32 = arith.constant 0 : i32
    %2 = arith.maxsi %1, %c0_i32 : i32
    %c0_i32_0 = arith.constant 0 : i32
    %c0_i32_1 = arith.constant 0 : i32
    %c0_i32_2 = arith.constant 0 : i32
    return %arg0, %2, %c0_i32_0, %c0_i32_1 : i32, i32, i32, i32
  }
  func.func @transform_2(%arg0: i32, %arg1: i32) -> (i32, i32, i32, i32) {
    %c8_i32 = arith.constant 8 : i32
    %0 = arith.muli %arg1, %c8_i32 : i32
    %c8_i32_0 = arith.constant 8 : i32
    %1 = arith.addi %0, %c8_i32_0 : i32
    %c7_i32 = arith.constant 7 : i32
    %2 = arith.minsi %1, %c7_i32 : i32
    %c0_i32 = arith.constant 0 : i32
    %c0_i32_1 = arith.constant 0 : i32
    %c0_i32_2 = arith.constant 0 : i32
    return %arg0, %2, %c0_i32, %c0_i32_1 : i32, i32, i32, i32
  }
  func.func @transform_3(%arg0: i32, %arg1: i32) -> (i32, i32, i32) {
    %c0_i32 = arith.constant 0 : i32
    %c0_i32_0 = arith.constant 0 : i32
    %c0_i32_1 = arith.constant 0 : i32
    %c0_i32_2 = arith.constant 0 : i32
    return %c0_i32, %c0_i32_0, %c0_i32_1 : i32, i32, i32
  }
  func.func @transform_4(%arg0: i32, %arg1: i32) -> (i32, i32) {
    %c0_i32 = arith.constant 0 : i32
    %c0_i32_0 = arith.constant 0 : i32
    %c0_i32_1 = arith.constant 0 : i32
    return %c0_i32, %c0_i32_0 : i32, i32
  }
  func.func @transform_5(%arg0: i32, %arg1: i32) -> (i32, i32, i32) {
    %c0_i32 = arith.constant 0 : i32
    %c0_i32_0 = arith.constant 0 : i32
    return %arg0, %arg1, %c0_i32 : i32, i32, i32
  }
}

module attributes {stable_mosaic.version = 11 : i64} {
  func.func @_conv3x3_kernel(%arg0: i32, %arg1: i32, %arg2: memref<1x8x8x128xbf16, #tpu.memory_space<vmem>>, %arg3: memref<1x1x8x128xbf16, #tpu.memory_space<vmem>>, %arg4: memref<1x1x8x128xbf16, #tpu.memory_space<vmem>>, %arg5: memref<9x128x128xbf16, #tpu.memory_space<vmem>>, %arg6: memref<1x128xf32, #tpu.memory_space<vmem>>, %arg7: memref<1x64x128xbf16, #tpu.memory_space<vmem>>) attributes {dimension_semantics = [#tpu.dimension_semantics<parallel>, #tpu.dimension_semantics<parallel>], iteration_bounds = array<i64: 2, 1>, scalar_prefetch = 0 : i64, scratch_operands = 0 : i64, tpu.core_type = #tpu.core_type<tc>, window_params = [{transform_indices = @transform_0, window_bounds = array<i64: 1, 8, 8, 128>}, {transform_indices = @transform_1, window_bounds = array<i64: 1, 1, 8, 128>}, {transform_indices = @transform_2, window_bounds = array<i64: 1, 1, 8, 128>}, {pipeline_mode = #tpu.pipeline_mode<synchronous>, transform_indices = @transform_3, window_bounds = array<i64: 9, 128, 128>}, {pipeline_mode = #tpu.pipeline_mode<synchronous>, transform_indices = @transform_4, window_bounds = array<i64: 1, 128>}, {transform_indices = @transform_5, window_bounds = array<i64: 1, 64, 128>}]} {
    %cst = arith.constant 0.000000e+00 : bf16
    %0 = vector.broadcast %cst : bf16 to vector<1x8x128xbf16>
    %c0_i32 = arith.constant 0 : i32
    %1 = arith.cmpi eq, %arg1, %c0_i32 : i32
    %c0 = arith.constant 0 : index
    %c0_0 = arith.constant 0 : index
    %c0_1 = arith.constant 0 : index
    %c0_2 = arith.constant 0 : index
    %2 = vector.load %arg3[%c0, %c0_0, %c0_1, %c0_2] : memref<1x1x8x128xbf16, #tpu.memory_space<vmem>>, vector<1x1x8x128xbf16>
    %3 = vector.shape_cast %2 : vector<1x1x8x128xbf16> to vector<1x8x128xbf16>
    %4 = arith.select %1, %0, %3 : vector<1x8x128xbf16>
    %c0_i32_3 = arith.constant 0 : i32
    %5 = arith.cmpi eq, %arg1, %c0_i32_3 : i32
    %c0_4 = arith.constant 0 : index
    %c0_5 = arith.constant 0 : index
    %c0_6 = arith.constant 0 : index
    %c0_7 = arith.constant 0 : index
    %6 = vector.load %arg4[%c0_4, %c0_5, %c0_6, %c0_7] : memref<1x1x8x128xbf16, #tpu.memory_space<vmem>>, vector<1x1x8x128xbf16>
    %7 = vector.shape_cast %6 : vector<1x1x8x128xbf16> to vector<1x8x128xbf16>
    %8 = arith.select %5, %0, %7 : vector<1x8x128xbf16>
    %c0_8 = arith.constant 0 : index
    %c0_9 = arith.constant 0 : index
    %c0_10 = arith.constant 0 : index
    %c0_11 = arith.constant 0 : index
    %9 = vector.load %arg2[%c0_8, %c0_9, %c0_10, %c0_11] : memref<1x8x8x128xbf16, #tpu.memory_space<vmem>>, vector<1x8x8x128xbf16>
    %10 = vector.shape_cast %9 : vector<1x8x8x128xbf16> to vector<8x8x128xbf16>
    %11 = tpu.concatenate %4, %10, %8 in 0 : vector<1x8x128xbf16>, vector<8x8x128xbf16>, vector<1x8x128xbf16> -> vector<10x8x128xbf16>
    %cst_12 = arith.constant 0.000000e+00 : bf16
    %12 = vector.broadcast %cst_12 : bf16 to vector<10x1x128xbf16>
    %13 = vector.extract_strided_slice %11 {offsets = [0, 0, 0], sizes = [10, 7, 128], strides = [1, 1, 1]} : vector<10x8x128xbf16> to vector<10x7x128xbf16>
    %14 = tpu.concatenate %12, %13 in 1 : vector<10x1x128xbf16>, vector<10x7x128xbf16> -> vector<10x8x128xbf16>
    %15 = vector.extract_strided_slice %11 {offsets = [0, 1, 0], sizes = [10, 7, 128], strides = [1, 1, 1]} : vector<10x8x128xbf16> to vector<10x7x128xbf16>
    %16 = tpu.concatenate %15, %12 in 1 : vector<10x7x128xbf16>, vector<10x1x128xbf16> -> vector<10x8x128xbf16>
    %c0_13 = arith.constant 0 : index
    %c0_14 = arith.constant 0 : index
    %17 = vector.load %arg6[%c0_13, %c0_14] : memref<1x128xf32, #tpu.memory_space<vmem>>, vector<1x128xf32>
    %cst_15 = arith.constant 0.000000e+00 : f32
    %18 = vector.broadcast %cst_15 : f32 to vector<64x128xf32>
    %19 = vector.extract_strided_slice %14 {offsets = [0, 0, 0], sizes = [8, 8, 128], strides = [1, 1, 1]} : vector<10x8x128xbf16> to vector<8x8x128xbf16>
    %20 = vector.shape_cast %19 : vector<8x8x128xbf16> to vector<64x128xbf16>
    %c0_16 = arith.constant 0 : index
    %c0_17 = arith.constant 0 : index
    %c0_18 = arith.constant 0 : index
    %21 = vector.load %arg5[%c0_16, %c0_17, %c0_18] : memref<9x128x128xbf16, #tpu.memory_space<vmem>>, vector<1x128x128xbf16>
    %22 = vector.shape_cast %21 : vector<1x128x128xbf16> to vector<128x128xbf16>
    %cst_19 = arith.constant dense<0.000000e+00> : vector<64x128xf32>
    %23 = tpu.matmul %20, %22, %cst_19 {dimension_numbers = #tpu.dot_dimension_numbers<[1], [0], [0], [1], [0, 0, 1, 1], [], []>} : vector<64x128xbf16>, vector<128x128xbf16>, vector<64x128xf32> -> vector<64x128xf32>
    %24 = arith.addf %18, %23 : vector<64x128xf32>
    %25 = vector.extract_strided_slice %11 {offsets = [0, 0, 0], sizes = [8, 8, 128], strides = [1, 1, 1]} : vector<10x8x128xbf16> to vector<8x8x128xbf16>
    %26 = vector.shape_cast %25 : vector<8x8x128xbf16> to vector<64x128xbf16>
    %c1 = arith.constant 1 : index
    %c0_20 = arith.constant 0 : index
    %c0_21 = arith.constant 0 : index
    %27 = vector.load %arg5[%c1, %c0_20, %c0_21] : memref<9x128x128xbf16, #tpu.memory_space<vmem>>, vector<1x128x128xbf16>
    %28 = vector.shape_cast %27 : vector<1x128x128xbf16> to vector<128x128xbf16>
    %cst_22 = arith.constant dense<0.000000e+00> : vector<64x128xf32>
    %29 = tpu.matmul %26, %28, %cst_22 {dimension_numbers = #tpu.dot_dimension_numbers<[1], [0], [0], [1], [0, 0, 1, 1], [], []>} : vector<64x128xbf16>, vector<128x128xbf16>, vector<64x128xf32> -> vector<64x128xf32>
    %30 = arith.addf %24, %29 : vector<64x128xf32>
    %31 = vector.extract_strided_slice %16 {offsets = [0, 0, 0], sizes = [8, 8, 128], strides = [1, 1, 1]} : vector<10x8x128xbf16> to vector<8x8x128xbf16>
    %32 = vector.shape_cast %31 : vector<8x8x128xbf16> to vector<64x128xbf16>
    %c2 = arith.constant 2 : index
    %c0_23 = arith.constant 0 : index
    %c0_24 = arith.constant 0 : index
    %33 = vector.load %arg5[%c2, %c0_23, %c0_24] : memref<9x128x128xbf16, #tpu.memory_space<vmem>>, vector<1x128x128xbf16>
    %34 = vector.shape_cast %33 : vector<1x128x128xbf16> to vector<128x128xbf16>
    %cst_25 = arith.constant dense<0.000000e+00> : vector<64x128xf32>
    %35 = tpu.matmul %32, %34, %cst_25 {dimension_numbers = #tpu.dot_dimension_numbers<[1], [0], [0], [1], [0, 0, 1, 1], [], []>} : vector<64x128xbf16>, vector<128x128xbf16>, vector<64x128xf32> -> vector<64x128xf32>
    %36 = arith.addf %30, %35 : vector<64x128xf32>
    %37 = vector.extract_strided_slice %14 {offsets = [1, 0, 0], sizes = [8, 8, 128], strides = [1, 1, 1]} : vector<10x8x128xbf16> to vector<8x8x128xbf16>
    %38 = vector.shape_cast %37 : vector<8x8x128xbf16> to vector<64x128xbf16>
    %c3 = arith.constant 3 : index
    %c0_26 = arith.constant 0 : index
    %c0_27 = arith.constant 0 : index
    %39 = vector.load %arg5[%c3, %c0_26, %c0_27] : memref<9x128x128xbf16, #tpu.memory_space<vmem>>, vector<1x128x128xbf16>
    %40 = vector.shape_cast %39 : vector<1x128x128xbf16> to vector<128x128xbf16>
    %cst_28 = arith.constant dense<0.000000e+00> : vector<64x128xf32>
    %41 = tpu.matmul %38, %40, %cst_28 {dimension_numbers = #tpu.dot_dimension_numbers<[1], [0], [0], [1], [0, 0, 1, 1], [], []>} : vector<64x128xbf16>, vector<128x128xbf16>, vector<64x128xf32> -> vector<64x128xf32>
    %42 = arith.addf %36, %41 : vector<64x128xf32>
    %43 = vector.extract_strided_slice %11 {offsets = [1, 0, 0], sizes = [8, 8, 128], strides = [1, 1, 1]} : vector<10x8x128xbf16> to vector<8x8x128xbf16>
    %44 = vector.shape_cast %43 : vector<8x8x128xbf16> to vector<64x128xbf16>
    %c4 = arith.constant 4 : index
    %c0_29 = arith.constant 0 : index
    %c0_30 = arith.constant 0 : index
    %45 = vector.load %arg5[%c4, %c0_29, %c0_30] : memref<9x128x128xbf16, #tpu.memory_space<vmem>>, vector<1x128x128xbf16>
    %46 = vector.shape_cast %45 : vector<1x128x128xbf16> to vector<128x128xbf16>
    %cst_31 = arith.constant dense<0.000000e+00> : vector<64x128xf32>
    %47 = tpu.matmul %44, %46, %cst_31 {dimension_numbers = #tpu.dot_dimension_numbers<[1], [0], [0], [1], [0, 0, 1, 1], [], []>} : vector<64x128xbf16>, vector<128x128xbf16>, vector<64x128xf32> -> vector<64x128xf32>
    %48 = arith.addf %42, %47 : vector<64x128xf32>
    %49 = vector.extract_strided_slice %16 {offsets = [1, 0, 0], sizes = [8, 8, 128], strides = [1, 1, 1]} : vector<10x8x128xbf16> to vector<8x8x128xbf16>
    %50 = vector.shape_cast %49 : vector<8x8x128xbf16> to vector<64x128xbf16>
    %c5 = arith.constant 5 : index
    %c0_32 = arith.constant 0 : index
    %c0_33 = arith.constant 0 : index
    %51 = vector.load %arg5[%c5, %c0_32, %c0_33] : memref<9x128x128xbf16, #tpu.memory_space<vmem>>, vector<1x128x128xbf16>
    %52 = vector.shape_cast %51 : vector<1x128x128xbf16> to vector<128x128xbf16>
    %cst_34 = arith.constant dense<0.000000e+00> : vector<64x128xf32>
    %53 = tpu.matmul %50, %52, %cst_34 {dimension_numbers = #tpu.dot_dimension_numbers<[1], [0], [0], [1], [0, 0, 1, 1], [], []>} : vector<64x128xbf16>, vector<128x128xbf16>, vector<64x128xf32> -> vector<64x128xf32>
    %54 = arith.addf %48, %53 : vector<64x128xf32>
    %55 = vector.extract_strided_slice %14 {offsets = [2, 0, 0], sizes = [8, 8, 128], strides = [1, 1, 1]} : vector<10x8x128xbf16> to vector<8x8x128xbf16>
    %56 = vector.shape_cast %55 : vector<8x8x128xbf16> to vector<64x128xbf16>
    %c6 = arith.constant 6 : index
    %c0_35 = arith.constant 0 : index
    %c0_36 = arith.constant 0 : index
    %57 = vector.load %arg5[%c6, %c0_35, %c0_36] : memref<9x128x128xbf16, #tpu.memory_space<vmem>>, vector<1x128x128xbf16>
    %58 = vector.shape_cast %57 : vector<1x128x128xbf16> to vector<128x128xbf16>
    %cst_37 = arith.constant dense<0.000000e+00> : vector<64x128xf32>
    %59 = tpu.matmul %56, %58, %cst_37 {dimension_numbers = #tpu.dot_dimension_numbers<[1], [0], [0], [1], [0, 0, 1, 1], [], []>} : vector<64x128xbf16>, vector<128x128xbf16>, vector<64x128xf32> -> vector<64x128xf32>
    %60 = arith.addf %54, %59 : vector<64x128xf32>
    %61 = vector.extract_strided_slice %11 {offsets = [2, 0, 0], sizes = [8, 8, 128], strides = [1, 1, 1]} : vector<10x8x128xbf16> to vector<8x8x128xbf16>
    %62 = vector.shape_cast %61 : vector<8x8x128xbf16> to vector<64x128xbf16>
    %c7 = arith.constant 7 : index
    %c0_38 = arith.constant 0 : index
    %c0_39 = arith.constant 0 : index
    %63 = vector.load %arg5[%c7, %c0_38, %c0_39] : memref<9x128x128xbf16, #tpu.memory_space<vmem>>, vector<1x128x128xbf16>
    %64 = vector.shape_cast %63 : vector<1x128x128xbf16> to vector<128x128xbf16>
    %cst_40 = arith.constant dense<0.000000e+00> : vector<64x128xf32>
    %65 = tpu.matmul %62, %64, %cst_40 {dimension_numbers = #tpu.dot_dimension_numbers<[1], [0], [0], [1], [0, 0, 1, 1], [], []>} : vector<64x128xbf16>, vector<128x128xbf16>, vector<64x128xf32> -> vector<64x128xf32>
    %66 = arith.addf %60, %65 : vector<64x128xf32>
    %67 = vector.extract_strided_slice %16 {offsets = [2, 0, 0], sizes = [8, 8, 128], strides = [1, 1, 1]} : vector<10x8x128xbf16> to vector<8x8x128xbf16>
    %68 = vector.shape_cast %67 : vector<8x8x128xbf16> to vector<64x128xbf16>
    %c8 = arith.constant 8 : index
    %c0_41 = arith.constant 0 : index
    %c0_42 = arith.constant 0 : index
    %69 = vector.load %arg5[%c8, %c0_41, %c0_42] : memref<9x128x128xbf16, #tpu.memory_space<vmem>>, vector<1x128x128xbf16>
    %70 = vector.shape_cast %69 : vector<1x128x128xbf16> to vector<128x128xbf16>
    %cst_43 = arith.constant dense<0.000000e+00> : vector<64x128xf32>
    %71 = tpu.matmul %68, %70, %cst_43 {dimension_numbers = #tpu.dot_dimension_numbers<[1], [0], [0], [1], [0, 0, 1, 1], [], []>} : vector<64x128xbf16>, vector<128x128xbf16>, vector<64x128xf32> -> vector<64x128xf32>
    %72 = arith.addf %66, %71 : vector<64x128xf32>
    %73 = vector.broadcast %17 : vector<1x128xf32> to vector<64x128xf32>
    %74 = arith.addf %72, %73 : vector<64x128xf32>
    %cst_44 = arith.constant 0.000000e+00 : f32
    %75 = vector.broadcast %cst_44 : f32 to vector<64x128xf32>
    %76 = arith.maximumf %74, %75 : vector<64x128xf32>
    %77 = arith.truncf %76 : vector<64x128xf32> to vector<64x128xbf16>
    %c0_45 = arith.constant 0 : index
    %c0_46 = arith.constant 0 : index
    %c0_47 = arith.constant 0 : index
    %78 = vector.load %arg7[%c0_45, %c0_46, %c0_47] : memref<1x64x128xbf16, #tpu.memory_space<vmem>>, vector<1x64x128xbf16>
    %79 = vector.shape_cast %78 : vector<1x64x128xbf16> to vector<64x128xbf16>
    %80 = vector.shape_cast %77 : vector<64x128xbf16> to vector<1x64x128xbf16>
    tpu.vector_store %arg7[%c0_45, %c0_46, %c0_47], %80 {strides = array<i32>} : memref<1x64x128xbf16, #tpu.memory_space<vmem>>, vector<1x64x128xbf16>,
    return
  }
  func.func @transform_0(%arg0: i32, %arg1: i32) -> (i32, i32, i32, i32) {
    %c0_i32 = arith.constant 0 : i32
    %c0_i32_0 = arith.constant 0 : i32
    %c0_i32_1 = arith.constant 0 : i32
    return %arg0, %arg1, %c0_i32, %c0_i32_0 : i32, i32, i32, i32
  }
  func.func @transform_1(%arg0: i32, %arg1: i32) -> (i32, i32, i32, i32) {
    %c8_i32 = arith.constant 8 : i32
    %0 = arith.muli %arg1, %c8_i32 : i32
    %c1_i32 = arith.constant 1 : i32
    %1 = arith.subi %0, %c1_i32 : i32
    %c0_i32 = arith.constant 0 : i32
    %2 = arith.maxsi %1, %c0_i32 : i32
    %c0_i32_0 = arith.constant 0 : i32
    %c0_i32_1 = arith.constant 0 : i32
    %c0_i32_2 = arith.constant 0 : i32
    return %arg0, %2, %c0_i32_0, %c0_i32_1 : i32, i32, i32, i32
  }
  func.func @transform_2(%arg0: i32, %arg1: i32) -> (i32, i32, i32, i32) {
    %c8_i32 = arith.constant 8 : i32
    %0 = arith.muli %arg1, %c8_i32 : i32
    %c8_i32_0 = arith.constant 8 : i32
    %1 = arith.addi %0, %c8_i32_0 : i32
    %c7_i32 = arith.constant 7 : i32
    %2 = arith.minsi %1, %c7_i32 : i32
    %c0_i32 = arith.constant 0 : i32
    %c0_i32_1 = arith.constant 0 : i32
    %c0_i32_2 = arith.constant 0 : i32
    return %arg0, %2, %c0_i32, %c0_i32_1 : i32, i32, i32, i32
  }
  func.func @transform_3(%arg0: i32, %arg1: i32) -> (i32, i32, i32) {
    %c0_i32 = arith.constant 0 : i32
    %c0_i32_0 = arith.constant 0 : i32
    %c0_i32_1 = arith.constant 0 : i32
    %c0_i32_2 = arith.constant 0 : i32
    return %c0_i32, %c0_i32_0, %c0_i32_1 : i32, i32, i32
  }
  func.func @transform_4(%arg0: i32, %arg1: i32) -> (i32, i32) {
    %c0_i32 = arith.constant 0 : i32
    %c0_i32_0 = arith.constant 0 : i32
    %c0_i32_1 = arith.constant 0 : i32
    return %c0_i32, %c0_i32_0 : i32, i32
  }
  func.func @transform_5(%arg0: i32, %arg1: i32) -> (i32, i32, i32) {
    %c0_i32 = arith.constant 0 : i32
    %c0_i32_0 = arith.constant 0 : i32
    return %arg0, %arg1, %c0_i32 : i32, i32, i32
  }
}

</mosaic_0001>

<llo_original>
// kernel: vggnet_forward.4
$region0: #{vggnet_forward.4}
  #allocation0 [shape = 'u32[]', space=smem, size = 0x4, offset = 0x4, fixed_abs, tag = 'smem constant byte address 0x4 - core index']
  #allocation1 [shape = 'u32[144,128]{1,0:T(1,128)}', space=vmem, size = 0x12000, scoped, tag = 'internal scratch']
  %s0 = inlined_call_operand.vmem [shape: bf16[2,16,16,3], index: 0, kind: input, shape index: {}, may-alias: {0,1,2}]
  %s1 = inlined_call_operand.vmem [shape: bf16[2,16,16,3], index: 1, kind: input, shape index: {}, may-alias: {0,1,2}]
  %s2 = inlined_call_operand.vmem [shape: bf16[2,16,16,3], index: 2, kind: input, shape index: {}, may-alias: {0,1,2}]
  %s3 = inlined_call_operand.vmem [shape: bf16[9,3,64], index: 3, kind: input, shape index: {}]
  %s4 = inlined_call_operand.vmem [shape: f32[1,64], index: 4, kind: input, shape index: {}]
  %s5 = inlined_call_operand.vmem [shape: bf16[2,256,64], index: 5, kind: output, shape index: {}]
  %s6 = sld [smem:[#allocation0]]
  $region53: #{vggnet_forward.4} parent=0
    _
  %s8 = ssub.s32 1, %s6
  %s9 = scalar_select 0, %s8, %s6
  loop: start=0, step=1, limit=4
  $region2: #{vggnet_forward.4} parent=0 // loop_pre_header
    _
  $region3: #{vggnet_forward.4} parent=0 // loop_header
    %s11 = sphi 0, %s15
    %p12 = scmp.ge.s32.totalorder %s11, 4
    %s18 = sphi 0, %s30
    %s19 = sphi 0, %s26
    %s20 = sphi 0, %s18
    %s21 = sphi 0, %s19
    %s22 = sphi 0, %s20
    %s23 = sphi 0, %s21
    %s35 = sphi 0, %s37
    %s38 = sphi 0, %s35
    %s39 = sphi 0, %s38
    %s55 = sphi 0, %s39
    %s71 = sphi 0, %s73
    %s74 = sphi 0, %s71
    %s75 = sphi 0, %s74
    %s91 = sphi 0, %s75
    %s107 = sphi 0, %s109
    %s110 = sphi 0, %s107
    %s111 = sphi 0, %s110
    %s127 = sphi 0, %s111
    %s131 = sphi 0, %s131
    %s133 = sphi 0, %s131
    %s134 = sphi 0, %s133
    %s148 = sphi 0, %s134
    %s152 = sphi 0, %s152
    %s154 = sphi 0, %s152
    %s155 = sphi 0, %s154
    %s169 = sphi 0, %s155
    %s177 = sphi 0, %s179
    %s180 = sphi 0, %s177
    %s181 = sphi 0, %s180
    %s197 = sphi 0, %s181
  $region4: #{vggnet_forward.4} parent=0 // loop_header_branch
    %14 = sbr.rel (%p12) target = $region8
  $region5: #{vggnet_forward.4} parent=0 // loop_body
    %s16 = ssub.s32 %s11, 1
    %s17 = ssub.s32 %s11, 2
    %s24 = sadd.s32 1, %s19
    %p25 = scmp.ge.s32.totalorder %s24, 1
    %s26 = scalar_select %p25, 0, %s24
    %s27 = sadd.s32 1, %s18
    %s28 = scalar_select %p25, %s27, %s18
    %p29 = scmp.ge.s32.totalorder %s28, 2
    %s30 = scalar_select %p29, 0, %s28
    %s31 = ssub.s32 %s18, %s30
    %s32 = ssub.s32 %s19, %s26
    %s33 = sor.u32 %s31, %s32
    %p34 = scmp.eq.s32.totalorder %s33, 0
    %s36 = sadd.s32 %s35, 1
    %s37 = scalar_select %p34, %s35, %s36
    %p40 = pneg %p34
    %p41 = scmp.eq.s32.totalorder %s11, 1
    %p42 = por %p40, %p41
    %p43 = scmp.ne.s32.totalorder %s35, %s38
    %p44 = scmp.eq.s32.totalorder %s11, 0
    %p45 = por %p43, %p44
    %p46 = scmp.ne.s32.totalorder %s35, %s38
    %p47 = scmp.eq.s32.totalorder %s16, 1
    %p48 = por %p46, %p47
    %p49 = scmp.ne.s32.totalorder %s38, %s39
    %p50 = scmp.eq.s32.totalorder %s16, 0
    %p51 = por %p49, %p50
    %p52 = scmp.ne.s32.totalorder %s38, %s39
    %p53 = scmp.eq.s32.totalorder %s17, 1
    %p54 = por %p52, %p53
    %p56 = scmp.ne.s32.totalorder %s39, %s55
    %p57 = scmp.eq.s32.totalorder %s17, 0
    %p58 = por %p56, %p57
    %s59 = smul.u32 %s19, 16
    %s60 = ssub.s32 %s59, 1
    %p61 = scmp.gt.s32.totalorder %s60, 0
    %s62 = scalar_select %p61, %s60, 0
    %s63 = smul.u32 %s26, 16
    %s64 = ssub.s32 %s63, 1
    %p65 = scmp.gt.s32.totalorder %s64, 0
    %s66 = scalar_select %p65, %s64, 0
    %s67 = ssub.s32 %s18, %s30
    %s68 = ssub.s32 %s62, %s66
    %s69 = sor.u32 %s67, %s68
    %p70 = scmp.eq.s32.totalorder %s69, 0
    %s72 = sadd.s32 %s71, 1
    %s73 = scalar_select %p70, %s71, %s72
    %p76 = pneg %p70
    %p77 = scmp.eq.s32.totalorder %s11, 1
    %p78 = por %p76, %p77
    %p79 = scmp.ne.s32.totalorder %s71, %s74
    %p80 = scmp.eq.s32.totalorder %s11, 0
    %p81 = por %p79, %p80
    %p82 = scmp.ne.s32.totalorder %s71, %s74
    %p83 = scmp.eq.s32.totalorder %s16, 1
    %p84 = por %p82, %p83
    %p85 = scmp.ne.s32.totalorder %s74, %s75
    %p86 = scmp.eq.s32.totalorder %s16, 0
    %p87 = por %p85, %p86
    %p88 = scmp.ne.s32.totalorder %s74, %s75
    %p89 = scmp.eq.s32.totalorder %s17, 1
    %p90 = por %p88, %p89
    %p92 = scmp.ne.s32.totalorder %s75, %s91
    %p93 = scmp.eq.s32.totalorder %s17, 0
    %p94 = por %p92, %p93
    %s95 = smul.u32 %s19, 16
    %s96 = sadd.s32 %s95, 16
    %p97 = scmp.lt.s32.totalorder %s96, 15
    %s98 = scalar_select %p97, %s96, 15
    %s99 = smul.u32 %s26, 16
    %s100 = sadd.s32 %s99, 16
    %p101 = scmp.lt.s32.totalorder %s100, 15
    %s102 = scalar_select %p101, %s100, 15
    %s103 = ssub.s32 %s18, %s30
    %s104 = ssub.s32 %s98, %s102
    %s105 = sor.u32 %s103, %s104
    %p106 = scmp.eq.s32.totalorder %s105, 0
    %s108 = sadd.s32 %s107, 1
    %s109 = scalar_select %p106, %s107, %s108
    %p112 = pneg %p106
    %p113 = scmp.eq.s32.totalorder %s11, 1
    %p114 = por %p112, %p113
    %p115 = scmp.ne.s32.totalorder %s107, %s110
    %p116 = scmp.eq.s32.totalorder %s11, 0
    %p117 = por %p115, %p116
    %p118 = scmp.ne.s32.totalorder %s107, %s110
    %p119 = scmp.eq.s32.totalorder %s16, 1
    %p120 = por %p118, %p119
    %p121 = scmp.ne.s32.totalorder %s110, %s111
    %p122 = scmp.eq.s32.totalorder %s16, 0
    %p123 = por %p121, %p122
    %p124 = scmp.ne.s32.totalorder %s110, %s111
    %p125 = scmp.eq.s32.totalorder %s17, 1
    %p126 = por %p124, %p125
    %p128 = scmp.ne.s32.totalorder %s111, %s127
    %p129 = scmp.eq.s32.totalorder %s17, 0
    %p130 = por %p128, %p129
    %s132 = sadd.s32 %s131, 1
    %p135 = scmp.eq.s32.totalorder %s11, 1
    %p136 = scmp.ne.s32.totalorder %s131, %s133
    %p137 = scmp.eq.s32.totalorder %s11, 0
    %p138 = por %p136, %p137
    %p139 = scmp.ne.s32.totalorder %s131, %s133
    %p140 = scmp.eq.s32.totalorder %s16, 1
    %p141 = por %p139, %p140
    %p142 = scmp.ne.s32.totalorder %s133, %s134
    %p143 = scmp.eq.s32.totalorder %s16, 0
    %p144 = por %p142, %p143
    %p145 = scmp.ne.s32.totalorder %s133, %s134
    %p146 = scmp.eq.s32.totalorder %s17, 1
    %p147 = por %p145, %p146
    %p149 = scmp.ne.s32.totalorder %s134, %s148
    %p150 = scmp.eq.s32.totalorder %s17, 0
    %p151 = por %p149, %p150
    %s153 = sadd.s32 %s152, 1
    %p156 = scmp.eq.s32.totalorder %s11, 1
    %p157 = scmp.ne.s32.totalorder %s152, %s154
    %p158 = scmp.eq.s32.totalorder %s11, 0
    %p159 = por %p157, %p158
    %p160 = scmp.ne.s32.totalorder %s152, %s154
    %p161 = scmp.eq.s32.totalorder %s16, 1
    %p162 = por %p160, %p161
    %p163 = scmp.ne.s32.totalorder %s154, %s155
    %p164 = scmp.eq.s32.totalorder %s16, 0
    %p165 = por %p163, %p164
    %p166 = scmp.ne.s32.totalorder %s154, %s155
    %p167 = scmp.eq.s32.totalorder %s17, 1
    %p168 = por %p166, %p167
    %p170 = scmp.ne.s32.totalorder %s155, %s169
    %p171 = scmp.eq.s32.totalorder %s17, 0
    %p172 = por %p170, %p171
    %s173 = ssub.s32 %s18, %s30
    %s174 = ssub.s32 %s19, %s26
    %s175 = sor.u32 %s173, %s174
    %p176 = scmp.eq.s32.totalorder %s175, 0
    %s178 = sadd.s32 %s177, 1
    %s179 = scalar_select %p176, %s177, %s178
    %p182 = pneg %p176
    %p183 = scmp.eq.s32.totalorder %s11, 1
    %p184 = por %p182, %p183
    %p185 = scmp.ne.s32.totalorder %s177, %s180
    %p186 = scmp.eq.s32.totalorder %s11, 0
    %p187 = por %p185, %p186
    %p188 = scmp.ne.s32.totalorder %s177, %s180
    %p189 = scmp.eq.s32.totalorder %s16, 1
    %p190 = por %p188, %p189
    %p191 = scmp.ne.s32.totalorder %s180, %s181
    %p192 = scmp.eq.s32.totalorder %s16, 0
    %p193 = por %p191, %p192
    %p194 = scmp.ne.s32.totalorder %s180, %s181
    %p195 = scmp.eq.s32.totalorder %s17, 1
    %p196 = por %p194, %p195
    %p198 = scmp.ne.s32.totalorder %s181, %s197
    %p199 = scmp.eq.s32.totalorder %s17, 0
    %p200 = por %p198, %p199
    %p201 = scmp.le.s32.totalorder 1, %s11
    %p202 = scmp.lt.s32.totalorder %s11, 3
    %p203 = pnand %p201, %p202
    %p204 = pneg %p203
    // Predicated region
    $region9: #{vggnet_forward.4} parent=5 // pred_check
      _
    $region10: #{vggnet_forward.4} parent=5 // pred_check_branch
      %206 = sbr.rel (%p203) target = $region12
    $region11: #{vggnet_forward.4} parent=5 // pred_region
      %s207 = ssub.s32 %s11, 1
      // Predicated region
      $region13: #{vggnet_forward.4} parent=11 // pred_check
        %p208 = pneg %p144
      $region14: #{vggnet_forward.4} parent=11 // pred_check_branch
        %210 = sbr.rel (%p208) target = $region16
      $region15: #{vggnet_forward.4} parent=11 // pred_region
        _
      $region16: #{vggnet_forward.4} parent=11 // pred_fallthru
        _
      // Predicated region
      $region17: #{vggnet_forward.4} parent=11 // pred_check
        %p211 = pneg %p165
      $region18: #{vggnet_forward.4} parent=11 // pred_check_branch
        %213 = sbr.rel (%p211) target = $region20
      $region19: #{vggnet_forward.4} parent=11 // pred_region
        _
      $region20: #{vggnet_forward.4} parent=11 // pred_fallthru
        _
    $region12: #{vggnet_forward.4} parent=5 // pred_fallthru
      _
    %p214 = scmp.lt.s32.totalorder %s11, 2
    // Predicated region
    $region21: #{vggnet_forward.4} parent=5 // pred_check
      %p215 = pneg %p214
    $region22: #{vggnet_forward.4} parent=5 // pred_check_branch
      %217 = sbr.rel (%p215) target = $region24
    $region23: #{vggnet_forward.4} parent=5 // pred_region
      // Predicated region
      $region25: #{vggnet_forward.4} parent=23 // pred_check
        %p218 = pneg %p45
      $region26: #{vggnet_forward.4} parent=23 // pred_check_branch
        %220 = sbr.rel (%p218) target = $region28
      $region27: #{vggnet_forward.4} parent=23 // pred_region
        %s221 = smul.u32 16, %s19
        %p222 = scmp.lt.s32.totalorder %s18, 1
        %s223 = scalar_select %p222, %s18, 1
        %p224 = scmp.lt.s32.totalorder %s221, 15
        %s225 = scalar_select %p224, %s221, 15
        %s226 = smul.addr %s225, 2
        %s227 = smul.addr %s223, 32
        %s228 = sadd.s32 %s226, %s227
        %s229 = smul.addr %s228, 4
        %s230 = scalar_lea.vmem %s0, %s229
        %s231 = smul.u32 16, %s19
      $region28: #{vggnet_forward.4} parent=23 // pred_fallthru
        _
      // Predicated region
      $region29: #{vggnet_forward.4} parent=23 // pred_check
        %p232 = pneg %p81
      $region30: #{vggnet_forward.4} parent=23 // pred_check_branch
        %234 = sbr.rel (%p232) target = $region32
      $region31: #{vggnet_forward.4} parent=23 // pred_region
        %s235 = smul.u32 %s19, 16
        %s236 = ssub.s32 %s235, 1
        %p237 = scmp.gt.s32.totalorder %s236, 0
        %s238 = scalar_select %p237, %s236, 0
        %p239 = scmp.lt.s32.totalorder %s18, 1
        %s240 = scalar_select %p239, %s18, 1
        %p241 = scmp.lt.s32.totalorder %s238, 15
        %s242 = scalar_select %p241, %s238, 15
        %s243 = smul.addr %s242, 2
        %s244 = smul.addr %s240, 32
        %s245 = sadd.s32 %s243, %s244
        %s246 = smul.addr %s245, 4
        %s247 = scalar_lea.vmem %s1, %s246
        %s248 = smul.u32 %s19, 16
        %s249 = ssub.s32 %s248, 1
        %p250 = scmp.gt.s32.totalorder %s249, 0
        %s251 = scalar_select %p250, %s249, 0
      $region32: #{vggnet_forward.4} parent=23 // pred_fallthru
        _
      // Predicated region
      $region33: #{vggnet_forward.4} parent=23 // pred_check
        %p252 = pneg %p117
      $region34: #{vggnet_forward.4} parent=23 // pred_check_branch
        %254 = sbr.rel (%p252) target = $region36
      $region35: #{vggnet_forward.4} parent=23 // pred_region
        %s255 = smul.u32 %s19, 16
        %s256 = sadd.s32 %s255, 16
        %p257 = scmp.lt.s32.totalorder %s256, 15
        %s258 = scalar_select %p257, %s256, 15
        %p259 = scmp.lt.s32.totalorder %s18, 1
        %s260 = scalar_select %p259, %s18, 1
        %p261 = scmp.lt.s32.totalorder %s258, 15
        %s262 = scalar_select %p261, %s258, 15
        %s263 = smul.addr %s262, 2
        %s264 = smul.addr %s260, 32
        %s265 = sadd.s32 %s263, %s264
        %s266 = smul.addr %s265, 4
        %s267 = scalar_lea.vmem %s2, %s266
        %s268 = smul.u32 %s19, 16
        %s269 = sadd.s32 %s268, 16
        %p270 = scmp.lt.s32.totalorder %s269, 15
        %s271 = scalar_select %p270, %s269, 15
      $region36: #{vggnet_forward.4} parent=23 // pred_fallthru
        _
    $region24: #{vggnet_forward.4} parent=5 // pred_fallthru
      _
    %p272 = scmp.le.s32.totalorder 1, %s11
    %p273 = scmp.lt.s32.totalorder %s11, 3
    %p274 = pnand %p272, %p273
    %p275 = pneg %p274
    // Predicated region
    $region37: #{vggnet_forward.4} parent=5 // pred_check
      _
    $region38: #{vggnet_forward.4} parent=5 // pred_check_branch
      %277 = sbr.rel (%p274) target = $region40
    $region39: #{vggnet_forward.4} parent=5 // pred_region
      %s278 = ssub.s32 %s11, 1
      %s279 = smul.u32 16, %s21
      %p280 = scmp.lt.s32.totalorder %s20, 1
      %s281 = scalar_select %p280, %s20, 1
      %p282 = scmp.lt.s32.totalorder %s279, 15
      %s283 = scalar_select %p282, %s279, 15
      %s284 = smul.addr %s283, 2
      %s285 = smul.addr %s281, 32
      %s286 = sadd.s32 %s284, %s285
      %s287 = smul.addr %s286, 4
      %s288 = scalar_lea.vmem %s0, %s287
      %p289 = pneg %p51
      %p290 = pneg %p48
      %s291 = smul.u32 %s21, 16
      %s292 = ssub.s32 %s291, 1
      %p293 = scmp.gt.s32.totalorder %s292, 0
      %s294 = scalar_select %p293, %s292, 0
      %p295 = scmp.lt.s32.totalorder %s20, 1
      %s296 = scalar_select %p295, %s20, 1
      %p297 = scmp.lt.s32.totalorder %s294, 15
      %s298 = scalar_select %p297, %s294, 15
      %s299 = smul.addr %s298, 2
      %s300 = smul.addr %s296, 32
      %s301 = sadd.s32 %s299, %s300
      %s302 = smul.addr %s301, 4
      %s303 = scalar_lea.vmem %s1, %s302
      %p304 = pneg %p87
      %p305 = pneg %p84
      %s306 = smul.u32 %s21, 16
      %s307 = sadd.s32 %s306, 16
      %p308 = scmp.lt.s32.totalorder %s307, 15
      %s309 = scalar_select %p308, %s307, 15
      %p310 = scmp.lt.s32.totalorder %s20, 1
      %s311 = scalar_select %p310, %s20, 1
      %p312 = scmp.lt.s32.totalorder %s309, 15
      %s313 = scalar_select %p312, %s309, 15
      %s314 = smul.addr %s313, 2
      %s315 = smul.addr %s311, 32
      %s316 = sadd.s32 %s314, %s315
      %s317 = smul.addr %s316, 4
      %s318 = scalar_lea.vmem %s2, %s317
      %p319 = pneg %p123
      %p320 = pneg %p120
      %p321 = pneg %p144
      %p322 = pneg %p141
      %p323 = pneg %p165
      %p324 = pneg %p162
      %p325 = pneg %p193
      %p326 = pneg %p190
      %s327 = smul.u32 32, %s21
      %p328 = scmp.lt.s32.totalorder %s20, 1
      %s329 = scalar_select %p328, %s20, 1
      %p330 = scmp.lt.s32.totalorder %s327, 31
      %s331 = scalar_select %p330, %s327, 31
      %s332 = smul.addr %s329, 32
      %s333 = sadd.s32 %s331, %s332
      %s334 = smul.addr %s333, 4
      %s335 = scalar_lea.vmem %s5, %s334
      %s336 = smul.u32 16, %s21
      %p337 = scmp.lt.s32.totalorder %s20, 1
      %s338 = scalar_select %p337, %s20, 1
      %p339 = scmp.lt.s32.totalorder %s336, 15
      %s340 = scalar_select %p339, %s336, 15
      %s341 = smul.addr %s340, 2
      %s342 = smul.addr %s338, 32
      %s343 = sadd.s32 %s341, %s342
      %s344 = smul.addr %s343, 4
      %s345 = scalar_lea.vmem %s0, %s344
      %s346 = smul.u32 16, %s21
      %s347 = smul.u32 %s21, 16
      %s348 = ssub.s32 %s347, 1
      %p349 = scmp.gt.s32.totalorder %s348, 0
      %s350 = scalar_select %p349, %s348, 0
      %p351 = scmp.lt.s32.totalorder %s20, 1
      %s352 = scalar_select %p351, %s20, 1
      %p353 = scmp.lt.s32.totalorder %s350, 15
      %s354 = scalar_select %p353, %s350, 15
      %s355 = smul.addr %s354, 2
      %s356 = smul.addr %s352, 32
      %s357 = sadd.s32 %s355, %s356
      %s358 = smul.addr %s357, 4
      %s359 = scalar_lea.vmem %s1, %s358
      %s360 = smul.u32 %s21, 16
      %s361 = ssub.s32 %s360, 1
      %p362 = scmp.gt.s32.totalorder %s361, 0
      %s363 = scalar_select %p362, %s361, 0
      %s364 = smul.u32 %s21, 16
      %s365 = sadd.s32 %s364, 16
      %p366 = scmp.lt.s32.totalorder %s365, 15
      %s367 = scalar_select %p366, %s365, 15
      %p368 = scmp.lt.s32.totalorder %s20, 1
      %s369 = scalar_select %p368, %s20, 1
      %p370 = scmp.lt.s32.totalorder %s367, 15
      %s371 = scalar_select %p370, %s367, 15
      %s372 = smul.addr %s371, 2
      %s373 = smul.addr %s369, 32
      %s374 = sadd.s32 %s372, %s373
      %s375 = smul.addr %s374, 4
      %s376 = scalar_lea.vmem %s2, %s375
      %s377 = smul.u32 %s21, 16
      %s378 = sadd.s32 %s377, 16
      %p379 = scmp.lt.s32.totalorder %s378, 15
      %s380 = scalar_select %p379, %s378, 15
      %s381 = smul.u32 32, %s21
      %p382 = scmp.lt.s32.totalorder %s20, 1
      %s383 = scalar_select %p382, %s20, 1
      %p384 = scmp.lt.s32.totalorder %s381, 31
      %s385 = scalar_select %p384, %s381, 31
      %s386 = smul.addr %s383, 32
      %s387 = sadd.s32 %s385, %s386
      %s388 = smul.addr %s387, 4
      %s389 = scalar_lea.vmem %s5, %s388
      %s390 = smul.u32 32, %s21
      %p392 = scmp.eq.s32.totalorder %s21, 0
      %v393 = vld [vmem:[%s359] sm:$0xf]
      %v394 = vld [vmem:[%s359 + $0x4] sm:$0xf]
      %s395 = scalar_select %p392, 1, 0
      %v396 = vstv %s395
      %vm397 = vcmp.eq.s32.totalorder %v396, 1
      %v398 = vsel %vm397, 0, %v393
      %v399 = vsel %vm397, 0, %v394
      %v400 = vld [vmem:[%s376] sm:$0xf]
      %v401 = vld [vmem:[%s376 + $0x4] sm:$0xf]
      %v402 = vsel %vm397, 0, %v400
      %v403 = vsel %vm397, 0, %v401
      %v404 = vld [vmem:[%s345] sm:$0xf]
      %v405 = vld [vmem:[%s345 + $0x4] sm:$0xf]
      %v406 = vld [vmem:[%s345 + $0x8] sm:$0xf]
      %v407 = vld [vmem:[%s345 + $0xc] sm:$0xf]
      %v408 = vld [vmem:[%s345 + $0x10] sm:$0xf]
      %v409 = vld [vmem:[%s345 + $0x14] sm:$0xf]
      %v410 = vld [vmem:[%s345 + $0x18] sm:$0xf]
      %v411 = vld [vmem:[%s345 + $0x1c] sm:$0xf]
      %v412 = vld [vmem:[%s345 + $0x20] sm:$0xf]
      %v413 = vld [vmem:[%s345 + $0x24] sm:$0xf]
      %v414 = vld [vmem:[%s345 + $0x28] sm:$0xf]
      %v415 = vld [vmem:[%s345 + $0x2c] sm:$0xf]
      %v416 = vld [vmem:[%s345 + $0x30] sm:$0xf]
      %v417 = vld [vmem:[%s345 + $0x34] sm:$0xf]
      %v418 = vld [vmem:[%s345 + $0x38] sm:$0xf]
      %v419 = vld [vmem:[%s345 + $0x3c] sm:$0xf]
      %v420 = vld [vmem:[%s345 + $0x40] sm:$0xf]
      %v421 = vld [vmem:[%s345 + $0x44] sm:$0xf]
      %v422 = vld [vmem:[%s345 + $0x48] sm:$0xf]
      %v423 = vld [vmem:[%s345 + $0x4c] sm:$0xf]
      %v424 = vld [vmem:[%s345 + $0x50] sm:$0xf]
      %v425 = vld [vmem:[%s345 + $0x54] sm:$0xf]
      %v426 = vld [vmem:[%s345 + $0x58] sm:$0xf]
      %v427 = vld [vmem:[%s345 + $0x5c] sm:$0xf]
      %v428 = vld [vmem:[%s345 + $0x60] sm:$0xf]
      %v429 = vld [vmem:[%s345 + $0x64] sm:$0xf]
      %v430 = vld [vmem:[%s345 + $0x68] sm:$0xf]
      %v431 = vld [vmem:[%s345 + $0x6c] sm:$0xf]
      %v432 = vld [vmem:[%s345 + $0x70] sm:$0xf]
      %v433 = vld [vmem:[%s345 + $0x74] sm:$0xf]
      %v434 = vld [vmem:[%s345 + $0x78] sm:$0xf]
      %v435 = vld [vmem:[%s345 + $0x7c] sm:$0xf]
      %v472 = vunpack.c.l.b16 %v398
      %v473 = vunpack.c.l.b16 %v399
      %v474 = vunpack.c.l.b16 %v404
      %v475 = vunpack.c.l.b16 %v405
      %v476 = vunpack.c.l.b16 %v406
      %v477 = vunpack.c.l.b16 %v407
      %v478 = vunpack.c.l.b16 %v408
      %v479 = vunpack.c.l.b16 %v409
      %v480 = vunpack.c.l.b16 %v410
      %v481 = vunpack.c.l.b16 %v411
      %v482 = vunpack.c.l.b16 %v412
      %v483 = vunpack.c.l.b16 %v413
      %v484 = vunpack.c.l.b16 %v414
      %v485 = vunpack.c.l.b16 %v415
      %v486 = vunpack.c.l.b16 %v416
      %v487 = vunpack.c.l.b16 %v417
      %v488 = vunpack.c.l.b16 %v418
      %v489 = vunpack.c.l.b16 %v419
      %v490 = vunpack.c.l.b16 %v420
      %v491 = vunpack.c.l.b16 %v421
      %v492 = vunpack.c.l.b16 %v422
      %v493 = vunpack.c.l.b16 %v423
      %v494 = vunpack.c.l.b16 %v424
      %v495 = vunpack.c.l.b16 %v425
      %v496 = vunpack.c.l.b16 %v426
      %v497 = vunpack.c.l.b16 %v427
      %v498 = vunpack.c.l.b16 %v428
      %v499 = vunpack.c.l.b16 %v429
      %v500 = vunpack.c.l.b16 %v430
      %v501 = vunpack.c.l.b16 %v431
      %v502 = vunpack.c.l.b16 %v432
      %v503 = vunpack.c.l.b16 %v433
      %v504 = vunpack.c.l.b16 %v434
      %v505 = vunpack.c.l.b16 %v435
      %v506 = vunpack.c.l.b16 %v402
      %v507 = vunpack.c.l.b16 %v403
      %v508 = vpack.c.b16 %v473, %v472
      %v509 = vpack.c.b16 %v475, %v474
      %v510 = vpack.c.b16 %v477, %v476
      %v511 = vpack.c.b16 %v479, %v478
      %v512 = vpack.c.b16 %v481, %v480
      %v513 = vpack.c.b16 %v483, %v482
      %v514 = vpack.c.b16 %v485, %v484
      %v515 = vpack.c.b16 %v487, %v486
      %v516 = vpack.c.b16 %v489, %v488
      %v517 = vpack.c.b16 %v491, %v490
      %v518 = vpack.c.b16 %v493, %v492
      %v519 = vpack.c.b16 %v495, %v494
      %v520 = vpack.c.b16 %v497, %v496
      %v521 = vpack.c.b16 %v499, %v498
      %v522 = vpack.c.b16 %v501, %v500
      %v523 = vpack.c.b16 %v503, %v502
      %v524 = vpack.c.b16 %v505, %v504
      %v525 = vpack.c.b16 %v507, %v506
      %v527 = vshrl.u32 %v508, 16
      %v529 = vrot.slane %v527, 7
      %v530 = vshll.u32 %v508, 16
      %v532 = vor.u32 %v529, %v530
      %v534 = vshrl.u32 %v509, 16
      %v536 = vrot.slane %v534, 7
      %v537 = vshll.u32 %v509, 16
      %v539 = vor.u32 %v536, %v537
      %v541 = vshrl.u32 %v510, 16
      %v543 = vrot.slane %v541, 7
      %v544 = vshll.u32 %v510, 16
      %v546 = vor.u32 %v543, %v544
      %v548 = vshrl.u32 %v511, 16
      %v550 = vrot.slane %v548, 7
      %v551 = vshll.u32 %v511, 16
      %v553 = vor.u32 %v550, %v551
      %v555 = vshrl.u32 %v512, 16
      %v557 = vrot.slane %v555, 7
      %v558 = vshll.u32 %v512, 16
      %v560 = vor.u32 %v557, %v558
      %v562 = vshrl.u32 %v513, 16
      %v564 = vrot.slane %v562, 7
      %v565 = vshll.u32 %v513, 16
      %v567 = vor.u32 %v564, %v565
      %v569 = vshrl.u32 %v514, 16
      %v571 = vrot.slane %v569, 7
      %v572 = vshll.u32 %v514, 16
      %v574 = vor.u32 %v571, %v572
      %v576 = vshrl.u32 %v515, 16
      %v578 = vrot.slane %v576, 7
      %v579 = vshll.u32 %v515, 16
      %v581 = vor.u32 %v578, %v579
      %v583 = vshrl.u32 %v516, 16
      %v585 = vrot.slane %v583, 7
      %v586 = vshll.u32 %v516, 16
      %v588 = vor.u32 %v585, %v586
      %v590 = vshrl.u32 %v517, 16
      %v592 = vrot.slane %v590, 7
      %v593 = vshll.u32 %v517, 16
      %v595 = vor.u32 %v592, %v593
      %v597 = vshrl.u32 %v518, 16
      %v599 = vrot.slane %v597, 7
      %v600 = vshll.u32 %v518, 16
      %v602 = vor.u32 %v599, %v600
      %v604 = vshrl.u32 %v519, 16
      %v606 = vrot.slane %v604, 7
      %v607 = vshll.u32 %v519, 16
      %v609 = vor.u32 %v606, %v607
      %v611 = vshrl.u32 %v520, 16
      %v613 = vrot.slane %v611, 7
      %v614 = vshll.u32 %v520, 16
      %v616 = vor.u32 %v613, %v614
      %v618 = vshrl.u32 %v521, 16
      %v620 = vrot.slane %v618, 7
      %v621 = vshll.u32 %v521, 16
      %v623 = vor.u32 %v620, %v621
      %v625 = vshrl.u32 %v522, 16
      %v627 = vrot.slane %v625, 7
      %v628 = vshll.u32 %v522, 16
      %v630 = vor.u32 %v627, %v628
      %v632 = vshrl.u32 %v523, 16
      %v634 = vrot.slane %v632, 7
      %v635 = vshll.u32 %v523, 16
      %v637 = vor.u32 %v634, %v635
      %v639 = vshrl.u32 %v524, 16
      %v641 = vrot.slane %v639, 7
      %v642 = vshll.u32 %v524, 16
      %v644 = vor.u32 %v641, %v642
      %v646 = vshrl.u32 %v525, 16
      %v648 = vrot.slane %v646, 7
      %v649 = vshll.u32 %v525, 16
      %v651 = vor.u32 %v648, %v649
      %vm670 = vcmask 1040384
      %vm671 = vsmask.f32 256
      %vm672 = vmand %vm670, %vm671
      %v673 = vsel %vm672, 0, %v532
      %v674 = vsel %vm672, 0, %v539
      %v675 = vsel %vm672, 0, %v546
      %v676 = vsel %vm672, 0, %v553
      %v677 = vsel %vm672, 0, %v560
      %v678 = vsel %vm672, 0, %v567
      %v679 = vsel %vm672, 0, %v574
      %v680 = vsel %vm672, 0, %v581
      %v681 = vsel %vm672, 0, %v588
      %v682 = vsel %vm672, 0, %v595
      %v683 = vsel %vm672, 0, %v602
      %v684 = vsel %vm672, 0, %v609
      %v685 = vsel %vm672, 0, %v616
      %v686 = vsel %vm672, 0, %v623
      %v687 = vsel %vm672, 0, %v630
      %v688 = vsel %vm672, 0, %v637
      %v689 = vsel %vm672, 0, %v644
      %v690 = vsel %vm672, 0, %v651
      %v691 = vrot.slane %v530, 1
      %v692 = vor.u32 %v527, %v691
      %v693 = vrot.slane %v537, 1
      %v694 = vor.u32 %v534, %v693
      %v695 = vrot.slane %v544, 1
      %v696 = vor.u32 %v541, %v695
      %v697 = vrot.slane %v551, 1
      %v698 = vor.u32 %v548, %v697
      %v699 = vrot.slane %v558, 1
      %v700 = vor.u32 %v555, %v699
      %v701 = vrot.slane %v565, 1
      %v702 = vor.u32 %v562, %v701
      %v703 = vrot.slane %v572, 1
      %v704 = vor.u32 %v569, %v703
      %v705 = vrot.slane %v579, 1
      %v706 = vor.u32 %v576, %v705
      %v707 = vrot.slane %v586, 1
      %v708 = vor.u32 %v583, %v707
      %v709 = vrot.slane %v593, 1
      %v710 = vor.u32 %v590, %v709
      %v711 = vrot.slane %v600, 1
      %v712 = vor.u32 %v597, %v711
      %v713 = vrot.slane %v607, 1
      %v714 = vor.u32 %v604, %v713
      %v715 = vrot.slane %v614, 1
      %v716 = vor.u32 %v611, %v715
      %v717 = vrot.slane %v621, 1
      %v718 = vor.u32 %v618, %v717
      %v719 = vrot.slane %v628, 1
      %v720 = vor.u32 %v625, %v719
      %v721 = vrot.slane %v635, 1
      %v722 = vor.u32 %v632, %v721
      %v723 = vrot.slane %v642, 1
      %v724 = vor.u32 %v639, %v723
      %v725 = vrot.slane %v649, 1
      %v726 = vor.u32 %v646, %v725
      %vm745 = vcmask 1047552
      %vm746 = vsmask.f32 7424
      %vm747 = vmand %vm745, %vm746
      %v748 = vsel %vm747, %v692, 0
      %v749 = vsel %vm747, %v694, 0
      %v750 = vsel %vm747, %v696, 0
      %v751 = vsel %vm747, %v698, 0
      %v752 = vsel %vm747, %v700, 0
      %v753 = vsel %vm747, %v702, 0
      %v754 = vsel %vm747, %v704, 0
      %v755 = vsel %vm747, %v706, 0
      %v756 = vsel %vm747, %v708, 0
      %v757 = vsel %vm747, %v710, 0
      %v758 = vsel %vm747, %v712, 0
      %v759 = vsel %vm747, %v714, 0
      %v760 = vsel %vm747, %v716, 0
      %v761 = vsel %vm747, %v718, 0
      %v762 = vsel %vm747, %v720, 0
      %v763 = vsel %vm747, %v722, 0
      %v764 = vsel %vm747, %v724, 0
      %v765 = vsel %vm747, %v726, 0
      %v766 = vld [vmem:[%s4] sm:$0x1]
      %v767 = vld [vmem:[%s3] sm:$0x3]
      %s768 = scalar_lea.vmem %s3, 2
      %v769 = vld [vmem:[%s768] sm:$0x3]
      %vm770 = vcmask 23552
      %v771 = vsel %vm770, %v508, 0
      %v773 = vsel %vm770, %v509, 0
      %v775 = vsel %vm770, %v510, 0
      %v777 = vsel %vm770, %v511, 0
      %v779 = vsel %vm770, %v512, 0
      %v781 = vsel %vm770, %v513, 0
      %v783 = vsel %vm770, %v514, 0
      %v785 = vsel %vm770, %v515, 0
      %v787 = vsel %vm770, %v516, 0
      %v789 = vsel %vm770, %v517, 0
      %v791 = vsel %vm770, %v518, 0
      %v793 = vsel %vm770, %v519, 0
      %v795 = vsel %vm770, %v520, 0
      %v797 = vsel %vm770, %v521, 0
      %v799 = vsel %vm770, %v522, 0
      %v801 = vsel %vm770, %v523, 0
      %vm803 = vcmask 1040384
      %vm804 = vcmask 1041408
      %v805 = vsel %vm803, 4294967295, 65535
      %v806 = vsel %vm804, %v805, 0
      %v808 = vand.u32 %v769, %v806
      %810 = vmatprep.subr.bf16.mxu0 0
      %811 = vmatpush1.bf16.msra.mxu0 0
      %812 = vmatprep.subr.bf16.mxu0 0
      %813 = vmatpush1.bf16.msra.mxu0 0
      %814 = vmatprep.subr.bf16.mxu0 0
      %815 = vmatpush1.bf16.msra.mxu0 0
      %816 = vmatprep.subr.bf16.mxu0 0
      %817 = vmatpush1.bf16.msra.mxu0 0
      %818 = vmatprep.subr.bf16.mxu0 0
      %819 = vmatpush1.bf16.msra.mxu0 0
      %820 = vmatprep.subr.bf16.mxu0 0
      %821 = vmatpush1.bf16.msra.mxu0 0
      %822 = vmatprep.subr.bf16.mxu0 0
      %823 = vmatpush1.bf16.msra.mxu0 0
      %824 = vmatprep.subr.bf16.mxu0 0
      %825 = vmatpush1.bf16.msra.mxu0 %v808
      %826 = vmatprep.subr.bf16.mxu0 0
      %827 = vmatpush2.bf16.msra.mxu0 0
      %828 = vmatprep.subr.bf16.mxu0 0
      %829 = vmatpush2.bf16.msra.mxu0 0
      %830 = vmatprep.subr.bf16.mxu0 0
      %831 = vmatpush2.bf16.msra.mxu0 0
      %832 = vmatprep.subr.bf16.mxu0 0
      %833 = vmatpush2.bf16.msra.mxu0 0
      %834 = vmatprep.subr.bf16.mxu0 0
      %835 = vmatpush2.bf16.msra.mxu0 0
      %836 = vmatprep.subr.bf16.mxu0 0
      %837 = vmatpush2.bf16.msra.mxu0 0
      %838 = vmatprep.subr.bf16.mxu0 0
      %839 = vmatpush2.bf16.msra.mxu0 0
      %840 = vmatprep.subr.bf16.mxu0 0
      %841 = vmatpush2.bf16.msra.mxu0 0
      %842 = vmatprep.mubr.bf16.mxu0 0
      %843 = vmatmul.mubr.bf16.gmra.mxu0 %v771
      %v844 = vpop.f32.mrf.mxu0
      %v845 = vadd.f32 0.0, %v844
      %v846 = vpop.f32.mrf.mxu0
      %v847 = vpop.f32.mrf.mxu0
      %v848 = vadd.f32 0.0, %v847
      %v849 = vpop.f32.mrf.mxu0
      %850 = vmatprep.mubr.bf16.mxu0 0
      %851 = vmatmul.mubr.bf16.gmra.mxu0 %v773
      %v852 = vpop.f32.mrf.mxu0
      %v853 = vadd.f32 0.0, %v852
      %v854 = vpop.f32.mrf.mxu0
      %v855 = vpop.f32.mrf.mxu0
      %v856 = vadd.f32 0.0, %v855
      %v857 = vpop.f32.mrf.mxu0
      %858 = vmatprep.mubr.bf16.mxu0 0
      %859 = vmatmul.mubr.bf16.gmra.mxu0 %v775
      %v860 = vpop.f32.mrf.mxu0
      %v861 = vadd.f32 0.0, %v860
      %v862 = vpop.f32.mrf.mxu0
      %v863 = vpop.f32.mrf.mxu0
      %v864 = vadd.f32 0.0, %v863
      %v865 = vpop.f32.mrf.mxu0
      %866 = vmatprep.mubr.bf16.mxu0 0
      %867 = vmatmul.mubr.bf16.gmra.mxu0 %v777
      %v868 = vpop.f32.mrf.mxu0
      %v869 = vadd.f32 0.0, %v868
      %v870 = vpop.f32.mrf.mxu0
      %v871 = vpop.f32.mrf.mxu0
      %v872 = vadd.f32 0.0, %v871
      %v873 = vpop.f32.mrf.mxu0
      %874 = vmatprep.mubr.bf16.mxu0 0
      %875 = vmatmul.mubr.bf16.gmra.mxu0 %v779
      %v876 = vpop.f32.mrf.mxu0
      %v877 = vadd.f32 0.0, %v876
      %v878 = vpop.f32.mrf.mxu0
      %v879 = vpop.f32.mrf.mxu0
      %v880 = vadd.f32 0.0, %v879
      %v881 = vpop.f32.mrf.mxu0
      %882 = vmatprep.mubr.bf16.mxu0 0
      %883 = vmatmul.mubr.bf16.gmra.mxu0 %v781
      %v884 = vpop.f32.mrf.mxu0
      %v885 = vadd.f32 0.0, %v884
      %v886 = vpop.f32.mrf.mxu0
      %v887 = vpop.f32.mrf.mxu0
      %v888 = vadd.f32 0.0, %v887
      %v889 = vpop.f32.mrf.mxu0
      %890 = vmatprep.mubr.bf16.mxu0 0
      %891 = vmatmul.mubr.bf16.gmra.mxu0 %v783
      %v892 = vpop.f32.mrf.mxu0
      %v893 = vadd.f32 0.0, %v892
      %v894 = vpop.f32.mrf.mxu0
      %v895 = vpop.f32.mrf.mxu0
      %v896 = vadd.f32 0.0, %v895
      %v897 = vpop.f32.mrf.mxu0
      %898 = vmatprep.mubr.bf16.mxu0 0
      %899 = vmatmul.mubr.bf16.gmra.mxu0 %v785
      %v900 = vpop.f32.mrf.mxu0
      %v901 = vadd.f32 0.0, %v900
      %v902 = vpop.f32.mrf.mxu0
      %v903 = vpop.f32.mrf.mxu0
      %v904 = vadd.f32 0.0, %v903
      %v905 = vpop.f32.mrf.mxu0
      %906 = vmatprep.mubr.bf16.mxu0 0
      %907 = vmatmul.mubr.bf16.gmra.mxu0 %v787
      %v908 = vpop.f32.mrf.mxu0
      %v909 = vadd.f32 0.0, %v908
      %v910 = vpop.f32.mrf.mxu0
      %v911 = vpop.f32.mrf.mxu0
      %v912 = vadd.f32 0.0, %v911
      %v913 = vpop.f32.mrf.mxu0
      %914 = vmatprep.mubr.bf16.mxu0 0
      %915 = vmatmul.mubr.bf16.gmra.mxu0 %v789
      %v916 = vpop.f32.mrf.mxu0
      %v917 = vadd.f32 0.0, %v916
      %v918 = vpop.f32.mrf.mxu0
      %v919 = vpop.f32.mrf.mxu0
      %v920 = vadd.f32 0.0, %v919
      %v921 = vpop.f32.mrf.mxu0
      %922 = vmatprep.mubr.bf16.mxu0 0
      %923 = vmatmul.mubr.bf16.gmra.mxu0 %v791
      %v924 = vpop.f32.mrf.mxu0
      %v925 = vadd.f32 0.0, %v924
      %v926 = vpop.f32.mrf.mxu0
      %v927 = vpop.f32.mrf.mxu0
      %v928 = vadd.f32 0.0, %v927
      %v929 = vpop.f32.mrf.mxu0
      %930 = vmatprep.mubr.bf16.mxu0 0
      %931 = vmatmul.mubr.bf16.gmra.mxu0 %v793
      %v932 = vpop.f32.mrf.mxu0
      %v933 = vadd.f32 0.0, %v932
      %v934 = vpop.f32.mrf.mxu0
      %v935 = vpop.f32.mrf.mxu0
      %v936 = vadd.f32 0.0, %v935
      %v937 = vpop.f32.mrf.mxu0
      %938 = vmatprep.mubr.bf16.mxu0 0
      %939 = vmatmul.mubr.bf16.gmra.mxu0 %v795
      %v940 = vpop.f32.mrf.mxu0
      %v941 = vadd.f32 0.0, %v940
      %v942 = vpop.f32.mrf.mxu0
      %v943 = vpop.f32.mrf.mxu0
      %v944 = vadd.f32 0.0, %v943
      %v945 = vpop.f32.mrf.mxu0
      %946 = vmatprep.mubr.bf16.mxu0 0
      %947 = vmatmul.mubr.bf16.gmra.mxu0 %v797
      %v948 = vpop.f32.mrf.mxu0
      %v949 = vadd.f32 0.0, %v948
      %v950 = vpop.f32.mrf.mxu0
      %v951 = vpop.f32.mrf.mxu0
      %v952 = vadd.f32 0.0, %v951
      %v953 = vpop.f32.mrf.mxu0
      %954 = vmatprep.mubr.bf16.mxu0 0
      %955 = vmatmul.mubr.bf16.gmra.mxu0 %v799
      %v956 = vpop.f32.mrf.mxu0
      %v957 = vadd.f32 0.0, %v956
      %v958 = vpop.f32.mrf.mxu0
      %v959 = vpop.f32.mrf.mxu0
      %v960 = vadd.f32 0.0, %v959
      %v961 = vpop.f32.mrf.mxu0
      %962 = vmatprep.mubr.bf16.mxu0 0
      %963 = vmatmul.mubr.bf16.gmra.mxu0 %v801
      %v964 = vpop.f32.mrf.mxu0
      %v965 = vadd.f32 0.0, %v964
      %v966 = vpop.f32.mrf.mxu0
      %v967 = vpop.f32.mrf.mxu0
      %v968 = vadd.f32 0.0, %v967
      %v969 = vpop.f32.mrf.mxu0
      %970 = vdwg.mxu0
      %v972 = vsel %vm770, %v673, 0
      %v975 = vsel %vm770, %v674, 0
      %v978 = vsel %vm770, %v675, 0
      %v981 = vsel %vm770, %v676, 0
      %v984 = vsel %vm770, %v677, 0
      %v987 = vsel %vm770, %v678, 0
      %v990 = vsel %vm770, %v679, 0
      %v993 = vsel %vm770, %v680, 0
      %v996 = vsel %vm770, %v681, 0
      %v999 = vsel %vm770, %v682, 0
      %v1002 = vsel %vm770, %v683, 0
      %v1005 = vsel %vm770, %v684, 0
      %v1008 = vsel %vm770, %v685, 0
      %v1011 = vsel %vm770, %v686, 0
      %v1014 = vsel %vm770, %v687, 0
      %v1017 = vsel %vm770, %v688, 0
      %v1020 = vand.u32 %v767, %v806
      %1022 = vmatprep.subr.bf16.mxu0 0
      %1023 = vmatpush1.bf16.msra.mxu0 0
      %1024 = vmatprep.subr.bf16.mxu0 0
      %1025 = vmatpush1.bf16.msra.mxu0 0
      %1026 = vmatprep.subr.bf16.mxu0 0
      %1027 = vmatpush1.bf16.msra.mxu0 0
      %1028 = vmatprep.subr.bf16.mxu0 0
      %1029 = vmatpush1.bf16.msra.mxu0 0
      %1030 = vmatprep.subr.bf16.mxu0 0
      %1031 = vmatpush1.bf16.msra.mxu0 0
      %1032 = vmatprep.subr.bf16.mxu0 0
      %1033 = vmatpush1.bf16.msra.mxu0 0
      %1034 = vmatprep.subr.bf16.mxu0 0
      %1035 = vmatpush1.bf16.msra.mxu0 0
      %1036 = vmatprep.subr.bf16.mxu0 0
      %1037 = vmatpush1.bf16.msra.mxu0 %v1020
      %1038 = vmatprep.subr.bf16.mxu0 0
      %1039 = vmatpush2.bf16.msra.mxu0 0
      %1040 = vmatprep.subr.bf16.mxu0 0
      %1041 = vmatpush2.bf16.msra.mxu0 0
      %1042 = vmatprep.subr.bf16.mxu0 0
      %1043 = vmatpush2.bf16.msra.mxu0 0
      %1044 = vmatprep.subr.bf16.mxu0 0
      %1045 = vmatpush2.bf16.msra.mxu0 0
      %1046 = vmatprep.subr.bf16.mxu0 0
      %1047 = vmatpush2.bf16.msra.mxu0 0
      %1048 = vmatprep.subr.bf16.mxu0 0
      %1049 = vmatpush2.bf16.msra.mxu0 0
      %1050 = vmatprep.subr.bf16.mxu0 0
      %1051 = vmatpush2.bf16.msra.mxu0 0
      %1052 = vmatprep.subr.bf16.mxu0 0
      %1053 = vmatpush2.bf16.msra.mxu0 0
      %1054 = vmatprep.mubr.bf16.mxu0 0
      %1055 = vmatmul.mubr.bf16.gmra.mxu0 %v972
      %v1056 = vpop.f32.mrf.mxu0
      %v1057 = vadd.f32 %v845, %v1056
      %v1058 = vpop.f32.mrf.mxu0
      %v1059 = vpop.f32.mrf.mxu0
      %v1060 = vadd.f32 %v848, %v1059
      %v1061 = vpop.f32.mrf.mxu0
      %1062 = vmatprep.mubr.bf16.mxu0 0
      %1063 = vmatmul.mubr.bf16.gmra.mxu0 %v975
      %v1064 = vpop.f32.mrf.mxu0
      %v1065 = vadd.f32 %v853, %v1064
      %v1066 = vpop.f32.mrf.mxu0
      %v1067 = vpop.f32.mrf.mxu0
      %v1068 = vadd.f32 %v856, %v1067
      %v1069 = vpop.f32.mrf.mxu0
      %1070 = vmatprep.mubr.bf16.mxu0 0
      %1071 = vmatmul.mubr.bf16.gmra.mxu0 %v978
      %v1072 = vpop.f32.mrf.mxu0
      %v1073 = vadd.f32 %v861, %v1072
      %v1074 = vpop.f32.mrf.mxu0
      %v1075 = vpop.f32.mrf.mxu0
      %v1076 = vadd.f32 %v864, %v1075
      %v1077 = vpop.f32.mrf.mxu0
      %1078 = vmatprep.mubr.bf16.mxu0 0
      %1079 = vmatmul.mubr.bf16.gmra.mxu0 %v981
      %v1080 = vpop.f32.mrf.mxu0
      %v1081 = vadd.f32 %v869, %v1080
      %v1082 = vpop.f32.mrf.mxu0
      %v1083 = vpop.f32.mrf.mxu0
      %v1084 = vadd.f32 %v872, %v1083
      %v1085 = vpop.f32.mrf.mxu0
      %1086 = vmatprep.mubr.bf16.mxu0 0
      %1087 = vmatmul.mubr.bf16.gmra.mxu0 %v984
      %v1088 = vpop.f32.mrf.mxu0
      %v1089 = vadd.f32 %v877, %v1088
      %v1090 = vpop.f32.mrf.mxu0
      %v1091 = vpop.f32.mrf.mxu0
      %v1092 = vadd.f32 %v880, %v1091
      %v1093 = vpop.f32.mrf.mxu0
      %1094 = vmatprep.mubr.bf16.mxu0 0
      %1095 = vmatmul.mubr.bf16.gmra.mxu0 %v987
      %v1096 = vpop.f32.mrf.mxu0
      %v1097 = vadd.f32 %v885, %v1096
      %v1098 = vpop.f32.mrf.mxu0
      %v1099 = vpop.f32.mrf.mxu0
      %v1100 = vadd.f32 %v888, %v1099
      %v1101 = vpop.f32.mrf.mxu0
      %1102 = vmatprep.mubr.bf16.mxu0 0
      %1103 = vmatmul.mubr.bf16.gmra.mxu0 %v990
      %v1104 = vpop.f32.mrf.mxu0
      %v1105 = vadd.f32 %v893, %v1104
      %v1106 = vpop.f32.mrf.mxu0
      %v1107 = vpop.f32.mrf.mxu0
      %v1108 = vadd.f32 %v896, %v1107
      %v1109 = vpop.f32.mrf.mxu0
      %1110 = vmatprep.mubr.bf16.mxu0 0
      %1111 = vmatmul.mubr.bf16.gmra.mxu0 %v993
      %v1112 = vpop.f32.mrf.mxu0
      %v1113 = vadd.f32 %v901, %v1112
      %v1114 = vpop.f32.mrf.mxu0
      %v1115 = vpop.f32.mrf.mxu0
      %v1116 = vadd.f32 %v904, %v1115
      %v1117 = vpop.f32.mrf.mxu0
      %1118 = vmatprep.mubr.bf16.mxu0 0
      %1119 = vmatmul.mubr.bf16.gmra.mxu0 %v996
      %v1120 = vpop.f32.mrf.mxu0
      %v1121 = vadd.f32 %v909, %v1120
      %v1122 = vpop.f32.mrf.mxu0
      %v1123 = vpop.f32.mrf.mxu0
      %v1124 = vadd.f32 %v912, %v1123
      %v1125 = vpop.f32.mrf.mxu0
      %1126 = vmatprep.mubr.bf16.mxu0 0
      %1127 = vmatmul.mubr.bf16.gmra.mxu0 %v999
      %v1128 = vpop.f32.mrf.mxu0
      %v1129 = vadd.f32 %v917, %v1128
      %v1130 = vpop.f32.mrf.mxu0
      %v1131 = vpop.f32.mrf.mxu0
      %v1132 = vadd.f32 %v920, %v1131
      %v1133 = vpop.f32.mrf.mxu0
      %1134 = vmatprep.mubr.bf16.mxu0 0
      %1135 = vmatmul.mubr.bf16.gmra.mxu0 %v1002
      %v1136 = vpop.f32.mrf.mxu0
      %v1137 = vadd.f32 %v925, %v1136
      %v1138 = vpop.f32.mrf.mxu0
      %v1139 = vpop.f32.mrf.mxu0
      %v1140 = vadd.f32 %v928, %v1139
      %v1141 = vpop.f32.mrf.mxu0
      %1142 = vmatprep.mubr.bf16.mxu0 0
      %1143 = vmatmul.mubr.bf16.gmra.mxu0 %v1005
      %v1144 = vpop.f32.mrf.mxu0
      %v1145 = vadd.f32 %v933, %v1144
      %v1146 = vpop.f32.mrf.mxu0
      %v1147 = vpop.f32.mrf.mxu0
      %v1148 = vadd.f32 %v936, %v1147
      %v1149 = vpop.f32.mrf.mxu0
      %1150 = vmatprep.mubr.bf16.mxu0 0
      %1151 = vmatmul.mubr.bf16.gmra.mxu0 %v1008
      %v1152 = vpop.f32.mrf.mxu0
      %v1153 = vadd.f32 %v941, %v1152
      %v1154 = vpop.f32.mrf.mxu0
      %v1155 = vpop.f32.mrf.mxu0
      %v1156 = vadd.f32 %v944, %v1155
      %v1157 = vpop.f32.mrf.mxu0
      %1158 = vmatprep.mubr.bf16.mxu0 0
      %1159 = vmatmul.mubr.bf16.gmra.mxu0 %v1011
      %v1160 = vpop.f32.mrf.mxu0
      %v1161 = vadd.f32 %v949, %v1160
      %v1162 = vpop.f32.mrf.mxu0
      %v1163 = vpop.f32.mrf.mxu0
      %v1164 = vadd.f32 %v952, %v1163
      %v1165 = vpop.f32.mrf.mxu0
      %1166 = vmatprep.mubr.bf16.mxu0 0
      %1167 = vmatmul.mubr.bf16.gmra.mxu0 %v1014
      %v1168 = vpop.f32.mrf.mxu0
      %v1169 = vadd.f32 %v957, %v1168
      %v1170 = vpop.f32.mrf.mxu0
      %v1171 = vpop.f32.mrf.mxu0
      %v1172 = vadd.f32 %v960, %v1171
      %v1173 = vpop.f32.mrf.mxu0
      %1174 = vmatprep.mubr.bf16.mxu0 0
      %1175 = vmatmul.mubr.bf16.gmra.mxu0 %v1017
      %v1176 = vpop.f32.mrf.mxu0
      %v1177 = vadd.f32 %v965, %v1176
      %v1178 = vpop.f32.mrf.mxu0
      %v1179 = vpop.f32.mrf.mxu0
      %v1180 = vadd.f32 %v968, %v1179
      %v1181 = vpop.f32.mrf.mxu0
      %1182 = vdwg.mxu0
      %s1183 = scalar_lea.vmem %s3, 4
      %v1184 = vld [vmem:[%s1183] sm:$0x3]
      %v1186 = vsel %vm770, %v748, 0
      %v1189 = vsel %vm770, %v749, 0
      %v1192 = vsel %vm770, %v750, 0
      %v1195 = vsel %vm770, %v751, 0
      %v1198 = vsel %vm770, %v752, 0
      %v1201 = vsel %vm770, %v753, 0
      %v1204 = vsel %vm770, %v754, 0
      %v1207 = vsel %vm770, %v755, 0
      %v1210 = vsel %vm770, %v756, 0
      %v1213 = vsel %vm770, %v757, 0
      %v1216 = vsel %vm770, %v758, 0
      %v1219 = vsel %vm770, %v759, 0
      %v1222 = vsel %vm770, %v760, 0
      %v1225 = vsel %vm770, %v761, 0
      %v1228 = vsel %vm770, %v762, 0
      %v1231 = vsel %vm770, %v763, 0
      %v1234 = vand.u32 %v1184, %v806
      %1236 = vmatprep.subr.bf16.mxu0 0
      %1237 = vmatpush1.bf16.msra.mxu0 0
      %1238 = vmatprep.subr.bf16.mxu0 0
      %1239 = vmatpush1.bf16.msra.mxu0 0
      %1240 = vmatprep.subr.bf16.mxu0 0
      %1241 = vmatpush1.bf16.msra.mxu0 0
      %1242 = vmatprep.subr.bf16.mxu0 0
      %1243 = vmatpush1.bf16.msra.mxu0 0
      %1244 = vmatprep.subr.bf16.mxu0 0
      %1245 = vmatpush1.bf16.msra.mxu0 0
      %1246 = vmatprep.subr.bf16.mxu0 0
      %1247 = vmatpush1.bf16.msra.mxu0 0
      %1248 = vmatprep.subr.bf16.mxu0 0
      %1249 = vmatpush1.bf16.msra.mxu0 0
      %1250 = vmatprep.subr.bf16.mxu0 0
      %1251 = vmatpush1.bf16.msra.mxu0 %v1234
      %1252 = vmatprep.subr.bf16.mxu0 0
      %1253 = vmatpush2.bf16.msra.mxu0 0
      %1254 = vmatprep.subr.bf16.mxu0 0
      %1255 = vmatpush2.bf16.msra.mxu0 0
      %1256 = vmatprep.subr.bf16.mxu0 0
      %1257 = vmatpush2.bf16.msra.mxu0 0
      %1258 = vmatprep.subr.bf16.mxu0 0
      %1259 = vmatpush2.bf16.msra.mxu0 0
      %1260 = vmatprep.subr.bf16.mxu0 0
      %1261 = vmatpush2.bf16.msra.mxu0 0
      %1262 = vmatprep.subr.bf16.mxu0 0
      %1263 = vmatpush2.bf16.msra.mxu0 0
      %1264 = vmatprep.subr.bf16.mxu0 0
      %1265 = vmatpush2.bf16.msra.mxu0 0
      %1266 = vmatprep.subr.bf16.mxu0 0
      %1267 = vmatpush2.bf16.msra.mxu0 0
      %1268 = vmatprep.mubr.bf16.mxu0 0
      %1269 = vmatmul.mubr.bf16.gmra.mxu0 %v1186
      %v1270 = vpop.f32.mrf.mxu0
      %v1271 = vadd.f32 0.0, %v1270
      %v1272 = vpop.f32.mrf.mxu0
      %v1273 = vpop.f32.mrf.mxu0
      %v1274 = vadd.f32 0.0, %v1273
      %v1275 = vpop.f32.mrf.mxu0
      %1276 = vmatprep.mubr.bf16.mxu0 0
      %1277 = vmatmul.mubr.bf16.gmra.mxu0 %v1189
      %v1278 = vpop.f32.mrf.mxu0
      %v1279 = vadd.f32 0.0, %v1278
      %v1280 = vpop.f32.mrf.mxu0
      %v1281 = vpop.f32.mrf.mxu0
      %v1282 = vadd.f32 0.0, %v1281
      %v1283 = vpop.f32.mrf.mxu0
      %1284 = vmatprep.mubr.bf16.mxu0 0
      %1285 = vmatmul.mubr.bf16.gmra.mxu0 %v1192
      %v1286 = vpop.f32.mrf.mxu0
      %v1287 = vadd.f32 0.0, %v1286
      %v1288 = vpop.f32.mrf.mxu0
      %v1289 = vpop.f32.mrf.mxu0
      %v1290 = vadd.f32 0.0, %v1289
      %v1291 = vpop.f32.mrf.mxu0
      %1292 = vmatprep.mubr.bf16.mxu0 0
      %1293 = vmatmul.mubr.bf16.gmra.mxu0 %v1195
      %v1294 = vpop.f32.mrf.mxu0
      %v1295 = vadd.f32 0.0, %v1294
      %v1296 = vpop.f32.mrf.mxu0
      %v1297 = vpop.f32.mrf.mxu0
      %v1298 = vadd.f32 0.0, %v1297
      %v1299 = vpop.f32.mrf.mxu0
      %1300 = vmatprep.mubr.bf16.mxu0 0
      %1301 = vmatmul.mubr.bf16.gmra.mxu0 %v1198
      %v1302 = vpop.f32.mrf.mxu0
      %v1303 = vadd.f32 0.0, %v1302
      %v1304 = vpop.f32.mrf.mxu0
      %v1305 = vpop.f32.mrf.mxu0
      %v1306 = vadd.f32 0.0, %v1305
      %v1307 = vpop.f32.mrf.mxu0
      %1308 = vmatprep.mubr.bf16.mxu0 0
      %1309 = vmatmul.mubr.bf16.gmra.mxu0 %v1201
      %v1310 = vpop.f32.mrf.mxu0
      %v1311 = vadd.f32 0.0, %v1310
      %v1312 = vpop.f32.mrf.mxu0
      %v1313 = vpop.f32.mrf.mxu0
      %v1314 = vadd.f32 0.0, %v1313
      %v1315 = vpop.f32.mrf.mxu0
      %1316 = vmatprep.mubr.bf16.mxu0 0
      %1317 = vmatmul.mubr.bf16.gmra.mxu0 %v1204
      %v1318 = vpop.f32.mrf.mxu0
      %v1319 = vadd.f32 0.0, %v1318
      %v1320 = vpop.f32.mrf.mxu0
      %v1321 = vpop.f32.mrf.mxu0
      %v1322 = vadd.f32 0.0, %v1321
      %v1323 = vpop.f32.mrf.mxu0
      %1324 = vmatprep.mubr.bf16.mxu0 0
      %1325 = vmatmul.mubr.bf16.gmra.mxu0 %v1207
      %v1326 = vpop.f32.mrf.mxu0
      %v1327 = vadd.f32 0.0, %v1326
      %v1328 = vpop.f32.mrf.mxu0
      %v1329 = vpop.f32.mrf.mxu0
      %v1330 = vadd.f32 0.0, %v1329
      %v1331 = vpop.f32.mrf.mxu0
      %1332 = vmatprep.mubr.bf16.mxu0 0
      %1333 = vmatmul.mubr.bf16.gmra.mxu0 %v1210
      %v1334 = vpop.f32.mrf.mxu0
      %v1335 = vadd.f32 0.0, %v1334
      %v1336 = vpop.f32.mrf.mxu0
      %v1337 = vpop.f32.mrf.mxu0
      %v1338 = vadd.f32 0.0, %v1337
      %v1339 = vpop.f32.mrf.mxu0
      %1340 = vmatprep.mubr.bf16.mxu0 0
      %1341 = vmatmul.mubr.bf16.gmra.mxu0 %v1213
      %v1342 = vpop.f32.mrf.mxu0
      %v1343 = vadd.f32 0.0, %v1342
      %v1344 = vpop.f32.mrf.mxu0
      %v1345 = vpop.f32.mrf.mxu0
      %v1346 = vadd.f32 0.0, %v1345
      %v1347 = vpop.f32.mrf.mxu0
      %1348 = vmatprep.mubr.bf16.mxu0 0
      %1349 = vmatmul.mubr.bf16.gmra.mxu0 %v1216
      %v1350 = vpop.f32.mrf.mxu0
      %v1351 = vadd.f32 0.0, %v1350
      %v1352 = vpop.f32.mrf.mxu0
      %v1353 = vpop.f32.mrf.mxu0
      %v1354 = vadd.f32 0.0, %v1353
      %v1355 = vpop.f32.mrf.mxu0
      %1356 = vmatprep.mubr.bf16.mxu0 0
      %1357 = vmatmul.mubr.bf16.gmra.mxu0 %v1219
      %v1358 = vpop.f32.mrf.mxu0
      %v1359 = vadd.f32 0.0, %v1358
      %v1360 = vpop.f32.mrf.mxu0
      %v1361 = vpop.f32.mrf.mxu0
      %v1362 = vadd.f32 0.0, %v1361
      %v1363 = vpop.f32.mrf.mxu0
      %1364 = vmatprep.mubr.bf16.mxu0 0
      %1365 = vmatmul.mubr.bf16.gmra.mxu0 %v1222
      %v1366 = vpop.f32.mrf.mxu0
      %v1367 = vadd.f32 0.0, %v1366
      %v1368 = vpop.f32.mrf.mxu0
      %v1369 = vpop.f32.mrf.mxu0
      %v1370 = vadd.f32 0.0, %v1369
      %v1371 = vpop.f32.mrf.mxu0
      %1372 = vmatprep.mubr.bf16.mxu0 0
      %1373 = vmatmul.mubr.bf16.gmra.mxu0 %v1225
      %v1374 = vpop.f32.mrf.mxu0
      %v1375 = vadd.f32 0.0, %v1374
      %v1376 = vpop.f32.mrf.mxu0
      %v1377 = vpop.f32.mrf.mxu0
      %v1378 = vadd.f32 0.0, %v1377
      %v1379 = vpop.f32.mrf.mxu0
      %1380 = vmatprep.mubr.bf16.mxu0 0
      %1381 = vmatmul.mubr.bf16.gmra.mxu0 %v1228
      %v1382 = vpop.f32.mrf.mxu0
      %v1383 = vadd.f32 0.0, %v1382
      %v1384 = vpop.f32.mrf.mxu0
      %v1385 = vpop.f32.mrf.mxu0
      %v1386 = vadd.f32 0.0, %v1385
      %v1387 = vpop.f32.mrf.mxu0
      %1388 = vmatprep.mubr.bf16.mxu0 0
      %1389 = vmatmul.mubr.bf16.gmra.mxu0 %v1231
      %v1390 = vpop.f32.mrf.mxu0
      %v1391 = vadd.f32 0.0, %v1390
      %v1392 = vpop.f32.mrf.mxu0
      %v1393 = vpop.f32.mrf.mxu0
      %v1394 = vadd.f32 0.0, %v1393
      %v1395 = vpop.f32.mrf.mxu0
      %1396 = vdwg.mxu0
      %v1397 = vadd.f32 %v1057, %v1271
      %v1398 = vadd.f32 %v1060, %v1274
      %v1399 = vadd.f32 %v1065, %v1279
      %v1400 = vadd.f32 %v1068, %v1282
      %v1401 = vadd.f32 %v1073, %v1287
      %v1402 = vadd.f32 %v1076, %v1290
      %v1403 = vadd.f32 %v1081, %v1295
      %v1404 = vadd.f32 %v1084, %v1298
      %v1405 = vadd.f32 %v1089, %v1303
      %v1406 = vadd.f32 %v1092, %v1306
      %v1407 = vadd.f32 %v1097, %v1311
      %v1408 = vadd.f32 %v1100, %v1314
      %v1409 = vadd.f32 %v1105, %v1319
      %v1410 = vadd.f32 %v1108, %v1322
      %v1411 = vadd.f32 %v1113, %v1327
      %v1412 = vadd.f32 %v1116, %v1330
      %v1413 = vadd.f32 %v1121, %v1335
      %v1414 = vadd.f32 %v1124, %v1338
      %v1415 = vadd.f32 %v1129, %v1343
      %v1416 = vadd.f32 %v1132, %v1346
      %v1417 = vadd.f32 %v1137, %v1351
      %v1418 = vadd.f32 %v1140, %v1354
      %v1419 = vadd.f32 %v1145, %v1359
      %v1420 = vadd.f32 %v1148, %v1362
      %v1421 = vadd.f32 %v1153, %v1367
      %v1422 = vadd.f32 %v1156, %v1370
      %v1423 = vadd.f32 %v1161, %v1375
      %v1424 = vadd.f32 %v1164, %v1378
      %v1425 = vadd.f32 %v1169, %v1383
      %v1426 = vadd.f32 %v1172, %v1386
      %v1427 = vadd.f32 %v1177, %v1391
      %v1428 = vadd.f32 %v1180, %v1394
      %s1429 = scalar_lea.vmem %s3, 6
      %v1430 = vld [vmem:[%s1429] sm:$0x3]
      %v1432 = vsel %vm770, %v689, 0
      %v1435 = vand.u32 %v1430, %v806
      %1437 = vmatprep.subr.bf16.mxu0 0
      %1438 = vmatpush1.bf16.msra.mxu0 0
      %1439 = vmatprep.subr.bf16.mxu0 0
      %1440 = vmatpush1.bf16.msra.mxu0 0
      %1441 = vmatprep.subr.bf16.mxu0 0
      %1442 = vmatpush1.bf16.msra.mxu0 0
      %1443 = vmatprep.subr.bf16.mxu0 0
      %1444 = vmatpush1.bf16.msra.mxu0 0
      %1445 = vmatprep.subr.bf16.mxu0 0
      %1446 = vmatpush1.bf16.msra.mxu0 0
      %1447 = vmatprep.subr.bf16.mxu0 0
      %1448 = vmatpush1.bf16.msra.mxu0 0
      %1449 = vmatprep.subr.bf16.mxu0 0
      %1450 = vmatpush1.bf16.msra.mxu0 0
      %1451 = vmatprep.subr.bf16.mxu0 0
      %1452 = vmatpush1.bf16.msra.mxu0 %v1435
      %1453 = vmatprep.subr.bf16.mxu0 0
      %1454 = vmatpush2.bf16.msra.mxu0 0
      %1455 = vmatprep.subr.bf16.mxu0 0
      %1456 = vmatpush2.bf16.msra.mxu0 0
      %1457 = vmatprep.subr.bf16.mxu0 0
      %1458 = vmatpush2.bf16.msra.mxu0 0
      %1459 = vmatprep.subr.bf16.mxu0 0
      %1460 = vmatpush2.bf16.msra.mxu0 0
      %1461 = vmatprep.subr.bf16.mxu0 0
      %1462 = vmatpush2.bf16.msra.mxu0 0
      %1463 = vmatprep.subr.bf16.mxu0 0
      %1464 = vmatpush2.bf16.msra.mxu0 0
      %1465 = vmatprep.subr.bf16.mxu0 0
      %1466 = vmatpush2.bf16.msra.mxu0 0
      %1467 = vmatprep.subr.bf16.mxu0 0
      %1468 = vmatpush2.bf16.msra.mxu0 0
      %1469 = vmatprep.mubr.bf16.mxu0 0
      %1470 = vmatmul.mubr.bf16.gmra.mxu0 %v975
      %v1471 = vpop.f32.mrf.mxu0
      %v1472 = vadd.f32 0.0, %v1471
      %v1473 = vpop.f32.mrf.mxu0
      %v1474 = vpop.f32.mrf.mxu0
      %v1475 = vadd.f32 0.0, %v1474
      %v1476 = vpop.f32.mrf.mxu0
      %1477 = vmatprep.mubr.bf16.mxu0 0
      %1478 = vmatmul.mubr.bf16.gmra.mxu0 %v978
      %v1479 = vpop.f32.mrf.mxu0
      %v1480 = vadd.f32 0.0, %v1479
      %v1481 = vpop.f32.mrf.mxu0
      %v1482 = vpop.f32.mrf.mxu0
      %v1483 = vadd.f32 0.0, %v1482
      %v1484 = vpop.f32.mrf.mxu0
      %1485 = vmatprep.mubr.bf16.mxu0 0
      %1486 = vmatmul.mubr.bf16.gmra.mxu0 %v981
      %v1487 = vpop.f32.mrf.mxu0
      %v1488 = vadd.f32 0.0, %v1487
      %v1489 = vpop.f32.mrf.mxu0
      %v1490 = vpop.f32.mrf.mxu0
      %v1491 = vadd.f32 0.0, %v1490
      %v1492 = vpop.f32.mrf.mxu0
      %1493 = vmatprep.mubr.bf16.mxu0 0
      %1494 = vmatmul.mubr.bf16.gmra.mxu0 %v984
      %v1495 = vpop.f32.mrf.mxu0
      %v1496 = vadd.f32 0.0, %v1495
      %v1497 = vpop.f32.mrf.mxu0
      %v1498 = vpop.f32.mrf.mxu0
      %v1499 = vadd.f32 0.0, %v1498
      %v1500 = vpop.f32.mrf.mxu0
      %1501 = vmatprep.mubr.bf16.mxu0 0
      %1502 = vmatmul.mubr.bf16.gmra.mxu0 %v987
      %v1503 = vpop.f32.mrf.mxu0
      %v1504 = vadd.f32 0.0, %v1503
      %v1505 = vpop.f32.mrf.mxu0
      %v1506 = vpop.f32.mrf.mxu0
      %v1507 = vadd.f32 0.0, %v1506
      %v1508 = vpop.f32.mrf.mxu0
      %1509 = vmatprep.mubr.bf16.mxu0 0
      %1510 = vmatmul.mubr.bf16.gmra.mxu0 %v990
      %v1511 = vpop.f32.mrf.mxu0
      %v1512 = vadd.f32 0.0, %v1511
      %v1513 = vpop.f32.mrf.mxu0
      %v1514 = vpop.f32.mrf.mxu0
      %v1515 = vadd.f32 0.0, %v1514
      %v1516 = vpop.f32.mrf.mxu0
      %1517 = vmatprep.mubr.bf16.mxu0 0
      %1518 = vmatmul.mubr.bf16.gmra.mxu0 %v993
      %v1519 = vpop.f32.mrf.mxu0
      %v1520 = vadd.f32 0.0, %v1519
      %v1521 = vpop.f32.mrf.mxu0
      %v1522 = vpop.f32.mrf.mxu0
      %v1523 = vadd.f32 0.0, %v1522
      %v1524 = vpop.f32.mrf.mxu0
      %1525 = vmatprep.mubr.bf16.mxu0 0
      %1526 = vmatmul.mubr.bf16.gmra.mxu0 %v996
      %v1527 = vpop.f32.mrf.mxu0
      %v1528 = vadd.f32 0.0, %v1527
      %v1529 = vpop.f32.mrf.mxu0
      %v1530 = vpop.f32.mrf.mxu0
      %v1531 = vadd.f32 0.0, %v1530
      %v1532 = vpop.f32.mrf.mxu0
      %1533 = vmatprep.mubr.bf16.mxu0 0
      %1534 = vmatmul.mubr.bf16.gmra.mxu0 %v999
      %v1535 = vpop.f32.mrf.mxu0
      %v1536 = vadd.f32 0.0, %v1535
      %v1537 = vpop.f32.mrf.mxu0
      %v1538 = vpop.f32.mrf.mxu0
      %v1539 = vadd.f32 0.0, %v1538
      %v1540 = vpop.f32.mrf.mxu0
      %1541 = vmatprep.mubr.bf16.mxu0 0
      %1542 = vmatmul.mubr.bf16.gmra.mxu0 %v1002
      %v1543 = vpop.f32.mrf.mxu0
      %v1544 = vadd.f32 0.0, %v1543
      %v1545 = vpop.f32.mrf.mxu0
      %v1546 = vpop.f32.mrf.mxu0
      %v1547 = vadd.f32 0.0, %v1546
      %v1548 = vpop.f32.mrf.mxu0
      %1549 = vmatprep.mubr.bf16.mxu0 0
      %1550 = vmatmul.mubr.bf16.gmra.mxu0 %v1005
      %v1551 = vpop.f32.mrf.mxu0
      %v1552 = vadd.f32 0.0, %v1551
      %v1553 = vpop.f32.mrf.mxu0
      %v1554 = vpop.f32.mrf.mxu0
      %v1555 = vadd.f32 0.0, %v1554
      %v1556 = vpop.f32.mrf.mxu0
      %1557 = vmatprep.mubr.bf16.mxu0 0
      %1558 = vmatmul.mubr.bf16.gmra.mxu0 %v1008
      %v1559 = vpop.f32.mrf.mxu0
      %v1560 = vadd.f32 0.0, %v1559
      %v1561 = vpop.f32.mrf.mxu0
      %v1562 = vpop.f32.mrf.mxu0
      %v1563 = vadd.f32 0.0, %v1562
      %v1564 = vpop.f32.mrf.mxu0
      %1565 = vmatprep.mubr.bf16.mxu0 0
      %1566 = vmatmul.mubr.bf16.gmra.mxu0 %v1011
      %v1567 = vpop.f32.mrf.mxu0
      %v1568 = vadd.f32 0.0, %v1567
      %v1569 = vpop.f32.mrf.mxu0
      %v1570 = vpop.f32.mrf.mxu0
      %v1571 = vadd.f32 0.0, %v1570
      %v1572 = vpop.f32.mrf.mxu0
      %1573 = vmatprep.mubr.bf16.mxu0 0
      %1574 = vmatmul.mubr.bf16.gmra.mxu0 %v1014
      %v1575 = vpop.f32.mrf.mxu0
      %v1576 = vadd.f32 0.0, %v1575
      %v1577 = vpop.f32.mrf.mxu0
      %v1578 = vpop.f32.mrf.mxu0
      %v1579 = vadd.f32 0.0, %v1578
      %v1580 = vpop.f32.mrf.mxu0
      %1581 = vmatprep.mubr.bf16.mxu0 0
      %1582 = vmatmul.mubr.bf16.gmra.mxu0 %v1017
      %v1583 = vpop.f32.mrf.mxu0
      %v1584 = vadd.f32 0.0, %v1583
      %v1585 = vpop.f32.mrf.mxu0
      %v1586 = vpop.f32.mrf.mxu0
      %v1587 = vadd.f32 0.0, %v1586
      %v1588 = vpop.f32.mrf.mxu0
      %1589 = vmatprep.mubr.bf16.mxu0 0
      %1590 = vmatmul.mubr.bf16.gmra.mxu0 %v1432
      %v1591 = vpop.f32.mrf.mxu0
      %v1592 = vadd.f32 0.0, %v1591
      %v1593 = vpop.f32.mrf.mxu0
      %v1594 = vpop.f32.mrf.mxu0
      %v1595 = vadd.f32 0.0, %v1594
      %v1596 = vpop.f32.mrf.mxu0
      %1597 = vdwg.mxu0
      %v1598 = vadd.f32 %v1397, %v1472
      %v1599 = vadd.f32 %v1398, %v1475
      %v1600 = vadd.f32 %v1399, %v1480
      %v1601 = vadd.f32 %v1400, %v1483
      %v1602 = vadd.f32 %v1401, %v1488
      %v1603 = vadd.f32 %v1402, %v1491
      %v1604 = vadd.f32 %v1403, %v1496
      %v1605 = vadd.f32 %v1404, %v1499
      %v1606 = vadd.f32 %v1405, %v1504
      %v1607 = vadd.f32 %v1406, %v1507
      %v1608 = vadd.f32 %v1407, %v1512
      %v1609 = vadd.f32 %v1408, %v1515
      %v1610 = vadd.f32 %v1409, %v1520
      %v1611 = vadd.f32 %v1410, %v1523
      %v1612 = vadd.f32 %v1411, %v1528
      %v1613 = vadd.f32 %v1412, %v1531
      %v1614 = vadd.f32 %v1413, %v1536
      %v1615 = vadd.f32 %v1414, %v1539
      %v1616 = vadd.f32 %v1415, %v1544
      %v1617 = vadd.f32 %v1416, %v1547
      %v1618 = vadd.f32 %v1417, %v1552
      %v1619 = vadd.f32 %v1418, %v1555
      %v1620 = vadd.f32 %v1419, %v1560
      %v1621 = vadd.f32 %v1420, %v1563
      %v1622 = vadd.f32 %v1421, %v1568
      %v1623 = vadd.f32 %v1422, %v1571
      %v1624 = vadd.f32 %v1423, %v1576
      %v1625 = vadd.f32 %v1424, %v1579
      %v1626 = vadd.f32 %v1425, %v1584
      %v1627 = vadd.f32 %v1426, %v1587
      %v1628 = vadd.f32 %v1427, %v1592
      %v1629 = vadd.f32 %v1428, %v1595
      %s1630 = scalar_lea.vmem %s3, 8
      %v1631 = vld [vmem:[%s1630] sm:$0x3]
      %v1632 = vsel %vm770, %v524, 0
      %v1635 = vand.u32 %v1631, %v806
      %1637 = vmatprep.subr.bf16.mxu0 0
      %1638 = vmatpush1.bf16.msra.mxu0 0
      %1639 = vmatprep.subr.bf16.mxu0 0
      %1640 = vmatpush1.bf16.msra.mxu0 0
      %1641 = vmatprep.subr.bf16.mxu0 0
      %1642 = vmatpush1.bf16.msra.mxu0 0
      %1643 = vmatprep.subr.bf16.mxu0 0
      %1644 = vmatpush1.bf16.msra.mxu0 0
      %1645 = vmatprep.subr.bf16.mxu0 0
      %1646 = vmatpush1.bf16.msra.mxu0 0
      %1647 = vmatprep.subr.bf16.mxu0 0
      %1648 = vmatpush1.bf16.msra.mxu0 0
      %1649 = vmatprep.subr.bf16.mxu0 0
      %1650 = vmatpush1.bf16.msra.mxu0 0
      %1651 = vmatprep.subr.bf16.mxu0 0
      %1652 = vmatpush1.bf16.msra.mxu0 %v1635
      %1653 = vmatprep.subr.bf16.mxu0 0
      %1654 = vmatpush2.bf16.msra.mxu0 0
      %1655 = vmatprep.subr.bf16.mxu0 0
      %1656 = vmatpush2.bf16.msra.mxu0 0
      %1657 = vmatprep.subr.bf16.mxu0 0
      %1658 = vmatpush2.bf16.msra.mxu0 0
      %1659 = vmatprep.subr.bf16.mxu0 0
      %1660 = vmatpush2.bf16.msra.mxu0 0
      %1661 = vmatprep.subr.bf16.mxu0 0
      %1662 = vmatpush2.bf16.msra.mxu0 0
      %1663 = vmatprep.subr.bf16.mxu0 0
      %1664 = vmatpush2.bf16.msra.mxu0 0
      %1665 = vmatprep.subr.bf16.mxu0 0
      %1666 = vmatpush2.bf16.msra.mxu0 0
      %1667 = vmatprep.subr.bf16.mxu0 0
      %1668 = vmatpush2.bf16.msra.mxu0 0
      %1669 = vmatprep.mubr.bf16.mxu0 0
      %1670 = vmatmul.mubr.bf16.gmra.mxu0 %v773
      %v1671 = vpop.f32.mrf.mxu0
      %v1672 = vadd.f32 0.0, %v1671
      %v1673 = vpop.f32.mrf.mxu0
      %v1674 = vpop.f32.mrf.mxu0
      %v1675 = vadd.f32 0.0, %v1674
      %v1676 = vpop.f32.mrf.mxu0
      %1677 = vmatprep.mubr.bf16.mxu0 0
      %1678 = vmatmul.mubr.bf16.gmra.mxu0 %v775
      %v1679 = vpop.f32.mrf.mxu0
      %v1680 = vadd.f32 0.0, %v1679
      %v1681 = vpop.f32.mrf.mxu0
      %v1682 = vpop.f32.mrf.mxu0
      %v1683 = vadd.f32 0.0, %v1682
      %v1684 = vpop.f32.mrf.mxu0
      %1685 = vmatprep.mubr.bf16.mxu0 0
      %1686 = vmatmul.mubr.bf16.gmra.mxu0 %v777
      %v1687 = vpop.f32.mrf.mxu0
      %v1688 = vadd.f32 0.0, %v1687
      %v1689 = vpop.f32.mrf.mxu0
      %v1690 = vpop.f32.mrf.mxu0
      %v1691 = vadd.f32 0.0, %v1690
      %v1692 = vpop.f32.mrf.mxu0
      %1693 = vmatprep.mubr.bf16.mxu0 0
      %1694 = vmatmul.mubr.bf16.gmra.mxu0 %v779
      %v1695 = vpop.f32.mrf.mxu0
      %v1696 = vadd.f32 0.0, %v1695
      %v1697 = vpop.f32.mrf.mxu0
      %v1698 = vpop.f32.mrf.mxu0
      %v1699 = vadd.f32 0.0, %v1698
      %v1700 = vpop.f32.mrf.mxu0
      %1701 = vmatprep.mubr.bf16.mxu0 0
      %1702 = vmatmul.mubr.bf16.gmra.mxu0 %v781
      %v1703 = vpop.f32.mrf.mxu0
      %v1704 = vadd.f32 0.0, %v1703
      %v1705 = vpop.f32.mrf.mxu0
      %v1706 = vpop.f32.mrf.mxu0
      %v1707 = vadd.f32 0.0, %v1706
      %v1708 = vpop.f32.mrf.mxu0
      %1709 = vmatprep.mubr.bf16.mxu0 0
      %1710 = vmatmul.mubr.bf16.gmra.mxu0 %v783
      %v1711 = vpop.f32.mrf.mxu0
      %v1712 = vadd.f32 0.0, %v1711
      %v1713 = vpop.f32.mrf.mxu0
      %v1714 = vpop.f32.mrf.mxu0
      %v1715 = vadd.f32 0.0, %v1714
      %v1716 = vpop.f32.mrf.mxu0
      %1717 = vmatprep.mubr.bf16.mxu0 0
      %1718 = vmatmul.mubr.bf16.gmra.mxu0 %v785
      %v1719 = vpop.f32.mrf.mxu0
      %v1720 = vadd.f32 0.0, %v1719
      %v1721 = vpop.f32.mrf.mxu0
      %v1722 = vpop.f32.mrf.mxu0
      %v1723 = vadd.f32 0.0, %v1722
      %v1724 = vpop.f32.mrf.mxu0
      %1725 = vmatprep.mubr.bf16.mxu0 0
      %1726 = vmatmul.mubr.bf16.gmra.mxu0 %v787
      %v1727 = vpop.f32.mrf.mxu0
      %v1728 = vadd.f32 0.0, %v1727
      %v1729 = vpop.f32.mrf.mxu0
      %v1730 = vpop.f32.mrf.mxu0
      %v1731 = vadd.f32 0.0, %v1730
      %v1732 = vpop.f32.mrf.mxu0
      %1733 = vmatprep.mubr.bf16.mxu0 0
      %1734 = vmatmul.mubr.bf16.gmra.mxu0 %v789
      %v1735 = vpop.f32.mrf.mxu0
      %v1736 = vadd.f32 0.0, %v1735
      %v1737 = vpop.f32.mrf.mxu0
      %v1738 = vpop.f32.mrf.mxu0
      %v1739 = vadd.f32 0.0, %v1738
      %v1740 = vpop.f32.mrf.mxu0
      %1741 = vmatprep.mubr.bf16.mxu0 0
      %1742 = vmatmul.mubr.bf16.gmra.mxu0 %v791
      %v1743 = vpop.f32.mrf.mxu0
      %v1744 = vadd.f32 0.0, %v1743
      %v1745 = vpop.f32.mrf.mxu0
      %v1746 = vpop.f32.mrf.mxu0
      %v1747 = vadd.f32 0.0, %v1746
      %v1748 = vpop.f32.mrf.mxu0
      %1749 = vmatprep.mubr.bf16.mxu0 0
      %1750 = vmatmul.mubr.bf16.gmra.mxu0 %v793
      %v1751 = vpop.f32.mrf.mxu0
      %v1752 = vadd.f32 0.0, %v1751
      %v1753 = vpop.f32.mrf.mxu0
      %v1754 = vpop.f32.mrf.mxu0
      %v1755 = vadd.f32 0.0, %v1754
      %v1756 = vpop.f32.mrf.mxu0
      %1757 = vmatprep.mubr.bf16.mxu0 0
      %1758 = vmatmul.mubr.bf16.gmra.mxu0 %v795
      %v1759 = vpop.f32.mrf.mxu0
      %v1760 = vadd.f32 0.0, %v1759
      %v1761 = vpop.f32.mrf.mxu0
      %v1762 = vpop.f32.mrf.mxu0
      %v1763 = vadd.f32 0.0, %v1762
      %v1764 = vpop.f32.mrf.mxu0
      %1765 = vmatprep.mubr.bf16.mxu0 0
      %1766 = vmatmul.mubr.bf16.gmra.mxu0 %v797
      %v1767 = vpop.f32.mrf.mxu0
      %v1768 = vadd.f32 0.0, %v1767
      %v1769 = vpop.f32.mrf.mxu0
      %v1770 = vpop.f32.mrf.mxu0
      %v1771 = vadd.f32 0.0, %v1770
      %v1772 = vpop.f32.mrf.mxu0
      %1773 = vmatprep.mubr.bf16.mxu0 0
      %1774 = vmatmul.mubr.bf16.gmra.mxu0 %v799
      %v1775 = vpop.f32.mrf.mxu0
      %v1776 = vadd.f32 0.0, %v1775
      %v1777 = vpop.f32.mrf.mxu0
      %v1778 = vpop.f32.mrf.mxu0
      %v1779 = vadd.f32 0.0, %v1778
      %v1780 = vpop.f32.mrf.mxu0
      %1781 = vmatprep.mubr.bf16.mxu0 0
      %1782 = vmatmul.mubr.bf16.gmra.mxu0 %v801
      %v1783 = vpop.f32.mrf.mxu0
      %v1784 = vadd.f32 0.0, %v1783
      %v1785 = vpop.f32.mrf.mxu0
      %v1786 = vpop.f32.mrf.mxu0
      %v1787 = vadd.f32 0.0, %v1786
      %v1788 = vpop.f32.mrf.mxu0
      %1789 = vmatprep.mubr.bf16.mxu0 0
      %1790 = vmatmul.mubr.bf16.gmra.mxu0 %v1632
      %v1791 = vpop.f32.mrf.mxu0
      %v1792 = vadd.f32 0.0, %v1791
      %v1793 = vpop.f32.mrf.mxu0
      %v1794 = vpop.f32.mrf.mxu0
      %v1795 = vadd.f32 0.0, %v1794
      %v1796 = vpop.f32.mrf.mxu0
      %1797 = vdwg.mxu0
      %v1798 = vadd.f32 %v1598, %v1672
      %v1799 = vadd.f32 %v1599, %v1675
      %v1800 = vadd.f32 %v1600, %v1680
      %v1801 = vadd.f32 %v1601, %v1683
      %v1802 = vadd.f32 %v1602, %v1688
      %v1803 = vadd.f32 %v1603, %v1691
      %v1804 = vadd.f32 %v1604, %v1696
      %v1805 = vadd.f32 %v1605, %v1699
      %v1806 = vadd.f32 %v1606, %v1704
      %v1807 = vadd.f32 %v1607, %v1707
      %v1808 = vadd.f32 %v1608, %v1712
      %v1809 = vadd.f32 %v1609, %v1715
      %v1810 = vadd.f32 %v1610, %v1720
      %v1811 = vadd.f32 %v1611, %v1723
      %v1812 = vadd.f32 %v1612, %v1728
      %v1813 = vadd.f32 %v1613, %v1731
      %v1814 = vadd.f32 %v1614, %v1736
      %v1815 = vadd.f32 %v1615, %v1739
      %v1816 = vadd.f32 %v1616, %v1744
      %v1817 = vadd.f32 %v1617, %v1747
      %v1818 = vadd.f32 %v1618, %v1752
      %v1819 = vadd.f32 %v1619, %v1755
      %v1820 = vadd.f32 %v1620, %v1760
      %v1821 = vadd.f32 %v1621, %v1763
      %v1822 = vadd.f32 %v1622, %v1768
      %v1823 = vadd.f32 %v1623, %v1771
      %v1824 = vadd.f32 %v1624, %v1776
      %v1825 = vadd.f32 %v1625, %v1779
      %v1826 = vadd.f32 %v1626, %v1784
      %v1827 = vadd.f32 %v1627, %v1787
      %v1828 = vadd.f32 %v1628, %v1792
      %v1829 = vadd.f32 %v1629, %v1795
      %s1830 = scalar_lea.vmem %s3, 10
      %v1831 = vld [vmem:[%s1830] sm:$0x3]
      %v1833 = vsel %vm770, %v764, 0
      %v1836 = vand.u32 %v1831, %v806
      %1838 = vmatprep.subr.bf16.mxu0 0
      %1839 = vmatpush1.bf16.msra.mxu0 0
      %1840 = vmatprep.subr.bf16.mxu0 0
      %1841 = vmatpush1.bf16.msra.mxu0 0
      %1842 = vmatprep.subr.bf16.mxu0 0
      %1843 = vmatpush1.bf16.msra.mxu0 0
      %1844 = vmatprep.subr.bf16.mxu0 0
      %1845 = vmatpush1.bf16.msra.mxu0 0
      %1846 = vmatprep.subr.bf16.mxu0 0
      %1847 = vmatpush1.bf16.msra.mxu0 0
      %1848 = vmatprep.subr.bf16.mxu0 0
      %1849 = vmatpush1.bf16.msra.mxu0 0
      %1850 = vmatprep.subr.bf16.mxu0 0
      %1851 = vmatpush1.bf16.msra.mxu0 0
      %1852 = vmatprep.subr.bf16.mxu0 0
      %1853 = vmatpush1.bf16.msra.mxu0 %v1836
      %1854 = vmatprep.subr.bf16.mxu0 0
      %1855 = vmatpush2.bf16.msra.mxu0 0
      %1856 = vmatprep.subr.bf16.mxu0 0
      %1857 = vmatpush2.bf16.msra.mxu0 0
      %1858 = vmatprep.subr.bf16.mxu0 0
      %1859 = vmatpush2.bf16.msra.mxu0 0
      %1860 = vmatprep.subr.bf16.mxu0 0
      %1861 = vmatpush2.bf16.msra.mxu0 0
      %1862 = vmatprep.subr.bf16.mxu0 0
      %1863 = vmatpush2.bf16.msra.mxu0 0
      %1864 = vmatprep.subr.bf16.mxu0 0
      %1865 = vmatpush2.bf16.msra.mxu0 0
      %1866 = vmatprep.subr.bf16.mxu0 0
      %1867 = vmatpush2.bf16.msra.mxu0 0
      %1868 = vmatprep.subr.bf16.mxu0 0
      %1869 = vmatpush2.bf16.msra.mxu0 0
      %1870 = vmatprep.mubr.bf16.mxu0 0
      %1871 = vmatmul.mubr.bf16.gmra.mxu0 %v1189
      %v1872 = vpop.f32.mrf.mxu0
      %v1873 = vadd.f32 0.0, %v1872
      %v1874 = vpop.f32.mrf.mxu0
      %v1875 = vpop.f32.mrf.mxu0
      %v1876 = vadd.f32 0.0, %v1875
      %v1877 = vpop.f32.mrf.mxu0
      %1878 = vmatprep.mubr.bf16.mxu0 0
      %1879 = vmatmul.mubr.bf16.gmra.mxu0 %v1192
      %v1880 = vpop.f32.mrf.mxu0
      %v1881 = vadd.f32 0.0, %v1880
      %v1882 = vpop.f32.mrf.mxu0
      %v1883 = vpop.f32.mrf.mxu0
      %v1884 = vadd.f32 0.0, %v1883
      %v1885 = vpop.f32.mrf.mxu0
      %1886 = vmatprep.mubr.bf16.mxu0 0
      %1887 = vmatmul.mubr.bf16.gmra.mxu0 %v1195
      %v1888 = vpop.f32.mrf.mxu0
      %v1889 = vadd.f32 0.0, %v1888
      %v1890 = vpop.f32.mrf.mxu0
      %v1891 = vpop.f32.mrf.mxu0
      %v1892 = vadd.f32 0.0, %v1891
      %v1893 = vpop.f32.mrf.mxu0
      %1894 = vmatprep.mubr.bf16.mxu0 0
      %1895 = vmatmul.mubr.bf16.gmra.mxu0 %v1198
      %v1896 = vpop.f32.mrf.mxu0
      %v1897 = vadd.f32 0.0, %v1896
      %v1898 = vpop.f32.mrf.mxu0
      %v1899 = vpop.f32.mrf.mxu0
      %v1900 = vadd.f32 0.0, %v1899
      %v1901 = vpop.f32.mrf.mxu0
      %1902 = vmatprep.mubr.bf16.mxu0 0
      %1903 = vmatmul.mubr.bf16.gmra.mxu0 %v1201
      %v1904 = vpop.f32.mrf.mxu0
      %v1905 = vadd.f32 0.0, %v1904
      %v1906 = vpop.f32.mrf.mxu0
      %v1907 = vpop.f32.mrf.mxu0
      %v1908 = vadd.f32 0.0, %v1907
      %v1909 = vpop.f32.mrf.mxu0
      %1910 = vmatprep.mubr.bf16.mxu0 0
      %1911 = vmatmul.mubr.bf16.gmra.mxu0 %v1204
      %v1912 = vpop.f32.mrf.mxu0
      %v1913 = vadd.f32 0.0, %v1912
      %v1914 = vpop.f32.mrf.mxu0
      %v1915 = vpop.f32.mrf.mxu0
      %v1916 = vadd.f32 0.0, %v1915
      %v1917 = vpop.f32.mrf.mxu0
      %1918 = vmatprep.mubr.bf16.mxu0 0
      %1919 = vmatmul.mubr.bf16.gmra.mxu0 %v1207
      %v1920 = vpop.f32.mrf.mxu0
      %v1921 = vadd.f32 0.0, %v1920
      %v1922 = vpop.f32.mrf.mxu0
      %v1923 = vpop.f32.mrf.mxu0
      %v1924 = vadd.f32 0.0, %v1923
      %v1925 = vpop.f32.mrf.mxu0
      %1926 = vmatprep.mubr.bf16.mxu0 0
      %1927 = vmatmul.mubr.bf16.gmra.mxu0 %v1210
      %v1928 = vpop.f32.mrf.mxu0
      %v1929 = vadd.f32 0.0, %v1928
      %v1930 = vpop.f32.mrf.mxu0
      %v1931 = vpop.f32.mrf.mxu0
      %v1932 = vadd.f32 0.0, %v1931
      %v1933 = vpop.f32.mrf.mxu0
      %1934 = vmatprep.mubr.bf16.mxu0 0
      %1935 = vmatmul.mubr.bf16.gmra.mxu0 %v1213
      %v1936 = vpop.f32.mrf.mxu0
      %v1937 = vadd.f32 0.0, %v1936
      %v1938 = vpop.f32.mrf.mxu0
      %v1939 = vpop.f32.mrf.mxu0
      %v1940 = vadd.f32 0.0, %v1939
      %v1941 = vpop.f32.mrf.mxu0
      %1942 = vmatprep.mubr.bf16.mxu0 0
      %1943 = vmatmul.mubr.bf16.gmra.mxu0 %v1216
      %v1944 = vpop.f32.mrf.mxu0
      %v1945 = vadd.f32 0.0, %v1944
      %v1946 = vpop.f32.mrf.mxu0
      %v1947 = vpop.f32.mrf.mxu0
      %v1948 = vadd.f32 0.0, %v1947
      %v1949 = vpop.f32.mrf.mxu0
      %1950 = vmatprep.mubr.bf16.mxu0 0
      %1951 = vmatmul.mubr.bf16.gmra.mxu0 %v1219
      %v1952 = vpop.f32.mrf.mxu0
      %v1953 = vadd.f32 0.0, %v1952
      %v1954 = vpop.f32.mrf.mxu0
      %v1955 = vpop.f32.mrf.mxu0
      %v1956 = vadd.f32 0.0, %v1955
      %v1957 = vpop.f32.mrf.mxu0
      %1958 = vmatprep.mubr.bf16.mxu0 0
      %1959 = vmatmul.mubr.bf16.gmra.mxu0 %v1222
      %v1960 = vpop.f32.mrf.mxu0
      %v1961 = vadd.f32 0.0, %v1960
      %v1962 = vpop.f32.mrf.mxu0
      %v1963 = vpop.f32.mrf.mxu0
      %v1964 = vadd.f32 0.0, %v1963
      %v1965 = vpop.f32.mrf.mxu0
      %1966 = vmatprep.mubr.bf16.mxu0 0
      %1967 = vmatmul.mubr.bf16.gmra.mxu0 %v1225
      %v1968 = vpop.f32.mrf.mxu0
      %v1969 = vadd.f32 0.0, %v1968
      %v1970 = vpop.f32.mrf.mxu0
      %v1971 = vpop.f32.mrf.mxu0
      %v1972 = vadd.f32 0.0, %v1971
      %v1973 = vpop.f32.mrf.mxu0
      %1974 = vmatprep.mubr.bf16.mxu0 0
      %1975 = vmatmul.mubr.bf16.gmra.mxu0 %v1228
      %v1976 = vpop.f32.mrf.mxu0
      %v1977 = vadd.f32 0.0, %v1976
      %v1978 = vpop.f32.mrf.mxu0
      %v1979 = vpop.f32.mrf.mxu0
      %v1980 = vadd.f32 0.0, %v1979
      %v1981 = vpop.f32.mrf.mxu0
      %1982 = vmatprep.mubr.bf16.mxu0 0
      %1983 = vmatmul.mubr.bf16.gmra.mxu0 %v1231
      %v1984 = vpop.f32.mrf.mxu0
      %v1985 = vadd.f32 0.0, %v1984
      %v1986 = vpop.f32.mrf.mxu0
      %v1987 = vpop.f32.mrf.mxu0
      %v1988 = vadd.f32 0.0, %v1987
      %v1989 = vpop.f32.mrf.mxu0
      %1990 = vmatprep.mubr.bf16.mxu0 0
      %1991 = vmatmul.mubr.bf16.gmra.mxu0 %v1833
      %v1992 = vpop.f32.mrf.mxu0
      %v1993 = vadd.f32 0.0, %v1992
      %v1994 = vpop.f32.mrf.mxu0
      %v1995 = vpop.f32.mrf.mxu0
      %v1996 = vadd.f32 0.0, %v1995
      %v1997 = vpop.f32.mrf.mxu0
      %1998 = vdwg.mxu0
      %v1999 = vadd.f32 %v1798, %v1873
      %v2000 = vadd.f32 %v1799, %v1876
      %v2001 = vadd.f32 %v1800, %v1881
      %v2002 = vadd.f32 %v1801, %v1884
      %v2003 = vadd.f32 %v1802, %v1889
      %v2004 = vadd.f32 %v1803, %v1892
      %v2005 = vadd.f32 %v1804, %v1897
      %v2006 = vadd.f32 %v1805, %v1900
      %v2007 = vadd.f32 %v1806, %v1905
      %v2008 = vadd.f32 %v1807, %v1908
      %v2009 = vadd.f32 %v1808, %v1913
      %v2010 = vadd.f32 %v1809, %v1916
      %v2011 = vadd.f32 %v1810, %v1921
      %v2012 = vadd.f32 %v1811, %v1924
      %v2013 = vadd.f32 %v1812, %v1929
      %v2014 = vadd.f32 %v1813, %v1932
      %v2015 = vadd.f32 %v1814, %v1937
      %v2016 = vadd.f32 %v1815, %v1940
      %v2017 = vadd.f32 %v1816, %v1945
      %v2018 = vadd.f32 %v1817, %v1948
      %v2019 = vadd.f32 %v1818, %v1953
      %v2020 = vadd.f32 %v1819, %v1956
      %v2021 = vadd.f32 %v1820, %v1961
      %v2022 = vadd.f32 %v1821, %v1964
      %v2023 = vadd.f32 %v1822, %v1969
      %v2024 = vadd.f32 %v1823, %v1972
      %v2025 = vadd.f32 %v1824, %v1977
      %v2026 = vadd.f32 %v1825, %v1980
      %v2027 = vadd.f32 %v1826, %v1985
      %v2028 = vadd.f32 %v1827, %v1988
      %v2029 = vadd.f32 %v1828, %v1993
      %v2030 = vadd.f32 %v1829, %v1996
      %s2031 = scalar_lea.vmem %s3, 12
      %v2032 = vld [vmem:[%s2031] sm:$0x3]
      %v2034 = vsel %vm770, %v690, 0
      %v2037 = vand.u32 %v2032, %v806
      %2039 = vmatprep.subr.bf16.mxu0 0
      %2040 = vmatpush1.bf16.msra.mxu0 0
      %2041 = vmatprep.subr.bf16.mxu0 0
      %2042 = vmatpush1.bf16.msra.mxu0 0
      %2043 = vmatprep.subr.bf16.mxu0 0
      %2044 = vmatpush1.bf16.msra.mxu0 0
      %2045 = vmatprep.subr.bf16.mxu0 0
      %2046 = vmatpush1.bf16.msra.mxu0 0
      %2047 = vmatprep.subr.bf16.mxu0 0
      %2048 = vmatpush1.bf16.msra.mxu0 0
      %2049 = vmatprep.subr.bf16.mxu0 0
      %2050 = vmatpush1.bf16.msra.mxu0 0
      %2051 = vmatprep.subr.bf16.mxu0 0
      %2052 = vmatpush1.bf16.msra.mxu0 0
      %2053 = vmatprep.subr.bf16.mxu0 0
      %2054 = vmatpush1.bf16.msra.mxu0 %v2037
      %2055 = vmatprep.subr.bf16.mxu0 0
      %2056 = vmatpush2.bf16.msra.mxu0 0
      %2057 = vmatprep.subr.bf16.mxu0 0
      %2058 = vmatpush2.bf16.msra.mxu0 0
      %2059 = vmatprep.subr.bf16.mxu0 0
      %2060 = vmatpush2.bf16.msra.mxu0 0
      %2061 = vmatprep.subr.bf16.mxu0 0
      %2062 = vmatpush2.bf16.msra.mxu0 0
      %2063 = vmatprep.subr.bf16.mxu0 0
      %2064 = vmatpush2.bf16.msra.mxu0 0
      %2065 = vmatprep.subr.bf16.mxu0 0
      %2066 = vmatpush2.bf16.msra.mxu0 0
      %2067 = vmatprep.subr.bf16.mxu0 0
      %2068 = vmatpush2.bf16.msra.mxu0 0
      %2069 = vmatprep.subr.bf16.mxu0 0
      %2070 = vmatpush2.bf16.msra.mxu0 0
      %2071 = vmatprep.mubr.bf16.mxu0 0
      %2072 = vmatmul.mubr.bf16.gmra.mxu0 %v978
      %v2073 = vpop.f32.mrf.mxu0
      %v2074 = vadd.f32 0.0, %v2073
      %v2075 = vpop.f32.mrf.mxu0
      %v2076 = vpop.f32.mrf.mxu0
      %v2077 = vadd.f32 0.0, %v2076
      %v2078 = vpop.f32.mrf.mxu0
      %2079 = vmatprep.mubr.bf16.mxu0 0
      %2080 = vmatmul.mubr.bf16.gmra.mxu0 %v981
      %v2081 = vpop.f32.mrf.mxu0
      %v2082 = vadd.f32 0.0, %v2081
      %v2083 = vpop.f32.mrf.mxu0
      %v2084 = vpop.f32.mrf.mxu0
      %v2085 = vadd.f32 0.0, %v2084
      %v2086 = vpop.f32.mrf.mxu0
      %2087 = vmatprep.mubr.bf16.mxu0 0
      %2088 = vmatmul.mubr.bf16.gmra.mxu0 %v984
      %v2089 = vpop.f32.mrf.mxu0
      %v2090 = vadd.f32 0.0, %v2089
      %v2091 = vpop.f32.mrf.mxu0
      %v2092 = vpop.f32.mrf.mxu0
      %v2093 = vadd.f32 0.0, %v2092
      %v2094 = vpop.f32.mrf.mxu0
      %2095 = vmatprep.mubr.bf16.mxu0 0
      %2096 = vmatmul.mubr.bf16.gmra.mxu0 %v987
      %v2097 = vpop.f32.mrf.mxu0
      %v2098 = vadd.f32 0.0, %v2097
      %v2099 = vpop.f32.mrf.mxu0
      %v2100 = vpop.f32.mrf.mxu0
      %v2101 = vadd.f32 0.0, %v2100
      %v2102 = vpop.f32.mrf.mxu0
      %2103 = vmatprep.mubr.bf16.mxu0 0
      %2104 = vmatmul.mubr.bf16.gmra.mxu0 %v990
      %v2105 = vpop.f32.mrf.mxu0
      %v2106 = vadd.f32 0.0, %v2105
      %v2107 = vpop.f32.mrf.mxu0
      %v2108 = vpop.f32.mrf.mxu0
      %v2109 = vadd.f32 0.0, %v2108
      %v2110 = vpop.f32.mrf.mxu0
      %2111 = vmatprep.mubr.bf16.mxu0 0
      %2112 = vmatmul.mubr.bf16.gmra.mxu0 %v993
      %v2113 = vpop.f32.mrf.mxu0
      %v2114 = vadd.f32 0.0, %v2113
      %v2115 = vpop.f32.mrf.mxu0
      %v2116 = vpop.f32.mrf.mxu0
      %v2117 = vadd.f32 0.0, %v2116
      %v2118 = vpop.f32.mrf.mxu0
      %2119 = vmatprep.mubr.bf16.mxu0 0
      %2120 = vmatmul.mubr.bf16.gmra.mxu0 %v996
      %v2121 = vpop.f32.mrf.mxu0
      %v2122 = vadd.f32 0.0, %v2121
      %v2123 = vpop.f32.mrf.mxu0
      %v2124 = vpop.f32.mrf.mxu0
      %v2125 = vadd.f32 0.0, %v2124
      %v2126 = vpop.f32.mrf.mxu0
      %2127 = vmatprep.mubr.bf16.mxu0 0
      %2128 = vmatmul.mubr.bf16.gmra.mxu0 %v999
      %v2129 = vpop.f32.mrf.mxu0
      %v2130 = vadd.f32 0.0, %v2129
      %v2131 = vpop.f32.mrf.mxu0
      %v2132 = vpop.f32.mrf.mxu0
      %v2133 = vadd.f32 0.0, %v2132
      %v2134 = vpop.f32.mrf.mxu0
      %2135 = vmatprep.mubr.bf16.mxu0 0
      %2136 = vmatmul.mubr.bf16.gmra.mxu0 %v1002
      %v2137 = vpop.f32.mrf.mxu0
      %v2138 = vadd.f32 0.0, %v2137
      %v2139 = vpop.f32.mrf.mxu0
      %v2140 = vpop.f32.mrf.mxu0
      %v2141 = vadd.f32 0.0, %v2140
      %v2142 = vpop.f32.mrf.mxu0
      %2143 = vmatprep.mubr.bf16.mxu0 0
      %2144 = vmatmul.mubr.bf16.gmra.mxu0 %v1005
      %v2145 = vpop.f32.mrf.mxu0
      %v2146 = vadd.f32 0.0, %v2145
      %v2147 = vpop.f32.mrf.mxu0
      %v2148 = vpop.f32.mrf.mxu0
      %v2149 = vadd.f32 0.0, %v2148
      %v2150 = vpop.f32.mrf.mxu0
      %2151 = vmatprep.mubr.bf16.mxu0 0
      %2152 = vmatmul.mubr.bf16.gmra.mxu0 %v1008
      %v2153 = vpop.f32.mrf.mxu0
      %v2154 = vadd.f32 0.0, %v2153
      %v2155 = vpop.f32.mrf.mxu0
      %v2156 = vpop.f32.mrf.mxu0
      %v2157 = vadd.f32 0.0, %v2156
      %v2158 = vpop.f32.mrf.mxu0
      %2159 = vmatprep.mubr.bf16.mxu0 0
      %2160 = vmatmul.mubr.bf16.gmra.mxu0 %v1011
      %v2161 = vpop.f32.mrf.mxu0
      %v2162 = vadd.f32 0.0, %v2161
      %v2163 = vpop.f32.mrf.mxu0
      %v2164 = vpop.f32.mrf.mxu0
      %v2165 = vadd.f32 0.0, %v2164
      %v2166 = vpop.f32.mrf.mxu0
      %2167 = vmatprep.mubr.bf16.mxu0 0
      %2168 = vmatmul.mubr.bf16.gmra.mxu0 %v1014
      %v2169 = vpop.f32.mrf.mxu0
      %v2170 = vadd.f32 0.0, %v2169
      %v2171 = vpop.f32.mrf.mxu0
      %v2172 = vpop.f32.mrf.mxu0
      %v2173 = vadd.f32 0.0, %v2172
      %v2174 = vpop.f32.mrf.mxu0
      %2175 = vmatprep.mubr.bf16.mxu0 0
      %2176 = vmatmul.mubr.bf16.gmra.mxu0 %v1017
      %v2177 = vpop.f32.mrf.mxu0
      %v2178 = vadd.f32 0.0, %v2177
      %v2179 = vpop.f32.mrf.mxu0
      %v2180 = vpop.f32.mrf.mxu0
      %v2181 = vadd.f32 0.0, %v2180
      %v2182 = vpop.f32.mrf.mxu0
      %2183 = vmatprep.mubr.bf16.mxu0 0
      %2184 = vmatmul.mubr.bf16.gmra.mxu0 %v1432
      %v2185 = vpop.f32.mrf.mxu0
      %v2186 = vadd.f32 0.0, %v2185
      %v2187 = vpop.f32.mrf.mxu0
      %v2188 = vpop.f32.mrf.mxu0
      %v2189 = vadd.f32 0.0, %v2188
      %v2190 = vpop.f32.mrf.mxu0
      %2191 = vmatprep.mubr.bf16.mxu0 0
      %2192 = vmatmul.mubr.bf16.gmra.mxu0 %v2034
      %v2193 = vpop.f32.mrf.mxu0
      %v2194 = vadd.f32 0.0, %v2193
      %v2195 = vpop.f32.mrf.mxu0
      %v2196 = vpop.f32.mrf.mxu0
      %v2197 = vadd.f32 0.0, %v2196
      %v2198 = vpop.f32.mrf.mxu0
      %2199 = vdwg.mxu0
      %v2200 = vadd.f32 %v1999, %v2074
      %v2201 = vadd.f32 %v2000, %v2077
      %v2202 = vadd.f32 %v2001, %v2082
      %v2203 = vadd.f32 %v2002, %v2085
      %v2204 = vadd.f32 %v2003, %v2090
      %v2205 = vadd.f32 %v2004, %v2093
      %v2206 = vadd.f32 %v2005, %v2098
      %v2207 = vadd.f32 %v2006, %v2101
      %v2208 = vadd.f32 %v2007, %v2106
      %v2209 = vadd.f32 %v2008, %v2109
      %v2210 = vadd.f32 %v2009, %v2114
      %v2211 = vadd.f32 %v2010, %v2117
      %v2212 = vadd.f32 %v2011, %v2122
      %v2213 = vadd.f32 %v2012, %v2125
      %v2214 = vadd.f32 %v2013, %v2130
      %v2215 = vadd.f32 %v2014, %v2133
      %v2216 = vadd.f32 %v2015, %v2138
      %v2217 = vadd.f32 %v2016, %v2141
      %v2218 = vadd.f32 %v2017, %v2146
      %v2219 = vadd.f32 %v2018, %v2149
      %v2220 = vadd.f32 %v2019, %v2154
      %v2221 = vadd.f32 %v2020, %v2157
      %v2222 = vadd.f32 %v2021, %v2162
      %v2223 = vadd.f32 %v2022, %v2165
      %v2224 = vadd.f32 %v2023, %v2170
      %v2225 = vadd.f32 %v2024, %v2173
      %v2226 = vadd.f32 %v2025, %v2178
      %v2227 = vadd.f32 %v2026, %v2181
      %v2228 = vadd.f32 %v2027, %v2186
      %v2229 = vadd.f32 %v2028, %v2189
      %v2230 = vadd.f32 %v2029, %v2194
      %v2231 = vadd.f32 %v2030, %v2197
      %s2232 = scalar_lea.vmem %s3, 14
      %v2233 = vld [vmem:[%s2232] sm:$0x3]
      %v2234 = vsel %vm770, %v525, 0
      %v2237 = vand.u32 %v2233, %v806
      %2239 = vmatprep.subr.bf16.mxu0 0
      %2240 = vmatpush1.bf16.msra.mxu0 0
      %2241 = vmatprep.subr.bf16.mxu0 0
      %2242 = vmatpush1.bf16.msra.mxu0 0
      %2243 = vmatprep.subr.bf16.mxu0 0
      %2244 = vmatpush1.bf16.msra.mxu0 0
      %2245 = vmatprep.subr.bf16.mxu0 0
      %2246 = vmatpush1.bf16.msra.mxu0 0
      %2247 = vmatprep.subr.bf16.mxu0 0
      %2248 = vmatpush1.bf16.msra.mxu0 0
      %2249 = vmatprep.subr.bf16.mxu0 0
      %2250 = vmatpush1.bf16.msra.mxu0 0
      %2251 = vmatprep.subr.bf16.mxu0 0
      %2252 = vmatpush1.bf16.msra.mxu0 0
      %2253 = vmatprep.subr.bf16.mxu0 0
      %2254 = vmatpush1.bf16.msra.mxu0 %v2237
      %2255 = vmatprep.subr.bf16.mxu0 0
      %2256 = vmatpush2.bf16.msra.mxu0 0
      %2257 = vmatprep.subr.bf16.mxu0 0
      %2258 = vmatpush2.bf16.msra.mxu0 0
      %2259 = vmatprep.subr.bf16.mxu0 0
      %2260 = vmatpush2.bf16.msra.mxu0 0
      %2261 = vmatprep.subr.bf16.mxu0 0
      %2262 = vmatpush2.bf16.msra.mxu0 0
      %2263 = vmatprep.subr.bf16.mxu0 0
      %2264 = vmatpush2.bf16.msra.mxu0 0
      %2265 = vmatprep.subr.bf16.mxu0 0
      %2266 = vmatpush2.bf16.msra.mxu0 0
      %2267 = vmatprep.subr.bf16.mxu0 0
      %2268 = vmatpush2.bf16.msra.mxu0 0
      %2269 = vmatprep.subr.bf16.mxu0 0
      %2270 = vmatpush2.bf16.msra.mxu0 0
      %2271 = vmatprep.mubr.bf16.mxu0 0
      %2272 = vmatmul.mubr.bf16.gmra.mxu0 %v775
      %v2273 = vpop.f32.mrf.mxu0
      %v2274 = vadd.f32 0.0, %v2273
      %v2275 = vpop.f32.mrf.mxu0
      %v2276 = vpop.f32.mrf.mxu0
      %v2277 = vadd.f32 0.0, %v2276
      %v2278 = vpop.f32.mrf.mxu0
      %2279 = vmatprep.mubr.bf16.mxu0 0
      %2280 = vmatmul.mubr.bf16.gmra.mxu0 %v777
      %v2281 = vpop.f32.mrf.mxu0
      %v2282 = vadd.f32 0.0, %v2281
      %v2283 = vpop.f32.mrf.mxu0
      %v2284 = vpop.f32.mrf.mxu0
      %v2285 = vadd.f32 0.0, %v2284
      %v2286 = vpop.f32.mrf.mxu0
      %2287 = vmatprep.mubr.bf16.mxu0 0
      %2288 = vmatmul.mubr.bf16.gmra.mxu0 %v779
      %v2289 = vpop.f32.mrf.mxu0
      %v2290 = vadd.f32 0.0, %v2289
      %v2291 = vpop.f32.mrf.mxu0
      %v2292 = vpop.f32.mrf.mxu0
      %v2293 = vadd.f32 0.0, %v2292
      %v2294 = vpop.f32.mrf.mxu0
      %2295 = vmatprep.mubr.bf16.mxu0 0
      %2296 = vmatmul.mubr.bf16.gmra.mxu0 %v781
      %v2297 = vpop.f32.mrf.mxu0
      %v2298 = vadd.f32 0.0, %v2297
      %v2299 = vpop.f32.mrf.mxu0
      %v2300 = vpop.f32.mrf.mxu0
      %v2301 = vadd.f32 0.0, %v2300
      %v2302 = vpop.f32.mrf.mxu0
      %2303 = vmatprep.mubr.bf16.mxu0 0
      %2304 = vmatmul.mubr.bf16.gmra.mxu0 %v783
      %v2305 = vpop.f32.mrf.mxu0
      %v2306 = vadd.f32 0.0, %v2305
      %v2307 = vpop.f32.mrf.mxu0
      %v2308 = vpop.f32.mrf.mxu0
      %v2309 = vadd.f32 0.0, %v2308
      %v2310 = vpop.f32.mrf.mxu0
      %2311 = vmatprep.mubr.bf16.mxu0 0
      %2312 = vmatmul.mubr.bf16.gmra.mxu0 %v785
      %v2313 = vpop.f32.mrf.mxu0
      %v2314 = vadd.f32 0.0, %v2313
      %v2315 = vpop.f32.mrf.mxu0
      %v2316 = vpop.f32.mrf.mxu0
      %v2317 = vadd.f32 0.0, %v2316
      %v2318 = vpop.f32.mrf.mxu0
      %2319 = vmatprep.mubr.bf16.mxu0 0
      %2320 = vmatmul.mubr.bf16.gmra.mxu0 %v787
      %v2321 = vpop.f32.mrf.mxu0
      %v2322 = vadd.f32 0.0, %v2321
      %v2323 = vpop.f32.mrf.mxu0
      %v2324 = vpop.f32.mrf.mxu0
      %v2325 = vadd.f32 0.0, %v2324
      %v2326 = vpop.f32.mrf.mxu0
      %2327 = vmatprep.mubr.bf16.mxu0 0
      %2328 = vmatmul.mubr.bf16.gmra.mxu0 %v789
      %v2329 = vpop.f32.mrf.mxu0
      %v2330 = vadd.f32 0.0, %v2329
      %v2331 = vpop.f32.mrf.mxu0
      %v2332 = vpop.f32.mrf.mxu0
      %v2333 = vadd.f32 0.0, %v2332
      %v2334 = vpop.f32.mrf.mxu0
      %2335 = vmatprep.mubr.bf16.mxu0 0
      %2336 = vmatmul.mubr.bf16.gmra.mxu0 %v791
      %v2337 = vpop.f32.mrf.mxu0
      %v2338 = vadd.f32 0.0, %v2337
      %v2339 = vpop.f32.mrf.mxu0
      %v2340 = vpop.f32.mrf.mxu0
      %v2341 = vadd.f32 0.0, %v2340
      %v2342 = vpop.f32.mrf.mxu0
      %2343 = vmatprep.mubr.bf16.mxu0 0
      %2344 = vmatmul.mubr.bf16.gmra.mxu0 %v793
      %v2345 = vpop.f32.mrf.mxu0
      %v2346 = vadd.f32 0.0, %v2345
      %v2347 = vpop.f32.mrf.mxu0
      %v2348 = vpop.f32.mrf.mxu0
      %v2349 = vadd.f32 0.0, %v2348
      %v2350 = vpop.f32.mrf.mxu0
      %2351 = vmatprep.mubr.bf16.mxu0 0
      %2352 = vmatmul.mubr.bf16.gmra.mxu0 %v795
      %v2353 = vpop.f32.mrf.mxu0
      %v2354 = vadd.f32 0.0, %v2353
      %v2355 = vpop.f32.mrf.mxu0
      %v2356 = vpop.f32.mrf.mxu0
      %v2357 = vadd.f32 0.0, %v2356
      %v2358 = vpop.f32.mrf.mxu0
      %2359 = vmatprep.mubr.bf16.mxu0 0
      %2360 = vmatmul.mubr.bf16.gmra.mxu0 %v797
      %v2361 = vpop.f32.mrf.mxu0
      %v2362 = vadd.f32 0.0, %v2361
      %v2363 = vpop.f32.mrf.mxu0
      %v2364 = vpop.f32.mrf.mxu0
      %v2365 = vadd.f32 0.0, %v2364
      %v2366 = vpop.f32.mrf.mxu0
      %2367 = vmatprep.mubr.bf16.mxu0 0
      %2368 = vmatmul.mubr.bf16.gmra.mxu0 %v799
      %v2369 = vpop.f32.mrf.mxu0
      %v2370 = vadd.f32 0.0, %v2369
      %v2371 = vpop.f32.mrf.mxu0
      %v2372 = vpop.f32.mrf.mxu0
      %v2373 = vadd.f32 0.0, %v2372
      %v2374 = vpop.f32.mrf.mxu0
      %2375 = vmatprep.mubr.bf16.mxu0 0
      %2376 = vmatmul.mubr.bf16.gmra.mxu0 %v801
      %v2377 = vpop.f32.mrf.mxu0
      %v2378 = vadd.f32 0.0, %v2377
      %v2379 = vpop.f32.mrf.mxu0
      %v2380 = vpop.f32.mrf.mxu0
      %v2381 = vadd.f32 0.0, %v2380
      %v2382 = vpop.f32.mrf.mxu0
      %2383 = vmatprep.mubr.bf16.mxu0 0
      %2384 = vmatmul.mubr.bf16.gmra.mxu0 %v1632
      %v2385 = vpop.f32.mrf.mxu0
      %v2386 = vadd.f32 0.0, %v2385
      %v2387 = vpop.f32.mrf.mxu0
      %v2388 = vpop.f32.mrf.mxu0
      %v2389 = vadd.f32 0.0, %v2388
      %v2390 = vpop.f32.mrf.mxu0
      %2391 = vmatprep.mubr.bf16.mxu0 0
      %2392 = vmatmul.mubr.bf16.gmra.mxu0 %v2234
      %v2393 = vpop.f32.mrf.mxu0
      %v2394 = vadd.f32 0.0, %v2393
      %v2395 = vpop.f32.mrf.mxu0
      %v2396 = vpop.f32.mrf.mxu0
      %v2397 = vadd.f32 0.0, %v2396
      %v2398 = vpop.f32.mrf.mxu0
      %2399 = vdwg.mxu0
      %v2400 = vadd.f32 %v2200, %v2274
      %v2401 = vadd.f32 %v2201, %v2277
      %v2402 = vadd.f32 %v2202, %v2282
      %v2403 = vadd.f32 %v2203, %v2285
      %v2404 = vadd.f32 %v2204, %v2290
      %v2405 = vadd.f32 %v2205, %v2293
      %v2406 = vadd.f32 %v2206, %v2298
      %v2407 = vadd.f32 %v2207, %v2301
      %v2408 = vadd.f32 %v2208, %v2306
      %v2409 = vadd.f32 %v2209, %v2309
      %v2410 = vadd.f32 %v2210, %v2314
      %v2411 = vadd.f32 %v2211, %v2317
      %v2412 = vadd.f32 %v2212, %v2322
      %v2413 = vadd.f32 %v2213, %v2325
      %v2414 = vadd.f32 %v2214, %v2330
      %v2415 = vadd.f32 %v2215, %v2333
      %v2416 = vadd.f32 %v2216, %v2338
      %v2417 = vadd.f32 %v2217, %v2341
      %v2418 = vadd.f32 %v2218, %v2346
      %v2419 = vadd.f32 %v2219, %v2349
      %v2420 = vadd.f32 %v2220, %v2354
      %v2421 = vadd.f32 %v2221, %v2357
      %v2422 = vadd.f32 %v2222, %v2362
      %v2423 = vadd.f32 %v2223, %v2365
      %v2424 = vadd.f32 %v2224, %v2370
      %v2425 = vadd.f32 %v2225, %v2373
      %v2426 = vadd.f32 %v2226, %v2378
      %v2427 = vadd.f32 %v2227, %v2381
      %v2428 = vadd.f32 %v2228, %v2386
      %v2429 = vadd.f32 %v2229, %v2389
      %v2430 = vadd.f32 %v2230, %v2394
      %v2431 = vadd.f32 %v2231, %v2397
      %s2432 = scalar_lea.vmem %s3, 16
      %v2433 = vld [vmem:[%s2432] sm:$0x3]
      %v2435 = vsel %vm770, %v765, 0
      %v2438 = vand.u32 %v2433, %v806
      %2440 = vmatprep.subr.bf16.mxu0 0
      %2441 = vmatpush1.bf16.msra.mxu0 0
      %2442 = vmatprep.subr.bf16.mxu0 0
      %2443 = vmatpush1.bf16.msra.mxu0 0
      %2444 = vmatprep.subr.bf16.mxu0 0
      %2445 = vmatpush1.bf16.msra.mxu0 0
      %2446 = vmatprep.subr.bf16.mxu0 0
      %2447 = vmatpush1.bf16.msra.mxu0 0
      %2448 = vmatprep.subr.bf16.mxu0 0
      %2449 = vmatpush1.bf16.msra.mxu0 0
      %2450 = vmatprep.subr.bf16.mxu0 0
      %2451 = vmatpush1.bf16.msra.mxu0 0
      %2452 = vmatprep.subr.bf16.mxu0 0
      %2453 = vmatpush1.bf16.msra.mxu0 0
      %2454 = vmatprep.subr.bf16.mxu0 0
      %2455 = vmatpush1.bf16.msra.mxu0 %v2438
      %2456 = vmatprep.subr.bf16.mxu0 0
      %2457 = vmatpush2.bf16.msra.mxu0 0
      %2458 = vmatprep.subr.bf16.mxu0 0
      %2459 = vmatpush2.bf16.msra.mxu0 0
      %2460 = vmatprep.subr.bf16.mxu0 0
      %2461 = vmatpush2.bf16.msra.mxu0 0
      %2462 = vmatprep.subr.bf16.mxu0 0
      %2463 = vmatpush2.bf16.msra.mxu0 0
      %2464 = vmatprep.subr.bf16.mxu0 0
      %2465 = vmatpush2.bf16.msra.mxu0 0
      %2466 = vmatprep.subr.bf16.mxu0 0
      %2467 = vmatpush2.bf16.msra.mxu0 0
      %2468 = vmatprep.subr.bf16.mxu0 0
      %2469 = vmatpush2.bf16.msra.mxu0 0
      %2470 = vmatprep.subr.bf16.mxu0 0
      %2471 = vmatpush2.bf16.msra.mxu0 0
      %2472 = vmatprep.mubr.bf16.mxu0 0
      %2473 = vmatmul.mubr.bf16.gmra.mxu0 %v1192
      %v2474 = vpop.f32.mrf.mxu0
      %v2475 = vadd.f32 0.0, %v2474
      %v2476 = vpop.f32.mrf.mxu0
      %v2477 = vpop.f32.mrf.mxu0
      %v2478 = vadd.f32 0.0, %v2477
      %v2479 = vpop.f32.mrf.mxu0
      %2480 = vmatprep.mubr.bf16.mxu0 0
      %2481 = vmatmul.mubr.bf16.gmra.mxu0 %v1195
      %v2482 = vpop.f32.mrf.mxu0
      %v2483 = vadd.f32 0.0, %v2482
      %v2484 = vpop.f32.mrf.mxu0
      %v2485 = vpop.f32.mrf.mxu0
      %v2486 = vadd.f32 0.0, %v2485
      %v2487 = vpop.f32.mrf.mxu0
      %2488 = vmatprep.mubr.bf16.mxu0 0
      %2489 = vmatmul.mubr.bf16.gmra.mxu0 %v1198
      %v2490 = vpop.f32.mrf.mxu0
      %v2491 = vadd.f32 0.0, %v2490
      %v2492 = vpop.f32.mrf.mxu0
      %v2493 = vpop.f32.mrf.mxu0
      %v2494 = vadd.f32 0.0, %v2493
      %v2495 = vpop.f32.mrf.mxu0
      %2496 = vmatprep.mubr.bf16.mxu0 0
      %2497 = vmatmul.mubr.bf16.gmra.mxu0 %v1201
      %v2498 = vpop.f32.mrf.mxu0
      %v2499 = vadd.f32 0.0, %v2498
      %v2500 = vpop.f32.mrf.mxu0
      %v2501 = vpop.f32.mrf.mxu0
      %v2502 = vadd.f32 0.0, %v2501
      %v2503 = vpop.f32.mrf.mxu0
      %2504 = vmatprep.mubr.bf16.mxu0 0
      %2505 = vmatmul.mubr.bf16.gmra.mxu0 %v1204
      %v2506 = vpop.f32.mrf.mxu0
      %v2507 = vadd.f32 0.0, %v2506
      %v2508 = vpop.f32.mrf.mxu0
      %v2509 = vpop.f32.mrf.mxu0
      %v2510 = vadd.f32 0.0, %v2509
      %v2511 = vpop.f32.mrf.mxu0
      %2512 = vmatprep.mubr.bf16.mxu0 0
      %2513 = vmatmul.mubr.bf16.gmra.mxu0 %v1207
      %v2514 = vpop.f32.mrf.mxu0
      %v2515 = vadd.f32 0.0, %v2514
      %v2516 = vpop.f32.mrf.mxu0
      %v2517 = vpop.f32.mrf.mxu0
      %v2518 = vadd.f32 0.0, %v2517
      %v2519 = vpop.f32.mrf.mxu0
      %2520 = vmatprep.mubr.bf16.mxu0 0
      %2521 = vmatmul.mubr.bf16.gmra.mxu0 %v1210
      %v2522 = vpop.f32.mrf.mxu0
      %v2523 = vadd.f32 0.0, %v2522
      %v2524 = vpop.f32.mrf.mxu0
      %v2525 = vpop.f32.mrf.mxu0
      %v2526 = vadd.f32 0.0, %v2525
      %v2527 = vpop.f32.mrf.mxu0
      %2528 = vmatprep.mubr.bf16.mxu0 0
      %2529 = vmatmul.mubr.bf16.gmra.mxu0 %v1213
      %v2530 = vpop.f32.mrf.mxu0
      %v2531 = vadd.f32 0.0, %v2530
      %v2532 = vpop.f32.mrf.mxu0
      %v2533 = vpop.f32.mrf.mxu0
      %v2534 = vadd.f32 0.0, %v2533
      %v2535 = vpop.f32.mrf.mxu0
      %2536 = vmatprep.mubr.bf16.mxu0 0
      %2537 = vmatmul.mubr.bf16.gmra.mxu0 %v1216
      %v2538 = vpop.f32.mrf.mxu0
      %v2539 = vadd.f32 0.0, %v2538
      %v2540 = vpop.f32.mrf.mxu0
      %v2541 = vpop.f32.mrf.mxu0
      %v2542 = vadd.f32 0.0, %v2541
      %v2543 = vpop.f32.mrf.mxu0
      %2544 = vmatprep.mubr.bf16.mxu0 0
      %2545 = vmatmul.mubr.bf16.gmra.mxu0 %v1219
      %v2546 = vpop.f32.mrf.mxu0
      %v2547 = vadd.f32 0.0, %v2546
      %v2548 = vpop.f32.mrf.mxu0
      %v2549 = vpop.f32.mrf.mxu0
      %v2550 = vadd.f32 0.0, %v2549
      %v2551 = vpop.f32.mrf.mxu0
      %2552 = vmatprep.mubr.bf16.mxu0 0
      %2553 = vmatmul.mubr.bf16.gmra.mxu0 %v1222
      %v2554 = vpop.f32.mrf.mxu0
      %v2555 = vadd.f32 0.0, %v2554
      %v2556 = vpop.f32.mrf.mxu0
      %v2557 = vpop.f32.mrf.mxu0
      %v2558 = vadd.f32 0.0, %v2557
      %v2559 = vpop.f32.mrf.mxu0
      %2560 = vmatprep.mubr.bf16.mxu0 0
      %2561 = vmatmul.mubr.bf16.gmra.mxu0 %v1225
      %v2562 = vpop.f32.mrf.mxu0
      %v2563 = vadd.f32 0.0, %v2562
      %v2564 = vpop.f32.mrf.mxu0
      %v2565 = vpop.f32.mrf.mxu0
      %v2566 = vadd.f32 0.0, %v2565
      %v2567 = vpop.f32.mrf.mxu0
      %2568 = vmatprep.mubr.bf16.mxu0 0
      %2569 = vmatmul.mubr.bf16.gmra.mxu0 %v1228
      %v2570 = vpop.f32.mrf.mxu0
      %v2571 = vadd.f32 0.0, %v2570
      %v2572 = vpop.f32.mrf.mxu0
      %v2573 = vpop.f32.mrf.mxu0
      %v2574 = vadd.f32 0.0, %v2573
      %v2575 = vpop.f32.mrf.mxu0
      %2576 = vmatprep.mubr.bf16.mxu0 0
      %2577 = vmatmul.mubr.bf16.gmra.mxu0 %v1231
      %v2578 = vpop.f32.mrf.mxu0
      %v2579 = vadd.f32 0.0, %v2578
      %v2580 = vpop.f32.mrf.mxu0
      %v2581 = vpop.f32.mrf.mxu0
      %v2582 = vadd.f32 0.0, %v2581
      %v2583 = vpop.f32.mrf.mxu0
      %2584 = vmatprep.mubr.bf16.mxu0 0
      %2585 = vmatmul.mubr.bf16.gmra.mxu0 %v1833
      %v2586 = vpop.f32.mrf.mxu0
      %v2587 = vadd.f32 0.0, %v2586
      %v2588 = vpop.f32.mrf.mxu0
      %v2589 = vpop.f32.mrf.mxu0
      %v2590 = vadd.f32 0.0, %v2589
      %v2591 = vpop.f32.mrf.mxu0
      %2592 = vmatprep.mubr.bf16.mxu0 0
      %2593 = vmatmul.mubr.bf16.gmra.mxu0 %v2435
      %v2594 = vpop.f32.mrf.mxu0
      %v2595 = vadd.f32 0.0, %v2594
      %v2596 = vpop.f32.mrf.mxu0
      %v2597 = vpop.f32.mrf.mxu0
      %v2598 = vadd.f32 0.0, %v2597
      %v2599 = vpop.f32.mrf.mxu0
      %2600 = vdwg.mxu0
      %v2601 = vadd.f32 %v2400, %v2475
      %v2602 = vadd.f32 %v2401, %v2478
      %v2603 = vadd.f32 %v2402, %v2483
      %v2604 = vadd.f32 %v2403, %v2486
      %v2605 = vadd.f32 %v2404, %v2491
      %v2606 = vadd.f32 %v2405, %v2494
      %v2607 = vadd.f32 %v2406, %v2499
      %v2608 = vadd.f32 %v2407, %v2502
      %v2609 = vadd.f32 %v2408, %v2507
      %v2610 = vadd.f32 %v2409, %v2510
      %v2611 = vadd.f32 %v2410, %v2515
      %v2612 = vadd.f32 %v2411, %v2518
      %v2613 = vadd.f32 %v2412, %v2523
      %v2614 = vadd.f32 %v2413, %v2526
      %v2615 = vadd.f32 %v2414, %v2531
      %v2616 = vadd.f32 %v2415, %v2534
      %v2617 = vadd.f32 %v2416, %v2539
      %v2618 = vadd.f32 %v2417, %v2542
      %v2619 = vadd.f32 %v2418, %v2547
      %v2620 = vadd.f32 %v2419, %v2550
      %v2621 = vadd.f32 %v2420, %v2555
      %v2622 = vadd.f32 %v2421, %v2558
      %v2623 = vadd.f32 %v2422, %v2563
      %v2624 = vadd.f32 %v2423, %v2566
      %v2625 = vadd.f32 %v2424, %v2571
      %v2626 = vadd.f32 %v2425, %v2574
      %v2627 = vadd.f32 %v2426, %v2579
      %v2628 = vadd.f32 %v2427, %v2582
      %v2629 = vadd.f32 %v2428, %v2587
      %v2630 = vadd.f32 %v2429, %v2590
      %v2631 = vadd.f32 %v2430, %v2595
      %v2632 = vadd.f32 %v2431, %v2598
      %v2634 = vlaneseq
      %v2635 = vshrl.u32 %v2634, 7
      %v2636 = vsub.s32 0, %v2635
      %v2637 = vrot.slane %v766, %v2636
      %v2639 = vadd.f32 %v2601, %v2637
      %v2640 = vadd.f32 %v2602, %v2637
      %v2641 = vadd.f32 %v2603, %v2637
      %v2642 = vadd.f32 %v2604, %v2637
      %v2643 = vadd.f32 %v2605, %v2637
      %v2644 = vadd.f32 %v2606, %v2637
      %v2645 = vadd.f32 %v2607, %v2637
      %v2646 = vadd.f32 %v2608, %v2637
      %v2647 = vadd.f32 %v2609, %v2637
      %v2648 = vadd.f32 %v2610, %v2637
      %v2649 = vadd.f32 %v2611, %v2637
      %v2650 = vadd.f32 %v2612, %v2637
      %v2651 = vadd.f32 %v2613, %v2637
      %v2652 = vadd.f32 %v2614, %v2637
      %v2653 = vadd.f32 %v2615, %v2637
      %v2654 = vadd.f32 %v2616, %v2637
      %v2655 = vadd.f32 %v2617, %v2637
      %v2656 = vadd.f32 %v2618, %v2637
      %v2657 = vadd.f32 %v2619, %v2637
      %v2658 = vadd.f32 %v2620, %v2637
      %v2659 = vadd.f32 %v2621, %v2637
      %v2660 = vadd.f32 %v2622, %v2637
      %v2661 = vadd.f32 %v2623, %v2637
      %v2662 = vadd.f32 %v2624, %v2637
      %v2663 = vadd.f32 %v2625, %v2637
      %v2664 = vadd.f32 %v2626, %v2637
      %v2665 = vadd.f32 %v2627, %v2637
      %v2666 = vadd.f32 %v2628, %v2637
      %v2667 = vadd.f32 %v2629, %v2637
      %v2668 = vadd.f32 %v2630, %v2637
      %v2669 = vadd.f32 %v2631, %v2637
      %v2670 = vadd.f32 %v2632, %v2637
      %v2671 = vmax.f32 %v2639, 0.0
      %v2672 = vmax.f32 %v2640, 0.0
      %v2673 = vmax.f32 %v2641, 0.0
      %v2674 = vmax.f32 %v2642, 0.0
      %v2675 = vmax.f32 %v2643, 0.0
      %v2676 = vmax.f32 %v2644, 0.0
      %v2677 = vmax.f32 %v2645, 0.0
      %v2678 = vmax.f32 %v2646, 0.0
      %v2679 = vmax.f32 %v2647, 0.0
      %v2680 = vmax.f32 %v2648, 0.0
      %v2681 = vmax.f32 %v2649, 0.0
      %v2682 = vmax.f32 %v2650, 0.0
      %v2683 = vmax.f32 %v2651, 0.0
      %v2684 = vmax.f32 %v2652, 0.0
      %v2685 = vmax.f32 %v2653, 0.0
      %v2686 = vmax.f32 %v2654, 0.0
      %v2687 = vmax.f32 %v2655, 0.0
      %v2688 = vmax.f32 %v2656, 0.0
      %v2689 = vmax.f32 %v2657, 0.0
      %v2690 = vmax.f32 %v2658, 0.0
      %v2691 = vmax.f32 %v2659, 0.0
      %v2692 = vmax.f32 %v2660, 0.0
      %v2693 = vmax.f32 %v2661, 0.0
      %v2694 = vmax.f32 %v2662, 0.0
      %v2695 = vmax.f32 %v2663, 0.0
      %v2696 = vmax.f32 %v2664, 0.0
      %v2697 = vmax.f32 %v2665, 0.0
      %v2698 = vmax.f32 %v2666, 0.0
      %v2699 = vmax.f32 %v2667, 0.0
      %v2700 = vmax.f32 %v2668, 0.0
      %v2701 = vmax.f32 %v2669, 0.0
      %v2702 = vmax.f32 %v2670, 0.0
      %v2703 = vpack.c.bf16 %v2672, %v2671
      %v2704 = vpack.c.bf16 %v2674, %v2673
      %v2705 = vpack.c.bf16 %v2676, %v2675
      %v2706 = vpack.c.bf16 %v2678, %v2677
      %v2707 = vpack.c.bf16 %v2680, %v2679
      %v2708 = vpack.c.bf16 %v2682, %v2681
      %v2709 = vpack.c.bf16 %v2684, %v2683
      %v2710 = vpack.c.bf16 %v2686, %v2685
      %v2711 = vpack.c.bf16 %v2688, %v2687
      %v2712 = vpack.c.bf16 %v2690, %v2689
      %v2713 = vpack.c.bf16 %v2692, %v2691
      %v2714 = vpack.c.bf16 %v2694, %v2693
      %v2715 = vpack.c.bf16 %v2696, %v2695
      %v2716 = vpack.c.bf16 %v2698, %v2697
      %v2717 = vpack.c.bf16 %v2700, %v2699
      %v2718 = vpack.c.bf16 %v2702, %v2701
      %v2735 = vunpack.c.l.b16 %v2703
      %v2736 = vunpack.c.h.b16 %v2703
      %v2737 = vunpack.c.l.b16 %v2704
      %v2738 = vunpack.c.h.b16 %v2704
      %v2739 = vunpack.c.l.b16 %v2705
      %v2740 = vunpack.c.h.b16 %v2705
      %v2741 = vunpack.c.l.b16 %v2706
      %v2742 = vunpack.c.h.b16 %v2706
      %v2743 = vunpack.c.l.b16 %v2707
      %v2744 = vunpack.c.h.b16 %v2707
      %v2745 = vunpack.c.l.b16 %v2708
      %v2746 = vunpack.c.h.b16 %v2708
      %v2747 = vunpack.c.l.b16 %v2709
      %v2748 = vunpack.c.h.b16 %v2709
      %v2749 = vunpack.c.l.b16 %v2710
      %v2750 = vunpack.c.h.b16 %v2710
      %v2751 = vunpack.c.l.b16 %v2711
      %v2752 = vunpack.c.h.b16 %v2711
      %v2753 = vunpack.c.l.b16 %v2712
      %v2754 = vunpack.c.h.b16 %v2712
      %v2755 = vunpack.c.l.b16 %v2713
      %v2756 = vunpack.c.h.b16 %v2713
      %v2757 = vunpack.c.l.b16 %v2714
      %v2758 = vunpack.c.h.b16 %v2714
      %v2759 = vunpack.c.l.b16 %v2715
      %v2760 = vunpack.c.h.b16 %v2715
      %v2761 = vunpack.c.l.b16 %v2716
      %v2762 = vunpack.c.h.b16 %v2716
      %v2763 = vunpack.c.l.b16 %v2717
      %v2764 = vunpack.c.h.b16 %v2717
      %v2765 = vunpack.c.l.b16 %v2718
      %v2766 = vunpack.c.h.b16 %v2718
      %v2767 = vpack.c.b16 %v2735, %v2735
      %v2768 = vpack.c.b16 %v2736, %v2736
      %v2769 = vpack.c.b16 %v2737, %v2737
      %v2770 = vpack.c.b16 %v2738, %v2738
      %v2771 = vpack.c.b16 %v2739, %v2739
      %v2772 = vpack.c.b16 %v2740, %v2740
      %v2773 = vpack.c.b16 %v2741, %v2741
      %v2774 = vpack.c.b16 %v2742, %v2742
      %v2775 = vpack.c.b16 %v2743, %v2743
      %v2776 = vpack.c.b16 %v2744, %v2744
      %v2777 = vpack.c.b16 %v2745, %v2745
      %v2778 = vpack.c.b16 %v2746, %v2746
      %v2779 = vpack.c.b16 %v2747, %v2747
      %v2780 = vpack.c.b16 %v2748, %v2748
      %v2781 = vpack.c.b16 %v2749, %v2749
      %v2782 = vpack.c.b16 %v2750, %v2750
      %v2783 = vpack.c.b16 %v2751, %v2751
      %v2784 = vpack.c.b16 %v2752, %v2752
      %v2785 = vpack.c.b16 %v2753, %v2753
      %v2786 = vpack.c.b16 %v2754, %v2754
      %v2787 = vpack.c.b16 %v2755, %v2755
      %v2788 = vpack.c.b16 %v2756, %v2756
      %v2789 = vpack.c.b16 %v2757, %v2757
      %v2790 = vpack.c.b16 %v2758, %v2758
      %v2791 = vpack.c.b16 %v2759, %v2759
      %v2792 = vpack.c.b16 %v2760, %v2760
      %v2793 = vpack.c.b16 %v2761, %v2761
      %v2794 = vpack.c.b16 %v2762, %v2762
      %v2795 = vpack.c.b16 %v2763, %v2763
      %v2796 = vpack.c.b16 %v2764, %v2764
      %v2797 = vpack.c.b16 %v2765, %v2765
      %v2798 = vpack.c.b16 %v2766, %v2766
      %vm2831 = vcmask 519168
      %2832 = vst.msk [vmem:[%s389] sm:$0xf] %vm2831, %v2767
      %2833 = vst.msk [vmem:[%s389 + $0x4] sm:$0xf] %vm2831, %v2768
      %2834 = vst.msk [vmem:[%s389 + $0x8] sm:$0xf] %vm2831, %v2769
      %2835 = vst.msk [vmem:[%s389 + $0xc] sm:$0xf] %vm2831, %v2770
      %2836 = vst.msk [vmem:[%s389 + $0x10] sm:$0xf] %vm2831, %v2771
      %2837 = vst.msk [vmem:[%s389 + $0x14] sm:$0xf] %vm2831, %v2772
      %2838 = vst.msk [vmem:[%s389 + $0x18] sm:$0xf] %vm2831, %v2773
      %2839 = vst.msk [vmem:[%s389 + $0x1c] sm:$0xf] %vm2831, %v2774
      %2840 = vst.msk [vmem:[%s389 + $0x20] sm:$0xf] %vm2831, %v2775
      %2841 = vst.msk [vmem:[%s389 + $0x24] sm:$0xf] %vm2831, %v2776
      %2842 = vst.msk [vmem:[%s389 + $0x28] sm:$0xf] %vm2831, %v2777
      %2843 = vst.msk [vmem:[%s389 + $0x2c] sm:$0xf] %vm2831, %v2778
      %2844 = vst.msk [vmem:[%s389 + $0x30] sm:$0xf] %vm2831, %v2779
      %2845 = vst.msk [vmem:[%s389 + $0x34] sm:$0xf] %vm2831, %v2780
      %2846 = vst.msk [vmem:[%s389 + $0x38] sm:$0xf] %vm2831, %v2781
      %2847 = vst.msk [vmem:[%s389 + $0x3c] sm:$0xf] %vm2831, %v2782
      %2848 = vst.msk [vmem:[%s389 + $0x40] sm:$0xf] %vm2831, %v2783
      %2849 = vst.msk [vmem:[%s389 + $0x44] sm:$0xf] %vm2831, %v2784
      %2850 = vst.msk [vmem:[%s389 + $0x48] sm:$0xf] %vm2831, %v2785
      %2851 = vst.msk [vmem:[%s389 + $0x4c] sm:$0xf] %vm2831, %v2786
      %2852 = vst.msk [vmem:[%s389 + $0x50] sm:$0xf] %vm2831, %v2787
      %2853 = vst.msk [vmem:[%s389 + $0x54] sm:$0xf] %vm2831, %v2788
      %2854 = vst.msk [vmem:[%s389 + $0x58] sm:$0xf] %vm2831, %v2789
      %2855 = vst.msk [vmem:[%s389 + $0x5c] sm:$0xf] %vm2831, %v2790
      %2856 = vst.msk [vmem:[%s389 + $0x60] sm:$0xf] %vm2831, %v2791
      %2857 = vst.msk [vmem:[%s389 + $0x64] sm:$0xf] %vm2831, %v2792
      %2858 = vst.msk [vmem:[%s389 + $0x68] sm:$0xf] %vm2831, %v2793
      %2859 = vst.msk [vmem:[%s389 + $0x6c] sm:$0xf] %vm2831, %v2794
      %2860 = vst.msk [vmem:[%s389 + $0x70] sm:$0xf] %vm2831, %v2795
      %2861 = vst.msk [vmem:[%s389 + $0x74] sm:$0xf] %vm2831, %v2796
      %2862 = vst.msk [vmem:[%s389 + $0x78] sm:$0xf] %vm2831, %v2797
      %2863 = vst.msk [vmem:[%s389 + $0x7c] sm:$0xf] %vm2831, %v2798
      %s2864 = smul.u32 32, %s21
      %p2865 = scmp.lt.s32.totalorder %s20, 1
      %s2866 = scalar_select %p2865, %s20, 1
      %p2867 = scmp.lt.s32.totalorder %s2864, 31
      %s2868 = scalar_select %p2867, %s2864, 31
      %s2869 = smul.addr %s2866, 32
      %s2870 = sadd.s32 %s2868, %s2869
      %s2871 = smul.addr %s2870, 4
      %s2872 = scalar_lea.vmem %s5, %s2871
      // Predicated region
      $region41: #{vggnet_forward.4} parent=39 // pred_check
        %p2873 = pneg %p190
      $region42: #{vggnet_forward.4} parent=39 // pred_check_branch
        %2875 = sbr.rel (%p2873) target = $region44
      $region43: #{vggnet_forward.4} parent=39 // pred_region
        %s2876 = smul.u32 32, %s21
      $region44: #{vggnet_forward.4} parent=39 // pred_fallthru
        _
    $region40: #{vggnet_forward.4} parent=5 // pred_fallthru
      _
    %p2877 = scmp.le.s32.totalorder 2, %s11
    // Predicated region
    $region45: #{vggnet_forward.4} parent=5 // pred_check
      %p2878 = pneg %p2877
    $region46: #{vggnet_forward.4} parent=5 // pred_check_branch
      %2880 = sbr.rel (%p2878) target = $region48
    $region47: #{vggnet_forward.4} parent=5 // pred_region
      %s2881 = ssub.s32 %s11, 2
      // Predicated region
      $region49: #{vggnet_forward.4} parent=47 // pred_check
        %p2882 = pneg %p196
      $region50: #{vggnet_forward.4} parent=47 // pred_check_branch
        %2884 = sbr.rel (%p2882) target = $region52
      $region51: #{vggnet_forward.4} parent=47 // pred_region
        %s2885 = smul.u32 32, %s23
        %p2886 = scmp.lt.s32.totalorder %s22, 1
        %s2887 = scalar_select %p2886, %s22, 1
        %p2888 = scmp.lt.s32.totalorder %s2885, 31
        %s2889 = scalar_select %p2888, %s2885, 31
        %s2890 = smul.addr %s2887, 32
        %s2891 = sadd.s32 %s2889, %s2890
        %s2892 = smul.addr %s2891, 4
        %s2893 = scalar_lea.vmem %s5, %s2892
      $region52: #{vggnet_forward.4} parent=47 // pred_fallthru
        _
    $region48: #{vggnet_forward.4} parent=5 // pred_fallthru
      _
  $region6: #{vggnet_forward.4} parent=0 // loop_footer
    %s15 = sadd.s32 1, %s11
  $region7: #{vggnet_forward.4} parent=0 // loop_footer_branch
    %10 = sbr.rel target = $region3
  $region8: #{vggnet_forward.4} parent=0 // loop_exit
    _

// kernel: vggnet_forward.5
$region0: #{vggnet_forward.5}
  #allocation0 [shape = 'u32[]', space=smem, size = 0x4, offset = 0x4, fixed_abs, tag = 'smem constant byte address 0x4 - core index']
  #allocation1 [shape = 'u32[144,128]{1,0:T(1,128)}', space=vmem, size = 0x12000, scoped, tag = 'internal scratch']
  #allocation2 [shape = 'f32[8,16,64]{2,1,0:T(8,128)}', space=vmem, size = 0x10000, scoped, tag = 'scratch operand']
  %s0 = inlined_call_operand.vmem [shape: bf16[2,16,16,64], index: 0, kind: input, shape index: {}, may-alias: {0,1,2}]
  %s1 = inlined_call_operand.vmem [shape: bf16[2,16,16,64], index: 1, kind: input, shape index: {}, may-alias: {0,1,2}]
  %s2 = inlined_call_operand.vmem [shape: bf16[2,16,16,64], index: 2, kind: input, shape index: {}, may-alias: {0,1,2}]
  %s3 = inlined_call_operand.vmem [shape: bf16[9,64,64], index: 3, kind: input, shape index: {}]
  %s4 = inlined_call_operand.vmem [shape: f32[1,64], index: 4, kind: input, shape index: {}]
  %s5 = inlined_call_operand.vmem [shape: bf16[2,8,8,64], index: 5, kind: output, shape index: {}]
  %s6 = sld [smem:[#allocation0]]
  $region53: #{vggnet_forward.5} parent=0
    _
  %s8 = ssub.s32 1, %s6
  %s9 = scalar_select 0, %s8, %s6
  loop: start=0, step=1, limit=4
  $region2: #{vggnet_forward.5} parent=0 // loop_pre_header
    _
  $region3: #{vggnet_forward.5} parent=0 // loop_header
    %s11 = sphi 0, %s15
    %p12 = scmp.ge.s32.totalorder %s11, 4
    %s18 = sphi 0, %s30
    %s19 = sphi 0, %s26
    %s20 = sphi 0, %s18
    %s21 = sphi 0, %s19
    %s22 = sphi 0, %s20
    %s23 = sphi 0, %s21
    %s35 = sphi 0, %s37
    %s38 = sphi 0, %s35
    %s39 = sphi 0, %s38
    %s55 = sphi 0, %s39
    %s71 = sphi 0, %s73
    %s74 = sphi 0, %s71
    %s75 = sphi 0, %s74
    %s91 = sphi 0, %s75
    %s107 = sphi 0, %s109
    %s110 = sphi 0, %s107
    %s111 = sphi 0, %s110
    %s127 = sphi 0, %s111
    %s131 = sphi 0, %s131
    %s133 = sphi 0, %s131
    %s134 = sphi 0, %s133
    %s148 = sphi 0, %s134
    %s152 = sphi 0, %s152
    %s154 = sphi 0, %s152
    %s155 = sphi 0, %s154
    %s169 = sphi 0, %s155
    %s177 = sphi 0, %s179
    %s180 = sphi 0, %s177
    %s181 = sphi 0, %s180
    %s197 = sphi 0, %s181
  $region4: #{vggnet_forward.5} parent=0 // loop_header_branch
    %14 = sbr.rel (%p12) target = $region8
  $region5: #{vggnet_forward.5} parent=0 // loop_body
    %s16 = ssub.s32 %s11, 1
    %s17 = ssub.s32 %s11, 2
    %s24 = sadd.s32 1, %s19
    %p25 = scmp.ge.s32.totalorder %s24, 1
    %s26 = scalar_select %p25, 0, %s24
    %s27 = sadd.s32 1, %s18
    %s28 = scalar_select %p25, %s27, %s18
    %p29 = scmp.ge.s32.totalorder %s28, 2
    %s30 = scalar_select %p29, 0, %s28
    %s31 = ssub.s32 %s18, %s30
    %s32 = ssub.s32 %s19, %s26
    %s33 = sor.u32 %s31, %s32
    %p34 = scmp.eq.s32.totalorder %s33, 0
    %s36 = sadd.s32 %s35, 1
    %s37 = scalar_select %p34, %s35, %s36
    %p40 = pneg %p34
    %p41 = scmp.eq.s32.totalorder %s11, 1
    %p42 = por %p40, %p41
    %p43 = scmp.ne.s32.totalorder %s35, %s38
    %p44 = scmp.eq.s32.totalorder %s11, 0
    %p45 = por %p43, %p44
    %p46 = scmp.ne.s32.totalorder %s35, %s38
    %p47 = scmp.eq.s32.totalorder %s16, 1
    %p48 = por %p46, %p47
    %p49 = scmp.ne.s32.totalorder %s38, %s39
    %p50 = scmp.eq.s32.totalorder %s16, 0
    %p51 = por %p49, %p50
    %p52 = scmp.ne.s32.totalorder %s38, %s39
    %p53 = scmp.eq.s32.totalorder %s17, 1
    %p54 = por %p52, %p53
    %p56 = scmp.ne.s32.totalorder %s39, %s55
    %p57 = scmp.eq.s32.totalorder %s17, 0
    %p58 = por %p56, %p57
    %s59 = smul.u32 %s19, 16
    %s60 = ssub.s32 %s59, 1
    %p61 = scmp.gt.s32.totalorder %s60, 0
    %s62 = scalar_select %p61, %s60, 0
    %s63 = smul.u32 %s26, 16
    %s64 = ssub.s32 %s63, 1
    %p65 = scmp.gt.s32.totalorder %s64, 0
    %s66 = scalar_select %p65, %s64, 0
    %s67 = ssub.s32 %s18, %s30
    %s68 = ssub.s32 %s62, %s66
    %s69 = sor.u32 %s67, %s68
    %p70 = scmp.eq.s32.totalorder %s69, 0
    %s72 = sadd.s32 %s71, 1
    %s73 = scalar_select %p70, %s71, %s72
    %p76 = pneg %p70
    %p77 = scmp.eq.s32.totalorder %s11, 1
    %p78 = por %p76, %p77
    %p79 = scmp.ne.s32.totalorder %s71, %s74
    %p80 = scmp.eq.s32.totalorder %s11, 0
    %p81 = por %p79, %p80
    %p82 = scmp.ne.s32.totalorder %s71, %s74
    %p83 = scmp.eq.s32.totalorder %s16, 1
    %p84 = por %p82, %p83
    %p85 = scmp.ne.s32.totalorder %s74, %s75
    %p86 = scmp.eq.s32.totalorder %s16, 0
    %p87 = por %p85, %p86
    %p88 = scmp.ne.s32.totalorder %s74, %s75
    %p89 = scmp.eq.s32.totalorder %s17, 1
    %p90 = por %p88, %p89
    %p92 = scmp.ne.s32.totalorder %s75, %s91
    %p93 = scmp.eq.s32.totalorder %s17, 0
    %p94 = por %p92, %p93
    %s95 = smul.u32 %s19, 16
    %s96 = sadd.s32 %s95, 16
    %p97 = scmp.lt.s32.totalorder %s96, 15
    %s98 = scalar_select %p97, %s96, 15
    %s99 = smul.u32 %s26, 16
    %s100 = sadd.s32 %s99, 16
    %p101 = scmp.lt.s32.totalorder %s100, 15
    %s102 = scalar_select %p101, %s100, 15
    %s103 = ssub.s32 %s18, %s30
    %s104 = ssub.s32 %s98, %s102
    %s105 = sor.u32 %s103, %s104
    %p106 = scmp.eq.s32.totalorder %s105, 0
    %s108 = sadd.s32 %s107, 1
    %s109 = scalar_select %p106, %s107, %s108
    %p112 = pneg %p106
    %p113 = scmp.eq.s32.totalorder %s11, 1
    %p114 = por %p112, %p113
    %p115 = scmp.ne.s32.totalorder %s107, %s110
    %p116 = scmp.eq.s32.totalorder %s11, 0
    %p117 = por %p115, %p116
    %p118 = scmp.ne.s32.totalorder %s107, %s110
    %p119 = scmp.eq.s32.totalorder %s16, 1
    %p120 = por %p118, %p119
    %p121 = scmp.ne.s32.totalorder %s110, %s111
    %p122 = scmp.eq.s32.totalorder %s16, 0
    %p123 = por %p121, %p122
    %p124 = scmp.ne.s32.totalorder %s110, %s111
    %p125 = scmp.eq.s32.totalorder %s17, 1
    %p126 = por %p124, %p125
    %p128 = scmp.ne.s32.totalorder %s111, %s127
    %p129 = scmp.eq.s32.totalorder %s17, 0
    %p130 = por %p128, %p129
    %s132 = sadd.s32 %s131, 1
    %p135 = scmp.eq.s32.totalorder %s11, 1
    %p136 = scmp.ne.s32.totalorder %s131, %s133
    %p137 = scmp.eq.s32.totalorder %s11, 0
    %p138 = por %p136, %p137
    %p139 = scmp.ne.s32.totalorder %s131, %s133
    %p140 = scmp.eq.s32.totalorder %s16, 1
    %p141 = por %p139, %p140
    %p142 = scmp.ne.s32.totalorder %s133, %s134
    %p143 = scmp.eq.s32.totalorder %s16, 0
    %p144 = por %p142, %p143
    %p145 = scmp.ne.s32.totalorder %s133, %s134
    %p146 = scmp.eq.s32.totalorder %s17, 1
    %p147 = por %p145, %p146
    %p149 = scmp.ne.s32.totalorder %s134, %s148
    %p150 = scmp.eq.s32.totalorder %s17, 0
    %p151 = por %p149, %p150
    %s153 = sadd.s32 %s152, 1
    %p156 = scmp.eq.s32.totalorder %s11, 1
    %p157 = scmp.ne.s32.totalorder %s152, %s154
    %p158 = scmp.eq.s32.totalorder %s11, 0
    %p159 = por %p157, %p158
    %p160 = scmp.ne.s32.totalorder %s152, %s154
    %p161 = scmp.eq.s32.totalorder %s16, 1
    %p162 = por %p160, %p161
    %p163 = scmp.ne.s32.totalorder %s154, %s155
    %p164 = scmp.eq.s32.totalorder %s16, 0
    %p165 = por %p163, %p164
    %p166 = scmp.ne.s32.totalorder %s154, %s155
    %p167 = scmp.eq.s32.totalorder %s17, 1
    %p168 = por %p166, %p167
    %p170 = scmp.ne.s32.totalorder %s155, %s169
    %p171 = scmp.eq.s32.totalorder %s17, 0
    %p172 = por %p170, %p171
    %s173 = ssub.s32 %s18, %s30
    %s174 = ssub.s32 %s19, %s26
    %s175 = sor.u32 %s173, %s174
    %p176 = scmp.eq.s32.totalorder %s175, 0
    %s178 = sadd.s32 %s177, 1
    %s179 = scalar_select %p176, %s177, %s178
    %p182 = pneg %p176
    %p183 = scmp.eq.s32.totalorder %s11, 1
    %p184 = por %p182, %p183
    %p185 = scmp.ne.s32.totalorder %s177, %s180
    %p186 = scmp.eq.s32.totalorder %s11, 0
    %p187 = por %p185, %p186
    %p188 = scmp.ne.s32.totalorder %s177, %s180
    %p189 = scmp.eq.s32.totalorder %s16, 1
    %p190 = por %p188, %p189
    %p191 = scmp.ne.s32.totalorder %s180, %s181
    %p192 = scmp.eq.s32.totalorder %s16, 0
    %p193 = por %p191, %p192
    %p194 = scmp.ne.s32.totalorder %s180, %s181
    %p195 = scmp.eq.s32.totalorder %s17, 1
    %p196 = por %p194, %p195
    %p198 = scmp.ne.s32.totalorder %s181, %s197
    %p199 = scmp.eq.s32.totalorder %s17, 0
    %p200 = por %p198, %p199
    %p201 = scmp.le.s32.totalorder 1, %s11
    %p202 = scmp.lt.s32.totalorder %s11, 3
    %p203 = pnand %p201, %p202
    %p204 = pneg %p203
    // Predicated region
    $region9: #{vggnet_forward.5} parent=5 // pred_check
      _
    $region10: #{vggnet_forward.5} parent=5 // pred_check_branch
      %206 = sbr.rel (%p203) target = $region12
    $region11: #{vggnet_forward.5} parent=5 // pred_region
      %s207 = ssub.s32 %s11, 1
      // Predicated region
      $region13: #{vggnet_forward.5} parent=11 // pred_check
        %p208 = pneg %p144
      $region14: #{vggnet_forward.5} parent=11 // pred_check_branch
        %210 = sbr.rel (%p208) target = $region16
      $region15: #{vggnet_forward.5} parent=11 // pred_region
        _
      $region16: #{vggnet_forward.5} parent=11 // pred_fallthru
        _
      // Predicated region
      $region17: #{vggnet_forward.5} parent=11 // pred_check
        %p211 = pneg %p165
      $region18: #{vggnet_forward.5} parent=11 // pred_check_branch
        %213 = sbr.rel (%p211) target = $region20
      $region19: #{vggnet_forward.5} parent=11 // pred_region
        _
      $region20: #{vggnet_forward.5} parent=11 // pred_fallthru
        _
    $region12: #{vggnet_forward.5} parent=5 // pred_fallthru
      _
    %p214 = scmp.lt.s32.totalorder %s11, 2
    // Predicated region
    $region21: #{vggnet_forward.5} parent=5 // pred_check
      %p215 = pneg %p214
    $region22: #{vggnet_forward.5} parent=5 // pred_check_branch
      %217 = sbr.rel (%p215) target = $region24
    $region23: #{vggnet_forward.5} parent=5 // pred_region
      // Predicated region
      $region25: #{vggnet_forward.5} parent=23 // pred_check
        %p218 = pneg %p45
      $region26: #{vggnet_forward.5} parent=23 // pred_check_branch
        %220 = sbr.rel (%p218) target = $region28
      $region27: #{vggnet_forward.5} parent=23 // pred_region
        %s221 = smul.u32 16, %s19
        %p222 = scmp.lt.s32.totalorder %s18, 1
        %s223 = scalar_select %p222, %s18, 1
        %p224 = scmp.lt.s32.totalorder %s221, 15
        %s225 = scalar_select %p224, %s221, 15
        %s226 = smul.addr %s225, 2
        %s227 = smul.addr %s223, 32
        %s228 = sadd.s32 %s226, %s227
        %s229 = smul.addr %s228, 4
        %s230 = scalar_lea.vmem %s0, %s229
        %s231 = smul.u32 16, %s19
      $region28: #{vggnet_forward.5} parent=23 // pred_fallthru
        _
      // Predicated region
      $region29: #{vggnet_forward.5} parent=23 // pred_check
        %p232 = pneg %p81
      $region30: #{vggnet_forward.5} parent=23 // pred_check_branch
        %234 = sbr.rel (%p232) target = $region32
      $region31: #{vggnet_forward.5} parent=23 // pred_region
        %s235 = smul.u32 %s19, 16
        %s236 = ssub.s32 %s235, 1
        %p237 = scmp.gt.s32.totalorder %s236, 0
        %s238 = scalar_select %p237, %s236, 0
        %p239 = scmp.lt.s32.totalorder %s18, 1
        %s240 = scalar_select %p239, %s18, 1
        %p241 = scmp.lt.s32.totalorder %s238, 15
        %s242 = scalar_select %p241, %s238, 15
        %s243 = smul.addr %s242, 2
        %s244 = smul.addr %s240, 32
        %s245 = sadd.s32 %s243, %s244
        %s246 = smul.addr %s245, 4
        %s247 = scalar_lea.vmem %s1, %s246
        %s248 = smul.u32 %s19, 16
        %s249 = ssub.s32 %s248, 1
        %p250 = scmp.gt.s32.totalorder %s249, 0
        %s251 = scalar_select %p250, %s249, 0
      $region32: #{vggnet_forward.5} parent=23 // pred_fallthru
        _
      // Predicated region
      $region33: #{vggnet_forward.5} parent=23 // pred_check
        %p252 = pneg %p117
      $region34: #{vggnet_forward.5} parent=23 // pred_check_branch
        %254 = sbr.rel (%p252) target = $region36
      $region35: #{vggnet_forward.5} parent=23 // pred_region
        %s255 = smul.u32 %s19, 16
        %s256 = sadd.s32 %s255, 16
        %p257 = scmp.lt.s32.totalorder %s256, 15
        %s258 = scalar_select %p257, %s256, 15
        %p259 = scmp.lt.s32.totalorder %s18, 1
        %s260 = scalar_select %p259, %s18, 1
        %p261 = scmp.lt.s32.totalorder %s258, 15
        %s262 = scalar_select %p261, %s258, 15
        %s263 = smul.addr %s262, 2
        %s264 = smul.addr %s260, 32
        %s265 = sadd.s32 %s263, %s264
        %s266 = smul.addr %s265, 4
        %s267 = scalar_lea.vmem %s2, %s266
        %s268 = smul.u32 %s19, 16
        %s269 = sadd.s32 %s268, 16
        %p270 = scmp.lt.s32.totalorder %s269, 15
        %s271 = scalar_select %p270, %s269, 15
      $region36: #{vggnet_forward.5} parent=23 // pred_fallthru
        _
    $region24: #{vggnet_forward.5} parent=5 // pred_fallthru
      _
    %p272 = scmp.le.s32.totalorder 1, %s11
    %p273 = scmp.lt.s32.totalorder %s11, 3
    %p274 = pnand %p272, %p273
    %p275 = pneg %p274
    // Predicated region
    $region37: #{vggnet_forward.5} parent=5 // pred_check
      _
    $region38: #{vggnet_forward.5} parent=5 // pred_check_branch
      %277 = sbr.rel (%p274) target = $region40
    $region39: #{vggnet_forward.5} parent=5 // pred_region
      %s278 = ssub.s32 %s11, 1
      %s279 = smul.u32 16, %s21
      %p280 = scmp.lt.s32.totalorder %s20, 1
      %s281 = scalar_select %p280, %s20, 1
      %p282 = scmp.lt.s32.totalorder %s279, 15
      %s283 = scalar_select %p282, %s279, 15
      %s284 = smul.addr %s283, 2
      %s285 = smul.addr %s281, 32
      %s286 = sadd.s32 %s284, %s285
      %s287 = smul.addr %s286, 4
      %s288 = scalar_lea.vmem %s0, %s287
      %p289 = pneg %p51
      %p290 = pneg %p48
      %s291 = smul.u32 %s21, 16
      %s292 = ssub.s32 %s291, 1
      %p293 = scmp.gt.s32.totalorder %s292, 0
      %s294 = scalar_select %p293, %s292, 0
      %p295 = scmp.lt.s32.totalorder %s20, 1
      %s296 = scalar_select %p295, %s20, 1
      %p297 = scmp.lt.s32.totalorder %s294, 15
      %s298 = scalar_select %p297, %s294, 15
      %s299 = smul.addr %s298, 2
      %s300 = smul.addr %s296, 32
      %s301 = sadd.s32 %s299, %s300
      %s302 = smul.addr %s301, 4
      %s303 = scalar_lea.vmem %s1, %s302
      %p304 = pneg %p87
      %p305 = pneg %p84
      %s306 = smul.u32 %s21, 16
      %s307 = sadd.s32 %s306, 16
      %p308 = scmp.lt.s32.totalorder %s307, 15
      %s309 = scalar_select %p308, %s307, 15
      %p310 = scmp.lt.s32.totalorder %s20, 1
      %s311 = scalar_select %p310, %s20, 1
      %p312 = scmp.lt.s32.totalorder %s309, 15
      %s313 = scalar_select %p312, %s309, 15
      %s314 = smul.addr %s313, 2
      %s315 = smul.addr %s311, 32
      %s316 = sadd.s32 %s314, %s315
      %s317 = smul.addr %s316, 4
      %s318 = scalar_lea.vmem %s2, %s317
      %p319 = pneg %p123
      %p320 = pneg %p120
      %p321 = pneg %p144
      %p322 = pneg %p141
      %p323 = pneg %p165
      %p324 = pneg %p162
      %p325 = pneg %p193
      %p326 = pneg %p190
      %s327 = smul.u32 8, %s21
      %p328 = scmp.lt.s32.totalorder %s20, 1
      %s329 = scalar_select %p328, %s20, 1
      %p330 = scmp.lt.s32.totalorder %s327, 7
      %s331 = scalar_select %p330, %s327, 7
      %s332 = smul.addr %s329, 8
      %s333 = sadd.s32 %s331, %s332
      %s334 = smul.addr %s333, 4
      %s335 = scalar_lea.vmem %s5, %s334
      %s336 = smul.u32 16, %s21
      %p337 = scmp.lt.s32.totalorder %s20, 1
      %s338 = scalar_select %p337, %s20, 1
      %p339 = scmp.lt.s32.totalorder %s336, 15
      %s340 = scalar_select %p339, %s336, 15
      %s341 = smul.addr %s340, 2
      %s342 = smul.addr %s338, 32
      %s343 = sadd.s32 %s341, %s342
      %s344 = smul.addr %s343, 4
      %s345 = scalar_lea.vmem %s0, %s344
      %s346 = smul.u32 16, %s21
      %s347 = smul.u32 %s21, 16
      %s348 = ssub.s32 %s347, 1
      %p349 = scmp.gt.s32.totalorder %s348, 0
      %s350 = scalar_select %p349, %s348, 0
      %p351 = scmp.lt.s32.totalorder %s20, 1
      %s352 = scalar_select %p351, %s20, 1
      %p353 = scmp.lt.s32.totalorder %s350, 15
      %s354 = scalar_select %p353, %s350, 15
      %s355 = smul.addr %s354, 2
      %s356 = smul.addr %s352, 32
      %s357 = sadd.s32 %s355, %s356
      %s358 = smul.addr %s357, 4
      %s359 = scalar_lea.vmem %s1, %s358
      %s360 = smul.u32 %s21, 16
      %s361 = ssub.s32 %s360, 1
      %p362 = scmp.gt.s32.totalorder %s361, 0
      %s363 = scalar_select %p362, %s361, 0
      %s364 = smul.u32 %s21, 16
      %s365 = sadd.s32 %s364, 16
      %p366 = scmp.lt.s32.totalorder %s365, 15
      %s367 = scalar_select %p366, %s365, 15
      %p368 = scmp.lt.s32.totalorder %s20, 1
      %s369 = scalar_select %p368, %s20, 1
      %p370 = scmp.lt.s32.totalorder %s367, 15
      %s371 = scalar_select %p370, %s367, 15
      %s372 = smul.addr %s371, 2
      %s373 = smul.addr %s369, 32
      %s374 = sadd.s32 %s372, %s373
      %s375 = smul.addr %s374, 4
      %s376 = scalar_lea.vmem %s2, %s375
      %s377 = smul.u32 %s21, 16
      %s378 = sadd.s32 %s377, 16
      %p379 = scmp.lt.s32.totalorder %s378, 15
      %s380 = scalar_select %p379, %s378, 15
      %s381 = smul.u32 8, %s21
      %p382 = scmp.lt.s32.totalorder %s20, 1
      %s383 = scalar_select %p382, %s20, 1
      %p384 = scmp.lt.s32.totalorder %s381, 7
      %s385 = scalar_select %p384, %s381, 7
      %s386 = smul.addr %s383, 8
      %s387 = sadd.s32 %s385, %s386
      %s388 = smul.addr %s387, 4
      %s389 = scalar_lea.vmem %s5, %s388
      %s390 = smul.u32 8, %s21
      %p392 = scmp.eq.s32.totalorder %s21, 0
      %v393 = vld [vmem:[%s359] sm:$0xf]
      %v394 = vld [vmem:[%s359 + $0x4] sm:$0xf]
      %s395 = scalar_select %p392, 1, 0
      %v396 = vstv %s395
      %vm397 = vcmp.eq.s32.totalorder %v396, 1
      %v398 = vsel %vm397, 0, %v393
      %v399 = vsel %vm397, 0, %v394
      %v400 = vld [vmem:[%s376] sm:$0xf]
      %v401 = vld [vmem:[%s376 + $0x4] sm:$0xf]
      %v402 = vsel %vm397, 0, %v400
      %v403 = vsel %vm397, 0, %v401
      %v404 = vld [vmem:[%s345] sm:$0xf]
      %v405 = vld [vmem:[%s345 + $0x4] sm:$0xf]
      %v406 = vld [vmem:[%s345 + $0x8] sm:$0xf]
      %v407 = vld [vmem:[%s345 + $0xc] sm:$0xf]
      %v408 = vld [vmem:[%s345 + $0x10] sm:$0xf]
      %v409 = vld [vmem:[%s345 + $0x14] sm:$0xf]
      %v410 = vld [vmem:[%s345 + $0x18] sm:$0xf]
      %v411 = vld [vmem:[%s345 + $0x1c] sm:$0xf]
      %v412 = vld [vmem:[%s345 + $0x20] sm:$0xf]
      %v413 = vld [vmem:[%s345 + $0x24] sm:$0xf]
      %v414 = vld [vmem:[%s345 + $0x28] sm:$0xf]
      %v415 = vld [vmem:[%s345 + $0x2c] sm:$0xf]
      %v416 = vld [vmem:[%s345 + $0x30] sm:$0xf]
      %v417 = vld [vmem:[%s345 + $0x34] sm:$0xf]
      %v418 = vld [vmem:[%s345 + $0x38] sm:$0xf]
      %v419 = vld [vmem:[%s345 + $0x3c] sm:$0xf]
      %v420 = vld [vmem:[%s345 + $0x40] sm:$0xf]
      %v421 = vld [vmem:[%s345 + $0x44] sm:$0xf]
      %v422 = vld [vmem:[%s345 + $0x48] sm:$0xf]
      %v423 = vld [vmem:[%s345 + $0x4c] sm:$0xf]
      %v424 = vld [vmem:[%s345 + $0x50] sm:$0xf]
      %v425 = vld [vmem:[%s345 + $0x54] sm:$0xf]
      %v426 = vld [vmem:[%s345 + $0x58] sm:$0xf]
      %v427 = vld [vmem:[%s345 + $0x5c] sm:$0xf]
      %v428 = vld [vmem:[%s345 + $0x60] sm:$0xf]
      %v429 = vld [vmem:[%s345 + $0x64] sm:$0xf]
      %v430 = vld [vmem:[%s345 + $0x68] sm:$0xf]
      %v431 = vld [vmem:[%s345 + $0x6c] sm:$0xf]
      %v432 = vld [vmem:[%s345 + $0x70] sm:$0xf]
      %v433 = vld [vmem:[%s345 + $0x74] sm:$0xf]
      %v434 = vld [vmem:[%s345 + $0x78] sm:$0xf]
      %v435 = vld [vmem:[%s345 + $0x7c] sm:$0xf]
      %v472 = vunpack.c.l.b16 %v398
      %v473 = vunpack.c.l.b16 %v399
      %v474 = vunpack.c.l.b16 %v404
      %v475 = vunpack.c.l.b16 %v405
      %v476 = vunpack.c.l.b16 %v406
      %v477 = vunpack.c.l.b16 %v407
      %v478 = vunpack.c.l.b16 %v408
      %v479 = vunpack.c.l.b16 %v409
      %v480 = vunpack.c.l.b16 %v410
      %v481 = vunpack.c.l.b16 %v411
      %v482 = vunpack.c.l.b16 %v412
      %v483 = vunpack.c.l.b16 %v413
      %v484 = vunpack.c.l.b16 %v414
      %v485 = vunpack.c.l.b16 %v415
      %v486 = vunpack.c.l.b16 %v416
      %v487 = vunpack.c.l.b16 %v417
      %v488 = vunpack.c.l.b16 %v418
      %v489 = vunpack.c.l.b16 %v419
      %v490 = vunpack.c.l.b16 %v420
      %v491 = vunpack.c.l.b16 %v421
      %v492 = vunpack.c.l.b16 %v422
      %v493 = vunpack.c.l.b16 %v423
      %v494 = vunpack.c.l.b16 %v424
      %v495 = vunpack.c.l.b16 %v425
      %v496 = vunpack.c.l.b16 %v426
      %v497 = vunpack.c.l.b16 %v427
      %v498 = vunpack.c.l.b16 %v428
      %v499 = vunpack.c.l.b16 %v429
      %v500 = vunpack.c.l.b16 %v430
      %v501 = vunpack.c.l.b16 %v431
      %v502 = vunpack.c.l.b16 %v432
      %v503 = vunpack.c.l.b16 %v433
      %v504 = vunpack.c.l.b16 %v434
      %v505 = vunpack.c.l.b16 %v435
      %v506 = vunpack.c.l.b16 %v402
      %v507 = vunpack.c.l.b16 %v403
      %v508 = vpack.c.b16 %v473, %v472
      %v509 = vpack.c.b16 %v475, %v474
      %v510 = vpack.c.b16 %v477, %v476
      %v511 = vpack.c.b16 %v479, %v478
      %v512 = vpack.c.b16 %v481, %v480
      %v513 = vpack.c.b16 %v483, %v482
      %v514 = vpack.c.b16 %v485, %v484
      %v515 = vpack.c.b16 %v487, %v486
      %v516 = vpack.c.b16 %v489, %v488
      %v517 = vpack.c.b16 %v491, %v490
      %v518 = vpack.c.b16 %v493, %v492
      %v519 = vpack.c.b16 %v495, %v494
      %v520 = vpack.c.b16 %v497, %v496
      %v521 = vpack.c.b16 %v499, %v498
      %v522 = vpack.c.b16 %v501, %v500
      %v523 = vpack.c.b16 %v503, %v502
      %v524 = vpack.c.b16 %v505, %v504
      %v525 = vpack.c.b16 %v507, %v506
      %v527 = vshrl.u32 %v508, 16
      %v529 = vrot.slane %v527, 7
      %v530 = vshll.u32 %v508, 16
      %v532 = vor.u32 %v529, %v530
      %v534 = vshrl.u32 %v509, 16
      %v536 = vrot.slane %v534, 7
      %v537 = vshll.u32 %v509, 16
      %v539 = vor.u32 %v536, %v537
      %v541 = vshrl.u32 %v510, 16
      %v543 = vrot.slane %v541, 7
      %v544 = vshll.u32 %v510, 16
      %v546 = vor.u32 %v543, %v544
      %v548 = vshrl.u32 %v511, 16
      %v550 = vrot.slane %v548, 7
      %v551 = vshll.u32 %v511, 16
      %v553 = vor.u32 %v550, %v551
      %v555 = vshrl.u32 %v512, 16
      %v557 = vrot.slane %v555, 7
      %v558 = vshll.u32 %v512, 16
      %v560 = vor.u32 %v557, %v558
      %v562 = vshrl.u32 %v513, 16
      %v564 = vrot.slane %v562, 7
      %v565 = vshll.u32 %v513, 16
      %v567 = vor.u32 %v564, %v565
      %v569 = vshrl.u32 %v514, 16
      %v571 = vrot.slane %v569, 7
      %v572 = vshll.u32 %v514, 16
      %v574 = vor.u32 %v571, %v572
      %v576 = vshrl.u32 %v515, 16
      %v578 = vrot.slane %v576, 7
      %v579 = vshll.u32 %v515, 16
      %v581 = vor.u32 %v578, %v579
      %v583 = vshrl.u32 %v516, 16
      %v585 = vrot.slane %v583, 7
      %v586 = vshll.u32 %v516, 16
      %v588 = vor.u32 %v585, %v586
      %v590 = vshrl.u32 %v517, 16
      %v592 = vrot.slane %v590, 7
      %v593 = vshll.u32 %v517, 16
      %v595 = vor.u32 %v592, %v593
      %v597 = vshrl.u32 %v518, 16
      %v599 = vrot.slane %v597, 7
      %v600 = vshll.u32 %v518, 16
      %v602 = vor.u32 %v599, %v600
      %v604 = vshrl.u32 %v519, 16
      %v606 = vrot.slane %v604, 7
      %v607 = vshll.u32 %v519, 16
      %v609 = vor.u32 %v606, %v607
      %v611 = vshrl.u32 %v520, 16
      %v613 = vrot.slane %v611, 7
      %v614 = vshll.u32 %v520, 16
      %v616 = vor.u32 %v613, %v614
      %v618 = vshrl.u32 %v521, 16
      %v620 = vrot.slane %v618, 7
      %v621 = vshll.u32 %v521, 16
      %v623 = vor.u32 %v620, %v621
      %v625 = vshrl.u32 %v522, 16
      %v627 = vrot.slane %v625, 7
      %v628 = vshll.u32 %v522, 16
      %v630 = vor.u32 %v627, %v628
      %v632 = vshrl.u32 %v523, 16
      %v634 = vrot.slane %v632, 7
      %v635 = vshll.u32 %v523, 16
      %v637 = vor.u32 %v634, %v635
      %v639 = vshrl.u32 %v524, 16
      %v641 = vrot.slane %v639, 7
      %v642 = vshll.u32 %v524, 16
      %v644 = vor.u32 %v641, %v642
      %v646 = vshrl.u32 %v525, 16
      %v648 = vrot.slane %v646, 7
      %v649 = vshll.u32 %v525, 16
      %v651 = vor.u32 %v648, %v649
      %vm670 = vcmask 1040384
      %vm671 = vsmask.f32 256
      %vm672 = vmand %vm670, %vm671
      %v673 = vsel %vm672, 0, %v532
      %v674 = vsel %vm672, 0, %v539
      %v675 = vsel %vm672, 0, %v546
      %v676 = vsel %vm672, 0, %v553
      %v677 = vsel %vm672, 0, %v560
      %v678 = vsel %vm672, 0, %v567
      %v679 = vsel %vm672, 0, %v574
      %v680 = vsel %vm672, 0, %v581
      %v681 = vsel %vm672, 0, %v588
      %v682 = vsel %vm672, 0, %v595
      %v683 = vsel %vm672, 0, %v602
      %v684 = vsel %vm672, 0, %v609
      %v685 = vsel %vm672, 0, %v616
      %v686 = vsel %vm672, 0, %v623
      %v687 = vsel %vm672, 0, %v630
      %v688 = vsel %vm672, 0, %v637
      %v689 = vsel %vm672, 0, %v644
      %v690 = vsel %vm672, 0, %v651
      %v691 = vrot.slane %v530, 1
      %v692 = vor.u32 %v527, %v691
      %v693 = vrot.slane %v537, 1
      %v694 = vor.u32 %v534, %v693
      %v695 = vrot.slane %v544, 1
      %v696 = vor.u32 %v541, %v695
      %v697 = vrot.slane %v551, 1
      %v698 = vor.u32 %v548, %v697
      %v699 = vrot.slane %v558, 1
      %v700 = vor.u32 %v555, %v699
      %v701 = vrot.slane %v565, 1
      %v702 = vor.u32 %v562, %v701
      %v703 = vrot.slane %v572, 1
      %v704 = vor.u32 %v569, %v703
      %v705 = vrot.slane %v579, 1
      %v706 = vor.u32 %v576, %v705
      %v707 = vrot.slane %v586, 1
      %v708 = vor.u32 %v583, %v707
      %v709 = vrot.slane %v593, 1
      %v710 = vor.u32 %v590, %v709
      %v711 = vrot.slane %v600, 1
      %v712 = vor.u32 %v597, %v711
      %v713 = vrot.slane %v607, 1
      %v714 = vor.u32 %v604, %v713
      %v715 = vrot.slane %v614, 1
      %v716 = vor.u32 %v611, %v715
      %v717 = vrot.slane %v621, 1
      %v718 = vor.u32 %v618, %v717
      %v719 = vrot.slane %v628, 1
      %v720 = vor.u32 %v625, %v719
      %v721 = vrot.slane %v635, 1
      %v722 = vor.u32 %v632, %v721
      %v723 = vrot.slane %v642, 1
      %v724 = vor.u32 %v639, %v723
      %v725 = vrot.slane %v649, 1
      %v726 = vor.u32 %v646, %v725
      %vm745 = vcmask 1047552
      %vm746 = vsmask.f32 7424
      %vm747 = vmand %vm745, %vm746
      %v748 = vsel %vm747, %v692, 0
      %v749 = vsel %vm747, %v694, 0
      %v750 = vsel %vm747, %v696, 0
      %v751 = vsel %vm747, %v698, 0
      %v752 = vsel %vm747, %v700, 0
      %v753 = vsel %vm747, %v702, 0
      %v754 = vsel %vm747, %v704, 0
      %v755 = vsel %vm747, %v706, 0
      %v756 = vsel %vm747, %v708, 0
      %v757 = vsel %vm747, %v710, 0
      %v758 = vsel %vm747, %v712, 0
      %v759 = vsel %vm747, %v714, 0
      %v760 = vsel %vm747, %v716, 0
      %v761 = vsel %vm747, %v718, 0
      %v762 = vsel %vm747, %v720, 0
      %v763 = vsel %vm747, %v722, 0
      %v764 = vsel %vm747, %v724, 0
      %v765 = vsel %vm747, %v726, 0
      %v766 = vld [vmem:[%s4] sm:$0x1]
      %v767 = vld [vmem:[%s3] sm:$0xf]
      %v768 = vld [vmem:[%s3 + $0x4] sm:$0xf]
      %v769 = vld [vmem:[%s3 + $0x8] sm:$0xf]
      %v770 = vld [vmem:[%s3 + $0xc] sm:$0xf]
      %v771 = vld [vmem:[%s3 + $0x10] sm:$0xf]
      %v772 = vld [vmem:[%s3 + $0x14] sm:$0xf]
      %v773 = vld [vmem:[%s3 + $0x18] sm:$0xf]
      %v774 = vld [vmem:[%s3 + $0x1c] sm:$0xf]
      %s775 = scalar_lea.vmem %s3, 32
      %v776 = vld [vmem:[%s775] sm:$0xf]
      %v777 = vld [vmem:[%s775 + $0x4] sm:$0xf]
      %v778 = vld [vmem:[%s775 + $0x8] sm:$0xf]
      %v779 = vld [vmem:[%s775 + $0xc] sm:$0xf]
      %v780 = vld [vmem:[%s775 + $0x10] sm:$0xf]
      %v781 = vld [vmem:[%s775 + $0x14] sm:$0xf]
      %v782 = vld [vmem:[%s775 + $0x18] sm:$0xf]
      %v783 = vld [vmem:[%s775 + $0x1c] sm:$0xf]
      %v792 = vunpack.c.l.b16 %v776
      %v793 = vunpack.c.l.b16 %v777
      %v794 = vunpack.c.l.b16 %v778
      %v795 = vunpack.c.l.b16 %v779
      %v796 = vunpack.c.l.b16 %v780
      %v797 = vunpack.c.l.b16 %v781
      %v798 = vunpack.c.l.b16 %v782
      %v799 = vunpack.c.l.b16 %v783
      %v800 = vpack.c.b16 %v793, %v792
      %v801 = vpack.c.b16 %v795, %v794
      %v802 = vpack.c.b16 %v797, %v796
      %v803 = vpack.c.b16 %v799, %v798
      %vm808 = vcmask 523264
      %v809 = vsel %vm808, %v508, 0
      %v811 = vsel %vm808, %v509, 0
      %v813 = vsel %vm808, %v510, 0
      %v815 = vsel %vm808, %v511, 0
      %v817 = vsel %vm808, %v512, 0
      %v819 = vsel %vm808, %v513, 0
      %v821 = vsel %vm808, %v514, 0
      %v823 = vsel %vm808, %v515, 0
      %v825 = vsel %vm808, %v516, 0
      %v827 = vsel %vm808, %v517, 0
      %v829 = vsel %vm808, %v518, 0
      %v831 = vsel %vm808, %v519, 0
      %v833 = vsel %vm808, %v520, 0
      %v835 = vsel %vm808, %v521, 0
      %v837 = vsel %vm808, %v522, 0
      %v839 = vsel %vm808, %v523, 0
      %841 = vmatprep.subr.bf16.mxu0 0
      %842 = vmatpush1.bf16.msra.mxu0 0
      %843 = vmatprep.subr.bf16.mxu0 0
      %844 = vmatpush1.bf16.msra.mxu0 0
      %845 = vmatprep.subr.bf16.mxu0 0
      %846 = vmatpush1.bf16.msra.mxu0 0
      %847 = vmatprep.subr.bf16.mxu0 0
      %848 = vmatpush1.bf16.msra.mxu0 0
      %849 = vmatprep.subr.bf16.mxu0 0
      %850 = vmatpush1.bf16.msra.mxu0 %v803
      %851 = vmatprep.subr.bf16.mxu0 0
      %852 = vmatpush1.bf16.msra.mxu0 %v802
      %853 = vmatprep.subr.bf16.mxu0 0
      %854 = vmatpush1.bf16.msra.mxu0 %v801
      %855 = vmatprep.subr.bf16.mxu0 0
      %856 = vmatpush1.bf16.msra.mxu0 %v800
      %857 = vmatprep.subr.bf16.mxu0 0
      %858 = vmatpush2.bf16.msra.mxu0 0
      %859 = vmatprep.subr.bf16.mxu0 0
      %860 = vmatpush2.bf16.msra.mxu0 0
      %861 = vmatprep.subr.bf16.mxu0 0
      %862 = vmatpush2.bf16.msra.mxu0 0
      %863 = vmatprep.subr.bf16.mxu0 0
      %864 = vmatpush2.bf16.msra.mxu0 0
      %865 = vmatprep.subr.bf16.mxu0 0
      %866 = vmatpush2.bf16.msra.mxu0 0
      %867 = vmatprep.subr.bf16.mxu0 0
      %868 = vmatpush2.bf16.msra.mxu0 0
      %869 = vmatprep.subr.bf16.mxu0 0
      %870 = vmatpush2.bf16.msra.mxu0 0
      %871 = vmatprep.subr.bf16.mxu0 0
      %872 = vmatpush2.bf16.msra.mxu0 0
      %873 = vmatprep.mubr.bf16.mxu0 0
      %874 = vmatmul.mubr.bf16.gmra.mxu0 %v809
      %v875 = vpop.f32.mrf.mxu0
      %v876 = vadd.f32 0.0, %v875
      %v877 = vpop.f32.mrf.mxu0
      %v878 = vpop.f32.mrf.mxu0
      %v879 = vadd.f32 0.0, %v878
      %v880 = vpop.f32.mrf.mxu0
      %881 = vmatprep.mubr.bf16.mxu0 0
      %882 = vmatmul.mubr.bf16.gmra.mxu0 %v811
      %v883 = vpop.f32.mrf.mxu0
      %v884 = vadd.f32 0.0, %v883
      %v885 = vpop.f32.mrf.mxu0
      %v886 = vpop.f32.mrf.mxu0
      %v887 = vadd.f32 0.0, %v886
      %v888 = vpop.f32.mrf.mxu0
      %889 = vmatprep.mubr.bf16.mxu0 0
      %890 = vmatmul.mubr.bf16.gmra.mxu0 %v813
      %v891 = vpop.f32.mrf.mxu0
      %v892 = vadd.f32 0.0, %v891
      %v893 = vpop.f32.mrf.mxu0
      %v894 = vpop.f32.mrf.mxu0
      %v895 = vadd.f32 0.0, %v894
      %v896 = vpop.f32.mrf.mxu0
      %897 = vmatprep.mubr.bf16.mxu0 0
      %898 = vmatmul.mubr.bf16.gmra.mxu0 %v815
      %v899 = vpop.f32.mrf.mxu0
      %v900 = vadd.f32 0.0, %v899
      %v901 = vpop.f32.mrf.mxu0
      %v902 = vpop.f32.mrf.mxu0
      %v903 = vadd.f32 0.0, %v902
      %v904 = vpop.f32.mrf.mxu0
      %905 = vmatprep.mubr.bf16.mxu0 0
      %906 = vmatmul.mubr.bf16.gmra.mxu0 %v817
      %v907 = vpop.f32.mrf.mxu0
      %v908 = vadd.f32 0.0, %v907
      %v909 = vpop.f32.mrf.mxu0
      %v910 = vpop.f32.mrf.mxu0
      %v911 = vadd.f32 0.0, %v910
      %v912 = vpop.f32.mrf.mxu0
      %913 = vmatprep.mubr.bf16.mxu0 0
      %914 = vmatmul.mubr.bf16.gmra.mxu0 %v819
      %v915 = vpop.f32.mrf.mxu0
      %v916 = vadd.f32 0.0, %v915
      %v917 = vpop.f32.mrf.mxu0
      %v918 = vpop.f32.mrf.mxu0
      %v919 = vadd.f32 0.0, %v918
      %v920 = vpop.f32.mrf.mxu0
      %921 = vmatprep.mubr.bf16.mxu0 0
      %922 = vmatmul.mubr.bf16.gmra.mxu0 %v821
      %v923 = vpop.f32.mrf.mxu0
      %v924 = vadd.f32 0.0, %v923
      %v925 = vpop.f32.mrf.mxu0
      %v926 = vpop.f32.mrf.mxu0
      %v927 = vadd.f32 0.0, %v926
      %v928 = vpop.f32.mrf.mxu0
      %929 = vmatprep.mubr.bf16.mxu0 0
      %930 = vmatmul.mubr.bf16.gmra.mxu0 %v823
      %v931 = vpop.f32.mrf.mxu0
      %v932 = vadd.f32 0.0, %v931
      %v933 = vpop.f32.mrf.mxu0
      %v934 = vpop.f32.mrf.mxu0
      %v935 = vadd.f32 0.0, %v934
      %v936 = vpop.f32.mrf.mxu0
      %937 = vmatprep.mubr.bf16.mxu0 0
      %938 = vmatmul.mubr.bf16.gmra.mxu0 %v825
      %v939 = vpop.f32.mrf.mxu0
      %v940 = vadd.f32 0.0, %v939
      %v941 = vpop.f32.mrf.mxu0
      %v942 = vpop.f32.mrf.mxu0
      %v943 = vadd.f32 0.0, %v942
      %v944 = vpop.f32.mrf.mxu0
      %945 = vmatprep.mubr.bf16.mxu0 0
      %946 = vmatmul.mubr.bf16.gmra.mxu0 %v827
      %v947 = vpop.f32.mrf.mxu0
      %v948 = vadd.f32 0.0, %v947
      %v949 = vpop.f32.mrf.mxu0
      %v950 = vpop.f32.mrf.mxu0
      %v951 = vadd.f32 0.0, %v950
      %v952 = vpop.f32.mrf.mxu0
      %953 = vmatprep.mubr.bf16.mxu0 0
      %954 = vmatmul.mubr.bf16.gmra.mxu0 %v829
      %v955 = vpop.f32.mrf.mxu0
      %v956 = vadd.f32 0.0, %v955
      %v957 = vpop.f32.mrf.mxu0
      %v958 = vpop.f32.mrf.mxu0
      %v959 = vadd.f32 0.0, %v958
      %v960 = vpop.f32.mrf.mxu0
      %961 = vmatprep.mubr.bf16.mxu0 0
      %962 = vmatmul.mubr.bf16.gmra.mxu0 %v831
      %v963 = vpop.f32.mrf.mxu0
      %v964 = vadd.f32 0.0, %v963
      %v965 = vpop.f32.mrf.mxu0
      %v966 = vpop.f32.mrf.mxu0
      %v967 = vadd.f32 0.0, %v966
      %v968 = vpop.f32.mrf.mxu0
      %969 = vmatprep.mubr.bf16.mxu0 0
      %970 = vmatmul.mubr.bf16.gmra.mxu0 %v833
      %v971 = vpop.f32.mrf.mxu0
      %v972 = vadd.f32 0.0, %v971
      %v973 = vpop.f32.mrf.mxu0
      %v974 = vpop.f32.mrf.mxu0
      %v975 = vadd.f32 0.0, %v974
      %v976 = vpop.f32.mrf.mxu0
      %977 = vmatprep.mubr.bf16.mxu0 0
      %978 = vmatmul.mubr.bf16.gmra.mxu0 %v835
      %v979 = vpop.f32.mrf.mxu0
      %v980 = vadd.f32 0.0, %v979
      %v981 = vpop.f32.mrf.mxu0
      %v982 = vpop.f32.mrf.mxu0
      %v983 = vadd.f32 0.0, %v982
      %v984 = vpop.f32.mrf.mxu0
      %985 = vmatprep.mubr.bf16.mxu0 0
      %986 = vmatmul.mubr.bf16.gmra.mxu0 %v837
      %v987 = vpop.f32.mrf.mxu0
      %v988 = vadd.f32 0.0, %v987
      %v989 = vpop.f32.mrf.mxu0
      %v990 = vpop.f32.mrf.mxu0
      %v991 = vadd.f32 0.0, %v990
      %v992 = vpop.f32.mrf.mxu0
      %993 = vmatprep.mubr.bf16.mxu0 0
      %994 = vmatmul.mubr.bf16.gmra.mxu0 %v839
      %v995 = vpop.f32.mrf.mxu0
      %v996 = vadd.f32 0.0, %v995
      %v997 = vpop.f32.mrf.mxu0
      %v998 = vpop.f32.mrf.mxu0
      %v999 = vadd.f32 0.0, %v998
      %v1000 = vpop.f32.mrf.mxu0
      %1001 = vdwg.mxu0
      %v1010 = vunpack.c.l.b16 %v767
      %v1011 = vunpack.c.l.b16 %v768
      %v1012 = vunpack.c.l.b16 %v769
      %v1013 = vunpack.c.l.b16 %v770
      %v1014 = vunpack.c.l.b16 %v771
      %v1015 = vunpack.c.l.b16 %v772
      %v1016 = vunpack.c.l.b16 %v773
      %v1017 = vunpack.c.l.b16 %v774
      %v1018 = vpack.c.b16 %v1011, %v1010
      %v1019 = vpack.c.b16 %v1013, %v1012
      %v1020 = vpack.c.b16 %v1015, %v1014
      %v1021 = vpack.c.b16 %v1017, %v1016
      %v1027 = vsel %vm808, %v673, 0
      %v1030 = vsel %vm808, %v674, 0
      %v1033 = vsel %vm808, %v675, 0
      %v1036 = vsel %vm808, %v676, 0
      %v1039 = vsel %vm808, %v677, 0
      %v1042 = vsel %vm808, %v678, 0
      %v1045 = vsel %vm808, %v679, 0
      %v1048 = vsel %vm808, %v680, 0
      %v1051 = vsel %vm808, %v681, 0
      %v1054 = vsel %vm808, %v682, 0
      %v1057 = vsel %vm808, %v683, 0
      %v1060 = vsel %vm808, %v684, 0
      %v1063 = vsel %vm808, %v685, 0
      %v1066 = vsel %vm808, %v686, 0
      %v1069 = vsel %vm808, %v687, 0
      %v1072 = vsel %vm808, %v688, 0
      %1074 = vmatprep.subr.bf16.mxu0 0
      %1075 = vmatpush1.bf16.msra.mxu0 0
      %1076 = vmatprep.subr.bf16.mxu0 0
      %1077 = vmatpush1.bf16.msra.mxu0 0
      %1078 = vmatprep.subr.bf16.mxu0 0
      %1079 = vmatpush1.bf16.msra.mxu0 0
      %1080 = vmatprep.subr.bf16.mxu0 0
      %1081 = vmatpush1.bf16.msra.mxu0 0
      %1082 = vmatprep.subr.bf16.mxu0 0
      %1083 = vmatpush1.bf16.msra.mxu0 %v1021
      %1084 = vmatprep.subr.bf16.mxu0 0
      %1085 = vmatpush1.bf16.msra.mxu0 %v1020
      %1086 = vmatprep.subr.bf16.mxu0 0
      %1087 = vmatpush1.bf16.msra.mxu0 %v1019
      %1088 = vmatprep.subr.bf16.mxu0 0
      %1089 = vmatpush1.bf16.msra.mxu0 %v1018
      %1090 = vmatprep.subr.bf16.mxu0 0
      %1091 = vmatpush2.bf16.msra.mxu0 0
      %1092 = vmatprep.subr.bf16.mxu0 0
      %1093 = vmatpush2.bf16.msra.mxu0 0
      %1094 = vmatprep.subr.bf16.mxu0 0
      %1095 = vmatpush2.bf16.msra.mxu0 0
      %1096 = vmatprep.subr.bf16.mxu0 0
      %1097 = vmatpush2.bf16.msra.mxu0 0
      %1098 = vmatprep.subr.bf16.mxu0 0
      %1099 = vmatpush2.bf16.msra.mxu0 0
      %1100 = vmatprep.subr.bf16.mxu0 0
      %1101 = vmatpush2.bf16.msra.mxu0 0
      %1102 = vmatprep.subr.bf16.mxu0 0
      %1103 = vmatpush2.bf16.msra.mxu0 0
      %1104 = vmatprep.subr.bf16.mxu0 0
      %1105 = vmatpush2.bf16.msra.mxu0 0
      %1106 = vmatprep.mubr.bf16.mxu0 0
      %1107 = vmatmul.mubr.bf16.gmra.mxu0 %v1027
      %v1108 = vpop.f32.mrf.mxu0
      %v1109 = vadd.f32 %v876, %v1108
      %v1110 = vpop.f32.mrf.mxu0
      %v1111 = vpop.f32.mrf.mxu0
      %v1112 = vadd.f32 %v879, %v1111
      %v1113 = vpop.f32.mrf.mxu0
      %1114 = vmatprep.mubr.bf16.mxu0 0
      %1115 = vmatmul.mubr.bf16.gmra.mxu0 %v1030
      %v1116 = vpop.f32.mrf.mxu0
      %v1117 = vadd.f32 %v884, %v1116
      %v1118 = vpop.f32.mrf.mxu0
      %v1119 = vpop.f32.mrf.mxu0
      %v1120 = vadd.f32 %v887, %v1119
      %v1121 = vpop.f32.mrf.mxu0
      %1122 = vmatprep.mubr.bf16.mxu0 0
      %1123 = vmatmul.mubr.bf16.gmra.mxu0 %v1033
      %v1124 = vpop.f32.mrf.mxu0
      %v1125 = vadd.f32 %v892, %v1124
      %v1126 = vpop.f32.mrf.mxu0
      %v1127 = vpop.f32.mrf.mxu0
      %v1128 = vadd.f32 %v895, %v1127
      %v1129 = vpop.f32.mrf.mxu0
      %1130 = vmatprep.mubr.bf16.mxu0 0
      %1131 = vmatmul.mubr.bf16.gmra.mxu0 %v1036
      %v1132 = vpop.f32.mrf.mxu0
      %v1133 = vadd.f32 %v900, %v1132
      %v1134 = vpop.f32.mrf.mxu0
      %v1135 = vpop.f32.mrf.mxu0
      %v1136 = vadd.f32 %v903, %v1135
      %v1137 = vpop.f32.mrf.mxu0
      %1138 = vmatprep.mubr.bf16.mxu0 0
      %1139 = vmatmul.mubr.bf16.gmra.mxu0 %v1039
      %v1140 = vpop.f32.mrf.mxu0
      %v1141 = vadd.f32 %v908, %v1140
      %v1142 = vpop.f32.mrf.mxu0
      %v1143 = vpop.f32.mrf.mxu0
      %v1144 = vadd.f32 %v911, %v1143
      %v1145 = vpop.f32.mrf.mxu0
      %1146 = vmatprep.mubr.bf16.mxu0 0
      %1147 = vmatmul.mubr.bf16.gmra.mxu0 %v1042
      %v1148 = vpop.f32.mrf.mxu0
      %v1149 = vadd.f32 %v916, %v1148
      %v1150 = vpop.f32.mrf.mxu0
      %v1151 = vpop.f32.mrf.mxu0
      %v1152 = vadd.f32 %v919, %v1151
      %v1153 = vpop.f32.mrf.mxu0
      %1154 = vmatprep.mubr.bf16.mxu0 0
      %1155 = vmatmul.mubr.bf16.gmra.mxu0 %v1045
      %v1156 = vpop.f32.mrf.mxu0
      %v1157 = vadd.f32 %v924, %v1156
      %v1158 = vpop.f32.mrf.mxu0
      %v1159 = vpop.f32.mrf.mxu0
      %v1160 = vadd.f32 %v927, %v1159
      %v1161 = vpop.f32.mrf.mxu0
      %1162 = vmatprep.mubr.bf16.mxu0 0
      %1163 = vmatmul.mubr.bf16.gmra.mxu0 %v1048
      %v1164 = vpop.f32.mrf.mxu0
      %v1165 = vadd.f32 %v932, %v1164
      %v1166 = vpop.f32.mrf.mxu0
      %v1167 = vpop.f32.mrf.mxu0
      %v1168 = vadd.f32 %v935, %v1167
      %v1169 = vpop.f32.mrf.mxu0
      %1170 = vmatprep.mubr.bf16.mxu0 0
      %1171 = vmatmul.mubr.bf16.gmra.mxu0 %v1051
      %v1172 = vpop.f32.mrf.mxu0
      %v1173 = vadd.f32 %v940, %v1172
      %v1174 = vpop.f32.mrf.mxu0
      %v1175 = vpop.f32.mrf.mxu0
      %v1176 = vadd.f32 %v943, %v1175
      %v1177 = vpop.f32.mrf.mxu0
      %1178 = vmatprep.mubr.bf16.mxu0 0
      %1179 = vmatmul.mubr.bf16.gmra.mxu0 %v1054
      %v1180 = vpop.f32.mrf.mxu0
      %v1181 = vadd.f32 %v948, %v1180
      %v1182 = vpop.f32.mrf.mxu0
      %v1183 = vpop.f32.mrf.mxu0
      %v1184 = vadd.f32 %v951, %v1183
      %v1185 = vpop.f32.mrf.mxu0
      %1186 = vmatprep.mubr.bf16.mxu0 0
      %1187 = vmatmul.mubr.bf16.gmra.mxu0 %v1057
      %v1188 = vpop.f32.mrf.mxu0
      %v1189 = vadd.f32 %v956, %v1188
      %v1190 = vpop.f32.mrf.mxu0
      %v1191 = vpop.f32.mrf.mxu0
      %v1192 = vadd.f32 %v959, %v1191
      %v1193 = vpop.f32.mrf.mxu0
      %1194 = vmatprep.mubr.bf16.mxu0 0
      %1195 = vmatmul.mubr.bf16.gmra.mxu0 %v1060
      %v1196 = vpop.f32.mrf.mxu0
      %v1197 = vadd.f32 %v964, %v1196
      %v1198 = vpop.f32.mrf.mxu0
      %v1199 = vpop.f32.mrf.mxu0
      %v1200 = vadd.f32 %v967, %v1199
      %v1201 = vpop.f32.mrf.mxu0
      %1202 = vmatprep.mubr.bf16.mxu0 0
      %1203 = vmatmul.mubr.bf16.gmra.mxu0 %v1063
      %v1204 = vpop.f32.mrf.mxu0
      %v1205 = vadd.f32 %v972, %v1204
      %v1206 = vpop.f32.mrf.mxu0
      %v1207 = vpop.f32.mrf.mxu0
      %v1208 = vadd.f32 %v975, %v1207
      %v1209 = vpop.f32.mrf.mxu0
      %1210 = vmatprep.mubr.bf16.mxu0 0
      %1211 = vmatmul.mubr.bf16.gmra.mxu0 %v1066
      %v1212 = vpop.f32.mrf.mxu0
      %v1213 = vadd.f32 %v980, %v1212
      %v1214 = vpop.f32.mrf.mxu0
      %v1215 = vpop.f32.mrf.mxu0
      %v1216 = vadd.f32 %v983, %v1215
      %v1217 = vpop.f32.mrf.mxu0
      %1218 = vmatprep.mubr.bf16.mxu0 0
      %1219 = vmatmul.mubr.bf16.gmra.mxu0 %v1069
      %v1220 = vpop.f32.mrf.mxu0
      %v1221 = vadd.f32 %v988, %v1220
      %v1222 = vpop.f32.mrf.mxu0
      %v1223 = vpop.f32.mrf.mxu0
      %v1224 = vadd.f32 %v991, %v1223
      %v1225 = vpop.f32.mrf.mxu0
      %1226 = vmatprep.mubr.bf16.mxu0 0
      %1227 = vmatmul.mubr.bf16.gmra.mxu0 %v1072
      %v1228 = vpop.f32.mrf.mxu0
      %v1229 = vadd.f32 %v996, %v1228
      %v1230 = vpop.f32.mrf.mxu0
      %v1231 = vpop.f32.mrf.mxu0
      %v1232 = vadd.f32 %v999, %v1231
      %v1233 = vpop.f32.mrf.mxu0
      %1234 = vdwg.mxu0
      %s1235 = scalar_lea.vmem %s3, 64
      %v1236 = vld [vmem:[%s1235] sm:$0xf]
      %v1237 = vld [vmem:[%s1235 + $0x4] sm:$0xf]
      %v1238 = vld [vmem:[%s1235 + $0x8] sm:$0xf]
      %v1239 = vld [vmem:[%s1235 + $0xc] sm:$0xf]
      %v1240 = vld [vmem:[%s1235 + $0x10] sm:$0xf]
      %v1241 = vld [vmem:[%s1235 + $0x14] sm:$0xf]
      %v1242 = vld [vmem:[%s1235 + $0x18] sm:$0xf]
      %v1243 = vld [vmem:[%s1235 + $0x1c] sm:$0xf]
      %v1252 = vunpack.c.l.b16 %v1236
      %v1253 = vunpack.c.l.b16 %v1237
      %v1254 = vunpack.c.l.b16 %v1238
      %v1255 = vunpack.c.l.b16 %v1239
      %v1256 = vunpack.c.l.b16 %v1240
      %v1257 = vunpack.c.l.b16 %v1241
      %v1258 = vunpack.c.l.b16 %v1242
      %v1259 = vunpack.c.l.b16 %v1243
      %v1260 = vpack.c.b16 %v1253, %v1252
      %v1261 = vpack.c.b16 %v1255, %v1254
      %v1262 = vpack.c.b16 %v1257, %v1256
      %v1263 = vpack.c.b16 %v1259, %v1258
      %v1269 = vsel %vm808, %v748, 0
      %v1272 = vsel %vm808, %v749, 0
      %v1275 = vsel %vm808, %v750, 0
      %v1278 = vsel %vm808, %v751, 0
      %v1281 = vsel %vm808, %v752, 0
      %v1284 = vsel %vm808, %v753, 0
      %v1287 = vsel %vm808, %v754, 0
      %v1290 = vsel %vm808, %v755, 0
      %v1293 = vsel %vm808, %v756, 0
      %v1296 = vsel %vm808, %v757, 0
      %v1299 = vsel %vm808, %v758, 0
      %v1302 = vsel %vm808, %v759, 0
      %v1305 = vsel %vm808, %v760, 0
      %v1308 = vsel %vm808, %v761, 0
      %v1311 = vsel %vm808, %v762, 0
      %v1314 = vsel %vm808, %v763, 0
      %1316 = vmatprep.subr.bf16.mxu0 0
      %1317 = vmatpush1.bf16.msra.mxu0 0
      %1318 = vmatprep.subr.bf16.mxu0 0
      %1319 = vmatpush1.bf16.msra.mxu0 0
      %1320 = vmatprep.subr.bf16.mxu0 0
      %1321 = vmatpush1.bf16.msra.mxu0 0
      %1322 = vmatprep.subr.bf16.mxu0 0
      %1323 = vmatpush1.bf16.msra.mxu0 0
      %1324 = vmatprep.subr.bf16.mxu0 0
      %1325 = vmatpush1.bf16.msra.mxu0 %v1263
      %1326 = vmatprep.subr.bf16.mxu0 0
      %1327 = vmatpush1.bf16.msra.mxu0 %v1262
      %1328 = vmatprep.subr.bf16.mxu0 0
      %1329 = vmatpush1.bf16.msra.mxu0 %v1261
      %1330 = vmatprep.subr.bf16.mxu0 0
      %1331 = vmatpush1.bf16.msra.mxu0 %v1260
      %1332 = vmatprep.subr.bf16.mxu0 0
      %1333 = vmatpush2.bf16.msra.mxu0 0
      %1334 = vmatprep.subr.bf16.mxu0 0
      %1335 = vmatpush2.bf16.msra.mxu0 0
      %1336 = vmatprep.subr.bf16.mxu0 0
      %1337 = vmatpush2.bf16.msra.mxu0 0
      %1338 = vmatprep.subr.bf16.mxu0 0
      %1339 = vmatpush2.bf16.msra.mxu0 0
      %1340 = vmatprep.subr.bf16.mxu0 0
      %1341 = vmatpush2.bf16.msra.mxu0 0
      %1342 = vmatprep.subr.bf16.mxu0 0
      %1343 = vmatpush2.bf16.msra.mxu0 0
      %1344 = vmatprep.subr.bf16.mxu0 0
      %1345 = vmatpush2.bf16.msra.mxu0 0
      %1346 = vmatprep.subr.bf16.mxu0 0
      %1347 = vmatpush2.bf16.msra.mxu0 0
      %1348 = vmatprep.mubr.bf16.mxu0 0
      %1349 = vmatmul.mubr.bf16.gmra.mxu0 %v1269
      %v1350 = vpop.f32.mrf.mxu0
      %v1351 = vadd.f32 0.0, %v1350
      %v1352 = vpop.f32.mrf.mxu0
      %v1353 = vpop.f32.mrf.mxu0
      %v1354 = vadd.f32 0.0, %v1353
      %v1355 = vpop.f32.mrf.mxu0
      %1356 = vmatprep.mubr.bf16.mxu0 0
      %1357 = vmatmul.mubr.bf16.gmra.mxu0 %v1272
      %v1358 = vpop.f32.mrf.mxu0
      %v1359 = vadd.f32 0.0, %v1358
      %v1360 = vpop.f32.mrf.mxu0
      %v1361 = vpop.f32.mrf.mxu0
      %v1362 = vadd.f32 0.0, %v1361
      %v1363 = vpop.f32.mrf.mxu0
      %1364 = vmatprep.mubr.bf16.mxu0 0
      %1365 = vmatmul.mubr.bf16.gmra.mxu0 %v1275
      %v1366 = vpop.f32.mrf.mxu0
      %v1367 = vadd.f32 0.0, %v1366
      %v1368 = vpop.f32.mrf.mxu0
      %v1369 = vpop.f32.mrf.mxu0
      %v1370 = vadd.f32 0.0, %v1369
      %v1371 = vpop.f32.mrf.mxu0
      %1372 = vmatprep.mubr.bf16.mxu0 0
      %1373 = vmatmul.mubr.bf16.gmra.mxu0 %v1278
      %v1374 = vpop.f32.mrf.mxu0
      %v1375 = vadd.f32 0.0, %v1374
      %v1376 = vpop.f32.mrf.mxu0
      %v1377 = vpop.f32.mrf.mxu0
      %v1378 = vadd.f32 0.0, %v1377
      %v1379 = vpop.f32.mrf.mxu0
      %1380 = vmatprep.mubr.bf16.mxu0 0
      %1381 = vmatmul.mubr.bf16.gmra.mxu0 %v1281
      %v1382 = vpop.f32.mrf.mxu0
      %v1383 = vadd.f32 0.0, %v1382
      %v1384 = vpop.f32.mrf.mxu0
      %v1385 = vpop.f32.mrf.mxu0
      %v1386 = vadd.f32 0.0, %v1385
      %v1387 = vpop.f32.mrf.mxu0
      %1388 = vmatprep.mubr.bf16.mxu0 0
      %1389 = vmatmul.mubr.bf16.gmra.mxu0 %v1284
      %v1390 = vpop.f32.mrf.mxu0
      %v1391 = vadd.f32 0.0, %v1390
      %v1392 = vpop.f32.mrf.mxu0
      %v1393 = vpop.f32.mrf.mxu0
      %v1394 = vadd.f32 0.0, %v1393
      %v1395 = vpop.f32.mrf.mxu0
      %1396 = vmatprep.mubr.bf16.mxu0 0
      %1397 = vmatmul.mubr.bf16.gmra.mxu0 %v1287
      %v1398 = vpop.f32.mrf.mxu0
      %v1399 = vadd.f32 0.0, %v1398
      %v1400 = vpop.f32.mrf.mxu0
      %v1401 = vpop.f32.mrf.mxu0
      %v1402 = vadd.f32 0.0, %v1401
      %v1403 = vpop.f32.mrf.mxu0
      %1404 = vmatprep.mubr.bf16.mxu0 0
      %1405 = vmatmul.mubr.bf16.gmra.mxu0 %v1290
      %v1406 = vpop.f32.mrf.mxu0
      %v1407 = vadd.f32 0.0, %v1406
      %v1408 = vpop.f32.mrf.mxu0
      %v1409 = vpop.f32.mrf.mxu0
      %v1410 = vadd.f32 0.0, %v1409
      %v1411 = vpop.f32.mrf.mxu0
      %1412 = vmatprep.mubr.bf16.mxu0 0
      %1413 = vmatmul.mubr.bf16.gmra.mxu0 %v1293
      %v1414 = vpop.f32.mrf.mxu0
      %v1415 = vadd.f32 0.0, %v1414
      %v1416 = vpop.f32.mrf.mxu0
      %v1417 = vpop.f32.mrf.mxu0
      %v1418 = vadd.f32 0.0, %v1417
      %v1419 = vpop.f32.mrf.mxu0
      %1420 = vmatprep.mubr.bf16.mxu0 0
      %1421 = vmatmul.mubr.bf16.gmra.mxu0 %v1296
      %v1422 = vpop.f32.mrf.mxu0
      %v1423 = vadd.f32 0.0, %v1422
      %v1424 = vpop.f32.mrf.mxu0
      %v1425 = vpop.f32.mrf.mxu0
      %v1426 = vadd.f32 0.0, %v1425
      %v1427 = vpop.f32.mrf.mxu0
      %1428 = vmatprep.mubr.bf16.mxu0 0
      %1429 = vmatmul.mubr.bf16.gmra.mxu0 %v1299
      %v1430 = vpop.f32.mrf.mxu0
      %v1431 = vadd.f32 0.0, %v1430
      %v1432 = vpop.f32.mrf.mxu0
      %v1433 = vpop.f32.mrf.mxu0
      %v1434 = vadd.f32 0.0, %v1433
      %v1435 = vpop.f32.mrf.mxu0
      %1436 = vmatprep.mubr.bf16.mxu0 0
      %1437 = vmatmul.mubr.bf16.gmra.mxu0 %v1302
      %v1438 = vpop.f32.mrf.mxu0
      %v1439 = vadd.f32 0.0, %v1438
      %v1440 = vpop.f32.mrf.mxu0
      %v1441 = vpop.f32.mrf.mxu0
      %v1442 = vadd.f32 0.0, %v1441
      %v1443 = vpop.f32.mrf.mxu0
      %1444 = vmatprep.mubr.bf16.mxu0 0
      %1445 = vmatmul.mubr.bf16.gmra.mxu0 %v1305
      %v1446 = vpop.f32.mrf.mxu0
      %v1447 = vadd.f32 0.0, %v1446
      %v1448 = vpop.f32.mrf.mxu0
      %v1449 = vpop.f32.mrf.mxu0
      %v1450 = vadd.f32 0.0, %v1449
      %v1451 = vpop.f32.mrf.mxu0
      %1452 = vmatprep.mubr.bf16.mxu0 0
      %1453 = vmatmul.mubr.bf16.gmra.mxu0 %v1308
      %v1454 = vpop.f32.mrf.mxu0
      %v1455 = vadd.f32 0.0, %v1454
      %v1456 = vpop.f32.mrf.mxu0
      %v1457 = vpop.f32.mrf.mxu0
      %v1458 = vadd.f32 0.0, %v1457
      %v1459 = vpop.f32.mrf.mxu0
      %1460 = vmatprep.mubr.bf16.mxu0 0
      %1461 = vmatmul.mubr.bf16.gmra.mxu0 %v1311
      %v1462 = vpop.f32.mrf.mxu0
      %v1463 = vadd.f32 0.0, %v1462
      %v1464 = vpop.f32.mrf.mxu0
      %v1465 = vpop.f32.mrf.mxu0
      %v1466 = vadd.f32 0.0, %v1465
      %v1467 = vpop.f32.mrf.mxu0
      %1468 = vmatprep.mubr.bf16.mxu0 0
      %1469 = vmatmul.mubr.bf16.gmra.mxu0 %v1314
      %v1470 = vpop.f32.mrf.mxu0
      %v1471 = vadd.f32 0.0, %v1470
      %v1472 = vpop.f32.mrf.mxu0
      %v1473 = vpop.f32.mrf.mxu0
      %v1474 = vadd.f32 0.0, %v1473
      %v1475 = vpop.f32.mrf.mxu0
      %1476 = vdwg.mxu0
      %v1477 = vadd.f32 %v1109, %v1351
      %v1478 = vadd.f32 %v1112, %v1354
      %v1479 = vadd.f32 %v1117, %v1359
      %v1480 = vadd.f32 %v1120, %v1362
      %v1481 = vadd.f32 %v1125, %v1367
      %v1482 = vadd.f32 %v1128, %v1370
      %v1483 = vadd.f32 %v1133, %v1375
      %v1484 = vadd.f32 %v1136, %v1378
      %v1485 = vadd.f32 %v1141, %v1383
      %v1486 = vadd.f32 %v1144, %v1386
      %v1487 = vadd.f32 %v1149, %v1391
      %v1488 = vadd.f32 %v1152, %v1394
      %v1489 = vadd.f32 %v1157, %v1399
      %v1490 = vadd.f32 %v1160, %v1402
      %v1491 = vadd.f32 %v1165, %v1407
      %v1492 = vadd.f32 %v1168, %v1410
      %v1493 = vadd.f32 %v1173, %v1415
      %v1494 = vadd.f32 %v1176, %v1418
      %v1495 = vadd.f32 %v1181, %v1423
      %v1496 = vadd.f32 %v1184, %v1426
      %v1497 = vadd.f32 %v1189, %v1431
      %v1498 = vadd.f32 %v1192, %v1434
      %v1499 = vadd.f32 %v1197, %v1439
      %v1500 = vadd.f32 %v1200, %v1442
      %v1501 = vadd.f32 %v1205, %v1447
      %v1502 = vadd.f32 %v1208, %v1450
      %v1503 = vadd.f32 %v1213, %v1455
      %v1504 = vadd.f32 %v1216, %v1458
      %v1505 = vadd.f32 %v1221, %v1463
      %v1506 = vadd.f32 %v1224, %v1466
      %v1507 = vadd.f32 %v1229, %v1471
      %v1508 = vadd.f32 %v1232, %v1474
      %s1509 = scalar_lea.vmem %s3, 96
      %v1510 = vld [vmem:[%s1509] sm:$0xf]
      %v1511 = vld [vmem:[%s1509 + $0x4] sm:$0xf]
      %v1512 = vld [vmem:[%s1509 + $0x8] sm:$0xf]
      %v1513 = vld [vmem:[%s1509 + $0xc] sm:$0xf]
      %v1514 = vld [vmem:[%s1509 + $0x10] sm:$0xf]
      %v1515 = vld [vmem:[%s1509 + $0x14] sm:$0xf]
      %v1516 = vld [vmem:[%s1509 + $0x18] sm:$0xf]
      %v1517 = vld [vmem:[%s1509 + $0x1c] sm:$0xf]
      %v1526 = vunpack.c.l.b16 %v1510
      %v1527 = vunpack.c.l.b16 %v1511
      %v1528 = vunpack.c.l.b16 %v1512
      %v1529 = vunpack.c.l.b16 %v1513
      %v1530 = vunpack.c.l.b16 %v1514
      %v1531 = vunpack.c.l.b16 %v1515
      %v1532 = vunpack.c.l.b16 %v1516
      %v1533 = vunpack.c.l.b16 %v1517
      %v1534 = vpack.c.b16 %v1527, %v1526
      %v1535 = vpack.c.b16 %v1529, %v1528
      %v1536 = vpack.c.b16 %v1531, %v1530
      %v1537 = vpack.c.b16 %v1533, %v1532
      %v1543 = vsel %vm808, %v689, 0
      %1545 = vmatprep.subr.bf16.mxu0 0
      %1546 = vmatpush1.bf16.msra.mxu0 0
      %1547 = vmatprep.subr.bf16.mxu0 0
      %1548 = vmatpush1.bf16.msra.mxu0 0
      %1549 = vmatprep.subr.bf16.mxu0 0
      %1550 = vmatpush1.bf16.msra.mxu0 0
      %1551 = vmatprep.subr.bf16.mxu0 0
      %1552 = vmatpush1.bf16.msra.mxu0 0
      %1553 = vmatprep.subr.bf16.mxu0 0
      %1554 = vmatpush1.bf16.msra.mxu0 %v1537
      %1555 = vmatprep.subr.bf16.mxu0 0
      %1556 = vmatpush1.bf16.msra.mxu0 %v1536
      %1557 = vmatprep.subr.bf16.mxu0 0
      %1558 = vmatpush1.bf16.msra.mxu0 %v1535
      %1559 = vmatprep.subr.bf16.mxu0 0
      %1560 = vmatpush1.bf16.msra.mxu0 %v1534
      %1561 = vmatprep.subr.bf16.mxu0 0
      %1562 = vmatpush2.bf16.msra.mxu0 0
      %1563 = vmatprep.subr.bf16.mxu0 0
      %1564 = vmatpush2.bf16.msra.mxu0 0
      %1565 = vmatprep.subr.bf16.mxu0 0
      %1566 = vmatpush2.bf16.msra.mxu0 0
      %1567 = vmatprep.subr.bf16.mxu0 0
      %1568 = vmatpush2.bf16.msra.mxu0 0
      %1569 = vmatprep.subr.bf16.mxu0 0
      %1570 = vmatpush2.bf16.msra.mxu0 0
      %1571 = vmatprep.subr.bf16.mxu0 0
      %1572 = vmatpush2.bf16.msra.mxu0 0
      %1573 = vmatprep.subr.bf16.mxu0 0
      %1574 = vmatpush2.bf16.msra.mxu0 0
      %1575 = vmatprep.subr.bf16.mxu0 0
      %1576 = vmatpush2.bf16.msra.mxu0 0
      %1577 = vmatprep.mubr.bf16.mxu0 0
      %1578 = vmatmul.mubr.bf16.gmra.mxu0 %v1030
      %v1579 = vpop.f32.mrf.mxu0
      %v1580 = vadd.f32 0.0, %v1579
      %v1581 = vpop.f32.mrf.mxu0
      %v1582 = vpop.f32.mrf.mxu0
      %v1583 = vadd.f32 0.0, %v1582
      %v1584 = vpop.f32.mrf.mxu0
      %1585 = vmatprep.mubr.bf16.mxu0 0
      %1586 = vmatmul.mubr.bf16.gmra.mxu0 %v1033
      %v1587 = vpop.f32.mrf.mxu0
      %v1588 = vadd.f32 0.0, %v1587
      %v1589 = vpop.f32.mrf.mxu0
      %v1590 = vpop.f32.mrf.mxu0
      %v1591 = vadd.f32 0.0, %v1590
      %v1592 = vpop.f32.mrf.mxu0
      %1593 = vmatprep.mubr.bf16.mxu0 0
      %1594 = vmatmul.mubr.bf16.gmra.mxu0 %v1036
      %v1595 = vpop.f32.mrf.mxu0
      %v1596 = vadd.f32 0.0, %v1595
      %v1597 = vpop.f32.mrf.mxu0
      %v1598 = vpop.f32.mrf.mxu0
      %v1599 = vadd.f32 0.0, %v1598
      %v1600 = vpop.f32.mrf.mxu0
      %1601 = vmatprep.mubr.bf16.mxu0 0
      %1602 = vmatmul.mubr.bf16.gmra.mxu0 %v1039
      %v1603 = vpop.f32.mrf.mxu0
      %v1604 = vadd.f32 0.0, %v1603
      %v1605 = vpop.f32.mrf.mxu0
      %v1606 = vpop.f32.mrf.mxu0
      %v1607 = vadd.f32 0.0, %v1606
      %v1608 = vpop.f32.mrf.mxu0
      %1609 = vmatprep.mubr.bf16.mxu0 0
      %1610 = vmatmul.mubr.bf16.gmra.mxu0 %v1042
      %v1611 = vpop.f32.mrf.mxu0
      %v1612 = vadd.f32 0.0, %v1611
      %v1613 = vpop.f32.mrf.mxu0
      %v1614 = vpop.f32.mrf.mxu0
      %v1615 = vadd.f32 0.0, %v1614
      %v1616 = vpop.f32.mrf.mxu0
      %1617 = vmatprep.mubr.bf16.mxu0 0
      %1618 = vmatmul.mubr.bf16.gmra.mxu0 %v1045
      %v1619 = vpop.f32.mrf.mxu0
      %v1620 = vadd.f32 0.0, %v1619
      %v1621 = vpop.f32.mrf.mxu0
      %v1622 = vpop.f32.mrf.mxu0
      %v1623 = vadd.f32 0.0, %v1622
      %v1624 = vpop.f32.mrf.mxu0
      %1625 = vmatprep.mubr.bf16.mxu0 0
      %1626 = vmatmul.mubr.bf16.gmra.mxu0 %v1048
      %v1627 = vpop.f32.mrf.mxu0
      %v1628 = vadd.f32 0.0, %v1627
      %v1629 = vpop.f32.mrf.mxu0
      %v1630 = vpop.f32.mrf.mxu0
      %v1631 = vadd.f32 0.0, %v1630
      %v1632 = vpop.f32.mrf.mxu0
      %1633 = vmatprep.mubr.bf16.mxu0 0
      %1634 = vmatmul.mubr.bf16.gmra.mxu0 %v1051
      %v1635 = vpop.f32.mrf.mxu0
      %v1636 = vadd.f32 0.0, %v1635
      %v1637 = vpop.f32.mrf.mxu0
      %v1638 = vpop.f32.mrf.mxu0
      %v1639 = vadd.f32 0.0, %v1638
      %v1640 = vpop.f32.mrf.mxu0
      %1641 = vmatprep.mubr.bf16.mxu0 0
      %1642 = vmatmul.mubr.bf16.gmra.mxu0 %v1054
      %v1643 = vpop.f32.mrf.mxu0
      %v1644 = vadd.f32 0.0, %v1643
      %v1645 = vpop.f32.mrf.mxu0
      %v1646 = vpop.f32.mrf.mxu0
      %v1647 = vadd.f32 0.0, %v1646
      %v1648 = vpop.f32.mrf.mxu0
      %1649 = vmatprep.mubr.bf16.mxu0 0
      %1650 = vmatmul.mubr.bf16.gmra.mxu0 %v1057
      %v1651 = vpop.f32.mrf.mxu0
      %v1652 = vadd.f32 0.0, %v1651
      %v1653 = vpop.f32.mrf.mxu0
      %v1654 = vpop.f32.mrf.mxu0
      %v1655 = vadd.f32 0.0, %v1654
      %v1656 = vpop.f32.mrf.mxu0
      %1657 = vmatprep.mubr.bf16.mxu0 0
      %1658 = vmatmul.mubr.bf16.gmra.mxu0 %v1060
      %v1659 = vpop.f32.mrf.mxu0
      %v1660 = vadd.f32 0.0, %v1659
      %v1661 = vpop.f32.mrf.mxu0
      %v1662 = vpop.f32.mrf.mxu0
      %v1663 = vadd.f32 0.0, %v1662
      %v1664 = vpop.f32.mrf.mxu0
      %1665 = vmatprep.mubr.bf16.mxu0 0
      %1666 = vmatmul.mubr.bf16.gmra.mxu0 %v1063
      %v1667 = vpop.f32.mrf.mxu0
      %v1668 = vadd.f32 0.0, %v1667
      %v1669 = vpop.f32.mrf.mxu0
      %v1670 = vpop.f32.mrf.mxu0
      %v1671 = vadd.f32 0.0, %v1670
      %v1672 = vpop.f32.mrf.mxu0
      %1673 = vmatprep.mubr.bf16.mxu0 0
      %1674 = vmatmul.mubr.bf16.gmra.mxu0 %v1066
      %v1675 = vpop.f32.mrf.mxu0
      %v1676 = vadd.f32 0.0, %v1675
      %v1677 = vpop.f32.mrf.mxu0
      %v1678 = vpop.f32.mrf.mxu0
      %v1679 = vadd.f32 0.0, %v1678
      %v1680 = vpop.f32.mrf.mxu0
      %1681 = vmatprep.mubr.bf16.mxu0 0
      %1682 = vmatmul.mubr.bf16.gmra.mxu0 %v1069
      %v1683 = vpop.f32.mrf.mxu0
      %v1684 = vadd.f32 0.0, %v1683
      %v1685 = vpop.f32.mrf.mxu0
      %v1686 = vpop.f32.mrf.mxu0
      %v1687 = vadd.f32 0.0, %v1686
      %v1688 = vpop.f32.mrf.mxu0
      %1689 = vmatprep.mubr.bf16.mxu0 0
      %1690 = vmatmul.mubr.bf16.gmra.mxu0 %v1072
      %v1691 = vpop.f32.mrf.mxu0
      %v1692 = vadd.f32 0.0, %v1691
      %v1693 = vpop.f32.mrf.mxu0
      %v1694 = vpop.f32.mrf.mxu0
      %v1695 = vadd.f32 0.0, %v1694
      %v1696 = vpop.f32.mrf.mxu0
      %1697 = vmatprep.mubr.bf16.mxu0 0
      %1698 = vmatmul.mubr.bf16.gmra.mxu0 %v1543
      %v1699 = vpop.f32.mrf.mxu0
      %v1700 = vadd.f32 0.0, %v1699
      %v1701 = vpop.f32.mrf.mxu0
      %v1702 = vpop.f32.mrf.mxu0
      %v1703 = vadd.f32 0.0, %v1702
      %v1704 = vpop.f32.mrf.mxu0
      %1705 = vdwg.mxu0
      %v1706 = vadd.f32 %v1477, %v1580
      %v1707 = vadd.f32 %v1478, %v1583
      %v1708 = vadd.f32 %v1479, %v1588
      %v1709 = vadd.f32 %v1480, %v1591
      %v1710 = vadd.f32 %v1481, %v1596
      %v1711 = vadd.f32 %v1482, %v1599
      %v1712 = vadd.f32 %v1483, %v1604
      %v1713 = vadd.f32 %v1484, %v1607
      %v1714 = vadd.f32 %v1485, %v1612
      %v1715 = vadd.f32 %v1486, %v1615
      %v1716 = vadd.f32 %v1487, %v1620
      %v1717 = vadd.f32 %v1488, %v1623
      %v1718 = vadd.f32 %v1489, %v1628
      %v1719 = vadd.f32 %v1490, %v1631
      %v1720 = vadd.f32 %v1491, %v1636
      %v1721 = vadd.f32 %v1492, %v1639
      %v1722 = vadd.f32 %v1493, %v1644
      %v1723 = vadd.f32 %v1494, %v1647
      %v1724 = vadd.f32 %v1495, %v1652
      %v1725 = vadd.f32 %v1496, %v1655
      %v1726 = vadd.f32 %v1497, %v1660
      %v1727 = vadd.f32 %v1498, %v1663
      %v1728 = vadd.f32 %v1499, %v1668
      %v1729 = vadd.f32 %v1500, %v1671
      %v1730 = vadd.f32 %v1501, %v1676
      %v1731 = vadd.f32 %v1502, %v1679
      %v1732 = vadd.f32 %v1503, %v1684
      %v1733 = vadd.f32 %v1504, %v1687
      %v1734 = vadd.f32 %v1505, %v1692
      %v1735 = vadd.f32 %v1506, %v1695
      %v1736 = vadd.f32 %v1507, %v1700
      %v1737 = vadd.f32 %v1508, %v1703
      %s1738 = scalar_lea.vmem %s3, 128
      %v1739 = vld [vmem:[%s1738] sm:$0xf]
      %v1740 = vld [vmem:[%s1738 + $0x4] sm:$0xf]
      %v1741 = vld [vmem:[%s1738 + $0x8] sm:$0xf]
      %v1742 = vld [vmem:[%s1738 + $0xc] sm:$0xf]
      %v1743 = vld [vmem:[%s1738 + $0x10] sm:$0xf]
      %v1744 = vld [vmem:[%s1738 + $0x14] sm:$0xf]
      %v1745 = vld [vmem:[%s1738 + $0x18] sm:$0xf]
      %v1746 = vld [vmem:[%s1738 + $0x1c] sm:$0xf]
      %v1755 = vunpack.c.l.b16 %v1739
      %v1756 = vunpack.c.l.b16 %v1740
      %v1757 = vunpack.c.l.b16 %v1741
      %v1758 = vunpack.c.l.b16 %v1742
      %v1759 = vunpack.c.l.b16 %v1743
      %v1760 = vunpack.c.l.b16 %v1744
      %v1761 = vunpack.c.l.b16 %v1745
      %v1762 = vunpack.c.l.b16 %v1746
      %v1763 = vpack.c.b16 %v1756, %v1755
      %v1764 = vpack.c.b16 %v1758, %v1757
      %v1765 = vpack.c.b16 %v1760, %v1759
      %v1766 = vpack.c.b16 %v1762, %v1761
      %v1771 = vsel %vm808, %v524, 0
      %1773 = vmatprep.subr.bf16.mxu0 0
      %1774 = vmatpush1.bf16.msra.mxu0 0
      %1775 = vmatprep.subr.bf16.mxu0 0
      %1776 = vmatpush1.bf16.msra.mxu0 0
      %1777 = vmatprep.subr.bf16.mxu0 0
      %1778 = vmatpush1.bf16.msra.mxu0 0
      %1779 = vmatprep.subr.bf16.mxu0 0
      %1780 = vmatpush1.bf16.msra.mxu0 0
      %1781 = vmatprep.subr.bf16.mxu0 0
      %1782 = vmatpush1.bf16.msra.mxu0 %v1766
      %1783 = vmatprep.subr.bf16.mxu0 0
      %1784 = vmatpush1.bf16.msra.mxu0 %v1765
      %1785 = vmatprep.subr.bf16.mxu0 0
      %1786 = vmatpush1.bf16.msra.mxu0 %v1764
      %1787 = vmatprep.subr.bf16.mxu0 0
      %1788 = vmatpush1.bf16.msra.mxu0 %v1763
      %1789 = vmatprep.subr.bf16.mxu0 0
      %1790 = vmatpush2.bf16.msra.mxu0 0
      %1791 = vmatprep.subr.bf16.mxu0 0
      %1792 = vmatpush2.bf16.msra.mxu0 0
      %1793 = vmatprep.subr.bf16.mxu0 0
      %1794 = vmatpush2.bf16.msra.mxu0 0
      %1795 = vmatprep.subr.bf16.mxu0 0
      %1796 = vmatpush2.bf16.msra.mxu0 0
      %1797 = vmatprep.subr.bf16.mxu0 0
      %1798 = vmatpush2.bf16.msra.mxu0 0
      %1799 = vmatprep.subr.bf16.mxu0 0
      %1800 = vmatpush2.bf16.msra.mxu0 0
      %1801 = vmatprep.subr.bf16.mxu0 0
      %1802 = vmatpush2.bf16.msra.mxu0 0
      %1803 = vmatprep.subr.bf16.mxu0 0
      %1804 = vmatpush2.bf16.msra.mxu0 0
      %1805 = vmatprep.mubr.bf16.mxu0 0
      %1806 = vmatmul.mubr.bf16.gmra.mxu0 %v811
      %v1807 = vpop.f32.mrf.mxu0
      %v1808 = vadd.f32 0.0, %v1807
      %v1809 = vpop.f32.mrf.mxu0
      %v1810 = vpop.f32.mrf.mxu0
      %v1811 = vadd.f32 0.0, %v1810
      %v1812 = vpop.f32.mrf.mxu0
      %1813 = vmatprep.mubr.bf16.mxu0 0
      %1814 = vmatmul.mubr.bf16.gmra.mxu0 %v813
      %v1815 = vpop.f32.mrf.mxu0
      %v1816 = vadd.f32 0.0, %v1815
      %v1817 = vpop.f32.mrf.mxu0
      %v1818 = vpop.f32.mrf.mxu0
      %v1819 = vadd.f32 0.0, %v1818
      %v1820 = vpop.f32.mrf.mxu0
      %1821 = vmatprep.mubr.bf16.mxu0 0
      %1822 = vmatmul.mubr.bf16.gmra.mxu0 %v815
      %v1823 = vpop.f32.mrf.mxu0
      %v1824 = vadd.f32 0.0, %v1823
      %v1825 = vpop.f32.mrf.mxu0
      %v1826 = vpop.f32.mrf.mxu0
      %v1827 = vadd.f32 0.0, %v1826
      %v1828 = vpop.f32.mrf.mxu0
      %1829 = vmatprep.mubr.bf16.mxu0 0
      %1830 = vmatmul.mubr.bf16.gmra.mxu0 %v817
      %v1831 = vpop.f32.mrf.mxu0
      %v1832 = vadd.f32 0.0, %v1831
      %v1833 = vpop.f32.mrf.mxu0
      %v1834 = vpop.f32.mrf.mxu0
      %v1835 = vadd.f32 0.0, %v1834
      %v1836 = vpop.f32.mrf.mxu0
      %1837 = vmatprep.mubr.bf16.mxu0 0
      %1838 = vmatmul.mubr.bf16.gmra.mxu0 %v819
      %v1839 = vpop.f32.mrf.mxu0
      %v1840 = vadd.f32 0.0, %v1839
      %v1841 = vpop.f32.mrf.mxu0
      %v1842 = vpop.f32.mrf.mxu0
      %v1843 = vadd.f32 0.0, %v1842
      %v1844 = vpop.f32.mrf.mxu0
      %1845 = vmatprep.mubr.bf16.mxu0 0
      %1846 = vmatmul.mubr.bf16.gmra.mxu0 %v821
      %v1847 = vpop.f32.mrf.mxu0
      %v1848 = vadd.f32 0.0, %v1847
      %v1849 = vpop.f32.mrf.mxu0
      %v1850 = vpop.f32.mrf.mxu0
      %v1851 = vadd.f32 0.0, %v1850
      %v1852 = vpop.f32.mrf.mxu0
      %1853 = vmatprep.mubr.bf16.mxu0 0
      %1854 = vmatmul.mubr.bf16.gmra.mxu0 %v823
      %v1855 = vpop.f32.mrf.mxu0
      %v1856 = vadd.f32 0.0, %v1855
      %v1857 = vpop.f32.mrf.mxu0
      %v1858 = vpop.f32.mrf.mxu0
      %v1859 = vadd.f32 0.0, %v1858
      %v1860 = vpop.f32.mrf.mxu0
      %1861 = vmatprep.mubr.bf16.mxu0 0
      %1862 = vmatmul.mubr.bf16.gmra.mxu0 %v825
      %v1863 = vpop.f32.mrf.mxu0
      %v1864 = vadd.f32 0.0, %v1863
      %v1865 = vpop.f32.mrf.mxu0
      %v1866 = vpop.f32.mrf.mxu0
      %v1867 = vadd.f32 0.0, %v1866
      %v1868 = vpop.f32.mrf.mxu0
      %1869 = vmatprep.mubr.bf16.mxu0 0
      %1870 = vmatmul.mubr.bf16.gmra.mxu0 %v827
      %v1871 = vpop.f32.mrf.mxu0
      %v1872 = vadd.f32 0.0, %v1871
      %v1873 = vpop.f32.mrf.mxu0
      %v1874 = vpop.f32.mrf.mxu0
      %v1875 = vadd.f32 0.0, %v1874
      %v1876 = vpop.f32.mrf.mxu0
      %1877 = vmatprep.mubr.bf16.mxu0 0
      %1878 = vmatmul.mubr.bf16.gmra.mxu0 %v829
      %v1879 = vpop.f32.mrf.mxu0
      %v1880 = vadd.f32 0.0, %v1879
      %v1881 = vpop.f32.mrf.mxu0
      %v1882 = vpop.f32.mrf.mxu0
      %v1883 = vadd.f32 0.0, %v1882
      %v1884 = vpop.f32.mrf.mxu0
      %1885 = vmatprep.mubr.bf16.mxu0 0
      %1886 = vmatmul.mubr.bf16.gmra.mxu0 %v831
      %v1887 = vpop.f32.mrf.mxu0
      %v1888 = vadd.f32 0.0, %v1887
      %v1889 = vpop.f32.mrf.mxu0
      %v1890 = vpop.f32.mrf.mxu0
      %v1891 = vadd.f32 0.0, %v1890
      %v1892 = vpop.f32.mrf.mxu0
      %1893 = vmatprep.mubr.bf16.mxu0 0
      %1894 = vmatmul.mubr.bf16.gmra.mxu0 %v833
      %v1895 = vpop.f32.mrf.mxu0
      %v1896 = vadd.f32 0.0, %v1895
      %v1897 = vpop.f32.mrf.mxu0
      %v1898 = vpop.f32.mrf.mxu0
      %v1899 = vadd.f32 0.0, %v1898
      %v1900 = vpop.f32.mrf.mxu0
      %1901 = vmatprep.mubr.bf16.mxu0 0
      %1902 = vmatmul.mubr.bf16.gmra.mxu0 %v835
      %v1903 = vpop.f32.mrf.mxu0
      %v1904 = vadd.f32 0.0, %v1903
      %v1905 = vpop.f32.mrf.mxu0
      %v1906 = vpop.f32.mrf.mxu0
      %v1907 = vadd.f32 0.0, %v1906
      %v1908 = vpop.f32.mrf.mxu0
      %1909 = vmatprep.mubr.bf16.mxu0 0
      %1910 = vmatmul.mubr.bf16.gmra.mxu0 %v837
      %v1911 = vpop.f32.mrf.mxu0
      %v1912 = vadd.f32 0.0, %v1911
      %v1913 = vpop.f32.mrf.mxu0
      %v1914 = vpop.f32.mrf.mxu0
      %v1915 = vadd.f32 0.0, %v1914
      %v1916 = vpop.f32.mrf.mxu0
      %1917 = vmatprep.mubr.bf16.mxu0 0
      %1918 = vmatmul.mubr.bf16.gmra.mxu0 %v839
      %v1919 = vpop.f32.mrf.mxu0
      %v1920 = vadd.f32 0.0, %v1919
      %v1921 = vpop.f32.mrf.mxu0
      %v1922 = vpop.f32.mrf.mxu0
      %v1923 = vadd.f32 0.0, %v1922
      %v1924 = vpop.f32.mrf.mxu0
      %1925 = vmatprep.mubr.bf16.mxu0 0
      %1926 = vmatmul.mubr.bf16.gmra.mxu0 %v1771
      %v1927 = vpop.f32.mrf.mxu0
      %v1928 = vadd.f32 0.0, %v1927
      %v1929 = vpop.f32.mrf.mxu0
      %v1930 = vpop.f32.mrf.mxu0
      %v1931 = vadd.f32 0.0, %v1930
      %v1932 = vpop.f32.mrf.mxu0
      %1933 = vdwg.mxu0
      %v1934 = vadd.f32 %v1706, %v1808
      %v1935 = vadd.f32 %v1707, %v1811
      %v1936 = vadd.f32 %v1708, %v1816
      %v1937 = vadd.f32 %v1709, %v1819
      %v1938 = vadd.f32 %v1710, %v1824
      %v1939 = vadd.f32 %v1711, %v1827
      %v1940 = vadd.f32 %v1712, %v1832
      %v1941 = vadd.f32 %v1713, %v1835
      %v1942 = vadd.f32 %v1714, %v1840
      %v1943 = vadd.f32 %v1715, %v1843
      %v1944 = vadd.f32 %v1716, %v1848
      %v1945 = vadd.f32 %v1717, %v1851
      %v1946 = vadd.f32 %v1718, %v1856
      %v1947 = vadd.f32 %v1719, %v1859
      %v1948 = vadd.f32 %v1720, %v1864
      %v1949 = vadd.f32 %v1721, %v1867
      %v1950 = vadd.f32 %v1722, %v1872
      %v1951 = vadd.f32 %v1723, %v1875
      %v1952 = vadd.f32 %v1724, %v1880
      %v1953 = vadd.f32 %v1725, %v1883
      %v1954 = vadd.f32 %v1726, %v1888
      %v1955 = vadd.f32 %v1727, %v1891
      %v1956 = vadd.f32 %v1728, %v1896
      %v1957 = vadd.f32 %v1729, %v1899
      %v1958 = vadd.f32 %v1730, %v1904
      %v1959 = vadd.f32 %v1731, %v1907
      %v1960 = vadd.f32 %v1732, %v1912
      %v1961 = vadd.f32 %v1733, %v1915
      %v1962 = vadd.f32 %v1734, %v1920
      %v1963 = vadd.f32 %v1735, %v1923
      %v1964 = vadd.f32 %v1736, %v1928
      %v1965 = vadd.f32 %v1737, %v1931
      %s1966 = scalar_lea.vmem %s3, 160
      %v1967 = vld [vmem:[%s1966] sm:$0xf]
      %v1968 = vld [vmem:[%s1966 + $0x4] sm:$0xf]
      %v1969 = vld [vmem:[%s1966 + $0x8] sm:$0xf]
      %v1970 = vld [vmem:[%s1966 + $0xc] sm:$0xf]
      %v1971 = vld [vmem:[%s1966 + $0x10] sm:$0xf]
      %v1972 = vld [vmem:[%s1966 + $0x14] sm:$0xf]
      %v1973 = vld [vmem:[%s1966 + $0x18] sm:$0xf]
      %v1974 = vld [vmem:[%s1966 + $0x1c] sm:$0xf]
      %v1983 = vunpack.c.l.b16 %v1967
      %v1984 = vunpack.c.l.b16 %v1968
      %v1985 = vunpack.c.l.b16 %v1969
      %v1986 = vunpack.c.l.b16 %v1970
      %v1987 = vunpack.c.l.b16 %v1971
      %v1988 = vunpack.c.l.b16 %v1972
      %v1989 = vunpack.c.l.b16 %v1973
      %v1990 = vunpack.c.l.b16 %v1974
      %v1991 = vpack.c.b16 %v1984, %v1983
      %v1992 = vpack.c.b16 %v1986, %v1985
      %v1993 = vpack.c.b16 %v1988, %v1987
      %v1994 = vpack.c.b16 %v1990, %v1989
      %v2000 = vsel %vm808, %v764, 0
      %2002 = vmatprep.subr.bf16.mxu0 0
      %2003 = vmatpush1.bf16.msra.mxu0 0
      %2004 = vmatprep.subr.bf16.mxu0 0
      %2005 = vmatpush1.bf16.msra.mxu0 0
      %2006 = vmatprep.subr.bf16.mxu0 0
      %2007 = vmatpush1.bf16.msra.mxu0 0
      %2008 = vmatprep.subr.bf16.mxu0 0
      %2009 = vmatpush1.bf16.msra.mxu0 0
      %2010 = vmatprep.subr.bf16.mxu0 0
      %2011 = vmatpush1.bf16.msra.mxu0 %v1994
      %2012 = vmatprep.subr.bf16.mxu0 0
      %2013 = vmatpush1.bf16.msra.mxu0 %v1993
      %2014 = vmatprep.subr.bf16.mxu0 0
      %2015 = vmatpush1.bf16.msra.mxu0 %v1992
      %2016 = vmatprep.subr.bf16.mxu0 0
      %2017 = vmatpush1.bf16.msra.mxu0 %v1991
      %2018 = vmatprep.subr.bf16.mxu0 0
      %2019 = vmatpush2.bf16.msra.mxu0 0
      %2020 = vmatprep.subr.bf16.mxu0 0
      %2021 = vmatpush2.bf16.msra.mxu0 0
      %2022 = vmatprep.subr.bf16.mxu0 0
      %2023 = vmatpush2.bf16.msra.mxu0 0
      %2024 = vmatprep.subr.bf16.mxu0 0
      %2025 = vmatpush2.bf16.msra.mxu0 0
      %2026 = vmatprep.subr.bf16.mxu0 0
      %2027 = vmatpush2.bf16.msra.mxu0 0
      %2028 = vmatprep.subr.bf16.mxu0 0
      %2029 = vmatpush2.bf16.msra.mxu0 0
      %2030 = vmatprep.subr.bf16.mxu0 0
      %2031 = vmatpush2.bf16.msra.mxu0 0
      %2032 = vmatprep.subr.bf16.mxu0 0
      %2033 = vmatpush2.bf16.msra.mxu0 0
      %2034 = vmatprep.mubr.bf16.mxu0 0
      %2035 = vmatmul.mubr.bf16.gmra.mxu0 %v1272
      %v2036 = vpop.f32.mrf.mxu0
      %v2037 = vadd.f32 0.0, %v2036
      %v2038 = vpop.f32.mrf.mxu0
      %v2039 = vpop.f32.mrf.mxu0
      %v2040 = vadd.f32 0.0, %v2039
      %v2041 = vpop.f32.mrf.mxu0
      %2042 = vmatprep.mubr.bf16.mxu0 0
      %2043 = vmatmul.mubr.bf16.gmra.mxu0 %v1275
      %v2044 = vpop.f32.mrf.mxu0
      %v2045 = vadd.f32 0.0, %v2044
      %v2046 = vpop.f32.mrf.mxu0
      %v2047 = vpop.f32.mrf.mxu0
      %v2048 = vadd.f32 0.0, %v2047
      %v2049 = vpop.f32.mrf.mxu0
      %2050 = vmatprep.mubr.bf16.mxu0 0
      %2051 = vmatmul.mubr.bf16.gmra.mxu0 %v1278
      %v2052 = vpop.f32.mrf.mxu0
      %v2053 = vadd.f32 0.0, %v2052
      %v2054 = vpop.f32.mrf.mxu0
      %v2055 = vpop.f32.mrf.mxu0
      %v2056 = vadd.f32 0.0, %v2055
      %v2057 = vpop.f32.mrf.mxu0
      %2058 = vmatprep.mubr.bf16.mxu0 0
      %2059 = vmatmul.mubr.bf16.gmra.mxu0 %v1281
      %v2060 = vpop.f32.mrf.mxu0
      %v2061 = vadd.f32 0.0, %v2060
      %v2062 = vpop.f32.mrf.mxu0
      %v2063 = vpop.f32.mrf.mxu0
      %v2064 = vadd.f32 0.0, %v2063
      %v2065 = vpop.f32.mrf.mxu0
      %2066 = vmatprep.mubr.bf16.mxu0 0
      %2067 = vmatmul.mubr.bf16.gmra.mxu0 %v1284
      %v2068 = vpop.f32.mrf.mxu0
      %v2069 = vadd.f32 0.0, %v2068
      %v2070 = vpop.f32.mrf.mxu0
      %v2071 = vpop.f32.mrf.mxu0
      %v2072 = vadd.f32 0.0, %v2071
      %v2073 = vpop.f32.mrf.mxu0
      %2074 = vmatprep.mubr.bf16.mxu0 0
      %2075 = vmatmul.mubr.bf16.gmra.mxu0 %v1287
      %v2076 = vpop.f32.mrf.mxu0
      %v2077 = vadd.f32 0.0, %v2076
      %v2078 = vpop.f32.mrf.mxu0
      %v2079 = vpop.f32.mrf.mxu0
      %v2080 = vadd.f32 0.0, %v2079
      %v2081 = vpop.f32.mrf.mxu0
      %2082 = vmatprep.mubr.bf16.mxu0 0
      %2083 = vmatmul.mubr.bf16.gmra.mxu0 %v1290
      %v2084 = vpop.f32.mrf.mxu0
      %v2085 = vadd.f32 0.0, %v2084
      %v2086 = vpop.f32.mrf.mxu0
      %v2087 = vpop.f32.mrf.mxu0
      %v2088 = vadd.f32 0.0, %v2087
      %v2089 = vpop.f32.mrf.mxu0
      %2090 = vmatprep.mubr.bf16.mxu0 0
      %2091 = vmatmul.mubr.bf16.gmra.mxu0 %v1293
      %v2092 = vpop.f32.mrf.mxu0
      %v2093 = vadd.f32 0.0, %v2092
      %v2094 = vpop.f32.mrf.mxu0
      %v2095 = vpop.f32.mrf.mxu0
      %v2096 = vadd.f32 0.0, %v2095
      %v2097 = vpop.f32.mrf.mxu0
      %2098 = vmatprep.mubr.bf16.mxu0 0
      %2099 = vmatmul.mubr.bf16.gmra.mxu0 %v1296
      %v2100 = vpop.f32.mrf.mxu0
      %v2101 = vadd.f32 0.0, %v2100
      %v2102 = vpop.f32.mrf.mxu0
      %v2103 = vpop.f32.mrf.mxu0
      %v2104 = vadd.f32 0.0, %v2103
      %v2105 = vpop.f32.mrf.mxu0
      %2106 = vmatprep.mubr.bf16.mxu0 0
      %2107 = vmatmul.mubr.bf16.gmra.mxu0 %v1299
      %v2108 = vpop.f32.mrf.mxu0
      %v2109 = vadd.f32 0.0, %v2108
      %v2110 = vpop.f32.mrf.mxu0
      %v2111 = vpop.f32.mrf.mxu0
      %v2112 = vadd.f32 0.0, %v2111
      %v2113 = vpop.f32.mrf.mxu0
      %2114 = vmatprep.mubr.bf16.mxu0 0
      %2115 = vmatmul.mubr.bf16.gmra.mxu0 %v1302
      %v2116 = vpop.f32.mrf.mxu0
      %v2117 = vadd.f32 0.0, %v2116
      %v2118 = vpop.f32.mrf.mxu0
      %v2119 = vpop.f32.mrf.mxu0
      %v2120 = vadd.f32 0.0, %v2119
      %v2121 = vpop.f32.mrf.mxu0
      %2122 = vmatprep.mubr.bf16.mxu0 0
      %2123 = vmatmul.mubr.bf16.gmra.mxu0 %v1305
      %v2124 = vpop.f32.mrf.mxu0
      %v2125 = vadd.f32 0.0, %v2124
      %v2126 = vpop.f32.mrf.mxu0
      %v2127 = vpop.f32.mrf.mxu0
      %v2128 = vadd.f32 0.0, %v2127
      %v2129 = vpop.f32.mrf.mxu0
      %2130 = vmatprep.mubr.bf16.mxu0 0
      %2131 = vmatmul.mubr.bf16.gmra.mxu0 %v1308
      %v2132 = vpop.f32.mrf.mxu0
      %v2133 = vadd.f32 0.0, %v2132
      %v2134 = vpop.f32.mrf.mxu0
      %v2135 = vpop.f32.mrf.mxu0
      %v2136 = vadd.f32 0.0, %v2135
      %v2137 = vpop.f32.mrf.mxu0
      %2138 = vmatprep.mubr.bf16.mxu0 0
      %2139 = vmatmul.mubr.bf16.gmra.mxu0 %v1311
      %v2140 = vpop.f32.mrf.mxu0
      %v2141 = vadd.f32 0.0, %v2140
      %v2142 = vpop.f32.mrf.mxu0
      %v2143 = vpop.f32.mrf.mxu0
      %v2144 = vadd.f32 0.0, %v2143
      %v2145 = vpop.f32.mrf.mxu0
      %2146 = vmatprep.mubr.bf16.mxu0 0
      %2147 = vmatmul.mubr.bf16.gmra.mxu0 %v1314
      %v2148 = vpop.f32.mrf.mxu0
      %v2149 = vadd.f32 0.0, %v2148
      %v2150 = vpop.f32.mrf.mxu0
      %v2151 = vpop.f32.mrf.mxu0
      %v2152 = vadd.f32 0.0, %v2151
      %v2153 = vpop.f32.mrf.mxu0
      %2154 = vmatprep.mubr.bf16.mxu0 0
      %2155 = vmatmul.mubr.bf16.gmra.mxu0 %v2000
      %v2156 = vpop.f32.mrf.mxu0
      %v2157 = vadd.f32 0.0, %v2156
      %v2158 = vpop.f32.mrf.mxu0
      %v2159 = vpop.f32.mrf.mxu0
      %v2160 = vadd.f32 0.0, %v2159
      %v2161 = vpop.f32.mrf.mxu0
      %2162 = vdwg.mxu0
      %v2163 = vadd.f32 %v1934, %v2037
      %v2164 = vadd.f32 %v1935, %v2040
      %v2165 = vadd.f32 %v1936, %v2045
      %v2166 = vadd.f32 %v1937, %v2048
      %v2167 = vadd.f32 %v1938, %v2053
      %v2168 = vadd.f32 %v1939, %v2056
      %v2169 = vadd.f32 %v1940, %v2061
      %v2170 = vadd.f32 %v1941, %v2064
      %v2171 = vadd.f32 %v1942, %v2069
      %v2172 = vadd.f32 %v1943, %v2072
      %v2173 = vadd.f32 %v1944, %v2077
      %v2174 = vadd.f32 %v1945, %v2080
      %v2175 = vadd.f32 %v1946, %v2085
      %v2176 = vadd.f32 %v1947, %v2088
      %v2177 = vadd.f32 %v1948, %v2093
      %v2178 = vadd.f32 %v1949, %v2096
      %v2179 = vadd.f32 %v1950, %v2101
      %v2180 = vadd.f32 %v1951, %v2104
      %v2181 = vadd.f32 %v1952, %v2109
      %v2182 = vadd.f32 %v1953, %v2112
      %v2183 = vadd.f32 %v1954, %v2117
      %v2184 = vadd.f32 %v1955, %v2120
      %v2185 = vadd.f32 %v1956, %v2125
      %v2186 = vadd.f32 %v1957, %v2128
      %v2187 = vadd.f32 %v1958, %v2133
      %v2188 = vadd.f32 %v1959, %v2136
      %v2189 = vadd.f32 %v1960, %v2141
      %v2190 = vadd.f32 %v1961, %v2144
      %v2191 = vadd.f32 %v1962, %v2149
      %v2192 = vadd.f32 %v1963, %v2152
      %v2193 = vadd.f32 %v1964, %v2157
      %v2194 = vadd.f32 %v1965, %v2160
      %s2195 = scalar_lea.vmem %s3, 192
      %v2196 = vld [vmem:[%s2195] sm:$0xf]
      %v2197 = vld [vmem:[%s2195 + $0x4] sm:$0xf]
      %v2198 = vld [vmem:[%s2195 + $0x8] sm:$0xf]
      %v2199 = vld [vmem:[%s2195 + $0xc] sm:$0xf]
      %v2200 = vld [vmem:[%s2195 + $0x10] sm:$0xf]
      %v2201 = vld [vmem:[%s2195 + $0x14] sm:$0xf]
      %v2202 = vld [vmem:[%s2195 + $0x18] sm:$0xf]
      %v2203 = vld [vmem:[%s2195 + $0x1c] sm:$0xf]
      %v2212 = vunpack.c.l.b16 %v2196
      %v2213 = vunpack.c.l.b16 %v2197
      %v2214 = vunpack.c.l.b16 %v2198
      %v2215 = vunpack.c.l.b16 %v2199
      %v2216 = vunpack.c.l.b16 %v2200
      %v2217 = vunpack.c.l.b16 %v2201
      %v2218 = vunpack.c.l.b16 %v2202
      %v2219 = vunpack.c.l.b16 %v2203
      %v2220 = vpack.c.b16 %v2213, %v2212
      %v2221 = vpack.c.b16 %v2215, %v2214
      %v2222 = vpack.c.b16 %v2217, %v2216
      %v2223 = vpack.c.b16 %v2219, %v2218
      %v2229 = vsel %vm808, %v690, 0
      %2231 = vmatprep.subr.bf16.mxu0 0
      %2232 = vmatpush1.bf16.msra.mxu0 0
      %2233 = vmatprep.subr.bf16.mxu0 0
      %2234 = vmatpush1.bf16.msra.mxu0 0
      %2235 = vmatprep.subr.bf16.mxu0 0
      %2236 = vmatpush1.bf16.msra.mxu0 0
      %2237 = vmatprep.subr.bf16.mxu0 0
      %2238 = vmatpush1.bf16.msra.mxu0 0
      %2239 = vmatprep.subr.bf16.mxu0 0
      %2240 = vmatpush1.bf16.msra.mxu0 %v2223
      %2241 = vmatprep.subr.bf16.mxu0 0
      %2242 = vmatpush1.bf16.msra.mxu0 %v2222
      %2243 = vmatprep.subr.bf16.mxu0 0
      %2244 = vmatpush1.bf16.msra.mxu0 %v2221
      %2245 = vmatprep.subr.bf16.mxu0 0
      %2246 = vmatpush1.bf16.msra.mxu0 %v2220
      %2247 = vmatprep.subr.bf16.mxu0 0
      %2248 = vmatpush2.bf16.msra.mxu0 0
      %2249 = vmatprep.subr.bf16.mxu0 0
      %2250 = vmatpush2.bf16.msra.mxu0 0
      %2251 = vmatprep.subr.bf16.mxu0 0
      %2252 = vmatpush2.bf16.msra.mxu0 0
      %2253 = vmatprep.subr.bf16.mxu0 0
      %2254 = vmatpush2.bf16.msra.mxu0 0
      %2255 = vmatprep.subr.bf16.mxu0 0
      %2256 = vmatpush2.bf16.msra.mxu0 0
      %2257 = vmatprep.subr.bf16.mxu0 0
      %2258 = vmatpush2.bf16.msra.mxu0 0
      %2259 = vmatprep.subr.bf16.mxu0 0
      %2260 = vmatpush2.bf16.msra.mxu0 0
      %2261 = vmatprep.subr.bf16.mxu0 0
      %2262 = vmatpush2.bf16.msra.mxu0 0
      %2263 = vmatprep.mubr.bf16.mxu0 0
      %2264 = vmatmul.mubr.bf16.gmra.mxu0 %v1033
      %v2265 = vpop.f32.mrf.mxu0
      %v2266 = vadd.f32 0.0, %v2265
      %v2267 = vpop.f32.mrf.mxu0
      %v2268 = vpop.f32.mrf.mxu0
      %v2269 = vadd.f32 0.0, %v2268
      %v2270 = vpop.f32.mrf.mxu0
      %2271 = vmatprep.mubr.bf16.mxu0 0
      %2272 = vmatmul.mubr.bf16.gmra.mxu0 %v1036
      %v2273 = vpop.f32.mrf.mxu0
      %v2274 = vadd.f32 0.0, %v2273
      %v2275 = vpop.f32.mrf.mxu0
      %v2276 = vpop.f32.mrf.mxu0
      %v2277 = vadd.f32 0.0, %v2276
      %v2278 = vpop.f32.mrf.mxu0
      %2279 = vmatprep.mubr.bf16.mxu0 0
      %2280 = vmatmul.mubr.bf16.gmra.mxu0 %v1039
      %v2281 = vpop.f32.mrf.mxu0
      %v2282 = vadd.f32 0.0, %v2281
      %v2283 = vpop.f32.mrf.mxu0
      %v2284 = vpop.f32.mrf.mxu0
      %v2285 = vadd.f32 0.0, %v2284
      %v2286 = vpop.f32.mrf.mxu0
      %2287 = vmatprep.mubr.bf16.mxu0 0
      %2288 = vmatmul.mubr.bf16.gmra.mxu0 %v1042
      %v2289 = vpop.f32.mrf.mxu0
      %v2290 = vadd.f32 0.0, %v2289
      %v2291 = vpop.f32.mrf.mxu0
      %v2292 = vpop.f32.mrf.mxu0
      %v2293 = vadd.f32 0.0, %v2292
      %v2294 = vpop.f32.mrf.mxu0
      %2295 = vmatprep.mubr.bf16.mxu0 0
      %2296 = vmatmul.mubr.bf16.gmra.mxu0 %v1045
      %v2297 = vpop.f32.mrf.mxu0
      %v2298 = vadd.f32 0.0, %v2297
      %v2299 = vpop.f32.mrf.mxu0
      %v2300 = vpop.f32.mrf.mxu0
      %v2301 = vadd.f32 0.0, %v2300
      %v2302 = vpop.f32.mrf.mxu0
      %2303 = vmatprep.mubr.bf16.mxu0 0
      %2304 = vmatmul.mubr.bf16.gmra.mxu0 %v1048
      %v2305 = vpop.f32.mrf.mxu0
      %v2306 = vadd.f32 0.0, %v2305
      %v2307 = vpop.f32.mrf.mxu0
      %v2308 = vpop.f32.mrf.mxu0
      %v2309 = vadd.f32 0.0, %v2308
      %v2310 = vpop.f32.mrf.mxu0
      %2311 = vmatprep.mubr.bf16.mxu0 0
      %2312 = vmatmul.mubr.bf16.gmra.mxu0 %v1051
      %v2313 = vpop.f32.mrf.mxu0
      %v2314 = vadd.f32 0.0, %v2313
      %v2315 = vpop.f32.mrf.mxu0
      %v2316 = vpop.f32.mrf.mxu0
      %v2317 = vadd.f32 0.0, %v2316
      %v2318 = vpop.f32.mrf.mxu0
      %2319 = vmatprep.mubr.bf16.mxu0 0
      %2320 = vmatmul.mubr.bf16.gmra.mxu0 %v1054
      %v2321 = vpop.f32.mrf.mxu0
      %v2322 = vadd.f32 0.0, %v2321
      %v2323 = vpop.f32.mrf.mxu0
      %v2324 = vpop.f32.mrf.mxu0
      %v2325 = vadd.f32 0.0, %v2324
      %v2326 = vpop.f32.mrf.mxu0
      %2327 = vmatprep.mubr.bf16.mxu0 0
      %2328 = vmatmul.mubr.bf16.gmra.mxu0 %v1057
      %v2329 = vpop.f32.mrf.mxu0
      %v2330 = vadd.f32 0.0, %v2329
      %v2331 = vpop.f32.mrf.mxu0
      %v2332 = vpop.f32.mrf.mxu0
      %v2333 = vadd.f32 0.0, %v2332
      %v2334 = vpop.f32.mrf.mxu0
      %2335 = vmatprep.mubr.bf16.mxu0 0
      %2336 = vmatmul.mubr.bf16.gmra.mxu0 %v1060
      %v2337 = vpop.f32.mrf.mxu0
      %v2338 = vadd.f32 0.0, %v2337
      %v2339 = vpop.f32.mrf.mxu0
      %v2340 = vpop.f32.mrf.mxu0
      %v2341 = vadd.f32 0.0, %v2340
      %v2342 = vpop.f32.mrf.mxu0
      %2343 = vmatprep.mubr.bf16.mxu0 0
      %2344 = vmatmul.mubr.bf16.gmra.mxu0 %v1063
      %v2345 = vpop.f32.mrf.mxu0
      %v2346 = vadd.f32 0.0, %v2345
      %v2347 = vpop.f32.mrf.mxu0
      %v2348 = vpop.f32.mrf.mxu0
      %v2349 = vadd.f32 0.0, %v2348
      %v2350 = vpop.f32.mrf.mxu0
      %2351 = vmatprep.mubr.bf16.mxu0 0
      %2352 = vmatmul.mubr.bf16.gmra.mxu0 %v1066
      %v2353 = vpop.f32.mrf.mxu0
      %v2354 = vadd.f32 0.0, %v2353
      %v2355 = vpop.f32.mrf.mxu0
      %v2356 = vpop.f32.mrf.mxu0
      %v2357 = vadd.f32 0.0, %v2356
      %v2358 = vpop.f32.mrf.mxu0
      %2359 = vmatprep.mubr.bf16.mxu0 0
      %2360 = vmatmul.mubr.bf16.gmra.mxu0 %v1069
      %v2361 = vpop.f32.mrf.mxu0
      %v2362 = vadd.f32 0.0, %v2361
      %v2363 = vpop.f32.mrf.mxu0
      %v2364 = vpop.f32.mrf.mxu0
      %v2365 = vadd.f32 0.0, %v2364
      %v2366 = vpop.f32.mrf.mxu0
      %2367 = vmatprep.mubr.bf16.mxu0 0
      %2368 = vmatmul.mubr.bf16.gmra.mxu0 %v1072
      %v2369 = vpop.f32.mrf.mxu0
      %v2370 = vadd.f32 0.0, %v2369
      %v2371 = vpop.f32.mrf.mxu0
      %v2372 = vpop.f32.mrf.mxu0
      %v2373 = vadd.f32 0.0, %v2372
      %v2374 = vpop.f32.mrf.mxu0
      %2375 = vmatprep.mubr.bf16.mxu0 0
      %2376 = vmatmul.mubr.bf16.gmra.mxu0 %v1543
      %v2377 = vpop.f32.mrf.mxu0
      %v2378 = vadd.f32 0.0, %v2377
      %v2379 = vpop.f32.mrf.mxu0
      %v2380 = vpop.f32.mrf.mxu0
      %v2381 = vadd.f32 0.0, %v2380
      %v2382 = vpop.f32.mrf.mxu0
      %2383 = vmatprep.mubr.bf16.mxu0 0
      %2384 = vmatmul.mubr.bf16.gmra.mxu0 %v2229
      %v2385 = vpop.f32.mrf.mxu0
      %v2386 = vadd.f32 0.0, %v2385
      %v2387 = vpop.f32.mrf.mxu0
      %v2388 = vpop.f32.mrf.mxu0
      %v2389 = vadd.f32 0.0, %v2388
      %v2390 = vpop.f32.mrf.mxu0
      %2391 = vdwg.mxu0
      %v2392 = vadd.f32 %v2163, %v2266
      %v2393 = vadd.f32 %v2164, %v2269
      %v2394 = vadd.f32 %v2165, %v2274
      %v2395 = vadd.f32 %v2166, %v2277
      %v2396 = vadd.f32 %v2167, %v2282
      %v2397 = vadd.f32 %v2168, %v2285
      %v2398 = vadd.f32 %v2169, %v2290
      %v2399 = vadd.f32 %v2170, %v2293
      %v2400 = vadd.f32 %v2171, %v2298
      %v2401 = vadd.f32 %v2172, %v2301
      %v2402 = vadd.f32 %v2173, %v2306
      %v2403 = vadd.f32 %v2174, %v2309
      %v2404 = vadd.f32 %v2175, %v2314
      %v2405 = vadd.f32 %v2176, %v2317
      %v2406 = vadd.f32 %v2177, %v2322
      %v2407 = vadd.f32 %v2178, %v2325
      %v2408 = vadd.f32 %v2179, %v2330
      %v2409 = vadd.f32 %v2180, %v2333
      %v2410 = vadd.f32 %v2181, %v2338
      %v2411 = vadd.f32 %v2182, %v2341
      %v2412 = vadd.f32 %v2183, %v2346
      %v2413 = vadd.f32 %v2184, %v2349
      %v2414 = vadd.f32 %v2185, %v2354
      %v2415 = vadd.f32 %v2186, %v2357
      %v2416 = vadd.f32 %v2187, %v2362
      %v2417 = vadd.f32 %v2188, %v2365
      %v2418 = vadd.f32 %v2189, %v2370
      %v2419 = vadd.f32 %v2190, %v2373
      %v2420 = vadd.f32 %v2191, %v2378
      %v2421 = vadd.f32 %v2192, %v2381
      %v2422 = vadd.f32 %v2193, %v2386
      %v2423 = vadd.f32 %v2194, %v2389
      %s2424 = scalar_lea.vmem %s3, 224
      %v2425 = vld [vmem:[%s2424] sm:$0xf]
      %v2426 = vld [vmem:[%s2424 + $0x4] sm:$0xf]
      %v2427 = vld [vmem:[%s2424 + $0x8] sm:$0xf]
      %v2428 = vld [vmem:[%s2424 + $0xc] sm:$0xf]
      %v2429 = vld [vmem:[%s2424 + $0x10] sm:$0xf]
      %v2430 = vld [vmem:[%s2424 + $0x14] sm:$0xf]
      %v2431 = vld [vmem:[%s2424 + $0x18] sm:$0xf]
      %v2432 = vld [vmem:[%s2424 + $0x1c] sm:$0xf]
      %v2441 = vunpack.c.l.b16 %v2425
      %v2442 = vunpack.c.l.b16 %v2426
      %v2443 = vunpack.c.l.b16 %v2427
      %v2444 = vunpack.c.l.b16 %v2428
      %v2445 = vunpack.c.l.b16 %v2429
      %v2446 = vunpack.c.l.b16 %v2430
      %v2447 = vunpack.c.l.b16 %v2431
      %v2448 = vunpack.c.l.b16 %v2432
      %v2449 = vpack.c.b16 %v2442, %v2441
      %v2450 = vpack.c.b16 %v2444, %v2443
      %v2451 = vpack.c.b16 %v2446, %v2445
      %v2452 = vpack.c.b16 %v2448, %v2447
      %v2457 = vsel %vm808, %v525, 0
      %2459 = vmatprep.subr.bf16.mxu0 0
      %2460 = vmatpush1.bf16.msra.mxu0 0
      %2461 = vmatprep.subr.bf16.mxu0 0
      %2462 = vmatpush1.bf16.msra.mxu0 0
      %2463 = vmatprep.subr.bf16.mxu0 0
      %2464 = vmatpush1.bf16.msra.mxu0 0
      %2465 = vmatprep.subr.bf16.mxu0 0
      %2466 = vmatpush1.bf16.msra.mxu0 0
      %2467 = vmatprep.subr.bf16.mxu0 0
      %2468 = vmatpush1.bf16.msra.mxu0 %v2452
      %2469 = vmatprep.subr.bf16.mxu0 0
      %2470 = vmatpush1.bf16.msra.mxu0 %v2451
      %2471 = vmatprep.subr.bf16.mxu0 0
      %2472 = vmatpush1.bf16.msra.mxu0 %v2450
      %2473 = vmatprep.subr.bf16.mxu0 0
      %2474 = vmatpush1.bf16.msra.mxu0 %v2449
      %2475 = vmatprep.subr.bf16.mxu0 0
      %2476 = vmatpush2.bf16.msra.mxu0 0
      %2477 = vmatprep.subr.bf16.mxu0 0
      %2478 = vmatpush2.bf16.msra.mxu0 0
      %2479 = vmatprep.subr.bf16.mxu0 0
      %2480 = vmatpush2.bf16.msra.mxu0 0
      %2481 = vmatprep.subr.bf16.mxu0 0
      %2482 = vmatpush2.bf16.msra.mxu0 0
      %2483 = vmatprep.subr.bf16.mxu0 0
      %2484 = vmatpush2.bf16.msra.mxu0 0
      %2485 = vmatprep.subr.bf16.mxu0 0
      %2486 = vmatpush2.bf16.msra.mxu0 0
      %2487 = vmatprep.subr.bf16.mxu0 0
      %2488 = vmatpush2.bf16.msra.mxu0 0
      %2489 = vmatprep.subr.bf16.mxu0 0
      %2490 = vmatpush2.bf16.msra.mxu0 0
      %2491 = vmatprep.mubr.bf16.mxu0 0
      %2492 = vmatmul.mubr.bf16.gmra.mxu0 %v813
      %v2493 = vpop.f32.mrf.mxu0
      %v2494 = vadd.f32 0.0, %v2493
      %v2495 = vpop.f32.mrf.mxu0
      %v2496 = vpop.f32.mrf.mxu0
      %v2497 = vadd.f32 0.0, %v2496
      %v2498 = vpop.f32.mrf.mxu0
      %2499 = vmatprep.mubr.bf16.mxu0 0
      %2500 = vmatmul.mubr.bf16.gmra.mxu0 %v815
      %v2501 = vpop.f32.mrf.mxu0
      %v2502 = vadd.f32 0.0, %v2501
      %v2503 = vpop.f32.mrf.mxu0
      %v2504 = vpop.f32.mrf.mxu0
      %v2505 = vadd.f32 0.0, %v2504
      %v2506 = vpop.f32.mrf.mxu0
      %2507 = vmatprep.mubr.bf16.mxu0 0
      %2508 = vmatmul.mubr.bf16.gmra.mxu0 %v817
      %v2509 = vpop.f32.mrf.mxu0
      %v2510 = vadd.f32 0.0, %v2509
      %v2511 = vpop.f32.mrf.mxu0
      %v2512 = vpop.f32.mrf.mxu0
      %v2513 = vadd.f32 0.0, %v2512
      %v2514 = vpop.f32.mrf.mxu0
      %2515 = vmatprep.mubr.bf16.mxu0 0
      %2516 = vmatmul.mubr.bf16.gmra.mxu0 %v819
      %v2517 = vpop.f32.mrf.mxu0
      %v2518 = vadd.f32 0.0, %v2517
      %v2519 = vpop.f32.mrf.mxu0
      %v2520 = vpop.f32.mrf.mxu0
      %v2521 = vadd.f32 0.0, %v2520
      %v2522 = vpop.f32.mrf.mxu0
      %2523 = vmatprep.mubr.bf16.mxu0 0
      %2524 = vmatmul.mubr.bf16.gmra.mxu0 %v821
      %v2525 = vpop.f32.mrf.mxu0
      %v2526 = vadd.f32 0.0, %v2525
      %v2527 = vpop.f32.mrf.mxu0
      %v2528 = vpop.f32.mrf.mxu0
      %v2529 = vadd.f32 0.0, %v2528
      %v2530 = vpop.f32.mrf.mxu0
      %2531 = vmatprep.mubr.bf16.mxu0 0
      %2532 = vmatmul.mubr.bf16.gmra.mxu0 %v823
      %v2533 = vpop.f32.mrf.mxu0
      %v2534 = vadd.f32 0.0, %v2533
      %v2535 = vpop.f32.mrf.mxu0
      %v2536 = vpop.f32.mrf.mxu0
      %v2537 = vadd.f32 0.0, %v2536
      %v2538 = vpop.f32.mrf.mxu0
      %2539 = vmatprep.mubr.bf16.mxu0 0
      %2540 = vmatmul.mubr.bf16.gmra.mxu0 %v825
      %v2541 = vpop.f32.mrf.mxu0
      %v2542 = vadd.f32 0.0, %v2541
      %v2543 = vpop.f32.mrf.mxu0
      %v2544 = vpop.f32.mrf.mxu0
      %v2545 = vadd.f32 0.0, %v2544
      %v2546 = vpop.f32.mrf.mxu0
      %2547 = vmatprep.mubr.bf16.mxu0 0
      %2548 = vmatmul.mubr.bf16.gmra.mxu0 %v827
      %v2549 = vpop.f32.mrf.mxu0
      %v2550 = vadd.f32 0.0, %v2549
      %v2551 = vpop.f32.mrf.mxu0
      %v2552 = vpop.f32.mrf.mxu0
      %v2553 = vadd.f32 0.0, %v2552
      %v2554 = vpop.f32.mrf.mxu0
      %2555 = vmatprep.mubr.bf16.mxu0 0
      %2556 = vmatmul.mubr.bf16.gmra.mxu0 %v829
      %v2557 = vpop.f32.mrf.mxu0
      %v2558 = vadd.f32 0.0, %v2557
      %v2559 = vpop.f32.mrf.mxu0
      %v2560 = vpop.f32.mrf.mxu0
      %v2561 = vadd.f32 0.0, %v2560
      %v2562 = vpop.f32.mrf.mxu0
      %2563 = vmatprep.mubr.bf16.mxu0 0
      %2564 = vmatmul.mubr.bf16.gmra.mxu0 %v831
      %v2565 = vpop.f32.mrf.mxu0
      %v2566 = vadd.f32 0.0, %v2565
      %v2567 = vpop.f32.mrf.mxu0
      %v2568 = vpop.f32.mrf.mxu0
      %v2569 = vadd.f32 0.0, %v2568
      %v2570 = vpop.f32.mrf.mxu0
      %2571 = vmatprep.mubr.bf16.mxu0 0
      %2572 = vmatmul.mubr.bf16.gmra.mxu0 %v833
      %v2573 = vpop.f32.mrf.mxu0
      %v2574 = vadd.f32 0.0, %v2573
      %v2575 = vpop.f32.mrf.mxu0
      %v2576 = vpop.f32.mrf.mxu0
      %v2577 = vadd.f32 0.0, %v2576
      %v2578 = vpop.f32.mrf.mxu0
      %2579 = vmatprep.mubr.bf16.mxu0 0
      %2580 = vmatmul.mubr.bf16.gmra.mxu0 %v835
      %v2581 = vpop.f32.mrf.mxu0
      %v2582 = vadd.f32 0.0, %v2581
      %v2583 = vpop.f32.mrf.mxu0
      %v2584 = vpop.f32.mrf.mxu0
      %v2585 = vadd.f32 0.0, %v2584
      %v2586 = vpop.f32.mrf.mxu0
      %2587 = vmatprep.mubr.bf16.mxu0 0
      %2588 = vmatmul.mubr.bf16.gmra.mxu0 %v837
      %v2589 = vpop.f32.mrf.mxu0
      %v2590 = vadd.f32 0.0, %v2589
      %v2591 = vpop.f32.mrf.mxu0
      %v2592 = vpop.f32.mrf.mxu0
      %v2593 = vadd.f32 0.0, %v2592
      %v2594 = vpop.f32.mrf.mxu0
      %2595 = vmatprep.mubr.bf16.mxu0 0
      %2596 = vmatmul.mubr.bf16.gmra.mxu0 %v839
      %v2597 = vpop.f32.mrf.mxu0
      %v2598 = vadd.f32 0.0, %v2597
      %v2599 = vpop.f32.mrf.mxu0
      %v2600 = vpop.f32.mrf.mxu0
      %v2601 = vadd.f32 0.0, %v2600
      %v2602 = vpop.f32.mrf.mxu0
      %2603 = vmatprep.mubr.bf16.mxu0 0
      %2604 = vmatmul.mubr.bf16.gmra.mxu0 %v1771
      %v2605 = vpop.f32.mrf.mxu0
      %v2606 = vadd.f32 0.0, %v2605
      %v2607 = vpop.f32.mrf.mxu0
      %v2608 = vpop.f32.mrf.mxu0
      %v2609 = vadd.f32 0.0, %v2608
      %v2610 = vpop.f32.mrf.mxu0
      %2611 = vmatprep.mubr.bf16.mxu0 0
      %2612 = vmatmul.mubr.bf16.gmra.mxu0 %v2457
      %v2613 = vpop.f32.mrf.mxu0
      %v2614 = vadd.f32 0.0, %v2613
      %v2615 = vpop.f32.mrf.mxu0
      %v2616 = vpop.f32.mrf.mxu0
      %v2617 = vadd.f32 0.0, %v2616
      %v2618 = vpop.f32.mrf.mxu0
      %2619 = vdwg.mxu0
      %v2620 = vadd.f32 %v2392, %v2494
      %v2621 = vadd.f32 %v2393, %v2497
      %v2622 = vadd.f32 %v2394, %v2502
      %v2623 = vadd.f32 %v2395, %v2505
      %v2624 = vadd.f32 %v2396, %v2510
      %v2625 = vadd.f32 %v2397, %v2513
      %v2626 = vadd.f32 %v2398, %v2518
      %v2627 = vadd.f32 %v2399, %v2521
      %v2628 = vadd.f32 %v2400, %v2526
      %v2629 = vadd.f32 %v2401, %v2529
      %v2630 = vadd.f32 %v2402, %v2534
      %v2631 = vadd.f32 %v2403, %v2537
      %v2632 = vadd.f32 %v2404, %v2542
      %v2633 = vadd.f32 %v2405, %v2545
      %v2634 = vadd.f32 %v2406, %v2550
      %v2635 = vadd.f32 %v2407, %v2553
      %v2636 = vadd.f32 %v2408, %v2558
      %v2637 = vadd.f32 %v2409, %v2561
      %v2638 = vadd.f32 %v2410, %v2566
      %v2639 = vadd.f32 %v2411, %v2569
      %v2640 = vadd.f32 %v2412, %v2574
      %v2641 = vadd.f32 %v2413, %v2577
      %v2642 = vadd.f32 %v2414, %v2582
      %v2643 = vadd.f32 %v2415, %v2585
      %v2644 = vadd.f32 %v2416, %v2590
      %v2645 = vadd.f32 %v2417, %v2593
      %v2646 = vadd.f32 %v2418, %v2598
      %v2647 = vadd.f32 %v2419, %v2601
      %v2648 = vadd.f32 %v2420, %v2606
      %v2649 = vadd.f32 %v2421, %v2609
      %v2650 = vadd.f32 %v2422, %v2614
      %v2651 = vadd.f32 %v2423, %v2617
      %s2652 = scalar_lea.vmem %s3, 256
      %v2653 = vld [vmem:[%s2652] sm:$0xf]
      %v2654 = vld [vmem:[%s2652 + $0x4] sm:$0xf]
      %v2655 = vld [vmem:[%s2652 + $0x8] sm:$0xf]
      %v2656 = vld [vmem:[%s2652 + $0xc] sm:$0xf]
      %v2657 = vld [vmem:[%s2652 + $0x10] sm:$0xf]
      %v2658 = vld [vmem:[%s2652 + $0x14] sm:$0xf]
      %v2659 = vld [vmem:[%s2652 + $0x18] sm:$0xf]
      %v2660 = vld [vmem:[%s2652 + $0x1c] sm:$0xf]
      %v2669 = vunpack.c.l.b16 %v2653
      %v2670 = vunpack.c.l.b16 %v2654
      %v2671 = vunpack.c.l.b16 %v2655
      %v2672 = vunpack.c.l.b16 %v2656
      %v2673 = vunpack.c.l.b16 %v2657
      %v2674 = vunpack.c.l.b16 %v2658
      %v2675 = vunpack.c.l.b16 %v2659
      %v2676 = vunpack.c.l.b16 %v2660
      %v2677 = vpack.c.b16 %v2670, %v2669
      %v2678 = vpack.c.b16 %v2672, %v2671
      %v2679 = vpack.c.b16 %v2674, %v2673
      %v2680 = vpack.c.b16 %v2676, %v2675
      %v2686 = vsel %vm808, %v765, 0
      %2688 = vmatprep.subr.bf16.mxu0 0
      %2689 = vmatpush1.bf16.msra.mxu0 0
      %2690 = vmatprep.subr.bf16.mxu0 0
      %2691 = vmatpush1.bf16.msra.mxu0 0
      %2692 = vmatprep.subr.bf16.mxu0 0
      %2693 = vmatpush1.bf16.msra.mxu0 0
      %2694 = vmatprep.subr.bf16.mxu0 0
      %2695 = vmatpush1.bf16.msra.mxu0 0
      %2696 = vmatprep.subr.bf16.mxu0 0
      %2697 = vmatpush1.bf16.msra.mxu0 %v2680
      %2698 = vmatprep.subr.bf16.mxu0 0
      %2699 = vmatpush1.bf16.msra.mxu0 %v2679
      %2700 = vmatprep.subr.bf16.mxu0 0
      %2701 = vmatpush1.bf16.msra.mxu0 %v2678
      %2702 = vmatprep.subr.bf16.mxu0 0
      %2703 = vmatpush1.bf16.msra.mxu0 %v2677
      %2704 = vmatprep.subr.bf16.mxu0 0
      %2705 = vmatpush2.bf16.msra.mxu0 0
      %2706 = vmatprep.subr.bf16.mxu0 0
      %2707 = vmatpush2.bf16.msra.mxu0 0
      %2708 = vmatprep.subr.bf16.mxu0 0
      %2709 = vmatpush2.bf16.msra.mxu0 0
      %2710 = vmatprep.subr.bf16.mxu0 0
      %2711 = vmatpush2.bf16.msra.mxu0 0
      %2712 = vmatprep.subr.bf16.mxu0 0
      %2713 = vmatpush2.bf16.msra.mxu0 0
      %2714 = vmatprep.subr.bf16.mxu0 0
      %2715 = vmatpush2.bf16.msra.mxu0 0
      %2716 = vmatprep.subr.bf16.mxu0 0
      %2717 = vmatpush2.bf16.msra.mxu0 0
      %2718 = vmatprep.subr.bf16.mxu0 0
      %2719 = vmatpush2.bf16.msra.mxu0 0
      %2720 = vmatprep.mubr.bf16.mxu0 0
      %2721 = vmatmul.mubr.bf16.gmra.mxu0 %v1275
      %v2722 = vpop.f32.mrf.mxu0
      %v2723 = vadd.f32 0.0, %v2722
      %v2724 = vpop.f32.mrf.mxu0
      %v2725 = vpop.f32.mrf.mxu0
      %v2726 = vadd.f32 0.0, %v2725
      %v2727 = vpop.f32.mrf.mxu0
      %2728 = vmatprep.mubr.bf16.mxu0 0
      %2729 = vmatmul.mubr.bf16.gmra.mxu0 %v1278
      %v2730 = vpop.f32.mrf.mxu0
      %v2731 = vadd.f32 0.0, %v2730
      %v2732 = vpop.f32.mrf.mxu0
      %v2733 = vpop.f32.mrf.mxu0
      %v2734 = vadd.f32 0.0, %v2733
      %v2735 = vpop.f32.mrf.mxu0
      %2736 = vmatprep.mubr.bf16.mxu0 0
      %2737 = vmatmul.mubr.bf16.gmra.mxu0 %v1281
      %v2738 = vpop.f32.mrf.mxu0
      %v2739 = vadd.f32 0.0, %v2738
      %v2740 = vpop.f32.mrf.mxu0
      %v2741 = vpop.f32.mrf.mxu0
      %v2742 = vadd.f32 0.0, %v2741
      %v2743 = vpop.f32.mrf.mxu0
      %2744 = vmatprep.mubr.bf16.mxu0 0
      %2745 = vmatmul.mubr.bf16.gmra.mxu0 %v1284
      %v2746 = vpop.f32.mrf.mxu0
      %v2747 = vadd.f32 0.0, %v2746
      %v2748 = vpop.f32.mrf.mxu0
      %v2749 = vpop.f32.mrf.mxu0
      %v2750 = vadd.f32 0.0, %v2749
      %v2751 = vpop.f32.mrf.mxu0
      %2752 = vmatprep.mubr.bf16.mxu0 0
      %2753 = vmatmul.mubr.bf16.gmra.mxu0 %v1287
      %v2754 = vpop.f32.mrf.mxu0
      %v2755 = vadd.f32 0.0, %v2754
      %v2756 = vpop.f32.mrf.mxu0
      %v2757 = vpop.f32.mrf.mxu0
      %v2758 = vadd.f32 0.0, %v2757
      %v2759 = vpop.f32.mrf.mxu0
      %2760 = vmatprep.mubr.bf16.mxu0 0
      %2761 = vmatmul.mubr.bf16.gmra.mxu0 %v1290
      %v2762 = vpop.f32.mrf.mxu0
      %v2763 = vadd.f32 0.0, %v2762
      %v2764 = vpop.f32.mrf.mxu0
      %v2765 = vpop.f32.mrf.mxu0
      %v2766 = vadd.f32 0.0, %v2765
      %v2767 = vpop.f32.mrf.mxu0
      %2768 = vmatprep.mubr.bf16.mxu0 0
      %2769 = vmatmul.mubr.bf16.gmra.mxu0 %v1293
      %v2770 = vpop.f32.mrf.mxu0
      %v2771 = vadd.f32 0.0, %v2770
      %v2772 = vpop.f32.mrf.mxu0
      %v2773 = vpop.f32.mrf.mxu0
      %v2774 = vadd.f32 0.0, %v2773
      %v2775 = vpop.f32.mrf.mxu0
      %2776 = vmatprep.mubr.bf16.mxu0 0
      %2777 = vmatmul.mubr.bf16.gmra.mxu0 %v1296
      %v2778 = vpop.f32.mrf.mxu0
      %v2779 = vadd.f32 0.0, %v2778
      %v2780 = vpop.f32.mrf.mxu0
      %v2781 = vpop.f32.mrf.mxu0
      %v2782 = vadd.f32 0.0, %v2781
      %v2783 = vpop.f32.mrf.mxu0
      %2784 = vmatprep.mubr.bf16.mxu0 0
      %2785 = vmatmul.mubr.bf16.gmra.mxu0 %v1299
      %v2786 = vpop.f32.mrf.mxu0
      %v2787 = vadd.f32 0.0, %v2786
      %v2788 = vpop.f32.mrf.mxu0
      %v2789 = vpop.f32.mrf.mxu0
      %v2790 = vadd.f32 0.0, %v2789
      %v2791 = vpop.f32.mrf.mxu0
      %2792 = vmatprep.mubr.bf16.mxu0 0
      %2793 = vmatmul.mubr.bf16.gmra.mxu0 %v1302
      %v2794 = vpop.f32.mrf.mxu0
      %v2795 = vadd.f32 0.0, %v2794
      %v2796 = vpop.f32.mrf.mxu0
      %v2797 = vpop.f32.mrf.mxu0
      %v2798 = vadd.f32 0.0, %v2797
      %v2799 = vpop.f32.mrf.mxu0
      %2800 = vmatprep.mubr.bf16.mxu0 0
      %2801 = vmatmul.mubr.bf16.gmra.mxu0 %v1305
      %v2802 = vpop.f32.mrf.mxu0
      %v2803 = vadd.f32 0.0, %v2802
      %v2804 = vpop.f32.mrf.mxu0
      %v2805 = vpop.f32.mrf.mxu0
      %v2806 = vadd.f32 0.0, %v2805
      %v2807 = vpop.f32.mrf.mxu0
      %2808 = vmatprep.mubr.bf16.mxu0 0
      %2809 = vmatmul.mubr.bf16.gmra.mxu0 %v1308
      %v2810 = vpop.f32.mrf.mxu0
      %v2811 = vadd.f32 0.0, %v2810
      %v2812 = vpop.f32.mrf.mxu0
      %v2813 = vpop.f32.mrf.mxu0
      %v2814 = vadd.f32 0.0, %v2813
      %v2815 = vpop.f32.mrf.mxu0
      %2816 = vmatprep.mubr.bf16.mxu0 0
      %2817 = vmatmul.mubr.bf16.gmra.mxu0 %v1311
      %v2818 = vpop.f32.mrf.mxu0
      %v2819 = vadd.f32 0.0, %v2818
      %v2820 = vpop.f32.mrf.mxu0
      %v2821 = vpop.f32.mrf.mxu0
      %v2822 = vadd.f32 0.0, %v2821
      %v2823 = vpop.f32.mrf.mxu0
      %2824 = vmatprep.mubr.bf16.mxu0 0
      %2825 = vmatmul.mubr.bf16.gmra.mxu0 %v1314
      %v2826 = vpop.f32.mrf.mxu0
      %v2827 = vadd.f32 0.0, %v2826
      %v2828 = vpop.f32.mrf.mxu0
      %v2829 = vpop.f32.mrf.mxu0
      %v2830 = vadd.f32 0.0, %v2829
      %v2831 = vpop.f32.mrf.mxu0
      %2832 = vmatprep.mubr.bf16.mxu0 0
      %2833 = vmatmul.mubr.bf16.gmra.mxu0 %v2000
      %v2834 = vpop.f32.mrf.mxu0
      %v2835 = vadd.f32 0.0, %v2834
      %v2836 = vpop.f32.mrf.mxu0
      %v2837 = vpop.f32.mrf.mxu0
      %v2838 = vadd.f32 0.0, %v2837
      %v2839 = vpop.f32.mrf.mxu0
      %2840 = vmatprep.mubr.bf16.mxu0 0
      %2841 = vmatmul.mubr.bf16.gmra.mxu0 %v2686
      %v2842 = vpop.f32.mrf.mxu0
      %v2843 = vadd.f32 0.0, %v2842
      %v2844 = vpop.f32.mrf.mxu0
      %v2845 = vpop.f32.mrf.mxu0
      %v2846 = vadd.f32 0.0, %v2845
      %v2847 = vpop.f32.mrf.mxu0
      %2848 = vdwg.mxu0
      %v2849 = vadd.f32 %v2620, %v2723
      %v2850 = vadd.f32 %v2621, %v2726
      %v2851 = vadd.f32 %v2622, %v2731
      %v2852 = vadd.f32 %v2623, %v2734
      %v2853 = vadd.f32 %v2624, %v2739
      %v2854 = vadd.f32 %v2625, %v2742
      %v2855 = vadd.f32 %v2626, %v2747
      %v2856 = vadd.f32 %v2627, %v2750
      %v2857 = vadd.f32 %v2628, %v2755
      %v2858 = vadd.f32 %v2629, %v2758
      %v2859 = vadd.f32 %v2630, %v2763
      %v2860 = vadd.f32 %v2631, %v2766
      %v2861 = vadd.f32 %v2632, %v2771
      %v2862 = vadd.f32 %v2633, %v2774
      %v2863 = vadd.f32 %v2634, %v2779
      %v2864 = vadd.f32 %v2635, %v2782
      %v2865 = vadd.f32 %v2636, %v2787
      %v2866 = vadd.f32 %v2637, %v2790
      %v2867 = vadd.f32 %v2638, %v2795
      %v2868 = vadd.f32 %v2639, %v2798
      %v2869 = vadd.f32 %v2640, %v2803
      %v2870 = vadd.f32 %v2641, %v2806
      %v2871 = vadd.f32 %v2642, %v2811
      %v2872 = vadd.f32 %v2643, %v2814
      %v2873 = vadd.f32 %v2644, %v2819
      %v2874 = vadd.f32 %v2645, %v2822
      %v2875 = vadd.f32 %v2646, %v2827
      %v2876 = vadd.f32 %v2647, %v2830
      %v2877 = vadd.f32 %v2648, %v2835
      %v2878 = vadd.f32 %v2649, %v2838
      %v2879 = vadd.f32 %v2650, %v2843
      %v2880 = vadd.f32 %v2651, %v2846
      %v2882 = vlaneseq
      %v2883 = vshrl.u32 %v2882, 7
      %v2884 = vsub.s32 0, %v2883
      %v2885 = vrot.slane %v766, %v2884
      %v2887 = vadd.f32 %v2849, %v2885
      %v2888 = vadd.f32 %v2850, %v2885
      %v2889 = vadd.f32 %v2851, %v2885
      %v2890 = vadd.f32 %v2852, %v2885
      %v2891 = vadd.f32 %v2853, %v2885
      %v2892 = vadd.f32 %v2854, %v2885
      %v2893 = vadd.f32 %v2855, %v2885
      %v2894 = vadd.f32 %v2856, %v2885
      %v2895 = vadd.f32 %v2857, %v2885
      %v2896 = vadd.f32 %v2858, %v2885
      %v2897 = vadd.f32 %v2859, %v2885
      %v2898 = vadd.f32 %v2860, %v2885
      %v2899 = vadd.f32 %v2861, %v2885
      %v2900 = vadd.f32 %v2862, %v2885
      %v2901 = vadd.f32 %v2863, %v2885
      %v2902 = vadd.f32 %v2864, %v2885
      %v2903 = vadd.f32 %v2865, %v2885
      %v2904 = vadd.f32 %v2866, %v2885
      %v2905 = vadd.f32 %v2867, %v2885
      %v2906 = vadd.f32 %v2868, %v2885
      %v2907 = vadd.f32 %v2869, %v2885
      %v2908 = vadd.f32 %v2870, %v2885
      %v2909 = vadd.f32 %v2871, %v2885
      %v2910 = vadd.f32 %v2872, %v2885
      %v2911 = vadd.f32 %v2873, %v2885
      %v2912 = vadd.f32 %v2874, %v2885
      %v2913 = vadd.f32 %v2875, %v2885
      %v2914 = vadd.f32 %v2876, %v2885
      %v2915 = vadd.f32 %v2877, %v2885
      %v2916 = vadd.f32 %v2878, %v2885
      %v2917 = vadd.f32 %v2879, %v2885
      %v2918 = vadd.f32 %v2880, %v2885
      %v2919 = vmax.f32 %v2887, 0.0
      %v2920 = vmax.f32 %v2888, 0.0
      %v2921 = vmax.f32 %v2889, 0.0
      %v2922 = vmax.f32 %v2890, 0.0
      %v2923 = vmax.f32 %v2891, 0.0
      %v2924 = vmax.f32 %v2892, 0.0
      %v2925 = vmax.f32 %v2893, 0.0
      %v2926 = vmax.f32 %v2894, 0.0
      %v2927 = vmax.f32 %v2895, 0.0
      %v2928 = vmax.f32 %v2896, 0.0
      %v2929 = vmax.f32 %v2897, 0.0
      %v2930 = vmax.f32 %v2898, 0.0
      %v2931 = vmax.f32 %v2899, 0.0
      %v2932 = vmax.f32 %v2900, 0.0
      %v2933 = vmax.f32 %v2901, 0.0
      %v2934 = vmax.f32 %v2902, 0.0
      %v2935 = vmax.f32 %v2903, 0.0
      %v2936 = vmax.f32 %v2904, 0.0
      %v2937 = vmax.f32 %v2905, 0.0
      %v2938 = vmax.f32 %v2906, 0.0
      %v2939 = vmax.f32 %v2907, 0.0
      %v2940 = vmax.f32 %v2908, 0.0
      %v2941 = vmax.f32 %v2909, 0.0
      %v2942 = vmax.f32 %v2910, 0.0
      %v2943 = vmax.f32 %v2911, 0.0
      %v2944 = vmax.f32 %v2912, 0.0
      %v2945 = vmax.f32 %v2913, 0.0
      %v2946 = vmax.f32 %v2914, 0.0
      %v2947 = vmax.f32 %v2915, 0.0
      %v2948 = vmax.f32 %v2916, 0.0
      %v2949 = vmax.f32 %v2917, 0.0
      %v2950 = vmax.f32 %v2918, 0.0
      %v2951 = vsel %vm808, %v2919, -inf
      %v2952 = vsel %vm808, %v2921, -inf
      %v2953 = vmax.f32 %v2951, %v2952
      %v2954 = vsel %vm808, %v2920, -inf
      %v2955 = vsel %vm808, %v2922, -inf
      %v2956 = vmax.f32 %v2954, %v2955
      %v2957 = vsel %vm808, %v2923, -inf
      %v2958 = vsel %vm808, %v2925, -inf
      %v2959 = vmax.f32 %v2957, %v2958
      %v2960 = vsel %vm808, %v2924, -inf
      %v2961 = vsel %vm808, %v2926, -inf
      %v2962 = vmax.f32 %v2960, %v2961
      %v2963 = vsel %vm808, %v2927, -inf
      %v2964 = vsel %vm808, %v2929, -inf
      %v2965 = vmax.f32 %v2963, %v2964
      %v2966 = vsel %vm808, %v2928, -inf
      %v2967 = vsel %vm808, %v2930, -inf
      %v2968 = vmax.f32 %v2966, %v2967
      %v2969 = vsel %vm808, %v2931, -inf
      %v2970 = vsel %vm808, %v2933, -inf
      %v2971 = vmax.f32 %v2969, %v2970
      %v2972 = vsel %vm808, %v2932, -inf
      %v2973 = vsel %vm808, %v2934, -inf
      %v2974 = vmax.f32 %v2972, %v2973
      %v2975 = vsel %vm808, %v2935, -inf
      %v2976 = vsel %vm808, %v2937, -inf
      %v2977 = vmax.f32 %v2975, %v2976
      %v2978 = vsel %vm808, %v2936, -inf
      %v2979 = vsel %vm808, %v2938, -inf
      %v2980 = vmax.f32 %v2978, %v2979
      %v2981 = vsel %vm808, %v2939, -inf
      %v2982 = vsel %vm808, %v2941, -inf
      %v2983 = vmax.f32 %v2981, %v2982
      %v2984 = vsel %vm808, %v2940, -inf
      %v2985 = vsel %vm808, %v2942, -inf
      %v2986 = vmax.f32 %v2984, %v2985
      %v2987 = vsel %vm808, %v2943, -inf
      %v2988 = vsel %vm808, %v2945, -inf
      %v2989 = vmax.f32 %v2987, %v2988
      %v2990 = vsel %vm808, %v2944, -inf
      %v2991 = vsel %vm808, %v2946, -inf
      %v2992 = vmax.f32 %v2990, %v2991
      %v2993 = vsel %vm808, %v2947, -inf
      %v2994 = vsel %vm808, %v2949, -inf
      %v2995 = vmax.f32 %v2993, %v2994
      %v2996 = vsel %vm808, %v2948, -inf
      %v2997 = vsel %vm808, %v2950, -inf
      %v2998 = vmax.f32 %v2996, %v2997
      %2999 = vst.msk [vmem:[#allocation2] sm:$0xff] %vm808, %v2953
      %3000 = vst.msk [vmem:[#allocation2 + $0x8] sm:$0xff] %vm808, %v2956
      %3001 = vst.msk [vmem:[#allocation2 + $0x10] sm:$0xff] %vm808, %v2959
      %3002 = vst.msk [vmem:[#allocation2 + $0x18] sm:$0xff] %vm808, %v2962
      %3003 = vst.msk [vmem:[#allocation2 + $0x20] sm:$0xff] %vm808, %v2965
      %3004 = vst.msk [vmem:[#allocation2 + $0x28] sm:$0xff] %vm808, %v2968
      %3005 = vst.msk [vmem:[#allocation2 + $0x30] sm:$0xff] %vm808, %v2971
      %3006 = vst.msk [vmem:[#allocation2 + $0x38] sm:$0xff] %vm808, %v2974
      %3007 = vst.msk [vmem:[#allocation2 + $0x40] sm:$0xff] %vm808, %v2977
      %3008 = vst.msk [vmem:[#allocation2 + $0x48] sm:$0xff] %vm808, %v2980
      %3009 = vst.msk [vmem:[#allocation2 + $0x50] sm:$0xff] %vm808, %v2983
      %3010 = vst.msk [vmem:[#allocation2 + $0x58] sm:$0xff] %vm808, %v2986
      %3011 = vst.msk [vmem:[#allocation2 + $0x60] sm:$0xff] %vm808, %v2989
      %3012 = vst.msk [vmem:[#allocation2 + $0x68] sm:$0xff] %vm808, %v2992
      %3013 = vst.msk [vmem:[#allocation2 + $0x70] sm:$0xff] %vm808, %v2995
      %3014 = vst.msk [vmem:[#allocation2 + $0x78] sm:$0xff] %vm808, %v2998
      %v3015 = vld [vmem:[#allocation2] ss:$2 sm:$0xff]
      %s3016 = scalar_lea.vmem [#allocation2], 16
      %v3017 = vld [vmem:[%s3016] ss:$2 sm:$0xff]
      %s3018 = scalar_lea.vmem [#allocation2], 32
      %v3019 = vld [vmem:[%s3018] ss:$2 sm:$0xff]
      %s3020 = scalar_lea.vmem [#allocation2], 48
      %v3021 = vld [vmem:[%s3020] ss:$2 sm:$0xff]
      %s3022 = scalar_lea.vmem [#allocation2], 64
      %v3023 = vld [vmem:[%s3022] ss:$2 sm:$0xff]
      %s3024 = scalar_lea.vmem [#allocation2], 80
      %v3025 = vld [vmem:[%s3024] ss:$2 sm:$0xff]
      %s3026 = scalar_lea.vmem [#allocation2], 96
      %v3027 = vld [vmem:[%s3026] ss:$2 sm:$0xff]
      %s3028 = scalar_lea.vmem [#allocation2], 112
      %v3029 = vld [vmem:[%s3028] ss:$2 sm:$0xff]
      %s3030 = scalar_lea.vmem [#allocation2], 1
      %v3031 = vld [vmem:[%s3030] ss:$2 sm:$0xff]
      %s3032 = scalar_lea.vmem [#allocation2], 17
      %v3033 = vld [vmem:[%s3032] ss:$2 sm:$0xff]
      %s3034 = scalar_lea.vmem [#allocation2], 33
      %v3035 = vld [vmem:[%s3034] ss:$2 sm:$0xff]
      %s3036 = scalar_lea.vmem [#allocation2], 49
      %v3037 = vld [vmem:[%s3036] ss:$2 sm:$0xff]
      %s3038 = scalar_lea.vmem [#allocation2], 65
      %v3039 = vld [vmem:[%s3038] ss:$2 sm:$0xff]
      %s3040 = scalar_lea.vmem [#allocation2], 81
      %v3041 = vld [vmem:[%s3040] ss:$2 sm:$0xff]
      %s3042 = scalar_lea.vmem [#allocation2], 97
      %v3043 = vld [vmem:[%s3042] ss:$2 sm:$0xff]
      %s3044 = scalar_lea.vmem [#allocation2], 113
      %v3045 = vld [vmem:[%s3044] ss:$2 sm:$0xff]
      %v3046 = vmax.f32 %v3015, %v3031
      %v3047 = vmax.f32 %v3017, %v3033
      %v3048 = vmax.f32 %v3019, %v3035
      %v3049 = vmax.f32 %v3021, %v3037
      %v3050 = vmax.f32 %v3023, %v3039
      %v3051 = vmax.f32 %v3025, %v3041
      %v3052 = vmax.f32 %v3027, %v3043
      %v3053 = vmax.f32 %v3029, %v3045
      %v3054 = vpack.c.bf16 %v3046, %v3046
      %v3055 = vpack.c.bf16 %v3047, %v3047
      %v3056 = vpack.c.bf16 %v3048, %v3048
      %v3057 = vpack.c.bf16 %v3049, %v3049
      %v3058 = vpack.c.bf16 %v3050, %v3050
      %v3059 = vpack.c.bf16 %v3051, %v3051
      %v3060 = vpack.c.bf16 %v3052, %v3052
      %v3061 = vpack.c.bf16 %v3053, %v3053
      %vm3062 = vcmask 519168
      %3063 = vst.msk [vmem:[%s389] sm:$0xf] %vm3062, %v3054
      %3064 = vst.msk [vmem:[%s389 + $0x4] sm:$0xf] %vm3062, %v3055
      %3065 = vst.msk [vmem:[%s389 + $0x8] sm:$0xf] %vm3062, %v3056
      %3066 = vst.msk [vmem:[%s389 + $0xc] sm:$0xf] %vm3062, %v3057
      %3067 = vst.msk [vmem:[%s389 + $0x10] sm:$0xf] %vm3062, %v3058
      %3068 = vst.msk [vmem:[%s389 + $0x14] sm:$0xf] %vm3062, %v3059
      %3069 = vst.msk [vmem:[%s389 + $0x18] sm:$0xf] %vm3062, %v3060
      %3070 = vst.msk [vmem:[%s389 + $0x1c] sm:$0xf] %vm3062, %v3061
      %s3071 = smul.u32 8, %s21
      %p3072 = scmp.lt.s32.totalorder %s20, 1
      %s3073 = scalar_select %p3072, %s20, 1
      %p3074 = scmp.lt.s32.totalorder %s3071, 7
      %s3075 = scalar_select %p3074, %s3071, 7
      %s3076 = smul.addr %s3073, 8
      %s3077 = sadd.s32 %s3075, %s3076
      %s3078 = smul.addr %s3077, 4
      %s3079 = scalar_lea.vmem %s5, %s3078
      // Predicated region
      $region41: #{vggnet_forward.5} parent=39 // pred_check
        %p3080 = pneg %p190
      $region42: #{vggnet_forward.5} parent=39 // pred_check_branch
        %3082 = sbr.rel (%p3080) target = $region44
      $region43: #{vggnet_forward.5} parent=39 // pred_region
        %s3083 = smul.u32 8, %s21
      $region44: #{vggnet_forward.5} parent=39 // pred_fallthru
        _
    $region40: #{vggnet_forward.5} parent=5 // pred_fallthru
      _
    %p3084 = scmp.le.s32.totalorder 2, %s11
    // Predicated region
    $region45: #{vggnet_forward.5} parent=5 // pred_check
      %p3085 = pneg %p3084
    $region46: #{vggnet_forward.5} parent=5 // pred_check_branch
      %3087 = sbr.rel (%p3085) target = $region48
    $region47: #{vggnet_forward.5} parent=5 // pred_region
      %s3088 = ssub.s32 %s11, 2
      // Predicated region
      $region49: #{vggnet_forward.5} parent=47 // pred_check
        %p3089 = pneg %p196
      $region50: #{vggnet_forward.5} parent=47 // pred_check_branch
        %3091 = sbr.rel (%p3089) target = $region52
      $region51: #{vggnet_forward.5} parent=47 // pred_region
        %s3092 = smul.u32 8, %s23
        %p3093 = scmp.lt.s32.totalorder %s22, 1
        %s3094 = scalar_select %p3093, %s22, 1
        %p3095 = scmp.lt.s32.totalorder %s3092, 7
        %s3096 = scalar_select %p3095, %s3092, 7
        %s3097 = smul.addr %s3094, 8
        %s3098 = sadd.s32 %s3096, %s3097
        %s3099 = smul.addr %s3098, 4
        %s3100 = scalar_lea.vmem %s5, %s3099
      $region52: #{vggnet_forward.5} parent=47 // pred_fallthru
        _
    $region48: #{vggnet_forward.5} parent=5 // pred_fallthru
      _
  $region6: #{vggnet_forward.5} parent=0 // loop_footer
    %s15 = sadd.s32 1, %s11
  $region7: #{vggnet_forward.5} parent=0 // loop_footer_branch
    %10 = sbr.rel target = $region3
  $region8: #{vggnet_forward.5} parent=0 // loop_exit
    _

// kernel: vggnet_forward.6
$region0: #{vggnet_forward.6}
  #allocation0 [shape = 'u32[]', space=smem, size = 0x4, offset = 0x4, fixed_abs, tag = 'smem constant byte address 0x4 - core index']
  #allocation1 [shape = 'u32[144,128]{1,0:T(1,128)}', space=vmem, size = 0x12000, scoped, tag = 'internal scratch']
  %s0 = inlined_call_operand.vmem [shape: bf16[2,8,8,64], index: 0, kind: input, shape index: {}, may-alias: {0,1,2}]
  %s1 = inlined_call_operand.vmem [shape: bf16[2,8,8,64], index: 1, kind: input, shape index: {}, may-alias: {0,1,2}]
  %s2 = inlined_call_operand.vmem [shape: bf16[2,8,8,64], index: 2, kind: input, shape index: {}, may-alias: {0,1,2}]
  %s3 = inlined_call_operand.vmem [shape: bf16[9,64,128], index: 3, kind: input, shape index: {}]
  %s4 = inlined_call_operand.vmem [shape: f32[1,128], index: 4, kind: input, shape index: {}]
  %s5 = inlined_call_operand.vmem [shape: bf16[2,64,128], index: 5, kind: output, shape index: {}]
  %s6 = sld [smem:[#allocation0]]
  $region53: #{vggnet_forward.6} parent=0
    _
  %s8 = ssub.s32 1, %s6
  %s9 = scalar_select 0, %s8, %s6
  loop: start=0, step=1, limit=4
  $region2: #{vggnet_forward.6} parent=0 // loop_pre_header
    _
  $region3: #{vggnet_forward.6} parent=0 // loop_header
    %s11 = sphi 0, %s15
    %p12 = scmp.ge.s32.totalorder %s11, 4
    %s18 = sphi 0, %s30
    %s19 = sphi 0, %s26
    %s20 = sphi 0, %s18
    %s21 = sphi 0, %s19
    %s22 = sphi 0, %s20
    %s23 = sphi 0, %s21
    %s35 = sphi 0, %s37
    %s38 = sphi 0, %s35
    %s39 = sphi 0, %s38
    %s55 = sphi 0, %s39
    %s71 = sphi 0, %s73
    %s74 = sphi 0, %s71
    %s75 = sphi 0, %s74
    %s91 = sphi 0, %s75
    %s107 = sphi 0, %s109
    %s110 = sphi 0, %s107
    %s111 = sphi 0, %s110
    %s127 = sphi 0, %s111
    %s131 = sphi 0, %s131
    %s133 = sphi 0, %s131
    %s134 = sphi 0, %s133
    %s148 = sphi 0, %s134
    %s152 = sphi 0, %s152
    %s154 = sphi 0, %s152
    %s155 = sphi 0, %s154
    %s169 = sphi 0, %s155
    %s177 = sphi 0, %s179
    %s180 = sphi 0, %s177
    %s181 = sphi 0, %s180
    %s197 = sphi 0, %s181
  $region4: #{vggnet_forward.6} parent=0 // loop_header_branch
    %14 = sbr.rel (%p12) target = $region8
  $region5: #{vggnet_forward.6} parent=0 // loop_body
    %s16 = ssub.s32 %s11, 1
    %s17 = ssub.s32 %s11, 2
    %s24 = sadd.s32 1, %s19
    %p25 = scmp.ge.s32.totalorder %s24, 1
    %s26 = scalar_select %p25, 0, %s24
    %s27 = sadd.s32 1, %s18
    %s28 = scalar_select %p25, %s27, %s18
    %p29 = scmp.ge.s32.totalorder %s28, 2
    %s30 = scalar_select %p29, 0, %s28
    %s31 = ssub.s32 %s18, %s30
    %s32 = ssub.s32 %s19, %s26
    %s33 = sor.u32 %s31, %s32
    %p34 = scmp.eq.s32.totalorder %s33, 0
    %s36 = sadd.s32 %s35, 1
    %s37 = scalar_select %p34, %s35, %s36
    %p40 = pneg %p34
    %p41 = scmp.eq.s32.totalorder %s11, 1
    %p42 = por %p40, %p41
    %p43 = scmp.ne.s32.totalorder %s35, %s38
    %p44 = scmp.eq.s32.totalorder %s11, 0
    %p45 = por %p43, %p44
    %p46 = scmp.ne.s32.totalorder %s35, %s38
    %p47 = scmp.eq.s32.totalorder %s16, 1
    %p48 = por %p46, %p47
    %p49 = scmp.ne.s32.totalorder %s38, %s39
    %p50 = scmp.eq.s32.totalorder %s16, 0
    %p51 = por %p49, %p50
    %p52 = scmp.ne.s32.totalorder %s38, %s39
    %p53 = scmp.eq.s32.totalorder %s17, 1
    %p54 = por %p52, %p53
    %p56 = scmp.ne.s32.totalorder %s39, %s55
    %p57 = scmp.eq.s32.totalorder %s17, 0
    %p58 = por %p56, %p57
    %s59 = smul.u32 %s19, 8
    %s60 = ssub.s32 %s59, 1
    %p61 = scmp.gt.s32.totalorder %s60, 0
    %s62 = scalar_select %p61, %s60, 0
    %s63 = smul.u32 %s26, 8
    %s64 = ssub.s32 %s63, 1
    %p65 = scmp.gt.s32.totalorder %s64, 0
    %s66 = scalar_select %p65, %s64, 0
    %s67 = ssub.s32 %s18, %s30
    %s68 = ssub.s32 %s62, %s66
    %s69 = sor.u32 %s67, %s68
    %p70 = scmp.eq.s32.totalorder %s69, 0
    %s72 = sadd.s32 %s71, 1
    %s73 = scalar_select %p70, %s71, %s72
    %p76 = pneg %p70
    %p77 = scmp.eq.s32.totalorder %s11, 1
    %p78 = por %p76, %p77
    %p79 = scmp.ne.s32.totalorder %s71, %s74
    %p80 = scmp.eq.s32.totalorder %s11, 0
    %p81 = por %p79, %p80
    %p82 = scmp.ne.s32.totalorder %s71, %s74
    %p83 = scmp.eq.s32.totalorder %s16, 1
    %p84 = por %p82, %p83
    %p85 = scmp.ne.s32.totalorder %s74, %s75
    %p86 = scmp.eq.s32.totalorder %s16, 0
    %p87 = por %p85, %p86
    %p88 = scmp.ne.s32.totalorder %s74, %s75
    %p89 = scmp.eq.s32.totalorder %s17, 1
    %p90 = por %p88, %p89
    %p92 = scmp.ne.s32.totalorder %s75, %s91
    %p93 = scmp.eq.s32.totalorder %s17, 0
    %p94 = por %p92, %p93
    %s95 = smul.u32 %s19, 8
    %s96 = sadd.s32 %s95, 8
    %p97 = scmp.lt.s32.totalorder %s96, 7
    %s98 = scalar_select %p97, %s96, 7
    %s99 = smul.u32 %s26, 8
    %s100 = sadd.s32 %s99, 8
    %p101 = scmp.lt.s32.totalorder %s100, 7
    %s102 = scalar_select %p101, %s100, 7
    %s103 = ssub.s32 %s18, %s30
    %s104 = ssub.s32 %s98, %s102
    %s105 = sor.u32 %s103, %s104
    %p106 = scmp.eq.s32.totalorder %s105, 0
    %s108 = sadd.s32 %s107, 1
    %s109 = scalar_select %p106, %s107, %s108
    %p112 = pneg %p106
    %p113 = scmp.eq.s32.totalorder %s11, 1
    %p114 = por %p112, %p113
    %p115 = scmp.ne.s32.totalorder %s107, %s110
    %p116 = scmp.eq.s32.totalorder %s11, 0
    %p117 = por %p115, %p116
    %p118 = scmp.ne.s32.totalorder %s107, %s110
    %p119 = scmp.eq.s32.totalorder %s16, 1
    %p120 = por %p118, %p119
    %p121 = scmp.ne.s32.totalorder %s110, %s111
    %p122 = scmp.eq.s32.totalorder %s16, 0
    %p123 = por %p121, %p122
    %p124 = scmp.ne.s32.totalorder %s110, %s111
    %p125 = scmp.eq.s32.totalorder %s17, 1
    %p126 = por %p124, %p125
    %p128 = scmp.ne.s32.totalorder %s111, %s127
    %p129 = scmp.eq.s32.totalorder %s17, 0
    %p130 = por %p128, %p129
    %s132 = sadd.s32 %s131, 1
    %p135 = scmp.eq.s32.totalorder %s11, 1
    %p136 = scmp.ne.s32.totalorder %s131, %s133
    %p137 = scmp.eq.s32.totalorder %s11, 0
    %p138 = por %p136, %p137
    %p139 = scmp.ne.s32.totalorder %s131, %s133
    %p140 = scmp.eq.s32.totalorder %s16, 1
    %p141 = por %p139, %p140
    %p142 = scmp.ne.s32.totalorder %s133, %s134
    %p143 = scmp.eq.s32.totalorder %s16, 0
    %p144 = por %p142, %p143
    %p145 = scmp.ne.s32.totalorder %s133, %s134
    %p146 = scmp.eq.s32.totalorder %s17, 1
    %p147 = por %p145, %p146
    %p149 = scmp.ne.s32.totalorder %s134, %s148
    %p150 = scmp.eq.s32.totalorder %s17, 0
    %p151 = por %p149, %p150
    %s153 = sadd.s32 %s152, 1
    %p156 = scmp.eq.s32.totalorder %s11, 1
    %p157 = scmp.ne.s32.totalorder %s152, %s154
    %p158 = scmp.eq.s32.totalorder %s11, 0
    %p159 = por %p157, %p158
    %p160 = scmp.ne.s32.totalorder %s152, %s154
    %p161 = scmp.eq.s32.totalorder %s16, 1
    %p162 = por %p160, %p161
    %p163 = scmp.ne.s32.totalorder %s154, %s155
    %p164 = scmp.eq.s32.totalorder %s16, 0
    %p165 = por %p163, %p164
    %p166 = scmp.ne.s32.totalorder %s154, %s155
    %p167 = scmp.eq.s32.totalorder %s17, 1
    %p168 = por %p166, %p167
    %p170 = scmp.ne.s32.totalorder %s155, %s169
    %p171 = scmp.eq.s32.totalorder %s17, 0
    %p172 = por %p170, %p171
    %s173 = ssub.s32 %s18, %s30
    %s174 = ssub.s32 %s19, %s26
    %s175 = sor.u32 %s173, %s174
    %p176 = scmp.eq.s32.totalorder %s175, 0
    %s178 = sadd.s32 %s177, 1
    %s179 = scalar_select %p176, %s177, %s178
    %p182 = pneg %p176
    %p183 = scmp.eq.s32.totalorder %s11, 1
    %p184 = por %p182, %p183
    %p185 = scmp.ne.s32.totalorder %s177, %s180
    %p186 = scmp.eq.s32.totalorder %s11, 0
    %p187 = por %p185, %p186
    %p188 = scmp.ne.s32.totalorder %s177, %s180
    %p189 = scmp.eq.s32.totalorder %s16, 1
    %p190 = por %p188, %p189
    %p191 = scmp.ne.s32.totalorder %s180, %s181
    %p192 = scmp.eq.s32.totalorder %s16, 0
    %p193 = por %p191, %p192
    %p194 = scmp.ne.s32.totalorder %s180, %s181
    %p195 = scmp.eq.s32.totalorder %s17, 1
    %p196 = por %p194, %p195
    %p198 = scmp.ne.s32.totalorder %s181, %s197
    %p199 = scmp.eq.s32.totalorder %s17, 0
    %p200 = por %p198, %p199
    %p201 = scmp.le.s32.totalorder 1, %s11
    %p202 = scmp.lt.s32.totalorder %s11, 3
    %p203 = pnand %p201, %p202
    %p204 = pneg %p203
    // Predicated region
    $region9: #{vggnet_forward.6} parent=5 // pred_check
      _
    $region10: #{vggnet_forward.6} parent=5 // pred_check_branch
      %206 = sbr.rel (%p203) target = $region12
    $region11: #{vggnet_forward.6} parent=5 // pred_region
      %s207 = ssub.s32 %s11, 1
      // Predicated region
      $region13: #{vggnet_forward.6} parent=11 // pred_check
        %p208 = pneg %p144
      $region14: #{vggnet_forward.6} parent=11 // pred_check_branch
        %210 = sbr.rel (%p208) target = $region16
      $region15: #{vggnet_forward.6} parent=11 // pred_region
        _
      $region16: #{vggnet_forward.6} parent=11 // pred_fallthru
        _
      // Predicated region
      $region17: #{vggnet_forward.6} parent=11 // pred_check
        %p211 = pneg %p165
      $region18: #{vggnet_forward.6} parent=11 // pred_check_branch
        %213 = sbr.rel (%p211) target = $region20
      $region19: #{vggnet_forward.6} parent=11 // pred_region
        _
      $region20: #{vggnet_forward.6} parent=11 // pred_fallthru
        _
    $region12: #{vggnet_forward.6} parent=5 // pred_fallthru
      _
    %p214 = scmp.lt.s32.totalorder %s11, 2
    // Predicated region
    $region21: #{vggnet_forward.6} parent=5 // pred_check
      %p215 = pneg %p214
    $region22: #{vggnet_forward.6} parent=5 // pred_check_branch
      %217 = sbr.rel (%p215) target = $region24
    $region23: #{vggnet_forward.6} parent=5 // pred_region
      // Predicated region
      $region25: #{vggnet_forward.6} parent=23 // pred_check
        %p218 = pneg %p45
      $region26: #{vggnet_forward.6} parent=23 // pred_check_branch
        %220 = sbr.rel (%p218) target = $region28
      $region27: #{vggnet_forward.6} parent=23 // pred_region
        %s221 = smul.u32 8, %s19
        %p222 = scmp.lt.s32.totalorder %s18, 1
        %s223 = scalar_select %p222, %s18, 1
        %p224 = scmp.lt.s32.totalorder %s221, 7
        %s225 = scalar_select %p224, %s221, 7
        %s226 = smul.addr %s223, 8
        %s227 = sadd.s32 %s225, %s226
        %s228 = smul.addr %s227, 4
        %s229 = scalar_lea.vmem %s0, %s228
        %s230 = smul.u32 8, %s19
      $region28: #{vggnet_forward.6} parent=23 // pred_fallthru
        _
      // Predicated region
      $region29: #{vggnet_forward.6} parent=23 // pred_check
        %p231 = pneg %p81
      $region30: #{vggnet_forward.6} parent=23 // pred_check_branch
        %233 = sbr.rel (%p231) target = $region32
      $region31: #{vggnet_forward.6} parent=23 // pred_region
        %s234 = smul.u32 %s19, 8
        %s235 = ssub.s32 %s234, 1
        %p236 = scmp.gt.s32.totalorder %s235, 0
        %s237 = scalar_select %p236, %s235, 0
        %p238 = scmp.lt.s32.totalorder %s18, 1
        %s239 = scalar_select %p238, %s18, 1
        %p240 = scmp.lt.s32.totalorder %s237, 7
        %s241 = scalar_select %p240, %s237, 7
        %s242 = smul.addr %s239, 8
        %s243 = sadd.s32 %s241, %s242
        %s244 = smul.addr %s243, 4
        %s245 = scalar_lea.vmem %s1, %s244
        %s246 = smul.u32 %s19, 8
        %s247 = ssub.s32 %s246, 1
        %p248 = scmp.gt.s32.totalorder %s247, 0
        %s249 = scalar_select %p248, %s247, 0
      $region32: #{vggnet_forward.6} parent=23 // pred_fallthru
        _
      // Predicated region
      $region33: #{vggnet_forward.6} parent=23 // pred_check
        %p250 = pneg %p117
      $region34: #{vggnet_forward.6} parent=23 // pred_check_branch
        %252 = sbr.rel (%p250) target = $region36
      $region35: #{vggnet_forward.6} parent=23 // pred_region
        %s253 = smul.u32 %s19, 8
        %s254 = sadd.s32 %s253, 8
        %p255 = scmp.lt.s32.totalorder %s254, 7
        %s256 = scalar_select %p255, %s254, 7
        %p257 = scmp.lt.s32.totalorder %s18, 1
        %s258 = scalar_select %p257, %s18, 1
        %p259 = scmp.lt.s32.totalorder %s256, 7
        %s260 = scalar_select %p259, %s256, 7
        %s261 = smul.addr %s258, 8
        %s262 = sadd.s32 %s260, %s261
        %s263 = smul.addr %s262, 4
        %s264 = scalar_lea.vmem %s2, %s263
        %s265 = smul.u32 %s19, 8
        %s266 = sadd.s32 %s265, 8
        %p267 = scmp.lt.s32.totalorder %s266, 7
        %s268 = scalar_select %p267, %s266, 7
      $region36: #{vggnet_forward.6} parent=23 // pred_fallthru
        _
    $region24: #{vggnet_forward.6} parent=5 // pred_fallthru
      _
    %p269 = scmp.le.s32.totalorder 1, %s11
    %p270 = scmp.lt.s32.totalorder %s11, 3
    %p271 = pnand %p269, %p270
    %p272 = pneg %p271
    // Predicated region
    $region37: #{vggnet_forward.6} parent=5 // pred_check
      _
    $region38: #{vggnet_forward.6} parent=5 // pred_check_branch
      %274 = sbr.rel (%p271) target = $region40
    $region39: #{vggnet_forward.6} parent=5 // pred_region
      %s275 = ssub.s32 %s11, 1
      %s276 = smul.u32 8, %s21
      %p277 = scmp.lt.s32.totalorder %s20, 1
      %s278 = scalar_select %p277, %s20, 1
      %p279 = scmp.lt.s32.totalorder %s276, 7
      %s280 = scalar_select %p279, %s276, 7
      %s281 = smul.addr %s278, 8
      %s282 = sadd.s32 %s280, %s281
      %s283 = smul.addr %s282, 4
      %s284 = scalar_lea.vmem %s0, %s283
      %p285 = pneg %p51
      %p286 = pneg %p48
      %s287 = smul.u32 %s21, 8
      %s288 = ssub.s32 %s287, 1
      %p289 = scmp.gt.s32.totalorder %s288, 0
      %s290 = scalar_select %p289, %s288, 0
      %p291 = scmp.lt.s32.totalorder %s20, 1
      %s292 = scalar_select %p291, %s20, 1
      %p293 = scmp.lt.s32.totalorder %s290, 7
      %s294 = scalar_select %p293, %s290, 7
      %s295 = smul.addr %s292, 8
      %s296 = sadd.s32 %s294, %s295
      %s297 = smul.addr %s296, 4
      %s298 = scalar_lea.vmem %s1, %s297
      %p299 = pneg %p87
      %p300 = pneg %p84
      %s301 = smul.u32 %s21, 8
      %s302 = sadd.s32 %s301, 8
      %p303 = scmp.lt.s32.totalorder %s302, 7
      %s304 = scalar_select %p303, %s302, 7
      %p305 = scmp.lt.s32.totalorder %s20, 1
      %s306 = scalar_select %p305, %s20, 1
      %p307 = scmp.lt.s32.totalorder %s304, 7
      %s308 = scalar_select %p307, %s304, 7
      %s309 = smul.addr %s306, 8
      %s310 = sadd.s32 %s308, %s309
      %s311 = smul.addr %s310, 4
      %s312 = scalar_lea.vmem %s2, %s311
      %p313 = pneg %p123
      %p314 = pneg %p120
      %p315 = pneg %p144
      %p316 = pneg %p141
      %p317 = pneg %p165
      %p318 = pneg %p162
      %p319 = pneg %p193
      %p320 = pneg %p190
      %s321 = smul.u32 8, %s21
      %p322 = scmp.lt.s32.totalorder %s20, 1
      %s323 = scalar_select %p322, %s20, 1
      %p324 = scmp.lt.s32.totalorder %s321, 7
      %s325 = scalar_select %p324, %s321, 7
      %s326 = smul.addr %s323, 8
      %s327 = sadd.s32 %s325, %s326
      %s328 = smul.addr %s327, 4
      %s329 = scalar_lea.vmem %s5, %s328
      %s330 = smul.u32 8, %s21
      %p331 = scmp.lt.s32.totalorder %s20, 1
      %s332 = scalar_select %p331, %s20, 1
      %p333 = scmp.lt.s32.totalorder %s330, 7
      %s334 = scalar_select %p333, %s330, 7
      %s335 = smul.addr %s332, 8
      %s336 = sadd.s32 %s334, %s335
      %s337 = smul.addr %s336, 4
      %s338 = scalar_lea.vmem %s0, %s337
      %s339 = smul.u32 8, %s21
      %s340 = smul.u32 %s21, 8
      %s341 = ssub.s32 %s340, 1
      %p342 = scmp.gt.s32.totalorder %s341, 0
      %s343 = scalar_select %p342, %s341, 0
      %p344 = scmp.lt.s32.totalorder %s20, 1
      %s345 = scalar_select %p344, %s20, 1
      %p346 = scmp.lt.s32.totalorder %s343, 7
      %s347 = scalar_select %p346, %s343, 7
      %s348 = smul.addr %s345, 8
      %s349 = sadd.s32 %s347, %s348
      %s350 = smul.addr %s349, 4
      %s351 = scalar_lea.vmem %s1, %s350
      %s352 = smul.u32 %s21, 8
      %s353 = ssub.s32 %s352, 1
      %p354 = scmp.gt.s32.totalorder %s353, 0
      %s355 = scalar_select %p354, %s353, 0
      %s356 = smul.u32 %s21, 8
      %s357 = sadd.s32 %s356, 8
      %p358 = scmp.lt.s32.totalorder %s357, 7
      %s359 = scalar_select %p358, %s357, 7
      %p360 = scmp.lt.s32.totalorder %s20, 1
      %s361 = scalar_select %p360, %s20, 1
      %p362 = scmp.lt.s32.totalorder %s359, 7
      %s363 = scalar_select %p362, %s359, 7
      %s364 = smul.addr %s361, 8
      %s365 = sadd.s32 %s363, %s364
      %s366 = smul.addr %s365, 4
      %s367 = scalar_lea.vmem %s2, %s366
      %s368 = smul.u32 %s21, 8
      %s369 = sadd.s32 %s368, 8
      %p370 = scmp.lt.s32.totalorder %s369, 7
      %s371 = scalar_select %p370, %s369, 7
      %s372 = smul.u32 8, %s21
      %p373 = scmp.lt.s32.totalorder %s20, 1
      %s374 = scalar_select %p373, %s20, 1
      %p375 = scmp.lt.s32.totalorder %s372, 7
      %s376 = scalar_select %p375, %s372, 7
      %s377 = smul.addr %s374, 8
      %s378 = sadd.s32 %s376, %s377
      %s379 = smul.addr %s378, 4
      %s380 = scalar_lea.vmem %s5, %s379
      %s381 = smul.u32 8, %s21
      %p383 = scmp.eq.s32.totalorder %s21, 0
      %v384 = vld [vmem:[%s351] sm:$0xf]
      %s385 = scalar_select %p383, 1, 0
      %v386 = vstv %s385
      %vm387 = vcmp.eq.s32.totalorder %v386, 1
      %v388 = vsel %vm387, 0, %v384
      %v389 = vld [vmem:[%s367] sm:$0xf]
      %v390 = vsel %vm387, 0, %v389
      %v391 = vld [vmem:[%s338] sm:$0xf]
      %v392 = vld [vmem:[%s338 + $0x4] sm:$0xf]
      %v393 = vld [vmem:[%s338 + $0x8] sm:$0xf]
      %v394 = vld [vmem:[%s338 + $0xc] sm:$0xf]
      %v395 = vld [vmem:[%s338 + $0x10] sm:$0xf]
      %v396 = vld [vmem:[%s338 + $0x14] sm:$0xf]
      %v397 = vld [vmem:[%s338 + $0x18] sm:$0xf]
      %v398 = vld [vmem:[%s338 + $0x1c] sm:$0xf]
      %v409 = vunpack.c.l.b16 %v388
      %v410 = vunpack.c.l.b16 %v391
      %v411 = vunpack.c.l.b16 %v392
      %v412 = vunpack.c.l.b16 %v393
      %v413 = vunpack.c.l.b16 %v394
      %v414 = vunpack.c.l.b16 %v395
      %v415 = vunpack.c.l.b16 %v396
      %v416 = vunpack.c.l.b16 %v397
      %v417 = vunpack.c.l.b16 %v398
      %v418 = vunpack.c.l.b16 %v390
      %v419 = vpack.c.b16 %v409, %v409
      %v420 = vpack.c.b16 %v410, %v410
      %v421 = vpack.c.b16 %v411, %v411
      %v422 = vpack.c.b16 %v412, %v412
      %v423 = vpack.c.b16 %v413, %v413
      %v424 = vpack.c.b16 %v414, %v414
      %v425 = vpack.c.b16 %v415, %v415
      %v426 = vpack.c.b16 %v416, %v416
      %v427 = vpack.c.b16 %v417, %v417
      %v428 = vpack.c.b16 %v418, %v418
      %v430 = vshrl.u32 %v419, 16
      %v432 = vrot.slane %v430, 7
      %v433 = vshll.u32 %v419, 16
      %v435 = vor.u32 %v432, %v433
      %v437 = vshrl.u32 %v420, 16
      %v439 = vrot.slane %v437, 7
      %v440 = vshll.u32 %v420, 16
      %v442 = vor.u32 %v439, %v440
      %v444 = vshrl.u32 %v421, 16
      %v446 = vrot.slane %v444, 7
      %v447 = vshll.u32 %v421, 16
      %v449 = vor.u32 %v446, %v447
      %v451 = vshrl.u32 %v422, 16
      %v453 = vrot.slane %v451, 7
      %v454 = vshll.u32 %v422, 16
      %v456 = vor.u32 %v453, %v454
      %v458 = vshrl.u32 %v423, 16
      %v460 = vrot.slane %v458, 7
      %v461 = vshll.u32 %v423, 16
      %v463 = vor.u32 %v460, %v461
      %v465 = vshrl.u32 %v424, 16
      %v467 = vrot.slane %v465, 7
      %v468 = vshll.u32 %v424, 16
      %v470 = vor.u32 %v467, %v468
      %v472 = vshrl.u32 %v425, 16
      %v474 = vrot.slane %v472, 7
      %v475 = vshll.u32 %v425, 16
      %v477 = vor.u32 %v474, %v475
      %v479 = vshrl.u32 %v426, 16
      %v481 = vrot.slane %v479, 7
      %v482 = vshll.u32 %v426, 16
      %v484 = vor.u32 %v481, %v482
      %v486 = vshrl.u32 %v427, 16
      %v488 = vrot.slane %v486, 7
      %v489 = vshll.u32 %v427, 16
      %v491 = vor.u32 %v488, %v489
      %v493 = vshrl.u32 %v428, 16
      %v495 = vrot.slane %v493, 7
      %v496 = vshll.u32 %v428, 16
      %v498 = vor.u32 %v495, %v496
      %vm509 = vcmask 1040384
      %vm510 = vsmask.f32 256
      %vm511 = vmand %vm509, %vm510
      %v512 = vsel %vm511, 0, %v435
      %v513 = vsel %vm511, 0, %v442
      %v514 = vsel %vm511, 0, %v449
      %v515 = vsel %vm511, 0, %v456
      %v516 = vsel %vm511, 0, %v463
      %v517 = vsel %vm511, 0, %v470
      %v518 = vsel %vm511, 0, %v477
      %v519 = vsel %vm511, 0, %v484
      %v520 = vsel %vm511, 0, %v491
      %v521 = vsel %vm511, 0, %v498
      %v522 = vrot.slane %v433, 1
      %v523 = vor.u32 %v430, %v522
      %v524 = vrot.slane %v440, 1
      %v525 = vor.u32 %v437, %v524
      %v526 = vrot.slane %v447, 1
      %v527 = vor.u32 %v444, %v526
      %v528 = vrot.slane %v454, 1
      %v529 = vor.u32 %v451, %v528
      %v530 = vrot.slane %v461, 1
      %v531 = vor.u32 %v458, %v530
      %v532 = vrot.slane %v468, 1
      %v533 = vor.u32 %v465, %v532
      %v534 = vrot.slane %v475, 1
      %v535 = vor.u32 %v472, %v534
      %v536 = vrot.slane %v482, 1
      %v537 = vor.u32 %v479, %v536
      %v538 = vrot.slane %v489, 1
      %v539 = vor.u32 %v486, %v538
      %v540 = vrot.slane %v496, 1
      %v541 = vor.u32 %v493, %v540
      %vm552 = vcmask 1043456
      %vm553 = vsmask.f32 3328
      %vm554 = vmand %vm552, %vm553
      %v555 = vsel %vm554, %v523, 0
      %v556 = vsel %vm554, %v525, 0
      %v557 = vsel %vm554, %v527, 0
      %v558 = vsel %vm554, %v529, 0
      %v559 = vsel %vm554, %v531, 0
      %v560 = vsel %vm554, %v533, 0
      %v561 = vsel %vm554, %v535, 0
      %v562 = vsel %vm554, %v537, 0
      %v563 = vsel %vm554, %v539, 0
      %v564 = vsel %vm554, %v541, 0
      %v565 = vld [vmem:[%s4] sm:$0x1]
      %v566 = vld [vmem:[%s3] sm:$0xf]
      %v567 = vld [vmem:[%s3 + $0x4] sm:$0xf]
      %v568 = vld [vmem:[%s3 + $0x8] sm:$0xf]
      %v569 = vld [vmem:[%s3 + $0xc] sm:$0xf]
      %v570 = vld [vmem:[%s3 + $0x10] sm:$0xf]
      %v571 = vld [vmem:[%s3 + $0x14] sm:$0xf]
      %v572 = vld [vmem:[%s3 + $0x18] sm:$0xf]
      %v573 = vld [vmem:[%s3 + $0x1c] sm:$0xf]
      %s574 = scalar_lea.vmem %s3, 32
      %v575 = vld [vmem:[%s574] sm:$0xf]
      %v576 = vld [vmem:[%s574 + $0x4] sm:$0xf]
      %v577 = vld [vmem:[%s574 + $0x8] sm:$0xf]
      %v578 = vld [vmem:[%s574 + $0xc] sm:$0xf]
      %v579 = vld [vmem:[%s574 + $0x10] sm:$0xf]
      %v580 = vld [vmem:[%s574 + $0x14] sm:$0xf]
      %v581 = vld [vmem:[%s574 + $0x18] sm:$0xf]
      %v582 = vld [vmem:[%s574 + $0x1c] sm:$0xf]
      %v583 = vpack.c.b16 %v410, %v409
      %v584 = vpack.c.b16 %v412, %v411
      %v585 = vpack.c.b16 %v414, %v413
      %v586 = vpack.c.b16 %v416, %v415
      %v595 = vunpack.c.l.b16 %v575
      %v596 = vunpack.c.l.b16 %v576
      %v597 = vunpack.c.l.b16 %v577
      %v598 = vunpack.c.l.b16 %v578
      %v599 = vunpack.c.l.b16 %v579
      %v600 = vunpack.c.l.b16 %v580
      %v601 = vunpack.c.l.b16 %v581
      %v602 = vunpack.c.l.b16 %v582
      %v603 = vpack.c.b16 %v596, %v595
      %v604 = vpack.c.b16 %v598, %v597
      %v605 = vpack.c.b16 %v600, %v599
      %v606 = vpack.c.b16 %v602, %v601
      %vm611 = vcmask 523264
      %v613 = vsel %vm611, %v583, 0
      %v616 = vsel %vm611, %v584, 0
      %v619 = vsel %vm611, %v585, 0
      %v622 = vsel %vm611, %v586, 0
      %624 = vmatprep.subr.bf16.mxu0 0
      %625 = vmatpush1.bf16.msra.mxu0 0
      %626 = vmatprep.subr.bf16.mxu0 0
      %627 = vmatpush1.bf16.msra.mxu0 0
      %628 = vmatprep.subr.bf16.mxu0 0
      %629 = vmatpush1.bf16.msra.mxu0 0
      %630 = vmatprep.subr.bf16.mxu0 0
      %631 = vmatpush1.bf16.msra.mxu0 0
      %632 = vmatprep.subr.bf16.mxu0 0
      %633 = vmatpush1.bf16.msra.mxu0 %v606
      %634 = vmatprep.subr.bf16.mxu0 0
      %635 = vmatpush1.bf16.msra.mxu0 %v605
      %636 = vmatprep.subr.bf16.mxu0 0
      %637 = vmatpush1.bf16.msra.mxu0 %v604
      %638 = vmatprep.subr.bf16.mxu0 0
      %639 = vmatpush1.bf16.msra.mxu0 %v603
      %640 = vmatprep.subr.bf16.mxu0 0
      %641 = vmatpush2.bf16.msra.mxu0 0
      %642 = vmatprep.subr.bf16.mxu0 0
      %643 = vmatpush2.bf16.msra.mxu0 0
      %644 = vmatprep.subr.bf16.mxu0 0
      %645 = vmatpush2.bf16.msra.mxu0 0
      %646 = vmatprep.subr.bf16.mxu0 0
      %647 = vmatpush2.bf16.msra.mxu0 0
      %648 = vmatprep.subr.bf16.mxu0 0
      %649 = vmatpush2.bf16.msra.mxu0 0
      %650 = vmatprep.subr.bf16.mxu0 0
      %651 = vmatpush2.bf16.msra.mxu0 0
      %652 = vmatprep.subr.bf16.mxu0 0
      %653 = vmatpush2.bf16.msra.mxu0 0
      %654 = vmatprep.subr.bf16.mxu0 0
      %655 = vmatpush2.bf16.msra.mxu0 0
      %656 = vmatprep.mubr.bf16.mxu0 0
      %657 = vmatmul.mubr.bf16.gmra.mxu0 %v613
      %v658 = vpop.f32.mrf.mxu0
      %v659 = vadd.f32 0.0, %v658
      %v660 = vpop.f32.mrf.mxu0
      %v661 = vpop.f32.mrf.mxu0
      %v662 = vadd.f32 0.0, %v661
      %v663 = vpop.f32.mrf.mxu0
      %664 = vmatprep.mubr.bf16.mxu0 0
      %665 = vmatmul.mubr.bf16.gmra.mxu0 %v616
      %v666 = vpop.f32.mrf.mxu0
      %v667 = vadd.f32 0.0, %v666
      %v668 = vpop.f32.mrf.mxu0
      %v669 = vpop.f32.mrf.mxu0
      %v670 = vadd.f32 0.0, %v669
      %v671 = vpop.f32.mrf.mxu0
      %672 = vmatprep.mubr.bf16.mxu0 0
      %673 = vmatmul.mubr.bf16.gmra.mxu0 %v619
      %v674 = vpop.f32.mrf.mxu0
      %v675 = vadd.f32 0.0, %v674
      %v676 = vpop.f32.mrf.mxu0
      %v677 = vpop.f32.mrf.mxu0
      %v678 = vadd.f32 0.0, %v677
      %v679 = vpop.f32.mrf.mxu0
      %680 = vmatprep.mubr.bf16.mxu0 0
      %681 = vmatmul.mubr.bf16.gmra.mxu0 %v622
      %v682 = vpop.f32.mrf.mxu0
      %v683 = vadd.f32 0.0, %v682
      %v684 = vpop.f32.mrf.mxu0
      %v685 = vpop.f32.mrf.mxu0
      %v686 = vadd.f32 0.0, %v685
      %v687 = vpop.f32.mrf.mxu0
      %688 = vdwg.mxu0
      %v697 = vunpack.c.l.b16 %v512
      %v698 = vunpack.c.l.b16 %v513
      %v699 = vunpack.c.l.b16 %v514
      %v700 = vunpack.c.l.b16 %v515
      %v701 = vunpack.c.l.b16 %v516
      %v702 = vunpack.c.l.b16 %v517
      %v703 = vunpack.c.l.b16 %v518
      %v704 = vunpack.c.l.b16 %v519
      %v705 = vpack.c.b16 %v698, %v697
      %v706 = vpack.c.b16 %v700, %v699
      %v707 = vpack.c.b16 %v702, %v701
      %v708 = vpack.c.b16 %v704, %v703
      %v717 = vunpack.c.l.b16 %v566
      %v718 = vunpack.c.l.b16 %v567
      %v719 = vunpack.c.l.b16 %v568
      %v720 = vunpack.c.l.b16 %v569
      %v721 = vunpack.c.l.b16 %v570
      %v722 = vunpack.c.l.b16 %v571
      %v723 = vunpack.c.l.b16 %v572
      %v724 = vunpack.c.l.b16 %v573
      %v725 = vpack.c.b16 %v718, %v717
      %v726 = vpack.c.b16 %v720, %v719
      %v727 = vpack.c.b16 %v722, %v721
      %v728 = vpack.c.b16 %v724, %v723
      %v734 = vsel %vm611, %v705, 0
      %v737 = vsel %vm611, %v706, 0
      %v740 = vsel %vm611, %v707, 0
      %v743 = vsel %vm611, %v708, 0
      %745 = vmatprep.subr.bf16.mxu0 0
      %746 = vmatpush1.bf16.msra.mxu0 0
      %747 = vmatprep.subr.bf16.mxu0 0
      %748 = vmatpush1.bf16.msra.mxu0 0
      %749 = vmatprep.subr.bf16.mxu0 0
      %750 = vmatpush1.bf16.msra.mxu0 0
      %751 = vmatprep.subr.bf16.mxu0 0
      %752 = vmatpush1.bf16.msra.mxu0 0
      %753 = vmatprep.subr.bf16.mxu0 0
      %754 = vmatpush1.bf16.msra.mxu0 %v728
      %755 = vmatprep.subr.bf16.mxu0 0
      %756 = vmatpush1.bf16.msra.mxu0 %v727
      %757 = vmatprep.subr.bf16.mxu0 0
      %758 = vmatpush1.bf16.msra.mxu0 %v726
      %759 = vmatprep.subr.bf16.mxu0 0
      %760 = vmatpush1.bf16.msra.mxu0 %v725
      %761 = vmatprep.subr.bf16.mxu0 0
      %762 = vmatpush2.bf16.msra.mxu0 0
      %763 = vmatprep.subr.bf16.mxu0 0
      %764 = vmatpush2.bf16.msra.mxu0 0
      %765 = vmatprep.subr.bf16.mxu0 0
      %766 = vmatpush2.bf16.msra.mxu0 0
      %767 = vmatprep.subr.bf16.mxu0 0
      %768 = vmatpush2.bf16.msra.mxu0 0
      %769 = vmatprep.subr.bf16.mxu0 0
      %770 = vmatpush2.bf16.msra.mxu0 0
      %771 = vmatprep.subr.bf16.mxu0 0
      %772 = vmatpush2.bf16.msra.mxu0 0
      %773 = vmatprep.subr.bf16.mxu0 0
      %774 = vmatpush2.bf16.msra.mxu0 0
      %775 = vmatprep.subr.bf16.mxu0 0
      %776 = vmatpush2.bf16.msra.mxu0 0
      %777 = vmatprep.mubr.bf16.mxu0 0
      %778 = vmatmul.mubr.bf16.gmra.mxu0 %v734
      %v779 = vpop.f32.mrf.mxu0
      %v780 = vadd.f32 %v659, %v779
      %v781 = vpop.f32.mrf.mxu0
      %v782 = vpop.f32.mrf.mxu0
      %v783 = vadd.f32 %v662, %v782
      %v784 = vpop.f32.mrf.mxu0
      %785 = vmatprep.mubr.bf16.mxu0 0
      %786 = vmatmul.mubr.bf16.gmra.mxu0 %v737
      %v787 = vpop.f32.mrf.mxu0
      %v788 = vadd.f32 %v667, %v787
      %v789 = vpop.f32.mrf.mxu0
      %v790 = vpop.f32.mrf.mxu0
      %v791 = vadd.f32 %v670, %v790
      %v792 = vpop.f32.mrf.mxu0
      %793 = vmatprep.mubr.bf16.mxu0 0
      %794 = vmatmul.mubr.bf16.gmra.mxu0 %v740
      %v795 = vpop.f32.mrf.mxu0
      %v796 = vadd.f32 %v675, %v795
      %v797 = vpop.f32.mrf.mxu0
      %v798 = vpop.f32.mrf.mxu0
      %v799 = vadd.f32 %v678, %v798
      %v800 = vpop.f32.mrf.mxu0
      %801 = vmatprep.mubr.bf16.mxu0 0
      %802 = vmatmul.mubr.bf16.gmra.mxu0 %v743
      %v803 = vpop.f32.mrf.mxu0
      %v804 = vadd.f32 %v683, %v803
      %v805 = vpop.f32.mrf.mxu0
      %v806 = vpop.f32.mrf.mxu0
      %v807 = vadd.f32 %v686, %v806
      %v808 = vpop.f32.mrf.mxu0
      %809 = vdwg.mxu0
      %s810 = scalar_lea.vmem %s3, 64
      %v811 = vld [vmem:[%s810] sm:$0xf]
      %v812 = vld [vmem:[%s810 + $0x4] sm:$0xf]
      %v813 = vld [vmem:[%s810 + $0x8] sm:$0xf]
      %v814 = vld [vmem:[%s810 + $0xc] sm:$0xf]
      %v815 = vld [vmem:[%s810 + $0x10] sm:$0xf]
      %v816 = vld [vmem:[%s810 + $0x14] sm:$0xf]
      %v817 = vld [vmem:[%s810 + $0x18] sm:$0xf]
      %v818 = vld [vmem:[%s810 + $0x1c] sm:$0xf]
      %v827 = vunpack.c.l.b16 %v555
      %v828 = vunpack.c.l.b16 %v556
      %v829 = vunpack.c.l.b16 %v557
      %v830 = vunpack.c.l.b16 %v558
      %v831 = vunpack.c.l.b16 %v559
      %v832 = vunpack.c.l.b16 %v560
      %v833 = vunpack.c.l.b16 %v561
      %v834 = vunpack.c.l.b16 %v562
      %v835 = vpack.c.b16 %v828, %v827
      %v836 = vpack.c.b16 %v830, %v829
      %v837 = vpack.c.b16 %v832, %v831
      %v838 = vpack.c.b16 %v834, %v833
      %v847 = vunpack.c.l.b16 %v811
      %v848 = vunpack.c.l.b16 %v812
      %v849 = vunpack.c.l.b16 %v813
      %v850 = vunpack.c.l.b16 %v814
      %v851 = vunpack.c.l.b16 %v815
      %v852 = vunpack.c.l.b16 %v816
      %v853 = vunpack.c.l.b16 %v817
      %v854 = vunpack.c.l.b16 %v818
      %v855 = vpack.c.b16 %v848, %v847
      %v856 = vpack.c.b16 %v850, %v849
      %v857 = vpack.c.b16 %v852, %v851
      %v858 = vpack.c.b16 %v854, %v853
      %v864 = vsel %vm611, %v835, 0
      %v867 = vsel %vm611, %v836, 0
      %v870 = vsel %vm611, %v837, 0
      %v873 = vsel %vm611, %v838, 0
      %875 = vmatprep.subr.bf16.mxu0 0
      %876 = vmatpush1.bf16.msra.mxu0 0
      %877 = vmatprep.subr.bf16.mxu0 0
      %878 = vmatpush1.bf16.msra.mxu0 0
      %879 = vmatprep.subr.bf16.mxu0 0
      %880 = vmatpush1.bf16.msra.mxu0 0
      %881 = vmatprep.subr.bf16.mxu0 0
      %882 = vmatpush1.bf16.msra.mxu0 0
      %883 = vmatprep.subr.bf16.mxu0 0
      %884 = vmatpush1.bf16.msra.mxu0 %v858
      %885 = vmatprep.subr.bf16.mxu0 0
      %886 = vmatpush1.bf16.msra.mxu0 %v857
      %887 = vmatprep.subr.bf16.mxu0 0
      %888 = vmatpush1.bf16.msra.mxu0 %v856
      %889 = vmatprep.subr.bf16.mxu0 0
      %890 = vmatpush1.bf16.msra.mxu0 %v855
      %891 = vmatprep.subr.bf16.mxu0 0
      %892 = vmatpush2.bf16.msra.mxu0 0
      %893 = vmatprep.subr.bf16.mxu0 0
      %894 = vmatpush2.bf16.msra.mxu0 0
      %895 = vmatprep.subr.bf16.mxu0 0
      %896 = vmatpush2.bf16.msra.mxu0 0
      %897 = vmatprep.subr.bf16.mxu0 0
      %898 = vmatpush2.bf16.msra.mxu0 0
      %899 = vmatprep.subr.bf16.mxu0 0
      %900 = vmatpush2.bf16.msra.mxu0 0
      %901 = vmatprep.subr.bf16.mxu0 0
      %902 = vmatpush2.bf16.msra.mxu0 0
      %903 = vmatprep.subr.bf16.mxu0 0
      %904 = vmatpush2.bf16.msra.mxu0 0
      %905 = vmatprep.subr.bf16.mxu0 0
      %906 = vmatpush2.bf16.msra.mxu0 0
      %907 = vmatprep.mubr.bf16.mxu0 0
      %908 = vmatmul.mubr.bf16.gmra.mxu0 %v864
      %v909 = vpop.f32.mrf.mxu0
      %v910 = vadd.f32 0.0, %v909
      %v911 = vpop.f32.mrf.mxu0
      %v912 = vpop.f32.mrf.mxu0
      %v913 = vadd.f32 0.0, %v912
      %v914 = vpop.f32.mrf.mxu0
      %915 = vmatprep.mubr.bf16.mxu0 0
      %916 = vmatmul.mubr.bf16.gmra.mxu0 %v867
      %v917 = vpop.f32.mrf.mxu0
      %v918 = vadd.f32 0.0, %v917
      %v919 = vpop.f32.mrf.mxu0
      %v920 = vpop.f32.mrf.mxu0
      %v921 = vadd.f32 0.0, %v920
      %v922 = vpop.f32.mrf.mxu0
      %923 = vmatprep.mubr.bf16.mxu0 0
      %924 = vmatmul.mubr.bf16.gmra.mxu0 %v870
      %v925 = vpop.f32.mrf.mxu0
      %v926 = vadd.f32 0.0, %v925
      %v927 = vpop.f32.mrf.mxu0
      %v928 = vpop.f32.mrf.mxu0
      %v929 = vadd.f32 0.0, %v928
      %v930 = vpop.f32.mrf.mxu0
      %931 = vmatprep.mubr.bf16.mxu0 0
      %932 = vmatmul.mubr.bf16.gmra.mxu0 %v873
      %v933 = vpop.f32.mrf.mxu0
      %v934 = vadd.f32 0.0, %v933
      %v935 = vpop.f32.mrf.mxu0
      %v936 = vpop.f32.mrf.mxu0
      %v937 = vadd.f32 0.0, %v936
      %v938 = vpop.f32.mrf.mxu0
      %939 = vdwg.mxu0
      %v940 = vadd.f32 %v780, %v910
      %v941 = vadd.f32 %v783, %v913
      %v942 = vadd.f32 %v788, %v918
      %v943 = vadd.f32 %v791, %v921
      %v944 = vadd.f32 %v796, %v926
      %v945 = vadd.f32 %v799, %v929
      %v946 = vadd.f32 %v804, %v934
      %v947 = vadd.f32 %v807, %v937
      %s948 = scalar_lea.vmem %s3, 96
      %v949 = vld [vmem:[%s948] sm:$0xf]
      %v950 = vld [vmem:[%s948 + $0x4] sm:$0xf]
      %v951 = vld [vmem:[%s948 + $0x8] sm:$0xf]
      %v952 = vld [vmem:[%s948 + $0xc] sm:$0xf]
      %v953 = vld [vmem:[%s948 + $0x10] sm:$0xf]
      %v954 = vld [vmem:[%s948 + $0x14] sm:$0xf]
      %v955 = vld [vmem:[%s948 + $0x18] sm:$0xf]
      %v956 = vld [vmem:[%s948 + $0x1c] sm:$0xf]
      %v958 = vunpack.c.l.b16 %v520
      %v959 = vpack.c.b16 %v699, %v698
      %v960 = vpack.c.b16 %v701, %v700
      %v961 = vpack.c.b16 %v703, %v702
      %v962 = vpack.c.b16 %v958, %v704
      %v971 = vunpack.c.l.b16 %v949
      %v972 = vunpack.c.l.b16 %v950
      %v973 = vunpack.c.l.b16 %v951
      %v974 = vunpack.c.l.b16 %v952
      %v975 = vunpack.c.l.b16 %v953
      %v976 = vunpack.c.l.b16 %v954
      %v977 = vunpack.c.l.b16 %v955
      %v978 = vunpack.c.l.b16 %v956
      %v979 = vpack.c.b16 %v972, %v971
      %v980 = vpack.c.b16 %v974, %v973
      %v981 = vpack.c.b16 %v976, %v975
      %v982 = vpack.c.b16 %v978, %v977
      %v988 = vsel %vm611, %v959, 0
      %v991 = vsel %vm611, %v960, 0
      %v994 = vsel %vm611, %v961, 0
      %v997 = vsel %vm611, %v962, 0
      %999 = vmatprep.subr.bf16.mxu0 0
      %1000 = vmatpush1.bf16.msra.mxu0 0
      %1001 = vmatprep.subr.bf16.mxu0 0
      %1002 = vmatpush1.bf16.msra.mxu0 0
      %1003 = vmatprep.subr.bf16.mxu0 0
      %1004 = vmatpush1.bf16.msra.mxu0 0
      %1005 = vmatprep.subr.bf16.mxu0 0
      %1006 = vmatpush1.bf16.msra.mxu0 0
      %1007 = vmatprep.subr.bf16.mxu0 0
      %1008 = vmatpush1.bf16.msra.mxu0 %v982
      %1009 = vmatprep.subr.bf16.mxu0 0
      %1010 = vmatpush1.bf16.msra.mxu0 %v981
      %1011 = vmatprep.subr.bf16.mxu0 0
      %1012 = vmatpush1.bf16.msra.mxu0 %v980
      %1013 = vmatprep.subr.bf16.mxu0 0
      %1014 = vmatpush1.bf16.msra.mxu0 %v979
      %1015 = vmatprep.subr.bf16.mxu0 0
      %1016 = vmatpush2.bf16.msra.mxu0 0
      %1017 = vmatprep.subr.bf16.mxu0 0
      %1018 = vmatpush2.bf16.msra.mxu0 0
      %1019 = vmatprep.subr.bf16.mxu0 0
      %1020 = vmatpush2.bf16.msra.mxu0 0
      %1021 = vmatprep.subr.bf16.mxu0 0
      %1022 = vmatpush2.bf16.msra.mxu0 0
      %1023 = vmatprep.subr.bf16.mxu0 0
      %1024 = vmatpush2.bf16.msra.mxu0 0
      %1025 = vmatprep.subr.bf16.mxu0 0
      %1026 = vmatpush2.bf16.msra.mxu0 0
      %1027 = vmatprep.subr.bf16.mxu0 0
      %1028 = vmatpush2.bf16.msra.mxu0 0
      %1029 = vmatprep.subr.bf16.mxu0 0
      %1030 = vmatpush2.bf16.msra.mxu0 0
      %1031 = vmatprep.mubr.bf16.mxu0 0
      %1032 = vmatmul.mubr.bf16.gmra.mxu0 %v988
      %v1033 = vpop.f32.mrf.mxu0
      %v1034 = vadd.f32 0.0, %v1033
      %v1035 = vpop.f32.mrf.mxu0
      %v1036 = vpop.f32.mrf.mxu0
      %v1037 = vadd.f32 0.0, %v1036
      %v1038 = vpop.f32.mrf.mxu0
      %1039 = vmatprep.mubr.bf16.mxu0 0
      %1040 = vmatmul.mubr.bf16.gmra.mxu0 %v991
      %v1041 = vpop.f32.mrf.mxu0
      %v1042 = vadd.f32 0.0, %v1041
      %v1043 = vpop.f32.mrf.mxu0
      %v1044 = vpop.f32.mrf.mxu0
      %v1045 = vadd.f32 0.0, %v1044
      %v1046 = vpop.f32.mrf.mxu0
      %1047 = vmatprep.mubr.bf16.mxu0 0
      %1048 = vmatmul.mubr.bf16.gmra.mxu0 %v994
      %v1049 = vpop.f32.mrf.mxu0
      %v1050 = vadd.f32 0.0, %v1049
      %v1051 = vpop.f32.mrf.mxu0
      %v1052 = vpop.f32.mrf.mxu0
      %v1053 = vadd.f32 0.0, %v1052
      %v1054 = vpop.f32.mrf.mxu0
      %1055 = vmatprep.mubr.bf16.mxu0 0
      %1056 = vmatmul.mubr.bf16.gmra.mxu0 %v997
      %v1057 = vpop.f32.mrf.mxu0
      %v1058 = vadd.f32 0.0, %v1057
      %v1059 = vpop.f32.mrf.mxu0
      %v1060 = vpop.f32.mrf.mxu0
      %v1061 = vadd.f32 0.0, %v1060
      %v1062 = vpop.f32.mrf.mxu0
      %1063 = vdwg.mxu0
      %v1064 = vadd.f32 %v940, %v1034
      %v1065 = vadd.f32 %v941, %v1037
      %v1066 = vadd.f32 %v942, %v1042
      %v1067 = vadd.f32 %v943, %v1045
      %v1068 = vadd.f32 %v944, %v1050
      %v1069 = vadd.f32 %v945, %v1053
      %v1070 = vadd.f32 %v946, %v1058
      %v1071 = vadd.f32 %v947, %v1061
      %s1072 = scalar_lea.vmem %s3, 128
      %v1073 = vld [vmem:[%s1072] sm:$0xf]
      %v1074 = vld [vmem:[%s1072 + $0x4] sm:$0xf]
      %v1075 = vld [vmem:[%s1072 + $0x8] sm:$0xf]
      %v1076 = vld [vmem:[%s1072 + $0xc] sm:$0xf]
      %v1077 = vld [vmem:[%s1072 + $0x10] sm:$0xf]
      %v1078 = vld [vmem:[%s1072 + $0x14] sm:$0xf]
      %v1079 = vld [vmem:[%s1072 + $0x18] sm:$0xf]
      %v1080 = vld [vmem:[%s1072 + $0x1c] sm:$0xf]
      %v1081 = vpack.c.b16 %v411, %v410
      %v1082 = vpack.c.b16 %v413, %v412
      %v1083 = vpack.c.b16 %v415, %v414
      %v1084 = vpack.c.b16 %v417, %v416
      %v1093 = vunpack.c.l.b16 %v1073
      %v1094 = vunpack.c.l.b16 %v1074
      %v1095 = vunpack.c.l.b16 %v1075
      %v1096 = vunpack.c.l.b16 %v1076
      %v1097 = vunpack.c.l.b16 %v1077
      %v1098 = vunpack.c.l.b16 %v1078
      %v1099 = vunpack.c.l.b16 %v1079
      %v1100 = vunpack.c.l.b16 %v1080
      %v1101 = vpack.c.b16 %v1094, %v1093
      %v1102 = vpack.c.b16 %v1096, %v1095
      %v1103 = vpack.c.b16 %v1098, %v1097
      %v1104 = vpack.c.b16 %v1100, %v1099
      %v1110 = vsel %vm611, %v1081, 0
      %v1113 = vsel %vm611, %v1082, 0
      %v1116 = vsel %vm611, %v1083, 0
      %v1119 = vsel %vm611, %v1084, 0
      %1121 = vmatprep.subr.bf16.mxu0 0
      %1122 = vmatpush1.bf16.msra.mxu0 0
      %1123 = vmatprep.subr.bf16.mxu0 0
      %1124 = vmatpush1.bf16.msra.mxu0 0
      %1125 = vmatprep.subr.bf16.mxu0 0
      %1126 = vmatpush1.bf16.msra.mxu0 0
      %1127 = vmatprep.subr.bf16.mxu0 0
      %1128 = vmatpush1.bf16.msra.mxu0 0
      %1129 = vmatprep.subr.bf16.mxu0 0
      %1130 = vmatpush1.bf16.msra.mxu0 %v1104
      %1131 = vmatprep.subr.bf16.mxu0 0
      %1132 = vmatpush1.bf16.msra.mxu0 %v1103
      %1133 = vmatprep.subr.bf16.mxu0 0
      %1134 = vmatpush1.bf16.msra.mxu0 %v1102
      %1135 = vmatprep.subr.bf16.mxu0 0
      %1136 = vmatpush1.bf16.msra.mxu0 %v1101
      %1137 = vmatprep.subr.bf16.mxu0 0
      %1138 = vmatpush2.bf16.msra.mxu0 0
      %1139 = vmatprep.subr.bf16.mxu0 0
      %1140 = vmatpush2.bf16.msra.mxu0 0
      %1141 = vmatprep.subr.bf16.mxu0 0
      %1142 = vmatpush2.bf16.msra.mxu0 0
      %1143 = vmatprep.subr.bf16.mxu0 0
      %1144 = vmatpush2.bf16.msra.mxu0 0
      %1145 = vmatprep.subr.bf16.mxu0 0
      %1146 = vmatpush2.bf16.msra.mxu0 0
      %1147 = vmatprep.subr.bf16.mxu0 0
      %1148 = vmatpush2.bf16.msra.mxu0 0
      %1149 = vmatprep.subr.bf16.mxu0 0
      %1150 = vmatpush2.bf16.msra.mxu0 0
      %1151 = vmatprep.subr.bf16.mxu0 0
      %1152 = vmatpush2.bf16.msra.mxu0 0
      %1153 = vmatprep.mubr.bf16.mxu0 0
      %1154 = vmatmul.mubr.bf16.gmra.mxu0 %v1110
      %v1155 = vpop.f32.mrf.mxu0
      %v1156 = vadd.f32 0.0, %v1155
      %v1157 = vpop.f32.mrf.mxu0
      %v1158 = vpop.f32.mrf.mxu0
      %v1159 = vadd.f32 0.0, %v1158
      %v1160 = vpop.f32.mrf.mxu0
      %1161 = vmatprep.mubr.bf16.mxu0 0
      %1162 = vmatmul.mubr.bf16.gmra.mxu0 %v1113
      %v1163 = vpop.f32.mrf.mxu0
      %v1164 = vadd.f32 0.0, %v1163
      %v1165 = vpop.f32.mrf.mxu0
      %v1166 = vpop.f32.mrf.mxu0
      %v1167 = vadd.f32 0.0, %v1166
      %v1168 = vpop.f32.mrf.mxu0
      %1169 = vmatprep.mubr.bf16.mxu0 0
      %1170 = vmatmul.mubr.bf16.gmra.mxu0 %v1116
      %v1171 = vpop.f32.mrf.mxu0
      %v1172 = vadd.f32 0.0, %v1171
      %v1173 = vpop.f32.mrf.mxu0
      %v1174 = vpop.f32.mrf.mxu0
      %v1175 = vadd.f32 0.0, %v1174
      %v1176 = vpop.f32.mrf.mxu0
      %1177 = vmatprep.mubr.bf16.mxu0 0
      %1178 = vmatmul.mubr.bf16.gmra.mxu0 %v1119
      %v1179 = vpop.f32.mrf.mxu0
      %v1180 = vadd.f32 0.0, %v1179
      %v1181 = vpop.f32.mrf.mxu0
      %v1182 = vpop.f32.mrf.mxu0
      %v1183 = vadd.f32 0.0, %v1182
      %v1184 = vpop.f32.mrf.mxu0
      %1185 = vdwg.mxu0
      %v1186 = vadd.f32 %v1064, %v1156
      %v1187 = vadd.f32 %v1065, %v1159
      %v1188 = vadd.f32 %v1066, %v1164
      %v1189 = vadd.f32 %v1067, %v1167
      %v1190 = vadd.f32 %v1068, %v1172
      %v1191 = vadd.f32 %v1069, %v1175
      %v1192 = vadd.f32 %v1070, %v1180
      %v1193 = vadd.f32 %v1071, %v1183
      %s1194 = scalar_lea.vmem %s3, 160
      %v1195 = vld [vmem:[%s1194] sm:$0xf]
      %v1196 = vld [vmem:[%s1194 + $0x4] sm:$0xf]
      %v1197 = vld [vmem:[%s1194 + $0x8] sm:$0xf]
      %v1198 = vld [vmem:[%s1194 + $0xc] sm:$0xf]
      %v1199 = vld [vmem:[%s1194 + $0x10] sm:$0xf]
      %v1200 = vld [vmem:[%s1194 + $0x14] sm:$0xf]
      %v1201 = vld [vmem:[%s1194 + $0x18] sm:$0xf]
      %v1202 = vld [vmem:[%s1194 + $0x1c] sm:$0xf]
      %v1204 = vunpack.c.l.b16 %v563
      %v1205 = vpack.c.b16 %v829, %v828
      %v1206 = vpack.c.b16 %v831, %v830
      %v1207 = vpack.c.b16 %v833, %v832
      %v1208 = vpack.c.b16 %v1204, %v834
      %v1217 = vunpack.c.l.b16 %v1195
      %v1218 = vunpack.c.l.b16 %v1196
      %v1219 = vunpack.c.l.b16 %v1197
      %v1220 = vunpack.c.l.b16 %v1198
      %v1221 = vunpack.c.l.b16 %v1199
      %v1222 = vunpack.c.l.b16 %v1200
      %v1223 = vunpack.c.l.b16 %v1201
      %v1224 = vunpack.c.l.b16 %v1202
      %v1225 = vpack.c.b16 %v1218, %v1217
      %v1226 = vpack.c.b16 %v1220, %v1219
      %v1227 = vpack.c.b16 %v1222, %v1221
      %v1228 = vpack.c.b16 %v1224, %v1223
      %v1234 = vsel %vm611, %v1205, 0
      %v1237 = vsel %vm611, %v1206, 0
      %v1240 = vsel %vm611, %v1207, 0
      %v1243 = vsel %vm611, %v1208, 0
      %1245 = vmatprep.subr.bf16.mxu0 0
      %1246 = vmatpush1.bf16.msra.mxu0 0
      %1247 = vmatprep.subr.bf16.mxu0 0
      %1248 = vmatpush1.bf16.msra.mxu0 0
      %1249 = vmatprep.subr.bf16.mxu0 0
      %1250 = vmatpush1.bf16.msra.mxu0 0
      %1251 = vmatprep.subr.bf16.mxu0 0
      %1252 = vmatpush1.bf16.msra.mxu0 0
      %1253 = vmatprep.subr.bf16.mxu0 0
      %1254 = vmatpush1.bf16.msra.mxu0 %v1228
      %1255 = vmatprep.subr.bf16.mxu0 0
      %1256 = vmatpush1.bf16.msra.mxu0 %v1227
      %1257 = vmatprep.subr.bf16.mxu0 0
      %1258 = vmatpush1.bf16.msra.mxu0 %v1226
      %1259 = vmatprep.subr.bf16.mxu0 0
      %1260 = vmatpush1.bf16.msra.mxu0 %v1225
      %1261 = vmatprep.subr.bf16.mxu0 0
      %1262 = vmatpush2.bf16.msra.mxu0 0
      %1263 = vmatprep.subr.bf16.mxu0 0
      %1264 = vmatpush2.bf16.msra.mxu0 0
      %1265 = vmatprep.subr.bf16.mxu0 0
      %1266 = vmatpush2.bf16.msra.mxu0 0
      %1267 = vmatprep.subr.bf16.mxu0 0
      %1268 = vmatpush2.bf16.msra.mxu0 0
      %1269 = vmatprep.subr.bf16.mxu0 0
      %1270 = vmatpush2.bf16.msra.mxu0 0
      %1271 = vmatprep.subr.bf16.mxu0 0
      %1272 = vmatpush2.bf16.msra.mxu0 0
      %1273 = vmatprep.subr.bf16.mxu0 0
      %1274 = vmatpush2.bf16.msra.mxu0 0
      %1275 = vmatprep.subr.bf16.mxu0 0
      %1276 = vmatpush2.bf16.msra.mxu0 0
      %1277 = vmatprep.mubr.bf16.mxu0 0
      %1278 = vmatmul.mubr.bf16.gmra.mxu0 %v1234
      %v1279 = vpop.f32.mrf.mxu0
      %v1280 = vadd.f32 0.0, %v1279
      %v1281 = vpop.f32.mrf.mxu0
      %v1282 = vpop.f32.mrf.mxu0
      %v1283 = vadd.f32 0.0, %v1282
      %v1284 = vpop.f32.mrf.mxu0
      %1285 = vmatprep.mubr.bf16.mxu0 0
      %1286 = vmatmul.mubr.bf16.gmra.mxu0 %v1237
      %v1287 = vpop.f32.mrf.mxu0
      %v1288 = vadd.f32 0.0, %v1287
      %v1289 = vpop.f32.mrf.mxu0
      %v1290 = vpop.f32.mrf.mxu0
      %v1291 = vadd.f32 0.0, %v1290
      %v1292 = vpop.f32.mrf.mxu0
      %1293 = vmatprep.mubr.bf16.mxu0 0
      %1294 = vmatmul.mubr.bf16.gmra.mxu0 %v1240
      %v1295 = vpop.f32.mrf.mxu0
      %v1296 = vadd.f32 0.0, %v1295
      %v1297 = vpop.f32.mrf.mxu0
      %v1298 = vpop.f32.mrf.mxu0
      %v1299 = vadd.f32 0.0, %v1298
      %v1300 = vpop.f32.mrf.mxu0
      %1301 = vmatprep.mubr.bf16.mxu0 0
      %1302 = vmatmul.mubr.bf16.gmra.mxu0 %v1243
      %v1303 = vpop.f32.mrf.mxu0
      %v1304 = vadd.f32 0.0, %v1303
      %v1305 = vpop.f32.mrf.mxu0
      %v1306 = vpop.f32.mrf.mxu0
      %v1307 = vadd.f32 0.0, %v1306
      %v1308 = vpop.f32.mrf.mxu0
      %1309 = vdwg.mxu0
      %v1310 = vadd.f32 %v1186, %v1280
      %v1311 = vadd.f32 %v1187, %v1283
      %v1312 = vadd.f32 %v1188, %v1288
      %v1313 = vadd.f32 %v1189, %v1291
      %v1314 = vadd.f32 %v1190, %v1296
      %v1315 = vadd.f32 %v1191, %v1299
      %v1316 = vadd.f32 %v1192, %v1304
      %v1317 = vadd.f32 %v1193, %v1307
      %s1318 = scalar_lea.vmem %s3, 192
      %v1319 = vld [vmem:[%s1318] sm:$0xf]
      %v1320 = vld [vmem:[%s1318 + $0x4] sm:$0xf]
      %v1321 = vld [vmem:[%s1318 + $0x8] sm:$0xf]
      %v1322 = vld [vmem:[%s1318 + $0xc] sm:$0xf]
      %v1323 = vld [vmem:[%s1318 + $0x10] sm:$0xf]
      %v1324 = vld [vmem:[%s1318 + $0x14] sm:$0xf]
      %v1325 = vld [vmem:[%s1318 + $0x18] sm:$0xf]
      %v1326 = vld [vmem:[%s1318 + $0x1c] sm:$0xf]
      %v1328 = vunpack.c.l.b16 %v521
      %v1329 = vpack.c.b16 %v1328, %v958
      %v1338 = vunpack.c.l.b16 %v1319
      %v1339 = vunpack.c.l.b16 %v1320
      %v1340 = vunpack.c.l.b16 %v1321
      %v1341 = vunpack.c.l.b16 %v1322
      %v1342 = vunpack.c.l.b16 %v1323
      %v1343 = vunpack.c.l.b16 %v1324
      %v1344 = vunpack.c.l.b16 %v1325
      %v1345 = vunpack.c.l.b16 %v1326
      %v1346 = vpack.c.b16 %v1339, %v1338
      %v1347 = vpack.c.b16 %v1341, %v1340
      %v1348 = vpack.c.b16 %v1343, %v1342
      %v1349 = vpack.c.b16 %v1345, %v1344
      %v1355 = vsel %vm611, %v1329, 0
      %1357 = vmatprep.subr.bf16.mxu0 0
      %1358 = vmatpush1.bf16.msra.mxu0 0
      %1359 = vmatprep.subr.bf16.mxu0 0
      %1360 = vmatpush1.bf16.msra.mxu0 0
      %1361 = vmatprep.subr.bf16.mxu0 0
      %1362 = vmatpush1.bf16.msra.mxu0 0
      %1363 = vmatprep.subr.bf16.mxu0 0
      %1364 = vmatpush1.bf16.msra.mxu0 0
      %1365 = vmatprep.subr.bf16.mxu0 0
      %1366 = vmatpush1.bf16.msra.mxu0 %v1349
      %1367 = vmatprep.subr.bf16.mxu0 0
      %1368 = vmatpush1.bf16.msra.mxu0 %v1348
      %1369 = vmatprep.subr.bf16.mxu0 0
      %1370 = vmatpush1.bf16.msra.mxu0 %v1347
      %1371 = vmatprep.subr.bf16.mxu0 0
      %1372 = vmatpush1.bf16.msra.mxu0 %v1346
      %1373 = vmatprep.subr.bf16.mxu0 0
      %1374 = vmatpush2.bf16.msra.mxu0 0
      %1375 = vmatprep.subr.bf16.mxu0 0
      %1376 = vmatpush2.bf16.msra.mxu0 0
      %1377 = vmatprep.subr.bf16.mxu0 0
      %1378 = vmatpush2.bf16.msra.mxu0 0
      %1379 = vmatprep.subr.bf16.mxu0 0
      %1380 = vmatpush2.bf16.msra.mxu0 0
      %1381 = vmatprep.subr.bf16.mxu0 0
      %1382 = vmatpush2.bf16.msra.mxu0 0
      %1383 = vmatprep.subr.bf16.mxu0 0
      %1384 = vmatpush2.bf16.msra.mxu0 0
      %1385 = vmatprep.subr.bf16.mxu0 0
      %1386 = vmatpush2.bf16.msra.mxu0 0
      %1387 = vmatprep.subr.bf16.mxu0 0
      %1388 = vmatpush2.bf16.msra.mxu0 0
      %1389 = vmatprep.mubr.bf16.mxu0 0
      %1390 = vmatmul.mubr.bf16.gmra.mxu0 %v737
      %v1391 = vpop.f32.mrf.mxu0
      %v1392 = vadd.f32 0.0, %v1391
      %v1393 = vpop.f32.mrf.mxu0
      %v1394 = vpop.f32.mrf.mxu0
      %v1395 = vadd.f32 0.0, %v1394
      %v1396 = vpop.f32.mrf.mxu0
      %1397 = vmatprep.mubr.bf16.mxu0 0
      %1398 = vmatmul.mubr.bf16.gmra.mxu0 %v740
      %v1399 = vpop.f32.mrf.mxu0
      %v1400 = vadd.f32 0.0, %v1399
      %v1401 = vpop.f32.mrf.mxu0
      %v1402 = vpop.f32.mrf.mxu0
      %v1403 = vadd.f32 0.0, %v1402
      %v1404 = vpop.f32.mrf.mxu0
      %1405 = vmatprep.mubr.bf16.mxu0 0
      %1406 = vmatmul.mubr.bf16.gmra.mxu0 %v743
      %v1407 = vpop.f32.mrf.mxu0
      %v1408 = vadd.f32 0.0, %v1407
      %v1409 = vpop.f32.mrf.mxu0
      %v1410 = vpop.f32.mrf.mxu0
      %v1411 = vadd.f32 0.0, %v1410
      %v1412 = vpop.f32.mrf.mxu0
      %1413 = vmatprep.mubr.bf16.mxu0 0
      %1414 = vmatmul.mubr.bf16.gmra.mxu0 %v1355
      %v1415 = vpop.f32.mrf.mxu0
      %v1416 = vadd.f32 0.0, %v1415
      %v1417 = vpop.f32.mrf.mxu0
      %v1418 = vpop.f32.mrf.mxu0
      %v1419 = vadd.f32 0.0, %v1418
      %v1420 = vpop.f32.mrf.mxu0
      %1421 = vdwg.mxu0
      %v1422 = vadd.f32 %v1310, %v1392
      %v1423 = vadd.f32 %v1311, %v1395
      %v1424 = vadd.f32 %v1312, %v1400
      %v1425 = vadd.f32 %v1313, %v1403
      %v1426 = vadd.f32 %v1314, %v1408
      %v1427 = vadd.f32 %v1315, %v1411
      %v1428 = vadd.f32 %v1316, %v1416
      %v1429 = vadd.f32 %v1317, %v1419
      %s1430 = scalar_lea.vmem %s3, 224
      %v1431 = vld [vmem:[%s1430] sm:$0xf]
      %v1432 = vld [vmem:[%s1430 + $0x4] sm:$0xf]
      %v1433 = vld [vmem:[%s1430 + $0x8] sm:$0xf]
      %v1434 = vld [vmem:[%s1430 + $0xc] sm:$0xf]
      %v1435 = vld [vmem:[%s1430 + $0x10] sm:$0xf]
      %v1436 = vld [vmem:[%s1430 + $0x14] sm:$0xf]
      %v1437 = vld [vmem:[%s1430 + $0x18] sm:$0xf]
      %v1438 = vld [vmem:[%s1430 + $0x1c] sm:$0xf]
      %v1439 = vpack.c.b16 %v418, %v417
      %v1448 = vunpack.c.l.b16 %v1431
      %v1449 = vunpack.c.l.b16 %v1432
      %v1450 = vunpack.c.l.b16 %v1433
      %v1451 = vunpack.c.l.b16 %v1434
      %v1452 = vunpack.c.l.b16 %v1435
      %v1453 = vunpack.c.l.b16 %v1436
      %v1454 = vunpack.c.l.b16 %v1437
      %v1455 = vunpack.c.l.b16 %v1438
      %v1456 = vpack.c.b16 %v1449, %v1448
      %v1457 = vpack.c.b16 %v1451, %v1450
      %v1458 = vpack.c.b16 %v1453, %v1452
      %v1459 = vpack.c.b16 %v1455, %v1454
      %v1465 = vsel %vm611, %v1439, 0
      %1467 = vmatprep.subr.bf16.mxu0 0
      %1468 = vmatpush1.bf16.msra.mxu0 0
      %1469 = vmatprep.subr.bf16.mxu0 0
      %1470 = vmatpush1.bf16.msra.mxu0 0
      %1471 = vmatprep.subr.bf16.mxu0 0
      %1472 = vmatpush1.bf16.msra.mxu0 0
      %1473 = vmatprep.subr.bf16.mxu0 0
      %1474 = vmatpush1.bf16.msra.mxu0 0
      %1475 = vmatprep.subr.bf16.mxu0 0
      %1476 = vmatpush1.bf16.msra.mxu0 %v1459
      %1477 = vmatprep.subr.bf16.mxu0 0
      %1478 = vmatpush1.bf16.msra.mxu0 %v1458
      %1479 = vmatprep.subr.bf16.mxu0 0
      %1480 = vmatpush1.bf16.msra.mxu0 %v1457
      %1481 = vmatprep.subr.bf16.mxu0 0
      %1482 = vmatpush1.bf16.msra.mxu0 %v1456
      %1483 = vmatprep.subr.bf16.mxu0 0
      %1484 = vmatpush2.bf16.msra.mxu0 0
      %1485 = vmatprep.subr.bf16.mxu0 0
      %1486 = vmatpush2.bf16.msra.mxu0 0
      %1487 = vmatprep.subr.bf16.mxu0 0
      %1488 = vmatpush2.bf16.msra.mxu0 0
      %1489 = vmatprep.subr.bf16.mxu0 0
      %1490 = vmatpush2.bf16.msra.mxu0 0
      %1491 = vmatprep.subr.bf16.mxu0 0
      %1492 = vmatpush2.bf16.msra.mxu0 0
      %1493 = vmatprep.subr.bf16.mxu0 0
      %1494 = vmatpush2.bf16.msra.mxu0 0
      %1495 = vmatprep.subr.bf16.mxu0 0
      %1496 = vmatpush2.bf16.msra.mxu0 0
      %1497 = vmatprep.subr.bf16.mxu0 0
      %1498 = vmatpush2.bf16.msra.mxu0 0
      %1499 = vmatprep.mubr.bf16.mxu0 0
      %1500 = vmatmul.mubr.bf16.gmra.mxu0 %v616
      %v1501 = vpop.f32.mrf.mxu0
      %v1502 = vadd.f32 0.0, %v1501
      %v1503 = vpop.f32.mrf.mxu0
      %v1504 = vpop.f32.mrf.mxu0
      %v1505 = vadd.f32 0.0, %v1504
      %v1506 = vpop.f32.mrf.mxu0
      %1507 = vmatprep.mubr.bf16.mxu0 0
      %1508 = vmatmul.mubr.bf16.gmra.mxu0 %v619
      %v1509 = vpop.f32.mrf.mxu0
      %v1510 = vadd.f32 0.0, %v1509
      %v1511 = vpop.f32.mrf.mxu0
      %v1512 = vpop.f32.mrf.mxu0
      %v1513 = vadd.f32 0.0, %v1512
      %v1514 = vpop.f32.mrf.mxu0
      %1515 = vmatprep.mubr.bf16.mxu0 0
      %1516 = vmatmul.mubr.bf16.gmra.mxu0 %v622
      %v1517 = vpop.f32.mrf.mxu0
      %v1518 = vadd.f32 0.0, %v1517
      %v1519 = vpop.f32.mrf.mxu0
      %v1520 = vpop.f32.mrf.mxu0
      %v1521 = vadd.f32 0.0, %v1520
      %v1522 = vpop.f32.mrf.mxu0
      %1523 = vmatprep.mubr.bf16.mxu0 0
      %1524 = vmatmul.mubr.bf16.gmra.mxu0 %v1465
      %v1525 = vpop.f32.mrf.mxu0
      %v1526 = vadd.f32 0.0, %v1525
      %v1527 = vpop.f32.mrf.mxu0
      %v1528 = vpop.f32.mrf.mxu0
      %v1529 = vadd.f32 0.0, %v1528
      %v1530 = vpop.f32.mrf.mxu0
      %1531 = vdwg.mxu0
      %v1532 = vadd.f32 %v1422, %v1502
      %v1533 = vadd.f32 %v1423, %v1505
      %v1534 = vadd.f32 %v1424, %v1510
      %v1535 = vadd.f32 %v1425, %v1513
      %v1536 = vadd.f32 %v1426, %v1518
      %v1537 = vadd.f32 %v1427, %v1521
      %v1538 = vadd.f32 %v1428, %v1526
      %v1539 = vadd.f32 %v1429, %v1529
      %s1540 = scalar_lea.vmem %s3, 256
      %v1541 = vld [vmem:[%s1540] sm:$0xf]
      %v1542 = vld [vmem:[%s1540 + $0x4] sm:$0xf]
      %v1543 = vld [vmem:[%s1540 + $0x8] sm:$0xf]
      %v1544 = vld [vmem:[%s1540 + $0xc] sm:$0xf]
      %v1545 = vld [vmem:[%s1540 + $0x10] sm:$0xf]
      %v1546 = vld [vmem:[%s1540 + $0x14] sm:$0xf]
      %v1547 = vld [vmem:[%s1540 + $0x18] sm:$0xf]
      %v1548 = vld [vmem:[%s1540 + $0x1c] sm:$0xf]
      %v1550 = vunpack.c.l.b16 %v564
      %v1551 = vpack.c.b16 %v1550, %v1204
      %v1560 = vunpack.c.l.b16 %v1541
      %v1561 = vunpack.c.l.b16 %v1542
      %v1562 = vunpack.c.l.b16 %v1543
      %v1563 = vunpack.c.l.b16 %v1544
      %v1564 = vunpack.c.l.b16 %v1545
      %v1565 = vunpack.c.l.b16 %v1546
      %v1566 = vunpack.c.l.b16 %v1547
      %v1567 = vunpack.c.l.b16 %v1548
      %v1568 = vpack.c.b16 %v1561, %v1560
      %v1569 = vpack.c.b16 %v1563, %v1562
      %v1570 = vpack.c.b16 %v1565, %v1564
      %v1571 = vpack.c.b16 %v1567, %v1566
      %v1577 = vsel %vm611, %v1551, 0
      %1579 = vmatprep.subr.bf16.mxu0 0
      %1580 = vmatpush1.bf16.msra.mxu0 0
      %1581 = vmatprep.subr.bf16.mxu0 0
      %1582 = vmatpush1.bf16.msra.mxu0 0
      %1583 = vmatprep.subr.bf16.mxu0 0
      %1584 = vmatpush1.bf16.msra.mxu0 0
      %1585 = vmatprep.subr.bf16.mxu0 0
      %1586 = vmatpush1.bf16.msra.mxu0 0
      %1587 = vmatprep.subr.bf16.mxu0 0
      %1588 = vmatpush1.bf16.msra.mxu0 %v1571
      %1589 = vmatprep.subr.bf16.mxu0 0
      %1590 = vmatpush1.bf16.msra.mxu0 %v1570
      %1591 = vmatprep.subr.bf16.mxu0 0
      %1592 = vmatpush1.bf16.msra.mxu0 %v1569
      %1593 = vmatprep.subr.bf16.mxu0 0
      %1594 = vmatpush1.bf16.msra.mxu0 %v1568
      %1595 = vmatprep.subr.bf16.mxu0 0
      %1596 = vmatpush2.bf16.msra.mxu0 0
      %1597 = vmatprep.subr.bf16.mxu0 0
      %1598 = vmatpush2.bf16.msra.mxu0 0
      %1599 = vmatprep.subr.bf16.mxu0 0
      %1600 = vmatpush2.bf16.msra.mxu0 0
      %1601 = vmatprep.subr.bf16.mxu0 0
      %1602 = vmatpush2.bf16.msra.mxu0 0
      %1603 = vmatprep.subr.bf16.mxu0 0
      %1604 = vmatpush2.bf16.msra.mxu0 0
      %1605 = vmatprep.subr.bf16.mxu0 0
      %1606 = vmatpush2.bf16.msra.mxu0 0
      %1607 = vmatprep.subr.bf16.mxu0 0
      %1608 = vmatpush2.bf16.msra.mxu0 0
      %1609 = vmatprep.subr.bf16.mxu0 0
      %1610 = vmatpush2.bf16.msra.mxu0 0
      %1611 = vmatprep.mubr.bf16.mxu0 0
      %1612 = vmatmul.mubr.bf16.gmra.mxu0 %v867
      %v1613 = vpop.f32.mrf.mxu0
      %v1614 = vadd.f32 0.0, %v1613
      %v1615 = vpop.f32.mrf.mxu0
      %v1616 = vpop.f32.mrf.mxu0
      %v1617 = vadd.f32 0.0, %v1616
      %v1618 = vpop.f32.mrf.mxu0
      %1619 = vmatprep.mubr.bf16.mxu0 0
      %1620 = vmatmul.mubr.bf16.gmra.mxu0 %v870
      %v1621 = vpop.f32.mrf.mxu0
      %v1622 = vadd.f32 0.0, %v1621
      %v1623 = vpop.f32.mrf.mxu0
      %v1624 = vpop.f32.mrf.mxu0
      %v1625 = vadd.f32 0.0, %v1624
      %v1626 = vpop.f32.mrf.mxu0
      %1627 = vmatprep.mubr.bf16.mxu0 0
      %1628 = vmatmul.mubr.bf16.gmra.mxu0 %v873
      %v1629 = vpop.f32.mrf.mxu0
      %v1630 = vadd.f32 0.0, %v1629
      %v1631 = vpop.f32.mrf.mxu0
      %v1632 = vpop.f32.mrf.mxu0
      %v1633 = vadd.f32 0.0, %v1632
      %v1634 = vpop.f32.mrf.mxu0
      %1635 = vmatprep.mubr.bf16.mxu0 0
      %1636 = vmatmul.mubr.bf16.gmra.mxu0 %v1577
      %v1637 = vpop.f32.mrf.mxu0
      %v1638 = vadd.f32 0.0, %v1637
      %v1639 = vpop.f32.mrf.mxu0
      %v1640 = vpop.f32.mrf.mxu0
      %v1641 = vadd.f32 0.0, %v1640
      %v1642 = vpop.f32.mrf.mxu0
      %1643 = vdwg.mxu0
      %v1644 = vadd.f32 %v1532, %v1614
      %v1645 = vadd.f32 %v1533, %v1617
      %v1646 = vadd.f32 %v1534, %v1622
      %v1647 = vadd.f32 %v1535, %v1625
      %v1648 = vadd.f32 %v1536, %v1630
      %v1649 = vadd.f32 %v1537, %v1633
      %v1650 = vadd.f32 %v1538, %v1638
      %v1651 = vadd.f32 %v1539, %v1641
      %v1653 = vlaneseq
      %v1654 = vshrl.u32 %v1653, 7
      %v1655 = vsub.s32 0, %v1654
      %v1656 = vrot.slane %v565, %v1655
      %v1658 = vadd.f32 %v1644, %v1656
      %v1659 = vadd.f32 %v1645, %v1656
      %v1660 = vadd.f32 %v1646, %v1656
      %v1661 = vadd.f32 %v1647, %v1656
      %v1662 = vadd.f32 %v1648, %v1656
      %v1663 = vadd.f32 %v1649, %v1656
      %v1664 = vadd.f32 %v1650, %v1656
      %v1665 = vadd.f32 %v1651, %v1656
      %v1666 = vmax.f32 %v1658, 0.0
      %v1667 = vmax.f32 %v1659, 0.0
      %v1668 = vmax.f32 %v1660, 0.0
      %v1669 = vmax.f32 %v1661, 0.0
      %v1670 = vmax.f32 %v1662, 0.0
      %v1671 = vmax.f32 %v1663, 0.0
      %v1672 = vmax.f32 %v1664, 0.0
      %v1673 = vmax.f32 %v1665, 0.0
      %v1674 = vpack.c.bf16 %v1667, %v1666
      %v1675 = vpack.c.bf16 %v1669, %v1668
      %v1676 = vpack.c.bf16 %v1671, %v1670
      %v1677 = vpack.c.bf16 %v1673, %v1672
      %v1682 = vunpack.c.l.b16 %v1674
      %v1683 = vunpack.c.h.b16 %v1674
      %v1684 = vunpack.c.l.b16 %v1675
      %v1685 = vunpack.c.h.b16 %v1675
      %v1686 = vunpack.c.l.b16 %v1676
      %v1687 = vunpack.c.h.b16 %v1676
      %v1688 = vunpack.c.l.b16 %v1677
      %v1689 = vunpack.c.h.b16 %v1677
      %v1690 = vpack.c.b16 %v1682, %v1682
      %v1691 = vpack.c.b16 %v1683, %v1683
      %v1692 = vpack.c.b16 %v1684, %v1684
      %v1693 = vpack.c.b16 %v1685, %v1685
      %v1694 = vpack.c.b16 %v1686, %v1686
      %v1695 = vpack.c.b16 %v1687, %v1687
      %v1696 = vpack.c.b16 %v1688, %v1688
      %v1697 = vpack.c.b16 %v1689, %v1689
      %1706 = vst [vmem:[%s380] sm:$0xf] %v1690
      %1707 = vst [vmem:[%s380 + $0x4] sm:$0xf] %v1691
      %1708 = vst [vmem:[%s380 + $0x8] sm:$0xf] %v1692
      %1709 = vst [vmem:[%s380 + $0xc] sm:$0xf] %v1693
      %1710 = vst [vmem:[%s380 + $0x10] sm:$0xf] %v1694
      %1711 = vst [vmem:[%s380 + $0x14] sm:$0xf] %v1695
      %1712 = vst [vmem:[%s380 + $0x18] sm:$0xf] %v1696
      %1713 = vst [vmem:[%s380 + $0x1c] sm:$0xf] %v1697
      %s1714 = smul.u32 8, %s21
      %p1715 = scmp.lt.s32.totalorder %s20, 1
      %s1716 = scalar_select %p1715, %s20, 1
      %p1717 = scmp.lt.s32.totalorder %s1714, 7
      %s1718 = scalar_select %p1717, %s1714, 7
      %s1719 = smul.addr %s1716, 8
      %s1720 = sadd.s32 %s1718, %s1719
      %s1721 = smul.addr %s1720, 4
      %s1722 = scalar_lea.vmem %s5, %s1721
      // Predicated region
      $region41: #{vggnet_forward.6} parent=39 // pred_check
        %p1723 = pneg %p190
      $region42: #{vggnet_forward.6} parent=39 // pred_check_branch
        %1725 = sbr.rel (%p1723) target = $region44
      $region43: #{vggnet_forward.6} parent=39 // pred_region
        %s1726 = smul.u32 8, %s21
      $region44: #{vggnet_forward.6} parent=39 // pred_fallthru
        _
    $region40: #{vggnet_forward.6} parent=5 // pred_fallthru
      _
    %p1727 = scmp.le.s32.totalorder 2, %s11
    // Predicated region
    $region45: #{vggnet_forward.6} parent=5 // pred_check
      %p1728 = pneg %p1727
    $region46: #{vggnet_forward.6} parent=5 // pred_check_branch
      %1730 = sbr.rel (%p1728) target = $region48
    $region47: #{vggnet_forward.6} parent=5 // pred_region
      %s1731 = ssub.s32 %s11, 2
      // Predicated region
      $region49: #{vggnet_forward.6} parent=47 // pred_check
        %p1732 = pneg %p196
      $region50: #{vggnet_forward.6} parent=47 // pred_check_branch
        %1734 = sbr.rel (%p1732) target = $region52
      $region51: #{vggnet_forward.6} parent=47 // pred_region
        %s1735 = smul.u32 8, %s23
        %p1736 = scmp.lt.s32.totalorder %s22, 1
        %s1737 = scalar_select %p1736, %s22, 1
        %p1738 = scmp.lt.s32.totalorder %s1735, 7
        %s1739 = scalar_select %p1738, %s1735, 7
        %s1740 = smul.addr %s1737, 8
        %s1741 = sadd.s32 %s1739, %s1740
        %s1742 = smul.addr %s1741, 4
        %s1743 = scalar_lea.vmem %s5, %s1742
      $region52: #{vggnet_forward.6} parent=47 // pred_fallthru
        _
    $region48: #{vggnet_forward.6} parent=5 // pred_fallthru
      _
  $region6: #{vggnet_forward.6} parent=0 // loop_footer
    %s15 = sadd.s32 1, %s11
  $region7: #{vggnet_forward.6} parent=0 // loop_footer_branch
    %10 = sbr.rel target = $region3
  $region8: #{vggnet_forward.6} parent=0 // loop_exit
    _

// kernel: vggnet_forward.7
$region0: #{vggnet_forward.7}
  #allocation0 [shape = 'u32[]', space=smem, size = 0x4, offset = 0x4, fixed_abs, tag = 'smem constant byte address 0x4 - core index']
  #allocation1 [shape = 'u32[144,128]{1,0:T(1,128)}', space=vmem, size = 0x12000, scoped, tag = 'internal scratch']
  %s0 = inlined_call_operand.vmem [shape: bf16[2,8,8,128], index: 0, kind: input, shape index: {}, may-alias: {0,1,2}]
  %s1 = inlined_call_operand.vmem [shape: bf16[2,8,8,128], index: 1, kind: input, shape index: {}, may-alias: {0,1,2}]
  %s2 = inlined_call_operand.vmem [shape: bf16[2,8,8,128], index: 2, kind: input, shape index: {}, may-alias: {0,1,2}]
  %s3 = inlined_call_operand.vmem [shape: bf16[9,128,128], index: 3, kind: input, shape index: {}]
  %s4 = inlined_call_operand.vmem [shape: f32[1,128], index: 4, kind: input, shape index: {}]
  %s5 = inlined_call_operand.vmem [shape: bf16[2,64,128], index: 5, kind: output, shape index: {}]
  %s6 = sld [smem:[#allocation0]]
  $region53: #{vggnet_forward.7} parent=0
    _
  %s8 = ssub.s32 1, %s6
  %s9 = scalar_select 0, %s8, %s6
  loop: start=0, step=1, limit=4
  $region2: #{vggnet_forward.7} parent=0 // loop_pre_header
    _
  $region3: #{vggnet_forward.7} parent=0 // loop_header
    %s11 = sphi 0, %s15
    %p12 = scmp.ge.s32.totalorder %s11, 4
    %s18 = sphi 0, %s30
    %s19 = sphi 0, %s26
    %s20 = sphi 0, %s18
    %s21 = sphi 0, %s19
    %s22 = sphi 0, %s20
    %s23 = sphi 0, %s21
    %s35 = sphi 0, %s37
    %s38 = sphi 0, %s35
    %s39 = sphi 0, %s38
    %s55 = sphi 0, %s39
    %s71 = sphi 0, %s73
    %s74 = sphi 0, %s71
    %s75 = sphi 0, %s74
    %s91 = sphi 0, %s75
    %s107 = sphi 0, %s109
    %s110 = sphi 0, %s107
    %s111 = sphi 0, %s110
    %s127 = sphi 0, %s111
    %s131 = sphi 0, %s131
    %s133 = sphi 0, %s131
    %s134 = sphi 0, %s133
    %s148 = sphi 0, %s134
    %s152 = sphi 0, %s152
    %s154 = sphi 0, %s152
    %s155 = sphi 0, %s154
    %s169 = sphi 0, %s155
    %s177 = sphi 0, %s179
    %s180 = sphi 0, %s177
    %s181 = sphi 0, %s180
    %s197 = sphi 0, %s181
  $region4: #{vggnet_forward.7} parent=0 // loop_header_branch
    %14 = sbr.rel (%p12) target = $region8
  $region5: #{vggnet_forward.7} parent=0 // loop_body
    %s16 = ssub.s32 %s11, 1
    %s17 = ssub.s32 %s11, 2
    %s24 = sadd.s32 1, %s19
    %p25 = scmp.ge.s32.totalorder %s24, 1
    %s26 = scalar_select %p25, 0, %s24
    %s27 = sadd.s32 1, %s18
    %s28 = scalar_select %p25, %s27, %s18
    %p29 = scmp.ge.s32.totalorder %s28, 2
    %s30 = scalar_select %p29, 0, %s28
    %s31 = ssub.s32 %s18, %s30
    %s32 = ssub.s32 %s19, %s26
    %s33 = sor.u32 %s31, %s32
    %p34 = scmp.eq.s32.totalorder %s33, 0
    %s36 = sadd.s32 %s35, 1
    %s37 = scalar_select %p34, %s35, %s36
    %p40 = pneg %p34
    %p41 = scmp.eq.s32.totalorder %s11, 1
    %p42 = por %p40, %p41
    %p43 = scmp.ne.s32.totalorder %s35, %s38
    %p44 = scmp.eq.s32.totalorder %s11, 0
    %p45 = por %p43, %p44
    %p46 = scmp.ne.s32.totalorder %s35, %s38
    %p47 = scmp.eq.s32.totalorder %s16, 1
    %p48 = por %p46, %p47
    %p49 = scmp.ne.s32.totalorder %s38, %s39
    %p50 = scmp.eq.s32.totalorder %s16, 0
    %p51 = por %p49, %p50
    %p52 = scmp.ne.s32.totalorder %s38, %s39
    %p53 = scmp.eq.s32.totalorder %s17, 1
    %p54 = por %p52, %p53
    %p56 = scmp.ne.s32.totalorder %s39, %s55
    %p57 = scmp.eq.s32.totalorder %s17, 0
    %p58 = por %p56, %p57
    %s59 = smul.u32 %s19, 8
    %s60 = ssub.s32 %s59, 1
    %p61 = scmp.gt.s32.totalorder %s60, 0
    %s62 = scalar_select %p61, %s60, 0
    %s63 = smul.u32 %s26, 8
    %s64 = ssub.s32 %s63, 1
    %p65 = scmp.gt.s32.totalorder %s64, 0
    %s66 = scalar_select %p65, %s64, 0
    %s67 = ssub.s32 %s18, %s30
    %s68 = ssub.s32 %s62, %s66
    %s69 = sor.u32 %s67, %s68
    %p70 = scmp.eq.s32.totalorder %s69, 0
    %s72 = sadd.s32 %s71, 1
    %s73 = scalar_select %p70, %s71, %s72
    %p76 = pneg %p70
    %p77 = scmp.eq.s32.totalorder %s11, 1
    %p78 = por %p76, %p77
    %p79 = scmp.ne.s32.totalorder %s71, %s74
    %p80 = scmp.eq.s32.totalorder %s11, 0
    %p81 = por %p79, %p80
    %p82 = scmp.ne.s32.totalorder %s71, %s74
    %p83 = scmp.eq.s32.totalorder %s16, 1
    %p84 = por %p82, %p83
    %p85 = scmp.ne.s32.totalorder %s74, %s75
    %p86 = scmp.eq.s32.totalorder %s16, 0
    %p87 = por %p85, %p86
    %p88 = scmp.ne.s32.totalorder %s74, %s75
    %p89 = scmp.eq.s32.totalorder %s17, 1
    %p90 = por %p88, %p89
    %p92 = scmp.ne.s32.totalorder %s75, %s91
    %p93 = scmp.eq.s32.totalorder %s17, 0
    %p94 = por %p92, %p93
    %s95 = smul.u32 %s19, 8
    %s96 = sadd.s32 %s95, 8
    %p97 = scmp.lt.s32.totalorder %s96, 7
    %s98 = scalar_select %p97, %s96, 7
    %s99 = smul.u32 %s26, 8
    %s100 = sadd.s32 %s99, 8
    %p101 = scmp.lt.s32.totalorder %s100, 7
    %s102 = scalar_select %p101, %s100, 7
    %s103 = ssub.s32 %s18, %s30
    %s104 = ssub.s32 %s98, %s102
    %s105 = sor.u32 %s103, %s104
    %p106 = scmp.eq.s32.totalorder %s105, 0
    %s108 = sadd.s32 %s107, 1
    %s109 = scalar_select %p106, %s107, %s108
    %p112 = pneg %p106
    %p113 = scmp.eq.s32.totalorder %s11, 1
    %p114 = por %p112, %p113
    %p115 = scmp.ne.s32.totalorder %s107, %s110
    %p116 = scmp.eq.s32.totalorder %s11, 0
    %p117 = por %p115, %p116
    %p118 = scmp.ne.s32.totalorder %s107, %s110
    %p119 = scmp.eq.s32.totalorder %s16, 1
    %p120 = por %p118, %p119
    %p121 = scmp.ne.s32.totalorder %s110, %s111
    %p122 = scmp.eq.s32.totalorder %s16, 0
    %p123 = por %p121, %p122
    %p124 = scmp.ne.s32.totalorder %s110, %s111
    %p125 = scmp.eq.s32.totalorder %s17, 1
    %p126 = por %p124, %p125
    %p128 = scmp.ne.s32.totalorder %s111, %s127
    %p129 = scmp.eq.s32.totalorder %s17, 0
    %p130 = por %p128, %p129
    %s132 = sadd.s32 %s131, 1
    %p135 = scmp.eq.s32.totalorder %s11, 1
    %p136 = scmp.ne.s32.totalorder %s131, %s133
    %p137 = scmp.eq.s32.totalorder %s11, 0
    %p138 = por %p136, %p137
    %p139 = scmp.ne.s32.totalorder %s131, %s133
    %p140 = scmp.eq.s32.totalorder %s16, 1
    %p141 = por %p139, %p140
    %p142 = scmp.ne.s32.totalorder %s133, %s134
    %p143 = scmp.eq.s32.totalorder %s16, 0
    %p144 = por %p142, %p143
    %p145 = scmp.ne.s32.totalorder %s133, %s134
    %p146 = scmp.eq.s32.totalorder %s17, 1
    %p147 = por %p145, %p146
    %p149 = scmp.ne.s32.totalorder %s134, %s148
    %p150 = scmp.eq.s32.totalorder %s17, 0
    %p151 = por %p149, %p150
    %s153 = sadd.s32 %s152, 1
    %p156 = scmp.eq.s32.totalorder %s11, 1
    %p157 = scmp.ne.s32.totalorder %s152, %s154
    %p158 = scmp.eq.s32.totalorder %s11, 0
    %p159 = por %p157, %p158
    %p160 = scmp.ne.s32.totalorder %s152, %s154
    %p161 = scmp.eq.s32.totalorder %s16, 1
    %p162 = por %p160, %p161
    %p163 = scmp.ne.s32.totalorder %s154, %s155
    %p164 = scmp.eq.s32.totalorder %s16, 0
    %p165 = por %p163, %p164
    %p166 = scmp.ne.s32.totalorder %s154, %s155
    %p167 = scmp.eq.s32.totalorder %s17, 1
    %p168 = por %p166, %p167
    %p170 = scmp.ne.s32.totalorder %s155, %s169
    %p171 = scmp.eq.s32.totalorder %s17, 0
    %p172 = por %p170, %p171
    %s173 = ssub.s32 %s18, %s30
    %s174 = ssub.s32 %s19, %s26
    %s175 = sor.u32 %s173, %s174
    %p176 = scmp.eq.s32.totalorder %s175, 0
    %s178 = sadd.s32 %s177, 1
    %s179 = scalar_select %p176, %s177, %s178
    %p182 = pneg %p176
    %p183 = scmp.eq.s32.totalorder %s11, 1
    %p184 = por %p182, %p183
    %p185 = scmp.ne.s32.totalorder %s177, %s180
    %p186 = scmp.eq.s32.totalorder %s11, 0
    %p187 = por %p185, %p186
    %p188 = scmp.ne.s32.totalorder %s177, %s180
    %p189 = scmp.eq.s32.totalorder %s16, 1
    %p190 = por %p188, %p189
    %p191 = scmp.ne.s32.totalorder %s180, %s181
    %p192 = scmp.eq.s32.totalorder %s16, 0
    %p193 = por %p191, %p192
    %p194 = scmp.ne.s32.totalorder %s180, %s181
    %p195 = scmp.eq.s32.totalorder %s17, 1
    %p196 = por %p194, %p195
    %p198 = scmp.ne.s32.totalorder %s181, %s197
    %p199 = scmp.eq.s32.totalorder %s17, 0
    %p200 = por %p198, %p199
    %p201 = scmp.le.s32.totalorder 1, %s11
    %p202 = scmp.lt.s32.totalorder %s11, 3
    %p203 = pnand %p201, %p202
    %p204 = pneg %p203
    // Predicated region
    $region9: #{vggnet_forward.7} parent=5 // pred_check
      _
    $region10: #{vggnet_forward.7} parent=5 // pred_check_branch
      %206 = sbr.rel (%p203) target = $region12
    $region11: #{vggnet_forward.7} parent=5 // pred_region
      %s207 = ssub.s32 %s11, 1
      // Predicated region
      $region13: #{vggnet_forward.7} parent=11 // pred_check
        %p208 = pneg %p144
      $region14: #{vggnet_forward.7} parent=11 // pred_check_branch
        %210 = sbr.rel (%p208) target = $region16
      $region15: #{vggnet_forward.7} parent=11 // pred_region
        _
      $region16: #{vggnet_forward.7} parent=11 // pred_fallthru
        _
      // Predicated region
      $region17: #{vggnet_forward.7} parent=11 // pred_check
        %p211 = pneg %p165
      $region18: #{vggnet_forward.7} parent=11 // pred_check_branch
        %213 = sbr.rel (%p211) target = $region20
      $region19: #{vggnet_forward.7} parent=11 // pred_region
        _
      $region20: #{vggnet_forward.7} parent=11 // pred_fallthru
        _
    $region12: #{vggnet_forward.7} parent=5 // pred_fallthru
      _
    %p214 = scmp.lt.s32.totalorder %s11, 2
    // Predicated region
    $region21: #{vggnet_forward.7} parent=5 // pred_check
      %p215 = pneg %p214
    $region22: #{vggnet_forward.7} parent=5 // pred_check_branch
      %217 = sbr.rel (%p215) target = $region24
    $region23: #{vggnet_forward.7} parent=5 // pred_region
      // Predicated region
      $region25: #{vggnet_forward.7} parent=23 // pred_check
        %p218 = pneg %p45
      $region26: #{vggnet_forward.7} parent=23 // pred_check_branch
        %220 = sbr.rel (%p218) target = $region28
      $region27: #{vggnet_forward.7} parent=23 // pred_region
        %s221 = smul.u32 8, %s19
        %p222 = scmp.lt.s32.totalorder %s18, 1
        %s223 = scalar_select %p222, %s18, 1
        %p224 = scmp.lt.s32.totalorder %s221, 7
        %s225 = scalar_select %p224, %s221, 7
        %s226 = smul.addr %s223, 8
        %s227 = sadd.s32 %s225, %s226
        %s228 = smul.addr %s227, 4
        %s229 = scalar_lea.vmem %s0, %s228
        %s230 = smul.u32 8, %s19
      $region28: #{vggnet_forward.7} parent=23 // pred_fallthru
        _
      // Predicated region
      $region29: #{vggnet_forward.7} parent=23 // pred_check
        %p231 = pneg %p81
      $region30: #{vggnet_forward.7} parent=23 // pred_check_branch
        %233 = sbr.rel (%p231) target = $region32
      $region31: #{vggnet_forward.7} parent=23 // pred_region
        %s234 = smul.u32 %s19, 8
        %s235 = ssub.s32 %s234, 1
        %p236 = scmp.gt.s32.totalorder %s235, 0
        %s237 = scalar_select %p236, %s235, 0
        %p238 = scmp.lt.s32.totalorder %s18, 1
        %s239 = scalar_select %p238, %s18, 1
        %p240 = scmp.lt.s32.totalorder %s237, 7
        %s241 = scalar_select %p240, %s237, 7
        %s242 = smul.addr %s239, 8
        %s243 = sadd.s32 %s241, %s242
        %s244 = smul.addr %s243, 4
        %s245 = scalar_lea.vmem %s1, %s244
        %s246 = smul.u32 %s19, 8
        %s247 = ssub.s32 %s246, 1
        %p248 = scmp.gt.s32.totalorder %s247, 0
        %s249 = scalar_select %p248, %s247, 0
      $region32: #{vggnet_forward.7} parent=23 // pred_fallthru
        _
      // Predicated region
      $region33: #{vggnet_forward.7} parent=23 // pred_check
        %p250 = pneg %p117
      $region34: #{vggnet_forward.7} parent=23 // pred_check_branch
        %252 = sbr.rel (%p250) target = $region36
      $region35: #{vggnet_forward.7} parent=23 // pred_region
        %s253 = smul.u32 %s19, 8
        %s254 = sadd.s32 %s253, 8
        %p255 = scmp.lt.s32.totalorder %s254, 7
        %s256 = scalar_select %p255, %s254, 7
        %p257 = scmp.lt.s32.totalorder %s18, 1
        %s258 = scalar_select %p257, %s18, 1
        %p259 = scmp.lt.s32.totalorder %s256, 7
        %s260 = scalar_select %p259, %s256, 7
        %s261 = smul.addr %s258, 8
        %s262 = sadd.s32 %s260, %s261
        %s263 = smul.addr %s262, 4
        %s264 = scalar_lea.vmem %s2, %s263
        %s265 = smul.u32 %s19, 8
        %s266 = sadd.s32 %s265, 8
        %p267 = scmp.lt.s32.totalorder %s266, 7
        %s268 = scalar_select %p267, %s266, 7
      $region36: #{vggnet_forward.7} parent=23 // pred_fallthru
        _
    $region24: #{vggnet_forward.7} parent=5 // pred_fallthru
      _
    %p269 = scmp.le.s32.totalorder 1, %s11
    %p270 = scmp.lt.s32.totalorder %s11, 3
    %p271 = pnand %p269, %p270
    %p272 = pneg %p271
    // Predicated region
    $region37: #{vggnet_forward.7} parent=5 // pred_check
      _
    $region38: #{vggnet_forward.7} parent=5 // pred_check_branch
      %274 = sbr.rel (%p271) target = $region40
    $region39: #{vggnet_forward.7} parent=5 // pred_region
      %s275 = ssub.s32 %s11, 1
      %s276 = smul.u32 8, %s21
      %p277 = scmp.lt.s32.totalorder %s20, 1
      %s278 = scalar_select %p277, %s20, 1
      %p279 = scmp.lt.s32.totalorder %s276, 7
      %s280 = scalar_select %p279, %s276, 7
      %s281 = smul.addr %s278, 8
      %s282 = sadd.s32 %s280, %s281
      %s283 = smul.addr %s282, 4
      %s284 = scalar_lea.vmem %s0, %s283
      %p285 = pneg %p51
      %p286 = pneg %p48
      %s287 = smul.u32 %s21, 8
      %s288 = ssub.s32 %s287, 1
      %p289 = scmp.gt.s32.totalorder %s288, 0
      %s290 = scalar_select %p289, %s288, 0
      %p291 = scmp.lt.s32.totalorder %s20, 1
      %s292 = scalar_select %p291, %s20, 1
      %p293 = scmp.lt.s32.totalorder %s290, 7
      %s294 = scalar_select %p293, %s290, 7
      %s295 = smul.addr %s292, 8
      %s296 = sadd.s32 %s294, %s295
      %s297 = smul.addr %s296, 4
      %s298 = scalar_lea.vmem %s1, %s297
      %p299 = pneg %p87
      %p300 = pneg %p84
      %s301 = smul.u32 %s21, 8
      %s302 = sadd.s32 %s301, 8
      %p303 = scmp.lt.s32.totalorder %s302, 7
      %s304 = scalar_select %p303, %s302, 7
      %p305 = scmp.lt.s32.totalorder %s20, 1
      %s306 = scalar_select %p305, %s20, 1
      %p307 = scmp.lt.s32.totalorder %s304, 7
      %s308 = scalar_select %p307, %s304, 7
      %s309 = smul.addr %s306, 8
      %s310 = sadd.s32 %s308, %s309
      %s311 = smul.addr %s310, 4
      %s312 = scalar_lea.vmem %s2, %s311
      %p313 = pneg %p123
      %p314 = pneg %p120
      %p315 = pneg %p144
      %p316 = pneg %p141
      %p317 = pneg %p165
      %p318 = pneg %p162
      %p319 = pneg %p193
      %p320 = pneg %p190
      %s321 = smul.u32 8, %s21
      %p322 = scmp.lt.s32.totalorder %s20, 1
      %s323 = scalar_select %p322, %s20, 1
      %p324 = scmp.lt.s32.totalorder %s321, 7
      %s325 = scalar_select %p324, %s321, 7
      %s326 = smul.addr %s323, 8
      %s327 = sadd.s32 %s325, %s326
      %s328 = smul.addr %s327, 4
      %s329 = scalar_lea.vmem %s5, %s328
      %s330 = smul.u32 8, %s21
      %p331 = scmp.lt.s32.totalorder %s20, 1
      %s332 = scalar_select %p331, %s20, 1
      %p333 = scmp.lt.s32.totalorder %s330, 7
      %s334 = scalar_select %p333, %s330, 7
      %s335 = smul.addr %s332, 8
      %s336 = sadd.s32 %s334, %s335
      %s337 = smul.addr %s336, 4
      %s338 = scalar_lea.vmem %s0, %s337
      %s339 = smul.u32 8, %s21
      %s340 = smul.u32 %s21, 8
      %s341 = ssub.s32 %s340, 1
      %p342 = scmp.gt.s32.totalorder %s341, 0
      %s343 = scalar_select %p342, %s341, 0
      %p344 = scmp.lt.s32.totalorder %s20, 1
      %s345 = scalar_select %p344, %s20, 1
      %p346 = scmp.lt.s32.totalorder %s343, 7
      %s347 = scalar_select %p346, %s343, 7
      %s348 = smul.addr %s345, 8
      %s349 = sadd.s32 %s347, %s348
      %s350 = smul.addr %s349, 4
      %s351 = scalar_lea.vmem %s1, %s350
      %s352 = smul.u32 %s21, 8
      %s353 = ssub.s32 %s352, 1
      %p354 = scmp.gt.s32.totalorder %s353, 0
      %s355 = scalar_select %p354, %s353, 0
      %s356 = smul.u32 %s21, 8
      %s357 = sadd.s32 %s356, 8
      %p358 = scmp.lt.s32.totalorder %s357, 7
      %s359 = scalar_select %p358, %s357, 7
      %p360 = scmp.lt.s32.totalorder %s20, 1
      %s361 = scalar_select %p360, %s20, 1
      %p362 = scmp.lt.s32.totalorder %s359, 7
      %s363 = scalar_select %p362, %s359, 7
      %s364 = smul.addr %s361, 8
      %s365 = sadd.s32 %s363, %s364
      %s366 = smul.addr %s365, 4
      %s367 = scalar_lea.vmem %s2, %s366
      %s368 = smul.u32 %s21, 8
      %s369 = sadd.s32 %s368, 8
      %p370 = scmp.lt.s32.totalorder %s369, 7
      %s371 = scalar_select %p370, %s369, 7
      %s372 = smul.u32 8, %s21
      %p373 = scmp.lt.s32.totalorder %s20, 1
      %s374 = scalar_select %p373, %s20, 1
      %p375 = scmp.lt.s32.totalorder %s372, 7
      %s376 = scalar_select %p375, %s372, 7
      %s377 = smul.addr %s374, 8
      %s378 = sadd.s32 %s376, %s377
      %s379 = smul.addr %s378, 4
      %s380 = scalar_lea.vmem %s5, %s379
      %s381 = smul.u32 8, %s21
      %p383 = scmp.eq.s32.totalorder %s21, 0
      %v384 = vld [vmem:[%s351] sm:$0xf]
      %s385 = scalar_select %p383, 1, 0
      %v386 = vstv %s385
      %vm387 = vcmp.eq.s32.totalorder %v386, 1
      %v388 = vsel %vm387, 0, %v384
      %v389 = vld [vmem:[%s367] sm:$0xf]
      %v390 = vsel %vm387, 0, %v389
      %v391 = vld [vmem:[%s338] sm:$0xf]
      %v392 = vld [vmem:[%s338 + $0x4] sm:$0xf]
      %v393 = vld [vmem:[%s338 + $0x8] sm:$0xf]
      %v394 = vld [vmem:[%s338 + $0xc] sm:$0xf]
      %v395 = vld [vmem:[%s338 + $0x10] sm:$0xf]
      %v396 = vld [vmem:[%s338 + $0x14] sm:$0xf]
      %v397 = vld [vmem:[%s338 + $0x18] sm:$0xf]
      %v398 = vld [vmem:[%s338 + $0x1c] sm:$0xf]
      %v409 = vunpack.c.l.b16 %v388
      %v410 = vunpack.c.l.b16 %v391
      %v411 = vunpack.c.l.b16 %v392
      %v412 = vunpack.c.l.b16 %v393
      %v413 = vunpack.c.l.b16 %v394
      %v414 = vunpack.c.l.b16 %v395
      %v415 = vunpack.c.l.b16 %v396
      %v416 = vunpack.c.l.b16 %v397
      %v417 = vunpack.c.l.b16 %v398
      %v418 = vunpack.c.l.b16 %v390
      %v419 = vpack.c.b16 %v409, %v409
      %v420 = vpack.c.b16 %v410, %v410
      %v421 = vpack.c.b16 %v411, %v411
      %v422 = vpack.c.b16 %v412, %v412
      %v423 = vpack.c.b16 %v413, %v413
      %v424 = vpack.c.b16 %v414, %v414
      %v425 = vpack.c.b16 %v415, %v415
      %v426 = vpack.c.b16 %v416, %v416
      %v427 = vpack.c.b16 %v417, %v417
      %v428 = vpack.c.b16 %v418, %v418
      %v430 = vshrl.u32 %v419, 16
      %v432 = vrot.slane %v430, 7
      %v433 = vshll.u32 %v419, 16
      %v435 = vor.u32 %v432, %v433
      %v437 = vshrl.u32 %v420, 16
      %v439 = vrot.slane %v437, 7
      %v440 = vshll.u32 %v420, 16
      %v442 = vor.u32 %v439, %v440
      %v444 = vshrl.u32 %v421, 16
      %v446 = vrot.slane %v444, 7
      %v447 = vshll.u32 %v421, 16
      %v449 = vor.u32 %v446, %v447
      %v451 = vshrl.u32 %v422, 16
      %v453 = vrot.slane %v451, 7
      %v454 = vshll.u32 %v422, 16
      %v456 = vor.u32 %v453, %v454
      %v458 = vshrl.u32 %v423, 16
      %v460 = vrot.slane %v458, 7
      %v461 = vshll.u32 %v423, 16
      %v463 = vor.u32 %v460, %v461
      %v465 = vshrl.u32 %v424, 16
      %v467 = vrot.slane %v465, 7
      %v468 = vshll.u32 %v424, 16
      %v470 = vor.u32 %v467, %v468
      %v472 = vshrl.u32 %v425, 16
      %v474 = vrot.slane %v472, 7
      %v475 = vshll.u32 %v425, 16
      %v477 = vor.u32 %v474, %v475
      %v479 = vshrl.u32 %v426, 16
      %v481 = vrot.slane %v479, 7
      %v482 = vshll.u32 %v426, 16
      %v484 = vor.u32 %v481, %v482
      %v486 = vshrl.u32 %v427, 16
      %v488 = vrot.slane %v486, 7
      %v489 = vshll.u32 %v427, 16
      %v491 = vor.u32 %v488, %v489
      %v493 = vshrl.u32 %v428, 16
      %v495 = vrot.slane %v493, 7
      %v496 = vshll.u32 %v428, 16
      %v498 = vor.u32 %v495, %v496
      %vm509 = vcmask 1040384
      %vm510 = vsmask.f32 256
      %vm511 = vmand %vm509, %vm510
      %v512 = vsel %vm511, 0, %v435
      %v513 = vsel %vm511, 0, %v442
      %v514 = vsel %vm511, 0, %v449
      %v515 = vsel %vm511, 0, %v456
      %v516 = vsel %vm511, 0, %v463
      %v517 = vsel %vm511, 0, %v470
      %v518 = vsel %vm511, 0, %v477
      %v519 = vsel %vm511, 0, %v484
      %v520 = vsel %vm511, 0, %v491
      %v521 = vsel %vm511, 0, %v498
      %v522 = vrot.slane %v433, 1
      %v523 = vor.u32 %v430, %v522
      %v524 = vrot.slane %v440, 1
      %v525 = vor.u32 %v437, %v524
      %v526 = vrot.slane %v447, 1
      %v527 = vor.u32 %v444, %v526
      %v528 = vrot.slane %v454, 1
      %v529 = vor.u32 %v451, %v528
      %v530 = vrot.slane %v461, 1
      %v531 = vor.u32 %v458, %v530
      %v532 = vrot.slane %v468, 1
      %v533 = vor.u32 %v465, %v532
      %v534 = vrot.slane %v475, 1
      %v535 = vor.u32 %v472, %v534
      %v536 = vrot.slane %v482, 1
      %v537 = vor.u32 %v479, %v536
      %v538 = vrot.slane %v489, 1
      %v539 = vor.u32 %v486, %v538
      %v540 = vrot.slane %v496, 1
      %v541 = vor.u32 %v493, %v540
      %vm552 = vcmask 1043456
      %vm553 = vsmask.f32 3328
      %vm554 = vmand %vm552, %vm553
      %v555 = vsel %vm554, %v523, 0
      %v556 = vsel %vm554, %v525, 0
      %v557 = vsel %vm554, %v527, 0
      %v558 = vsel %vm554, %v529, 0
      %v559 = vsel %vm554, %v531, 0
      %v560 = vsel %vm554, %v533, 0
      %v561 = vsel %vm554, %v535, 0
      %v562 = vsel %vm554, %v537, 0
      %v563 = vsel %vm554, %v539, 0
      %v564 = vsel %vm554, %v541, 0
      %v565 = vld [vmem:[%s4] sm:$0x1]
      %v566 = vld [vmem:[%s3] sm:$0xf]
      %v567 = vld [vmem:[%s3 + $0x4] sm:$0xf]
      %v568 = vld [vmem:[%s3 + $0x8] sm:$0xf]
      %v569 = vld [vmem:[%s3 + $0xc] sm:$0xf]
      %v570 = vld [vmem:[%s3 + $0x10] sm:$0xf]
      %v571 = vld [vmem:[%s3 + $0x14] sm:$0xf]
      %v572 = vld [vmem:[%s3 + $0x18] sm:$0xf]
      %v573 = vld [vmem:[%s3 + $0x1c] sm:$0xf]
      %v574 = vld [vmem:[%s3 + $0x20] sm:$0xf]
      %v575 = vld [vmem:[%s3 + $0x24] sm:$0xf]
      %v576 = vld [vmem:[%s3 + $0x28] sm:$0xf]
      %v577 = vld [vmem:[%s3 + $0x2c] sm:$0xf]
      %v578 = vld [vmem:[%s3 + $0x30] sm:$0xf]
      %v579 = vld [vmem:[%s3 + $0x34] sm:$0xf]
      %v580 = vld [vmem:[%s3 + $0x38] sm:$0xf]
      %v581 = vld [vmem:[%s3 + $0x3c] sm:$0xf]
      %s582 = scalar_lea.vmem %s3, 64
      %v583 = vld [vmem:[%s582] sm:$0xf]
      %v584 = vld [vmem:[%s582 + $0x4] sm:$0xf]
      %v585 = vld [vmem:[%s582 + $0x8] sm:$0xf]
      %v586 = vld [vmem:[%s582 + $0xc] sm:$0xf]
      %v587 = vld [vmem:[%s582 + $0x10] sm:$0xf]
      %v588 = vld [vmem:[%s582 + $0x14] sm:$0xf]
      %v589 = vld [vmem:[%s582 + $0x18] sm:$0xf]
      %v590 = vld [vmem:[%s582 + $0x1c] sm:$0xf]
      %v591 = vld [vmem:[%s582 + $0x20] sm:$0xf]
      %v592 = vld [vmem:[%s582 + $0x24] sm:$0xf]
      %v593 = vld [vmem:[%s582 + $0x28] sm:$0xf]
      %v594 = vld [vmem:[%s582 + $0x2c] sm:$0xf]
      %v595 = vld [vmem:[%s582 + $0x30] sm:$0xf]
      %v596 = vld [vmem:[%s582 + $0x34] sm:$0xf]
      %v597 = vld [vmem:[%s582 + $0x38] sm:$0xf]
      %v598 = vld [vmem:[%s582 + $0x3c] sm:$0xf]
      %v599 = vpack.c.b16 %v410, %v409
      %v600 = vpack.c.b16 %v412, %v411
      %v601 = vpack.c.b16 %v414, %v413
      %v602 = vpack.c.b16 %v416, %v415
      %v623 = vunpack.c.l.b16 %v583
      %v624 = vunpack.c.l.b16 %v584
      %v625 = vunpack.c.l.b16 %v585
      %v626 = vunpack.c.l.b16 %v586
      %v627 = vunpack.c.l.b16 %v587
      %v628 = vunpack.c.l.b16 %v588
      %v629 = vunpack.c.l.b16 %v589
      %v630 = vunpack.c.l.b16 %v590
      %v631 = vunpack.c.l.b16 %v591
      %v632 = vunpack.c.l.b16 %v592
      %v633 = vunpack.c.l.b16 %v593
      %v634 = vunpack.c.l.b16 %v594
      %v635 = vunpack.c.l.b16 %v595
      %v636 = vunpack.c.l.b16 %v596
      %v637 = vunpack.c.l.b16 %v597
      %v638 = vunpack.c.l.b16 %v598
      %v639 = vpack.c.b16 %v624, %v623
      %v640 = vpack.c.b16 %v626, %v625
      %v641 = vpack.c.b16 %v628, %v627
      %v642 = vpack.c.b16 %v630, %v629
      %v643 = vpack.c.b16 %v632, %v631
      %v644 = vpack.c.b16 %v634, %v633
      %v645 = vpack.c.b16 %v636, %v635
      %v646 = vpack.c.b16 %v638, %v637
      %655 = vmatprep.subr.bf16.mxu0 0
      %656 = vmatpush1.bf16.msra.mxu0 %v646
      %657 = vmatprep.subr.bf16.mxu0 0
      %658 = vmatpush1.bf16.msra.mxu0 %v645
      %659 = vmatprep.subr.bf16.mxu0 0
      %660 = vmatpush1.bf16.msra.mxu0 %v644
      %661 = vmatprep.subr.bf16.mxu0 0
      %662 = vmatpush1.bf16.msra.mxu0 %v643
      %663 = vmatprep.subr.bf16.mxu0 0
      %664 = vmatpush1.bf16.msra.mxu0 %v642
      %665 = vmatprep.subr.bf16.mxu0 0
      %666 = vmatpush1.bf16.msra.mxu0 %v641
      %667 = vmatprep.subr.bf16.mxu0 0
      %668 = vmatpush1.bf16.msra.mxu0 %v640
      %669 = vmatprep.subr.bf16.mxu0 0
      %670 = vmatpush1.bf16.msra.mxu0 %v639
      %671 = vmatprep.subr.bf16.mxu0 0
      %672 = vmatpush2.bf16.msra.mxu0 0
      %673 = vmatprep.subr.bf16.mxu0 0
      %674 = vmatpush2.bf16.msra.mxu0 0
      %675 = vmatprep.subr.bf16.mxu0 0
      %676 = vmatpush2.bf16.msra.mxu0 0
      %677 = vmatprep.subr.bf16.mxu0 0
      %678 = vmatpush2.bf16.msra.mxu0 0
      %679 = vmatprep.subr.bf16.mxu0 0
      %680 = vmatpush2.bf16.msra.mxu0 0
      %681 = vmatprep.subr.bf16.mxu0 0
      %682 = vmatpush2.bf16.msra.mxu0 0
      %683 = vmatprep.subr.bf16.mxu0 0
      %684 = vmatpush2.bf16.msra.mxu0 0
      %685 = vmatprep.subr.bf16.mxu0 0
      %686 = vmatpush2.bf16.msra.mxu0 0
      %687 = vmatprep.mubr.bf16.mxu0 0
      %688 = vmatmul.mubr.bf16.gmra.mxu0 %v599
      %v689 = vpop.f32.mrf.mxu0
      %v690 = vadd.f32 0.0, %v689
      %v691 = vpop.f32.mrf.mxu0
      %v692 = vpop.f32.mrf.mxu0
      %v693 = vadd.f32 0.0, %v692
      %v694 = vpop.f32.mrf.mxu0
      %695 = vmatprep.mubr.bf16.mxu0 0
      %696 = vmatmul.mubr.bf16.gmra.mxu0 %v600
      %v697 = vpop.f32.mrf.mxu0
      %v698 = vadd.f32 0.0, %v697
      %v699 = vpop.f32.mrf.mxu0
      %v700 = vpop.f32.mrf.mxu0
      %v701 = vadd.f32 0.0, %v700
      %v702 = vpop.f32.mrf.mxu0
      %703 = vmatprep.mubr.bf16.mxu0 0
      %704 = vmatmul.mubr.bf16.gmra.mxu0 %v601
      %v705 = vpop.f32.mrf.mxu0
      %v706 = vadd.f32 0.0, %v705
      %v707 = vpop.f32.mrf.mxu0
      %v708 = vpop.f32.mrf.mxu0
      %v709 = vadd.f32 0.0, %v708
      %v710 = vpop.f32.mrf.mxu0
      %711 = vmatprep.mubr.bf16.mxu0 0
      %712 = vmatmul.mubr.bf16.gmra.mxu0 %v602
      %v713 = vpop.f32.mrf.mxu0
      %v714 = vadd.f32 0.0, %v713
      %v715 = vpop.f32.mrf.mxu0
      %v716 = vpop.f32.mrf.mxu0
      %v717 = vadd.f32 0.0, %v716
      %v718 = vpop.f32.mrf.mxu0
      %719 = vdwg.mxu0
      %v728 = vunpack.c.l.b16 %v512
      %v729 = vunpack.c.l.b16 %v513
      %v730 = vunpack.c.l.b16 %v514
      %v731 = vunpack.c.l.b16 %v515
      %v732 = vunpack.c.l.b16 %v516
      %v733 = vunpack.c.l.b16 %v517
      %v734 = vunpack.c.l.b16 %v518
      %v735 = vunpack.c.l.b16 %v519
      %v736 = vpack.c.b16 %v729, %v728
      %v737 = vpack.c.b16 %v731, %v730
      %v738 = vpack.c.b16 %v733, %v732
      %v739 = vpack.c.b16 %v735, %v734
      %v760 = vunpack.c.l.b16 %v566
      %v761 = vunpack.c.l.b16 %v567
      %v762 = vunpack.c.l.b16 %v568
      %v763 = vunpack.c.l.b16 %v569
      %v764 = vunpack.c.l.b16 %v570
      %v765 = vunpack.c.l.b16 %v571
      %v766 = vunpack.c.l.b16 %v572
      %v767 = vunpack.c.l.b16 %v573
      %v768 = vunpack.c.l.b16 %v574
      %v769 = vunpack.c.l.b16 %v575
      %v770 = vunpack.c.l.b16 %v576
      %v771 = vunpack.c.l.b16 %v577
      %v772 = vunpack.c.l.b16 %v578
      %v773 = vunpack.c.l.b16 %v579
      %v774 = vunpack.c.l.b16 %v580
      %v775 = vunpack.c.l.b16 %v581
      %v776 = vpack.c.b16 %v761, %v760
      %v777 = vpack.c.b16 %v763, %v762
      %v778 = vpack.c.b16 %v765, %v764
      %v779 = vpack.c.b16 %v767, %v766
      %v780 = vpack.c.b16 %v769, %v768
      %v781 = vpack.c.b16 %v771, %v770
      %v782 = vpack.c.b16 %v773, %v772
      %v783 = vpack.c.b16 %v775, %v774
      %792 = vmatprep.subr.bf16.mxu0 0
      %793 = vmatpush1.bf16.msra.mxu0 %v783
      %794 = vmatprep.subr.bf16.mxu0 0
      %795 = vmatpush1.bf16.msra.mxu0 %v782
      %796 = vmatprep.subr.bf16.mxu0 0
      %797 = vmatpush1.bf16.msra.mxu0 %v781
      %798 = vmatprep.subr.bf16.mxu0 0
      %799 = vmatpush1.bf16.msra.mxu0 %v780
      %800 = vmatprep.subr.bf16.mxu0 0
      %801 = vmatpush1.bf16.msra.mxu0 %v779
      %802 = vmatprep.subr.bf16.mxu0 0
      %803 = vmatpush1.bf16.msra.mxu0 %v778
      %804 = vmatprep.subr.bf16.mxu0 0
      %805 = vmatpush1.bf16.msra.mxu0 %v777
      %806 = vmatprep.subr.bf16.mxu0 0
      %807 = vmatpush1.bf16.msra.mxu0 %v776
      %808 = vmatprep.subr.bf16.mxu0 0
      %809 = vmatpush2.bf16.msra.mxu0 0
      %810 = vmatprep.subr.bf16.mxu0 0
      %811 = vmatpush2.bf16.msra.mxu0 0
      %812 = vmatprep.subr.bf16.mxu0 0
      %813 = vmatpush2.bf16.msra.mxu0 0
      %814 = vmatprep.subr.bf16.mxu0 0
      %815 = vmatpush2.bf16.msra.mxu0 0
      %816 = vmatprep.subr.bf16.mxu0 0
      %817 = vmatpush2.bf16.msra.mxu0 0
      %818 = vmatprep.subr.bf16.mxu0 0
      %819 = vmatpush2.bf16.msra.mxu0 0
      %820 = vmatprep.subr.bf16.mxu0 0
      %821 = vmatpush2.bf16.msra.mxu0 0
      %822 = vmatprep.subr.bf16.mxu0 0
      %823 = vmatpush2.bf16.msra.mxu0 0
      %824 = vmatprep.mubr.bf16.mxu0 0
      %825 = vmatmul.mubr.bf16.gmra.mxu0 %v736
      %v826 = vpop.f32.mrf.mxu0
      %v827 = vadd.f32 %v690, %v826
      %v828 = vpop.f32.mrf.mxu0
      %v829 = vpop.f32.mrf.mxu0
      %v830 = vadd.f32 %v693, %v829
      %v831 = vpop.f32.mrf.mxu0
      %832 = vmatprep.mubr.bf16.mxu0 0
      %833 = vmatmul.mubr.bf16.gmra.mxu0 %v737
      %v834 = vpop.f32.mrf.mxu0
      %v835 = vadd.f32 %v698, %v834
      %v836 = vpop.f32.mrf.mxu0
      %v837 = vpop.f32.mrf.mxu0
      %v838 = vadd.f32 %v701, %v837
      %v839 = vpop.f32.mrf.mxu0
      %840 = vmatprep.mubr.bf16.mxu0 0
      %841 = vmatmul.mubr.bf16.gmra.mxu0 %v738
      %v842 = vpop.f32.mrf.mxu0
      %v843 = vadd.f32 %v706, %v842
      %v844 = vpop.f32.mrf.mxu0
      %v845 = vpop.f32.mrf.mxu0
      %v846 = vadd.f32 %v709, %v845
      %v847 = vpop.f32.mrf.mxu0
      %848 = vmatprep.mubr.bf16.mxu0 0
      %849 = vmatmul.mubr.bf16.gmra.mxu0 %v739
      %v850 = vpop.f32.mrf.mxu0
      %v851 = vadd.f32 %v714, %v850
      %v852 = vpop.f32.mrf.mxu0
      %v853 = vpop.f32.mrf.mxu0
      %v854 = vadd.f32 %v717, %v853
      %v855 = vpop.f32.mrf.mxu0
      %856 = vdwg.mxu0
      %s857 = scalar_lea.vmem %s3, 128
      %v858 = vld [vmem:[%s857] sm:$0xf]
      %v859 = vld [vmem:[%s857 + $0x4] sm:$0xf]
      %v860 = vld [vmem:[%s857 + $0x8] sm:$0xf]
      %v861 = vld [vmem:[%s857 + $0xc] sm:$0xf]
      %v862 = vld [vmem:[%s857 + $0x10] sm:$0xf]
      %v863 = vld [vmem:[%s857 + $0x14] sm:$0xf]
      %v864 = vld [vmem:[%s857 + $0x18] sm:$0xf]
      %v865 = vld [vmem:[%s857 + $0x1c] sm:$0xf]
      %v866 = vld [vmem:[%s857 + $0x20] sm:$0xf]
      %v867 = vld [vmem:[%s857 + $0x24] sm:$0xf]
      %v868 = vld [vmem:[%s857 + $0x28] sm:$0xf]
      %v869 = vld [vmem:[%s857 + $0x2c] sm:$0xf]
      %v870 = vld [vmem:[%s857 + $0x30] sm:$0xf]
      %v871 = vld [vmem:[%s857 + $0x34] sm:$0xf]
      %v872 = vld [vmem:[%s857 + $0x38] sm:$0xf]
      %v873 = vld [vmem:[%s857 + $0x3c] sm:$0xf]
      %v882 = vunpack.c.l.b16 %v555
      %v883 = vunpack.c.l.b16 %v556
      %v884 = vunpack.c.l.b16 %v557
      %v885 = vunpack.c.l.b16 %v558
      %v886 = vunpack.c.l.b16 %v559
      %v887 = vunpack.c.l.b16 %v560
      %v888 = vunpack.c.l.b16 %v561
      %v889 = vunpack.c.l.b16 %v562
      %v890 = vpack.c.b16 %v883, %v882
      %v891 = vpack.c.b16 %v885, %v884
      %v892 = vpack.c.b16 %v887, %v886
      %v893 = vpack.c.b16 %v889, %v888
      %v914 = vunpack.c.l.b16 %v858
      %v915 = vunpack.c.l.b16 %v859
      %v916 = vunpack.c.l.b16 %v860
      %v917 = vunpack.c.l.b16 %v861
      %v918 = vunpack.c.l.b16 %v862
      %v919 = vunpack.c.l.b16 %v863
      %v920 = vunpack.c.l.b16 %v864
      %v921 = vunpack.c.l.b16 %v865
      %v922 = vunpack.c.l.b16 %v866
      %v923 = vunpack.c.l.b16 %v867
      %v924 = vunpack.c.l.b16 %v868
      %v925 = vunpack.c.l.b16 %v869
      %v926 = vunpack.c.l.b16 %v870
      %v927 = vunpack.c.l.b16 %v871
      %v928 = vunpack.c.l.b16 %v872
      %v929 = vunpack.c.l.b16 %v873
      %v930 = vpack.c.b16 %v915, %v914
      %v931 = vpack.c.b16 %v917, %v916
      %v932 = vpack.c.b16 %v919, %v918
      %v933 = vpack.c.b16 %v921, %v920
      %v934 = vpack.c.b16 %v923, %v922
      %v935 = vpack.c.b16 %v925, %v924
      %v936 = vpack.c.b16 %v927, %v926
      %v937 = vpack.c.b16 %v929, %v928
      %946 = vmatprep.subr.bf16.mxu0 0
      %947 = vmatpush1.bf16.msra.mxu0 %v937
      %948 = vmatprep.subr.bf16.mxu0 0
      %949 = vmatpush1.bf16.msra.mxu0 %v936
      %950 = vmatprep.subr.bf16.mxu0 0
      %951 = vmatpush1.bf16.msra.mxu0 %v935
      %952 = vmatprep.subr.bf16.mxu0 0
      %953 = vmatpush1.bf16.msra.mxu0 %v934
      %954 = vmatprep.subr.bf16.mxu0 0
      %955 = vmatpush1.bf16.msra.mxu0 %v933
      %956 = vmatprep.subr.bf16.mxu0 0
      %957 = vmatpush1.bf16.msra.mxu0 %v932
      %958 = vmatprep.subr.bf16.mxu0 0
      %959 = vmatpush1.bf16.msra.mxu0 %v931
      %960 = vmatprep.subr.bf16.mxu0 0
      %961 = vmatpush1.bf16.msra.mxu0 %v930
      %962 = vmatprep.subr.bf16.mxu0 0
      %963 = vmatpush2.bf16.msra.mxu0 0
      %964 = vmatprep.subr.bf16.mxu0 0
      %965 = vmatpush2.bf16.msra.mxu0 0
      %966 = vmatprep.subr.bf16.mxu0 0
      %967 = vmatpush2.bf16.msra.mxu0 0
      %968 = vmatprep.subr.bf16.mxu0 0
      %969 = vmatpush2.bf16.msra.mxu0 0
      %970 = vmatprep.subr.bf16.mxu0 0
      %971 = vmatpush2.bf16.msra.mxu0 0
      %972 = vmatprep.subr.bf16.mxu0 0
      %973 = vmatpush2.bf16.msra.mxu0 0
      %974 = vmatprep.subr.bf16.mxu0 0
      %975 = vmatpush2.bf16.msra.mxu0 0
      %976 = vmatprep.subr.bf16.mxu0 0
      %977 = vmatpush2.bf16.msra.mxu0 0
      %978 = vmatprep.mubr.bf16.mxu0 0
      %979 = vmatmul.mubr.bf16.gmra.mxu0 %v890
      %v980 = vpop.f32.mrf.mxu0
      %v981 = vadd.f32 0.0, %v980
      %v982 = vpop.f32.mrf.mxu0
      %v983 = vpop.f32.mrf.mxu0
      %v984 = vadd.f32 0.0, %v983
      %v985 = vpop.f32.mrf.mxu0
      %986 = vmatprep.mubr.bf16.mxu0 0
      %987 = vmatmul.mubr.bf16.gmra.mxu0 %v891
      %v988 = vpop.f32.mrf.mxu0
      %v989 = vadd.f32 0.0, %v988
      %v990 = vpop.f32.mrf.mxu0
      %v991 = vpop.f32.mrf.mxu0
      %v992 = vadd.f32 0.0, %v991
      %v993 = vpop.f32.mrf.mxu0
      %994 = vmatprep.mubr.bf16.mxu0 0
      %995 = vmatmul.mubr.bf16.gmra.mxu0 %v892
      %v996 = vpop.f32.mrf.mxu0
      %v997 = vadd.f32 0.0, %v996
      %v998 = vpop.f32.mrf.mxu0
      %v999 = vpop.f32.mrf.mxu0
      %v1000 = vadd.f32 0.0, %v999
      %v1001 = vpop.f32.mrf.mxu0
      %1002 = vmatprep.mubr.bf16.mxu0 0
      %1003 = vmatmul.mubr.bf16.gmra.mxu0 %v893
      %v1004 = vpop.f32.mrf.mxu0
      %v1005 = vadd.f32 0.0, %v1004
      %v1006 = vpop.f32.mrf.mxu0
      %v1007 = vpop.f32.mrf.mxu0
      %v1008 = vadd.f32 0.0, %v1007
      %v1009 = vpop.f32.mrf.mxu0
      %1010 = vdwg.mxu0
      %v1011 = vadd.f32 %v827, %v981
      %v1012 = vadd.f32 %v830, %v984
      %v1013 = vadd.f32 %v835, %v989
      %v1014 = vadd.f32 %v838, %v992
      %v1015 = vadd.f32 %v843, %v997
      %v1016 = vadd.f32 %v846, %v1000
      %v1017 = vadd.f32 %v851, %v1005
      %v1018 = vadd.f32 %v854, %v1008
      %s1019 = scalar_lea.vmem %s3, 192
      %v1020 = vld [vmem:[%s1019] sm:$0xf]
      %v1021 = vld [vmem:[%s1019 + $0x4] sm:$0xf]
      %v1022 = vld [vmem:[%s1019 + $0x8] sm:$0xf]
      %v1023 = vld [vmem:[%s1019 + $0xc] sm:$0xf]
      %v1024 = vld [vmem:[%s1019 + $0x10] sm:$0xf]
      %v1025 = vld [vmem:[%s1019 + $0x14] sm:$0xf]
      %v1026 = vld [vmem:[%s1019 + $0x18] sm:$0xf]
      %v1027 = vld [vmem:[%s1019 + $0x1c] sm:$0xf]
      %v1028 = vld [vmem:[%s1019 + $0x20] sm:$0xf]
      %v1029 = vld [vmem:[%s1019 + $0x24] sm:$0xf]
      %v1030 = vld [vmem:[%s1019 + $0x28] sm:$0xf]
      %v1031 = vld [vmem:[%s1019 + $0x2c] sm:$0xf]
      %v1032 = vld [vmem:[%s1019 + $0x30] sm:$0xf]
      %v1033 = vld [vmem:[%s1019 + $0x34] sm:$0xf]
      %v1034 = vld [vmem:[%s1019 + $0x38] sm:$0xf]
      %v1035 = vld [vmem:[%s1019 + $0x3c] sm:$0xf]
      %v1037 = vunpack.c.l.b16 %v520
      %v1038 = vpack.c.b16 %v730, %v729
      %v1039 = vpack.c.b16 %v732, %v731
      %v1040 = vpack.c.b16 %v734, %v733
      %v1041 = vpack.c.b16 %v1037, %v735
      %v1062 = vunpack.c.l.b16 %v1020
      %v1063 = vunpack.c.l.b16 %v1021
      %v1064 = vunpack.c.l.b16 %v1022
      %v1065 = vunpack.c.l.b16 %v1023
      %v1066 = vunpack.c.l.b16 %v1024
      %v1067 = vunpack.c.l.b16 %v1025
      %v1068 = vunpack.c.l.b16 %v1026
      %v1069 = vunpack.c.l.b16 %v1027
      %v1070 = vunpack.c.l.b16 %v1028
      %v1071 = vunpack.c.l.b16 %v1029
      %v1072 = vunpack.c.l.b16 %v1030
      %v1073 = vunpack.c.l.b16 %v1031
      %v1074 = vunpack.c.l.b16 %v1032
      %v1075 = vunpack.c.l.b16 %v1033
      %v1076 = vunpack.c.l.b16 %v1034
      %v1077 = vunpack.c.l.b16 %v1035
      %v1078 = vpack.c.b16 %v1063, %v1062
      %v1079 = vpack.c.b16 %v1065, %v1064
      %v1080 = vpack.c.b16 %v1067, %v1066
      %v1081 = vpack.c.b16 %v1069, %v1068
      %v1082 = vpack.c.b16 %v1071, %v1070
      %v1083 = vpack.c.b16 %v1073, %v1072
      %v1084 = vpack.c.b16 %v1075, %v1074
      %v1085 = vpack.c.b16 %v1077, %v1076
      %1094 = vmatprep.subr.bf16.mxu0 0
      %1095 = vmatpush1.bf16.msra.mxu0 %v1085
      %1096 = vmatprep.subr.bf16.mxu0 0
      %1097 = vmatpush1.bf16.msra.mxu0 %v1084
      %1098 = vmatprep.subr.bf16.mxu0 0
      %1099 = vmatpush1.bf16.msra.mxu0 %v1083
      %1100 = vmatprep.subr.bf16.mxu0 0
      %1101 = vmatpush1.bf16.msra.mxu0 %v1082
      %1102 = vmatprep.subr.bf16.mxu0 0
      %1103 = vmatpush1.bf16.msra.mxu0 %v1081
      %1104 = vmatprep.subr.bf16.mxu0 0
      %1105 = vmatpush1.bf16.msra.mxu0 %v1080
      %1106 = vmatprep.subr.bf16.mxu0 0
      %1107 = vmatpush1.bf16.msra.mxu0 %v1079
      %1108 = vmatprep.subr.bf16.mxu0 0
      %1109 = vmatpush1.bf16.msra.mxu0 %v1078
      %1110 = vmatprep.subr.bf16.mxu0 0
      %1111 = vmatpush2.bf16.msra.mxu0 0
      %1112 = vmatprep.subr.bf16.mxu0 0
      %1113 = vmatpush2.bf16.msra.mxu0 0
      %1114 = vmatprep.subr.bf16.mxu0 0
      %1115 = vmatpush2.bf16.msra.mxu0 0
      %1116 = vmatprep.subr.bf16.mxu0 0
      %1117 = vmatpush2.bf16.msra.mxu0 0
      %1118 = vmatprep.subr.bf16.mxu0 0
      %1119 = vmatpush2.bf16.msra.mxu0 0
      %1120 = vmatprep.subr.bf16.mxu0 0
      %1121 = vmatpush2.bf16.msra.mxu0 0
      %1122 = vmatprep.subr.bf16.mxu0 0
      %1123 = vmatpush2.bf16.msra.mxu0 0
      %1124 = vmatprep.subr.bf16.mxu0 0
      %1125 = vmatpush2.bf16.msra.mxu0 0
      %1126 = vmatprep.mubr.bf16.mxu0 0
      %1127 = vmatmul.mubr.bf16.gmra.mxu0 %v1038
      %v1128 = vpop.f32.mrf.mxu0
      %v1129 = vadd.f32 0.0, %v1128
      %v1130 = vpop.f32.mrf.mxu0
      %v1131 = vpop.f32.mrf.mxu0
      %v1132 = vadd.f32 0.0, %v1131
      %v1133 = vpop.f32.mrf.mxu0
      %1134 = vmatprep.mubr.bf16.mxu0 0
      %1135 = vmatmul.mubr.bf16.gmra.mxu0 %v1039
      %v1136 = vpop.f32.mrf.mxu0
      %v1137 = vadd.f32 0.0, %v1136
      %v1138 = vpop.f32.mrf.mxu0
      %v1139 = vpop.f32.mrf.mxu0
      %v1140 = vadd.f32 0.0, %v1139
      %v1141 = vpop.f32.mrf.mxu0
      %1142 = vmatprep.mubr.bf16.mxu0 0
      %1143 = vmatmul.mubr.bf16.gmra.mxu0 %v1040
      %v1144 = vpop.f32.mrf.mxu0
      %v1145 = vadd.f32 0.0, %v1144
      %v1146 = vpop.f32.mrf.mxu0
      %v1147 = vpop.f32.mrf.mxu0
      %v1148 = vadd.f32 0.0, %v1147
      %v1149 = vpop.f32.mrf.mxu0
      %1150 = vmatprep.mubr.bf16.mxu0 0
      %1151 = vmatmul.mubr.bf16.gmra.mxu0 %v1041
      %v1152 = vpop.f32.mrf.mxu0
      %v1153 = vadd.f32 0.0, %v1152
      %v1154 = vpop.f32.mrf.mxu0
      %v1155 = vpop.f32.mrf.mxu0
      %v1156 = vadd.f32 0.0, %v1155
      %v1157 = vpop.f32.mrf.mxu0
      %1158 = vdwg.mxu0
      %v1159 = vadd.f32 %v1011, %v1129
      %v1160 = vadd.f32 %v1012, %v1132
      %v1161 = vadd.f32 %v1013, %v1137
      %v1162 = vadd.f32 %v1014, %v1140
      %v1163 = vadd.f32 %v1015, %v1145
      %v1164 = vadd.f32 %v1016, %v1148
      %v1165 = vadd.f32 %v1017, %v1153
      %v1166 = vadd.f32 %v1018, %v1156
      %s1167 = scalar_lea.vmem %s3, 256
      %v1168 = vld [vmem:[%s1167] sm:$0xf]
      %v1169 = vld [vmem:[%s1167 + $0x4] sm:$0xf]
      %v1170 = vld [vmem:[%s1167 + $0x8] sm:$0xf]
      %v1171 = vld [vmem:[%s1167 + $0xc] sm:$0xf]
      %v1172 = vld [vmem:[%s1167 + $0x10] sm:$0xf]
      %v1173 = vld [vmem:[%s1167 + $0x14] sm:$0xf]
      %v1174 = vld [vmem:[%s1167 + $0x18] sm:$0xf]
      %v1175 = vld [vmem:[%s1167 + $0x1c] sm:$0xf]
      %v1176 = vld [vmem:[%s1167 + $0x20] sm:$0xf]
      %v1177 = vld [vmem:[%s1167 + $0x24] sm:$0xf]
      %v1178 = vld [vmem:[%s1167 + $0x28] sm:$0xf]
      %v1179 = vld [vmem:[%s1167 + $0x2c] sm:$0xf]
      %v1180 = vld [vmem:[%s1167 + $0x30] sm:$0xf]
      %v1181 = vld [vmem:[%s1167 + $0x34] sm:$0xf]
      %v1182 = vld [vmem:[%s1167 + $0x38] sm:$0xf]
      %v1183 = vld [vmem:[%s1167 + $0x3c] sm:$0xf]
      %v1184 = vpack.c.b16 %v411, %v410
      %v1185 = vpack.c.b16 %v413, %v412
      %v1186 = vpack.c.b16 %v415, %v414
      %v1187 = vpack.c.b16 %v417, %v416
      %v1208 = vunpack.c.l.b16 %v1168
      %v1209 = vunpack.c.l.b16 %v1169
      %v1210 = vunpack.c.l.b16 %v1170
      %v1211 = vunpack.c.l.b16 %v1171
      %v1212 = vunpack.c.l.b16 %v1172
      %v1213 = vunpack.c.l.b16 %v1173
      %v1214 = vunpack.c.l.b16 %v1174
      %v1215 = vunpack.c.l.b16 %v1175
      %v1216 = vunpack.c.l.b16 %v1176
      %v1217 = vunpack.c.l.b16 %v1177
      %v1218 = vunpack.c.l.b16 %v1178
      %v1219 = vunpack.c.l.b16 %v1179
      %v1220 = vunpack.c.l.b16 %v1180
      %v1221 = vunpack.c.l.b16 %v1181
      %v1222 = vunpack.c.l.b16 %v1182
      %v1223 = vunpack.c.l.b16 %v1183
      %v1224 = vpack.c.b16 %v1209, %v1208
      %v1225 = vpack.c.b16 %v1211, %v1210
      %v1226 = vpack.c.b16 %v1213, %v1212
      %v1227 = vpack.c.b16 %v1215, %v1214
      %v1228 = vpack.c.b16 %v1217, %v1216
      %v1229 = vpack.c.b16 %v1219, %v1218
      %v1230 = vpack.c.b16 %v1221, %v1220
      %v1231 = vpack.c.b16 %v1223, %v1222
      %1240 = vmatprep.subr.bf16.mxu0 0
      %1241 = vmatpush1.bf16.msra.mxu0 %v1231
      %1242 = vmatprep.subr.bf16.mxu0 0
      %1243 = vmatpush1.bf16.msra.mxu0 %v1230
      %1244 = vmatprep.subr.bf16.mxu0 0
      %1245 = vmatpush1.bf16.msra.mxu0 %v1229
      %1246 = vmatprep.subr.bf16.mxu0 0
      %1247 = vmatpush1.bf16.msra.mxu0 %v1228
      %1248 = vmatprep.subr.bf16.mxu0 0
      %1249 = vmatpush1.bf16.msra.mxu0 %v1227
      %1250 = vmatprep.subr.bf16.mxu0 0
      %1251 = vmatpush1.bf16.msra.mxu0 %v1226
      %1252 = vmatprep.subr.bf16.mxu0 0
      %1253 = vmatpush1.bf16.msra.mxu0 %v1225
      %1254 = vmatprep.subr.bf16.mxu0 0
      %1255 = vmatpush1.bf16.msra.mxu0 %v1224
      %1256 = vmatprep.subr.bf16.mxu0 0
      %1257 = vmatpush2.bf16.msra.mxu0 0
      %1258 = vmatprep.subr.bf16.mxu0 0
      %1259 = vmatpush2.bf16.msra.mxu0 0
      %1260 = vmatprep.subr.bf16.mxu0 0
      %1261 = vmatpush2.bf16.msra.mxu0 0
      %1262 = vmatprep.subr.bf16.mxu0 0
      %1263 = vmatpush2.bf16.msra.mxu0 0
      %1264 = vmatprep.subr.bf16.mxu0 0
      %1265 = vmatpush2.bf16.msra.mxu0 0
      %1266 = vmatprep.subr.bf16.mxu0 0
      %1267 = vmatpush2.bf16.msra.mxu0 0
      %1268 = vmatprep.subr.bf16.mxu0 0
      %1269 = vmatpush2.bf16.msra.mxu0 0
      %1270 = vmatprep.subr.bf16.mxu0 0
      %1271 = vmatpush2.bf16.msra.mxu0 0
      %1272 = vmatprep.mubr.bf16.mxu0 0
      %1273 = vmatmul.mubr.bf16.gmra.mxu0 %v1184
      %v1274 = vpop.f32.mrf.mxu0
      %v1275 = vadd.f32 0.0, %v1274
      %v1276 = vpop.f32.mrf.mxu0
      %v1277 = vpop.f32.mrf.mxu0
      %v1278 = vadd.f32 0.0, %v1277
      %v1279 = vpop.f32.mrf.mxu0
      %1280 = vmatprep.mubr.bf16.mxu0 0
      %1281 = vmatmul.mubr.bf16.gmra.mxu0 %v1185
      %v1282 = vpop.f32.mrf.mxu0
      %v1283 = vadd.f32 0.0, %v1282
      %v1284 = vpop.f32.mrf.mxu0
      %v1285 = vpop.f32.mrf.mxu0
      %v1286 = vadd.f32 0.0, %v1285
      %v1287 = vpop.f32.mrf.mxu0
      %1288 = vmatprep.mubr.bf16.mxu0 0
      %1289 = vmatmul.mubr.bf16.gmra.mxu0 %v1186
      %v1290 = vpop.f32.mrf.mxu0
      %v1291 = vadd.f32 0.0, %v1290
      %v1292 = vpop.f32.mrf.mxu0
      %v1293 = vpop.f32.mrf.mxu0
      %v1294 = vadd.f32 0.0, %v1293
      %v1295 = vpop.f32.mrf.mxu0
      %1296 = vmatprep.mubr.bf16.mxu0 0
      %1297 = vmatmul.mubr.bf16.gmra.mxu0 %v1187
      %v1298 = vpop.f32.mrf.mxu0
      %v1299 = vadd.f32 0.0, %v1298
      %v1300 = vpop.f32.mrf.mxu0
      %v1301 = vpop.f32.mrf.mxu0
      %v1302 = vadd.f32 0.0, %v1301
      %v1303 = vpop.f32.mrf.mxu0
      %1304 = vdwg.mxu0
      %v1305 = vadd.f32 %v1159, %v1275
      %v1306 = vadd.f32 %v1160, %v1278
      %v1307 = vadd.f32 %v1161, %v1283
      %v1308 = vadd.f32 %v1162, %v1286
      %v1309 = vadd.f32 %v1163, %v1291
      %v1310 = vadd.f32 %v1164, %v1294
      %v1311 = vadd.f32 %v1165, %v1299
      %v1312 = vadd.f32 %v1166, %v1302
      %s1313 = scalar_lea.vmem %s3, 320
      %v1314 = vld [vmem:[%s1313] sm:$0xf]
      %v1315 = vld [vmem:[%s1313 + $0x4] sm:$0xf]
      %v1316 = vld [vmem:[%s1313 + $0x8] sm:$0xf]
      %v1317 = vld [vmem:[%s1313 + $0xc] sm:$0xf]
      %v1318 = vld [vmem:[%s1313 + $0x10] sm:$0xf]
      %v1319 = vld [vmem:[%s1313 + $0x14] sm:$0xf]
      %v1320 = vld [vmem:[%s1313 + $0x18] sm:$0xf]
      %v1321 = vld [vmem:[%s1313 + $0x1c] sm:$0xf]
      %v1322 = vld [vmem:[%s1313 + $0x20] sm:$0xf]
      %v1323 = vld [vmem:[%s1313 + $0x24] sm:$0xf]
      %v1324 = vld [vmem:[%s1313 + $0x28] sm:$0xf]
      %v1325 = vld [vmem:[%s1313 + $0x2c] sm:$0xf]
      %v1326 = vld [vmem:[%s1313 + $0x30] sm:$0xf]
      %v1327 = vld [vmem:[%s1313 + $0x34] sm:$0xf]
      %v1328 = vld [vmem:[%s1313 + $0x38] sm:$0xf]
      %v1329 = vld [vmem:[%s1313 + $0x3c] sm:$0xf]
      %v1331 = vunpack.c.l.b16 %v563
      %v1332 = vpack.c.b16 %v884, %v883
      %v1333 = vpack.c.b16 %v886, %v885
      %v1334 = vpack.c.b16 %v888, %v887
      %v1335 = vpack.c.b16 %v1331, %v889
      %v1356 = vunpack.c.l.b16 %v1314
      %v1357 = vunpack.c.l.b16 %v1315
      %v1358 = vunpack.c.l.b16 %v1316
      %v1359 = vunpack.c.l.b16 %v1317
      %v1360 = vunpack.c.l.b16 %v1318
      %v1361 = vunpack.c.l.b16 %v1319
      %v1362 = vunpack.c.l.b16 %v1320
      %v1363 = vunpack.c.l.b16 %v1321
      %v1364 = vunpack.c.l.b16 %v1322
      %v1365 = vunpack.c.l.b16 %v1323
      %v1366 = vunpack.c.l.b16 %v1324
      %v1367 = vunpack.c.l.b16 %v1325
      %v1368 = vunpack.c.l.b16 %v1326
      %v1369 = vunpack.c.l.b16 %v1327
      %v1370 = vunpack.c.l.b16 %v1328
      %v1371 = vunpack.c.l.b16 %v1329
      %v1372 = vpack.c.b16 %v1357, %v1356
      %v1373 = vpack.c.b16 %v1359, %v1358
      %v1374 = vpack.c.b16 %v1361, %v1360
      %v1375 = vpack.c.b16 %v1363, %v1362
      %v1376 = vpack.c.b16 %v1365, %v1364
      %v1377 = vpack.c.b16 %v1367, %v1366
      %v1378 = vpack.c.b16 %v1369, %v1368
      %v1379 = vpack.c.b16 %v1371, %v1370
      %1388 = vmatprep.subr.bf16.mxu0 0
      %1389 = vmatpush1.bf16.msra.mxu0 %v1379
      %1390 = vmatprep.subr.bf16.mxu0 0
      %1391 = vmatpush1.bf16.msra.mxu0 %v1378
      %1392 = vmatprep.subr.bf16.mxu0 0
      %1393 = vmatpush1.bf16.msra.mxu0 %v1377
      %1394 = vmatprep.subr.bf16.mxu0 0
      %1395 = vmatpush1.bf16.msra.mxu0 %v1376
      %1396 = vmatprep.subr.bf16.mxu0 0
      %1397 = vmatpush1.bf16.msra.mxu0 %v1375
      %1398 = vmatprep.subr.bf16.mxu0 0
      %1399 = vmatpush1.bf16.msra.mxu0 %v1374
      %1400 = vmatprep.subr.bf16.mxu0 0
      %1401 = vmatpush1.bf16.msra.mxu0 %v1373
      %1402 = vmatprep.subr.bf16.mxu0 0
      %1403 = vmatpush1.bf16.msra.mxu0 %v1372
      %1404 = vmatprep.subr.bf16.mxu0 0
      %1405 = vmatpush2.bf16.msra.mxu0 0
      %1406 = vmatprep.subr.bf16.mxu0 0
      %1407 = vmatpush2.bf16.msra.mxu0 0
      %1408 = vmatprep.subr.bf16.mxu0 0
      %1409 = vmatpush2.bf16.msra.mxu0 0
      %1410 = vmatprep.subr.bf16.mxu0 0
      %1411 = vmatpush2.bf16.msra.mxu0 0
      %1412 = vmatprep.subr.bf16.mxu0 0
      %1413 = vmatpush2.bf16.msra.mxu0 0
      %1414 = vmatprep.subr.bf16.mxu0 0
      %1415 = vmatpush2.bf16.msra.mxu0 0
      %1416 = vmatprep.subr.bf16.mxu0 0
      %1417 = vmatpush2.bf16.msra.mxu0 0
      %1418 = vmatprep.subr.bf16.mxu0 0
      %1419 = vmatpush2.bf16.msra.mxu0 0
      %1420 = vmatprep.mubr.bf16.mxu0 0
      %1421 = vmatmul.mubr.bf16.gmra.mxu0 %v1332
      %v1422 = vpop.f32.mrf.mxu0
      %v1423 = vadd.f32 0.0, %v1422
      %v1424 = vpop.f32.mrf.mxu0
      %v1425 = vpop.f32.mrf.mxu0
      %v1426 = vadd.f32 0.0, %v1425
      %v1427 = vpop.f32.mrf.mxu0
      %1428 = vmatprep.mubr.bf16.mxu0 0
      %1429 = vmatmul.mubr.bf16.gmra.mxu0 %v1333
      %v1430 = vpop.f32.mrf.mxu0
      %v1431 = vadd.f32 0.0, %v1430
      %v1432 = vpop.f32.mrf.mxu0
      %v1433 = vpop.f32.mrf.mxu0
      %v1434 = vadd.f32 0.0, %v1433
      %v1435 = vpop.f32.mrf.mxu0
      %1436 = vmatprep.mubr.bf16.mxu0 0
      %1437 = vmatmul.mubr.bf16.gmra.mxu0 %v1334
      %v1438 = vpop.f32.mrf.mxu0
      %v1439 = vadd.f32 0.0, %v1438
      %v1440 = vpop.f32.mrf.mxu0
      %v1441 = vpop.f32.mrf.mxu0
      %v1442 = vadd.f32 0.0, %v1441
      %v1443 = vpop.f32.mrf.mxu0
      %1444 = vmatprep.mubr.bf16.mxu0 0
      %1445 = vmatmul.mubr.bf16.gmra.mxu0 %v1335
      %v1446 = vpop.f32.mrf.mxu0
      %v1447 = vadd.f32 0.0, %v1446
      %v1448 = vpop.f32.mrf.mxu0
      %v1449 = vpop.f32.mrf.mxu0
      %v1450 = vadd.f32 0.0, %v1449
      %v1451 = vpop.f32.mrf.mxu0
      %1452 = vdwg.mxu0
      %v1453 = vadd.f32 %v1305, %v1423
      %v1454 = vadd.f32 %v1306, %v1426
      %v1455 = vadd.f32 %v1307, %v1431
      %v1456 = vadd.f32 %v1308, %v1434
      %v1457 = vadd.f32 %v1309, %v1439
      %v1458 = vadd.f32 %v1310, %v1442
      %v1459 = vadd.f32 %v1311, %v1447
      %v1460 = vadd.f32 %v1312, %v1450
      %s1461 = scalar_lea.vmem %s3, 384
      %v1462 = vld [vmem:[%s1461] sm:$0xf]
      %v1463 = vld [vmem:[%s1461 + $0x4] sm:$0xf]
      %v1464 = vld [vmem:[%s1461 + $0x8] sm:$0xf]
      %v1465 = vld [vmem:[%s1461 + $0xc] sm:$0xf]
      %v1466 = vld [vmem:[%s1461 + $0x10] sm:$0xf]
      %v1467 = vld [vmem:[%s1461 + $0x14] sm:$0xf]
      %v1468 = vld [vmem:[%s1461 + $0x18] sm:$0xf]
      %v1469 = vld [vmem:[%s1461 + $0x1c] sm:$0xf]
      %v1470 = vld [vmem:[%s1461 + $0x20] sm:$0xf]
      %v1471 = vld [vmem:[%s1461 + $0x24] sm:$0xf]
      %v1472 = vld [vmem:[%s1461 + $0x28] sm:$0xf]
      %v1473 = vld [vmem:[%s1461 + $0x2c] sm:$0xf]
      %v1474 = vld [vmem:[%s1461 + $0x30] sm:$0xf]
      %v1475 = vld [vmem:[%s1461 + $0x34] sm:$0xf]
      %v1476 = vld [vmem:[%s1461 + $0x38] sm:$0xf]
      %v1477 = vld [vmem:[%s1461 + $0x3c] sm:$0xf]
      %v1479 = vunpack.c.l.b16 %v521
      %v1480 = vpack.c.b16 %v1479, %v1037
      %v1498 = vunpack.c.l.b16 %v1462
      %v1499 = vunpack.c.l.b16 %v1463
      %v1500 = vunpack.c.l.b16 %v1464
      %v1501 = vunpack.c.l.b16 %v1465
      %v1502 = vunpack.c.l.b16 %v1466
      %v1503 = vunpack.c.l.b16 %v1467
      %v1504 = vunpack.c.l.b16 %v1468
      %v1505 = vunpack.c.l.b16 %v1469
      %v1506 = vunpack.c.l.b16 %v1470
      %v1507 = vunpack.c.l.b16 %v1471
      %v1508 = vunpack.c.l.b16 %v1472
      %v1509 = vunpack.c.l.b16 %v1473
      %v1510 = vunpack.c.l.b16 %v1474
      %v1511 = vunpack.c.l.b16 %v1475
      %v1512 = vunpack.c.l.b16 %v1476
      %v1513 = vunpack.c.l.b16 %v1477
      %v1514 = vpack.c.b16 %v1499, %v1498
      %v1515 = vpack.c.b16 %v1501, %v1500
      %v1516 = vpack.c.b16 %v1503, %v1502
      %v1517 = vpack.c.b16 %v1505, %v1504
      %v1518 = vpack.c.b16 %v1507, %v1506
      %v1519 = vpack.c.b16 %v1509, %v1508
      %v1520 = vpack.c.b16 %v1511, %v1510
      %v1521 = vpack.c.b16 %v1513, %v1512
      %1530 = vmatprep.subr.bf16.mxu0 0
      %1531 = vmatpush1.bf16.msra.mxu0 %v1521
      %1532 = vmatprep.subr.bf16.mxu0 0
      %1533 = vmatpush1.bf16.msra.mxu0 %v1520
      %1534 = vmatprep.subr.bf16.mxu0 0
      %1535 = vmatpush1.bf16.msra.mxu0 %v1519
      %1536 = vmatprep.subr.bf16.mxu0 0
      %1537 = vmatpush1.bf16.msra.mxu0 %v1518
      %1538 = vmatprep.subr.bf16.mxu0 0
      %1539 = vmatpush1.bf16.msra.mxu0 %v1517
      %1540 = vmatprep.subr.bf16.mxu0 0
      %1541 = vmatpush1.bf16.msra.mxu0 %v1516
      %1542 = vmatprep.subr.bf16.mxu0 0
      %1543 = vmatpush1.bf16.msra.mxu0 %v1515
      %1544 = vmatprep.subr.bf16.mxu0 0
      %1545 = vmatpush1.bf16.msra.mxu0 %v1514
      %1546 = vmatprep.subr.bf16.mxu0 0
      %1547 = vmatpush2.bf16.msra.mxu0 0
      %1548 = vmatprep.subr.bf16.mxu0 0
      %1549 = vmatpush2.bf16.msra.mxu0 0
      %1550 = vmatprep.subr.bf16.mxu0 0
      %1551 = vmatpush2.bf16.msra.mxu0 0
      %1552 = vmatprep.subr.bf16.mxu0 0
      %1553 = vmatpush2.bf16.msra.mxu0 0
      %1554 = vmatprep.subr.bf16.mxu0 0
      %1555 = vmatpush2.bf16.msra.mxu0 0
      %1556 = vmatprep.subr.bf16.mxu0 0
      %1557 = vmatpush2.bf16.msra.mxu0 0
      %1558 = vmatprep.subr.bf16.mxu0 0
      %1559 = vmatpush2.bf16.msra.mxu0 0
      %1560 = vmatprep.subr.bf16.mxu0 0
      %1561 = vmatpush2.bf16.msra.mxu0 0
      %1562 = vmatprep.mubr.bf16.mxu0 0
      %1563 = vmatmul.mubr.bf16.gmra.mxu0 %v737
      %v1564 = vpop.f32.mrf.mxu0
      %v1565 = vadd.f32 0.0, %v1564
      %v1566 = vpop.f32.mrf.mxu0
      %v1567 = vpop.f32.mrf.mxu0
      %v1568 = vadd.f32 0.0, %v1567
      %v1569 = vpop.f32.mrf.mxu0
      %1570 = vmatprep.mubr.bf16.mxu0 0
      %1571 = vmatmul.mubr.bf16.gmra.mxu0 %v738
      %v1572 = vpop.f32.mrf.mxu0
      %v1573 = vadd.f32 0.0, %v1572
      %v1574 = vpop.f32.mrf.mxu0
      %v1575 = vpop.f32.mrf.mxu0
      %v1576 = vadd.f32 0.0, %v1575
      %v1577 = vpop.f32.mrf.mxu0
      %1578 = vmatprep.mubr.bf16.mxu0 0
      %1579 = vmatmul.mubr.bf16.gmra.mxu0 %v739
      %v1580 = vpop.f32.mrf.mxu0
      %v1581 = vadd.f32 0.0, %v1580
      %v1582 = vpop.f32.mrf.mxu0
      %v1583 = vpop.f32.mrf.mxu0
      %v1584 = vadd.f32 0.0, %v1583
      %v1585 = vpop.f32.mrf.mxu0
      %1586 = vmatprep.mubr.bf16.mxu0 0
      %1587 = vmatmul.mubr.bf16.gmra.mxu0 %v1480
      %v1588 = vpop.f32.mrf.mxu0
      %v1589 = vadd.f32 0.0, %v1588
      %v1590 = vpop.f32.mrf.mxu0
      %v1591 = vpop.f32.mrf.mxu0
      %v1592 = vadd.f32 0.0, %v1591
      %v1593 = vpop.f32.mrf.mxu0
      %1594 = vdwg.mxu0
      %v1595 = vadd.f32 %v1453, %v1565
      %v1596 = vadd.f32 %v1454, %v1568
      %v1597 = vadd.f32 %v1455, %v1573
      %v1598 = vadd.f32 %v1456, %v1576
      %v1599 = vadd.f32 %v1457, %v1581
      %v1600 = vadd.f32 %v1458, %v1584
      %v1601 = vadd.f32 %v1459, %v1589
      %v1602 = vadd.f32 %v1460, %v1592
      %s1603 = scalar_lea.vmem %s3, 448
      %v1604 = vld [vmem:[%s1603] sm:$0xf]
      %v1605 = vld [vmem:[%s1603 + $0x4] sm:$0xf]
      %v1606 = vld [vmem:[%s1603 + $0x8] sm:$0xf]
      %v1607 = vld [vmem:[%s1603 + $0xc] sm:$0xf]
      %v1608 = vld [vmem:[%s1603 + $0x10] sm:$0xf]
      %v1609 = vld [vmem:[%s1603 + $0x14] sm:$0xf]
      %v1610 = vld [vmem:[%s1603 + $0x18] sm:$0xf]
      %v1611 = vld [vmem:[%s1603 + $0x1c] sm:$0xf]
      %v1612 = vld [vmem:[%s1603 + $0x20] sm:$0xf]
      %v1613 = vld [vmem:[%s1603 + $0x24] sm:$0xf]
      %v1614 = vld [vmem:[%s1603 + $0x28] sm:$0xf]
      %v1615 = vld [vmem:[%s1603 + $0x2c] sm:$0xf]
      %v1616 = vld [vmem:[%s1603 + $0x30] sm:$0xf]
      %v1617 = vld [vmem:[%s1603 + $0x34] sm:$0xf]
      %v1618 = vld [vmem:[%s1603 + $0x38] sm:$0xf]
      %v1619 = vld [vmem:[%s1603 + $0x3c] sm:$0xf]
      %v1620 = vpack.c.b16 %v418, %v417
      %v1638 = vunpack.c.l.b16 %v1604
      %v1639 = vunpack.c.l.b16 %v1605
      %v1640 = vunpack.c.l.b16 %v1606
      %v1641 = vunpack.c.l.b16 %v1607
      %v1642 = vunpack.c.l.b16 %v1608
      %v1643 = vunpack.c.l.b16 %v1609
      %v1644 = vunpack.c.l.b16 %v1610
      %v1645 = vunpack.c.l.b16 %v1611
      %v1646 = vunpack.c.l.b16 %v1612
      %v1647 = vunpack.c.l.b16 %v1613
      %v1648 = vunpack.c.l.b16 %v1614
      %v1649 = vunpack.c.l.b16 %v1615
      %v1650 = vunpack.c.l.b16 %v1616
      %v1651 = vunpack.c.l.b16 %v1617
      %v1652 = vunpack.c.l.b16 %v1618
      %v1653 = vunpack.c.l.b16 %v1619
      %v1654 = vpack.c.b16 %v1639, %v1638
      %v1655 = vpack.c.b16 %v1641, %v1640
      %v1656 = vpack.c.b16 %v1643, %v1642
      %v1657 = vpack.c.b16 %v1645, %v1644
      %v1658 = vpack.c.b16 %v1647, %v1646
      %v1659 = vpack.c.b16 %v1649, %v1648
      %v1660 = vpack.c.b16 %v1651, %v1650
      %v1661 = vpack.c.b16 %v1653, %v1652
      %1670 = vmatprep.subr.bf16.mxu0 0
      %1671 = vmatpush1.bf16.msra.mxu0 %v1661
      %1672 = vmatprep.subr.bf16.mxu0 0
      %1673 = vmatpush1.bf16.msra.mxu0 %v1660
      %1674 = vmatprep.subr.bf16.mxu0 0
      %1675 = vmatpush1.bf16.msra.mxu0 %v1659
      %1676 = vmatprep.subr.bf16.mxu0 0
      %1677 = vmatpush1.bf16.msra.mxu0 %v1658
      %1678 = vmatprep.subr.bf16.mxu0 0
      %1679 = vmatpush1.bf16.msra.mxu0 %v1657
      %1680 = vmatprep.subr.bf16.mxu0 0
      %1681 = vmatpush1.bf16.msra.mxu0 %v1656
      %1682 = vmatprep.subr.bf16.mxu0 0
      %1683 = vmatpush1.bf16.msra.mxu0 %v1655
      %1684 = vmatprep.subr.bf16.mxu0 0
      %1685 = vmatpush1.bf16.msra.mxu0 %v1654
      %1686 = vmatprep.subr.bf16.mxu0 0
      %1687 = vmatpush2.bf16.msra.mxu0 0
      %1688 = vmatprep.subr.bf16.mxu0 0
      %1689 = vmatpush2.bf16.msra.mxu0 0
      %1690 = vmatprep.subr.bf16.mxu0 0
      %1691 = vmatpush2.bf16.msra.mxu0 0
      %1692 = vmatprep.subr.bf16.mxu0 0
      %1693 = vmatpush2.bf16.msra.mxu0 0
      %1694 = vmatprep.subr.bf16.mxu0 0
      %1695 = vmatpush2.bf16.msra.mxu0 0
      %1696 = vmatprep.subr.bf16.mxu0 0
      %1697 = vmatpush2.bf16.msra.mxu0 0
      %1698 = vmatprep.subr.bf16.mxu0 0
      %1699 = vmatpush2.bf16.msra.mxu0 0
      %1700 = vmatprep.subr.bf16.mxu0 0
      %1701 = vmatpush2.bf16.msra.mxu0 0
      %1702 = vmatprep.mubr.bf16.mxu0 0
      %1703 = vmatmul.mubr.bf16.gmra.mxu0 %v600
      %v1704 = vpop.f32.mrf.mxu0
      %v1705 = vadd.f32 0.0, %v1704
      %v1706 = vpop.f32.mrf.mxu0
      %v1707 = vpop.f32.mrf.mxu0
      %v1708 = vadd.f32 0.0, %v1707
      %v1709 = vpop.f32.mrf.mxu0
      %1710 = vmatprep.mubr.bf16.mxu0 0
      %1711 = vmatmul.mubr.bf16.gmra.mxu0 %v601
      %v1712 = vpop.f32.mrf.mxu0
      %v1713 = vadd.f32 0.0, %v1712
      %v1714 = vpop.f32.mrf.mxu0
      %v1715 = vpop.f32.mrf.mxu0
      %v1716 = vadd.f32 0.0, %v1715
      %v1717 = vpop.f32.mrf.mxu0
      %1718 = vmatprep.mubr.bf16.mxu0 0
      %1719 = vmatmul.mubr.bf16.gmra.mxu0 %v602
      %v1720 = vpop.f32.mrf.mxu0
      %v1721 = vadd.f32 0.0, %v1720
      %v1722 = vpop.f32.mrf.mxu0
      %v1723 = vpop.f32.mrf.mxu0
      %v1724 = vadd.f32 0.0, %v1723
      %v1725 = vpop.f32.mrf.mxu0
      %1726 = vmatprep.mubr.bf16.mxu0 0
      %1727 = vmatmul.mubr.bf16.gmra.mxu0 %v1620
      %v1728 = vpop.f32.mrf.mxu0
      %v1729 = vadd.f32 0.0, %v1728
      %v1730 = vpop.f32.mrf.mxu0
      %v1731 = vpop.f32.mrf.mxu0
      %v1732 = vadd.f32 0.0, %v1731
      %v1733 = vpop.f32.mrf.mxu0
      %1734 = vdwg.mxu0
      %v1735 = vadd.f32 %v1595, %v1705
      %v1736 = vadd.f32 %v1596, %v1708
      %v1737 = vadd.f32 %v1597, %v1713
      %v1738 = vadd.f32 %v1598, %v1716
      %v1739 = vadd.f32 %v1599, %v1721
      %v1740 = vadd.f32 %v1600, %v1724
      %v1741 = vadd.f32 %v1601, %v1729
      %v1742 = vadd.f32 %v1602, %v1732
      %s1743 = scalar_lea.vmem %s3, 512
      %v1744 = vld [vmem:[%s1743] sm:$0xf]
      %v1745 = vld [vmem:[%s1743 + $0x4] sm:$0xf]
      %v1746 = vld [vmem:[%s1743 + $0x8] sm:$0xf]
      %v1747 = vld [vmem:[%s1743 + $0xc] sm:$0xf]
      %v1748 = vld [vmem:[%s1743 + $0x10] sm:$0xf]
      %v1749 = vld [vmem:[%s1743 + $0x14] sm:$0xf]
      %v1750 = vld [vmem:[%s1743 + $0x18] sm:$0xf]
      %v1751 = vld [vmem:[%s1743 + $0x1c] sm:$0xf]
      %v1752 = vld [vmem:[%s1743 + $0x20] sm:$0xf]
      %v1753 = vld [vmem:[%s1743 + $0x24] sm:$0xf]
      %v1754 = vld [vmem:[%s1743 + $0x28] sm:$0xf]
      %v1755 = vld [vmem:[%s1743 + $0x2c] sm:$0xf]
      %v1756 = vld [vmem:[%s1743 + $0x30] sm:$0xf]
      %v1757 = vld [vmem:[%s1743 + $0x34] sm:$0xf]
      %v1758 = vld [vmem:[%s1743 + $0x38] sm:$0xf]
      %v1759 = vld [vmem:[%s1743 + $0x3c] sm:$0xf]
      %v1761 = vunpack.c.l.b16 %v564
      %v1762 = vpack.c.b16 %v1761, %v1331
      %v1780 = vunpack.c.l.b16 %v1744
      %v1781 = vunpack.c.l.b16 %v1745
      %v1782 = vunpack.c.l.b16 %v1746
      %v1783 = vunpack.c.l.b16 %v1747
      %v1784 = vunpack.c.l.b16 %v1748
      %v1785 = vunpack.c.l.b16 %v1749
      %v1786 = vunpack.c.l.b16 %v1750
      %v1787 = vunpack.c.l.b16 %v1751
      %v1788 = vunpack.c.l.b16 %v1752
      %v1789 = vunpack.c.l.b16 %v1753
      %v1790 = vunpack.c.l.b16 %v1754
      %v1791 = vunpack.c.l.b16 %v1755
      %v1792 = vunpack.c.l.b16 %v1756
      %v1793 = vunpack.c.l.b16 %v1757
      %v1794 = vunpack.c.l.b16 %v1758
      %v1795 = vunpack.c.l.b16 %v1759
      %v1796 = vpack.c.b16 %v1781, %v1780
      %v1797 = vpack.c.b16 %v1783, %v1782
      %v1798 = vpack.c.b16 %v1785, %v1784
      %v1799 = vpack.c.b16 %v1787, %v1786
      %v1800 = vpack.c.b16 %v1789, %v1788
      %v1801 = vpack.c.b16 %v1791, %v1790
      %v1802 = vpack.c.b16 %v1793, %v1792
      %v1803 = vpack.c.b16 %v1795, %v1794
      %1812 = vmatprep.subr.bf16.mxu0 0
      %1813 = vmatpush1.bf16.msra.mxu0 %v1803
      %1814 = vmatprep.subr.bf16.mxu0 0
      %1815 = vmatpush1.bf16.msra.mxu0 %v1802
      %1816 = vmatprep.subr.bf16.mxu0 0
      %1817 = vmatpush1.bf16.msra.mxu0 %v1801
      %1818 = vmatprep.subr.bf16.mxu0 0
      %1819 = vmatpush1.bf16.msra.mxu0 %v1800
      %1820 = vmatprep.subr.bf16.mxu0 0
      %1821 = vmatpush1.bf16.msra.mxu0 %v1799
      %1822 = vmatprep.subr.bf16.mxu0 0
      %1823 = vmatpush1.bf16.msra.mxu0 %v1798
      %1824 = vmatprep.subr.bf16.mxu0 0
      %1825 = vmatpush1.bf16.msra.mxu0 %v1797
      %1826 = vmatprep.subr.bf16.mxu0 0
      %1827 = vmatpush1.bf16.msra.mxu0 %v1796
      %1828 = vmatprep.subr.bf16.mxu0 0
      %1829 = vmatpush2.bf16.msra.mxu0 0
      %1830 = vmatprep.subr.bf16.mxu0 0
      %1831 = vmatpush2.bf16.msra.mxu0 0
      %1832 = vmatprep.subr.bf16.mxu0 0
      %1833 = vmatpush2.bf16.msra.mxu0 0
      %1834 = vmatprep.subr.bf16.mxu0 0
      %1835 = vmatpush2.bf16.msra.mxu0 0
      %1836 = vmatprep.subr.bf16.mxu0 0
      %1837 = vmatpush2.bf16.msra.mxu0 0
      %1838 = vmatprep.subr.bf16.mxu0 0
      %1839 = vmatpush2.bf16.msra.mxu0 0
      %1840 = vmatprep.subr.bf16.mxu0 0
      %1841 = vmatpush2.bf16.msra.mxu0 0
      %1842 = vmatprep.subr.bf16.mxu0 0
      %1843 = vmatpush2.bf16.msra.mxu0 0
      %1844 = vmatprep.mubr.bf16.mxu0 0
      %1845 = vmatmul.mubr.bf16.gmra.mxu0 %v891
      %v1846 = vpop.f32.mrf.mxu0
      %v1847 = vadd.f32 0.0, %v1846
      %v1848 = vpop.f32.mrf.mxu0
      %v1849 = vpop.f32.mrf.mxu0
      %v1850 = vadd.f32 0.0, %v1849
      %v1851 = vpop.f32.mrf.mxu0
      %1852 = vmatprep.mubr.bf16.mxu0 0
      %1853 = vmatmul.mubr.bf16.gmra.mxu0 %v892
      %v1854 = vpop.f32.mrf.mxu0
      %v1855 = vadd.f32 0.0, %v1854
      %v1856 = vpop.f32.mrf.mxu0
      %v1857 = vpop.f32.mrf.mxu0
      %v1858 = vadd.f32 0.0, %v1857
      %v1859 = vpop.f32.mrf.mxu0
      %1860 = vmatprep.mubr.bf16.mxu0 0
      %1861 = vmatmul.mubr.bf16.gmra.mxu0 %v893
      %v1862 = vpop.f32.mrf.mxu0
      %v1863 = vadd.f32 0.0, %v1862
      %v1864 = vpop.f32.mrf.mxu0
      %v1865 = vpop.f32.mrf.mxu0
      %v1866 = vadd.f32 0.0, %v1865
      %v1867 = vpop.f32.mrf.mxu0
      %1868 = vmatprep.mubr.bf16.mxu0 0
      %1869 = vmatmul.mubr.bf16.gmra.mxu0 %v1762
      %v1870 = vpop.f32.mrf.mxu0
      %v1871 = vadd.f32 0.0, %v1870
      %v1872 = vpop.f32.mrf.mxu0
      %v1873 = vpop.f32.mrf.mxu0
      %v1874 = vadd.f32 0.0, %v1873
      %v1875 = vpop.f32.mrf.mxu0
      %1876 = vdwg.mxu0
      %v1877 = vadd.f32 %v1735, %v1847
      %v1878 = vadd.f32 %v1736, %v1850
      %v1879 = vadd.f32 %v1737, %v1855
      %v1880 = vadd.f32 %v1738, %v1858
      %v1881 = vadd.f32 %v1739, %v1863
      %v1882 = vadd.f32 %v1740, %v1866
      %v1883 = vadd.f32 %v1741, %v1871
      %v1884 = vadd.f32 %v1742, %v1874
      %v1886 = vlaneseq
      %v1887 = vshrl.u32 %v1886, 7
      %v1888 = vsub.s32 0, %v1887
      %v1889 = vrot.slane %v565, %v1888
      %v1891 = vadd.f32 %v1877, %v1889
      %v1892 = vadd.f32 %v1878, %v1889
      %v1893 = vadd.f32 %v1879, %v1889
      %v1894 = vadd.f32 %v1880, %v1889
      %v1895 = vadd.f32 %v1881, %v1889
      %v1896 = vadd.f32 %v1882, %v1889
      %v1897 = vadd.f32 %v1883, %v1889
      %v1898 = vadd.f32 %v1884, %v1889
      %v1899 = vmax.f32 %v1891, 0.0
      %v1900 = vmax.f32 %v1892, 0.0
      %v1901 = vmax.f32 %v1893, 0.0
      %v1902 = vmax.f32 %v1894, 0.0
      %v1903 = vmax.f32 %v1895, 0.0
      %v1904 = vmax.f32 %v1896, 0.0
      %v1905 = vmax.f32 %v1897, 0.0
      %v1906 = vmax.f32 %v1898, 0.0
      %v1907 = vpack.c.bf16 %v1900, %v1899
      %v1908 = vpack.c.bf16 %v1902, %v1901
      %v1909 = vpack.c.bf16 %v1904, %v1903
      %v1910 = vpack.c.bf16 %v1906, %v1905
      %v1915 = vunpack.c.l.b16 %v1907
      %v1916 = vunpack.c.h.b16 %v1907
      %v1917 = vunpack.c.l.b16 %v1908
      %v1918 = vunpack.c.h.b16 %v1908
      %v1919 = vunpack.c.l.b16 %v1909
      %v1920 = vunpack.c.h.b16 %v1909
      %v1921 = vunpack.c.l.b16 %v1910
      %v1922 = vunpack.c.h.b16 %v1910
      %v1923 = vpack.c.b16 %v1915, %v1915
      %v1924 = vpack.c.b16 %v1916, %v1916
      %v1925 = vpack.c.b16 %v1917, %v1917
      %v1926 = vpack.c.b16 %v1918, %v1918
      %v1927 = vpack.c.b16 %v1919, %v1919
      %v1928 = vpack.c.b16 %v1920, %v1920
      %v1929 = vpack.c.b16 %v1921, %v1921
      %v1930 = vpack.c.b16 %v1922, %v1922
      %1939 = vst [vmem:[%s380] sm:$0xf] %v1923
      %1940 = vst [vmem:[%s380 + $0x4] sm:$0xf] %v1924
      %1941 = vst [vmem:[%s380 + $0x8] sm:$0xf] %v1925
      %1942 = vst [vmem:[%s380 + $0xc] sm:$0xf] %v1926
      %1943 = vst [vmem:[%s380 + $0x10] sm:$0xf] %v1927
      %1944 = vst [vmem:[%s380 + $0x14] sm:$0xf] %v1928
      %1945 = vst [vmem:[%s380 + $0x18] sm:$0xf] %v1929
      %1946 = vst [vmem:[%s380 + $0x1c] sm:$0xf] %v1930
      %s1947 = smul.u32 8, %s21
      %p1948 = scmp.lt.s32.totalorder %s20, 1
      %s1949 = scalar_select %p1948, %s20, 1
      %p1950 = scmp.lt.s32.totalorder %s1947, 7
      %s1951 = scalar_select %p1950, %s1947, 7
      %s1952 = smul.addr %s1949, 8
      %s1953 = sadd.s32 %s1951, %s1952
      %s1954 = smul.addr %s1953, 4
      %s1955 = scalar_lea.vmem %s5, %s1954
      // Predicated region
      $region41: #{vggnet_forward.7} parent=39 // pred_check
        %p1956 = pneg %p190
      $region42: #{vggnet_forward.7} parent=39 // pred_check_branch
        %1958 = sbr.rel (%p1956) target = $region44
      $region43: #{vggnet_forward.7} parent=39 // pred_region
        %s1959 = smul.u32 8, %s21
      $region44: #{vggnet_forward.7} parent=39 // pred_fallthru
        _
    $region40: #{vggnet_forward.7} parent=5 // pred_fallthru
      _
    %p1960 = scmp.le.s32.totalorder 2, %s11
    // Predicated region
    $region45: #{vggnet_forward.7} parent=5 // pred_check
      %p1961 = pneg %p1960
    $region46: #{vggnet_forward.7} parent=5 // pred_check_branch
      %1963 = sbr.rel (%p1961) target = $region48
    $region47: #{vggnet_forward.7} parent=5 // pred_region
      %s1964 = ssub.s32 %s11, 2
      // Predicated region
      $region49: #{vggnet_forward.7} parent=47 // pred_check
        %p1965 = pneg %p196
      $region50: #{vggnet_forward.7} parent=47 // pred_check_branch
        %1967 = sbr.rel (%p1965) target = $region52
      $region51: #{vggnet_forward.7} parent=47 // pred_region
        %s1968 = smul.u32 8, %s23
        %p1969 = scmp.lt.s32.totalorder %s22, 1
        %s1970 = scalar_select %p1969, %s22, 1
        %p1971 = scmp.lt.s32.totalorder %s1968, 7
        %s1972 = scalar_select %p1971, %s1968, 7
        %s1973 = smul.addr %s1970, 8
        %s1974 = sadd.s32 %s1972, %s1973
        %s1975 = smul.addr %s1974, 4
        %s1976 = scalar_lea.vmem %s5, %s1975
      $region52: #{vggnet_forward.7} parent=47 // pred_fallthru
        _
    $region48: #{vggnet_forward.7} parent=5 // pred_fallthru
      _
  $region6: #{vggnet_forward.7} parent=0 // loop_footer
    %s15 = sadd.s32 1, %s11
  $region7: #{vggnet_forward.7} parent=0 // loop_footer_branch
    %10 = sbr.rel target = $region3
  $region8: #{vggnet_forward.7} parent=0 // loop_exit
    _

</llo_original>
